<compile_context>
chip_gen: v5e
topology: v5e:2x2
jax: 0.10.0
libtpu: 0.0.40
codegen_flags: <defaults>
</compile_context>

<pallas_src>
import jax
import jax.numpy as jnp
from jax import lax
from jax.experimental import pallas as pl
from jax.experimental.pallas import tpu as pltpu


def _round_up(x, m):
    return (x + m - 1) // m * m


def _bn_affine(gamma, beta, mean, var, eps=1e-5):
    scale = gamma / jnp.sqrt(var + eps)
    shift = beta - mean * scale
    return scale, shift


# ----------------------------------------------------------------------------
# Fused forward pass: one pallas_call over the batch, restricted to the
# data-dependent window; padding-only rows handled by an XLA-side baseline.
# ----------------------------------------------------------------------------
def model_forward(text, p, pads):
    """text: (N, S) int32 -> logits (N, num_classes)."""
    N, S = text.shape
    E = p["emb"].shape[1]
    C1, _, K1 = p["w1"].shape          # 256, E, 7
    C2, _, K2 = p["w2"].shape          # 128, 256, 7
    C3, _, K3 = p["w3"].shape          # 64, 128, 5
    C4, _, K4 = p["w4"].shape          # 32, 64, 5
    NC, L4_fc = p["wfc"].shape
    pad1, pad2, pad3, pad4 = pads
    f32, bf16 = jnp.float32, jnp.bfloat16

    # ---------------- static geometry (Python ints) ----------------
    L1 = S + 2 * pad1 - K1 + 1                  # conv1, stride 1
    L2 = (L1 + 2 * pad2 - K2) // 2 + 1          # conv2, stride 2
    L3 = L2 + 2 * pad3 - K3 + 1                 # conv3, stride 1
    L4 = L3 + 2 * pad4 - K4 + 1                 # conv4, stride 1
    assert L4 == L4_fc, (L4, L4_fc)
    assert pad2 % 2 == 0

    # rows of each conv output whose receptive field touches a real token
    d1_lo, d1_hi = max(0, pad1 - (K1 - 1)), min(L1, pad1 + S)
    d2_lo = max(0, -(-(d1_lo + pad2 - (K2 - 1)) // 2))
    d2_hi = min(L2, (d1_hi - 1 + pad2) // 2 + 1)
    d3_lo, d3_hi = max(0, d2_lo + pad3 - (K3 - 1)), min(L3, d2_hi + pad3)
    d4_lo, d4_hi = max(0, d3_lo + pad4 - (K4 - 1)), min(L4, d3_hi + pad4)

    # kernel compute windows (cover the data windows; everything outside
    # [o4, o4+n4) of conv4 is input-independent -> handled by the baseline)
    o4 = (d4_lo // 8) * 8
    n4 = _round_up(d4_hi - o4, 8)               # conv4 rows computed (272)
    o3, n3 = o4 - pad4, n4 + K4 - 1             # conv3 rows computed (276)
    o2, n2 = o3 - pad3, n3 + K3 - 1             # conv2 rows computed (280)
    n1p = _round_up(n2 + K2 // 2, 8)            # conv1 rows per parity phase (288)
    r1_lo = 2 * o2 - pad2                       # lowest conv1 output row needed
    assert r1_lo >= 0 and r1_lo % 2 == 0
    win = 2 * n1p + K1 - 1                      # embedded-input rows the kernel sees

    # all receptive fields stay inside the materialized windows
    assert 0 <= o4 and o4 + n4 <= L4
    assert 0 <= o3 and o3 + n3 <= L3
    assert 0 <= o2 and o2 + n2 <= L2
    assert 2 * (o2 + n2 - 1) - pad2 + (K2 - 1) < L1     # conv2 never reads its zero-pad
    assert r1_lo + win <= S + 2 * pad1
    left_z = pad1 - r1_lo
    right_z = r1_lo + win - (pad1 + S)
    assert left_z >= 0 and right_z >= 0

    MR2, MR3 = 8, 8                              # top margins of the im2col buffers
    assert MR2 >= K3 - 1 and MR3 >= K4 - 1
    R2 = _round_up(n2 + MR2, 8)
    R3 = _round_up(n3 + MR3, 8)

    # ---------------- XLA-side prep: embedding, conv1 im2col, weights --------
    x = p["emb"][text].astype(f32)                                   # (N, S, E)
    xwin = jnp.pad(x, ((0, 0), (left_z, right_z), (0, 0)))           # (N, win, E)
    phases = []
    for ph in range(2):                                              # parity phases
        taps = [xwin[:, ph + k: ph + k + 2 * n1p - 1: 2, :] for k in range(K1)]
        phases.append(jnp.concatenate(taps, axis=-1))                # (N, n1p, K1*E)
    x_im = jnp.stack(phases, axis=1).astype(bf16)                    # (N, 2, n1p, K1*E)

    w1s = jnp.transpose(p["w1"], (2, 1, 0)).reshape(K1 * E, C1).astype(bf16)
    w2t = jnp.transpose(p["w2"], (2, 1, 0)).astype(bf16)             # (K2, C1, C2)
    w3s = jnp.transpose(p["w3"], (2, 1, 0)).reshape(K3 * C2, C3).astype(bf16)
    w4s = jnp.transpose(p["w4"], (2, 1, 0)).reshape(K4 * C3, C4).astype(bf16)
    wfc_win = jnp.transpose(p["wfc"]).astype(f32)[o4:o4 + n4]        # (n4, NC)

    s1a, h1a = _bn_affine(*p["bn1"])
    s2a, h2a = _bn_affine(*p["bn2"])
    s3a, h3a = _bn_affine(*p["bn3"])
    row = lambda v: v.reshape(1, -1).astype(f32)

    # ---------------- the fused kernel (one grid step per sample) ------------
    def kernel(x_ref, w1_ref, w2_ref, w3_ref, w4_ref,
               b1_ref, s1_ref, h1_ref,
               b2_ref, s2_ref, h2_ref,
               b3_ref, s3_ref, h3_ref,
               b4_ref, wfc_ref,
               out_ref,
               a1_ref, a2_ref, a3_ref):
        # conv1 (taps folded into the contraction): one MXU dot per parity phase
        for ph in range(2):
            acc = jnp.dot(x_ref[ph, pl.ds(0, n1p), :], w1_ref[...],
                          preferred_element_type=f32)                # (n1p, C1)
            y1 = jnp.maximum(acc + b1_ref[...], 0.0) * s1_ref[...] + h1_ref[...]
            a1_ref[ph, pl.ds(0, n1p), :] = y1

        # conv2 (stride 2): polyphase reads -> contiguous per-tap slices,
        # 7 dots with a value accumulator (K=256 already fills the MXU)
        acc = None
        for k in range(K2):
            lhs = a1_ref[k % 2, pl.ds(k // 2, n2), :].astype(bf16)
            d = jnp.dot(lhs, w2_ref[k], preferred_element_type=f32)
            acc = d if acc is None else acc + d
        y2 = jnp.maximum(acc + b2_ref[...], 0.0) * s2_ref[...] + h2_ref[...]
        # im2col-at-store: stage conv2 output at K3 shifted (row, lane) offsets
        for k in range(K3):
            a2_ref[pl.ds(MR2 - k, n2), pl.ds(k * C2, C2)] = y2

        # conv3: single wide-contraction dot (K = K3*C2 = 640)
        acc = jnp.dot(a2_ref[pl.ds(MR2, n3), :].astype(bf16), w3_ref[...],
                      preferred_element_type=f32)                    # (n3, C3)
        y3 = jnp.maximum(acc + b3_ref[...], 0.0) * s3_ref[...] + h3_ref[...]
        for k in range(K4):
            a3_ref[pl.ds(MR3 - k, n3), pl.ds(k * C3, C3)] = y3

        # conv4 (K = K4*C3 = 320) + ReLU + channel-max + FC window contribution
        acc = jnp.dot(a3_ref[pl.ds(MR3, n4), :].astype(bf16), w4_ref[...],
                      preferred_element_type=f32)                    # (n4, C4)
        y4 = jnp.maximum(acc + b4_ref[...], 0.0)
        m = jnp.max(y4, axis=1, keepdims=True)                       # (n4, 1)
        out_ref[...] = jnp.sum(m * wfc_ref[...], axis=0, keepdims=True)   # (1, NC)

    grid_spec = pltpu.PrefetchScalarGridSpec(
        num_scalar_prefetch=0,
        grid=(N,),
        in_specs=[
            pl.BlockSpec((None, 2, n1p, K1 * E), lambda n: (n, 0, 0, 0)),
            pl.BlockSpec((K1 * E, C1), lambda n: (0, 0)),
            pl.BlockSpec((K2, C1, C2), lambda n: (0, 0, 0)),
            pl.BlockSpec((K3 * C2, C3), lambda n: (0, 0)),
            pl.BlockSpec((K4 * C3, C4), lambda n: (0, 0)),
            pl.BlockSpec((1, C1), lambda n: (0, 0)),   # b1
            pl.BlockSpec((1, C1), lambda n: (0, 0)),   # bn1 scale
            pl.BlockSpec((1, C1), lambda n: (0, 0)),   # bn1 shift
            pl.BlockSpec((1, C2), lambda n: (0, 0)),   # b2
            pl.BlockSpec((1, C2), lambda n: (0, 0)),
            pl.BlockSpec((1, C2), lambda n: (0, 0)),
            pl.BlockSpec((1, C3), lambda n: (0, 0)),   # b3
            pl.BlockSpec((1, C3), lambda n: (0, 0)),
            pl.BlockSpec((1, C3), lambda n: (0, 0)),
            pl.BlockSpec((1, C4), lambda n: (0, 0)),   # b4
            pl.BlockSpec((n4, NC), lambda n: (0, 0)),  # fc weight window
        ],
        out_specs=pl.BlockSpec((None, 1, NC), lambda n: (n, 0, 0)),
        scratch_shapes=[
            pltpu.VMEM((2, n1p, C1), jnp.float32),     # conv1 out (phase-split)
            pltpu.VMEM((R2, K3 * C2), jnp.float32),    # conv3 LHS (im2col-at-store)
            pltpu.VMEM((R3, K4 * C3), jnp.float32),    # conv4 LHS (im2col-at-store)
        ],
    )

    win_out = pl.pallas_call(
        kernel,
        out_shape=jax.ShapeDtypeStruct((N, 1, NC), jnp.float32),
        grid_spec=grid_spec,
        compiler_params=pltpu.CompilerParams(
            dimension_semantics=("parallel",),
            vmem_limit_bytes=32 * 1024 * 1024),
    )(x_im, w1s, w2t, w3s, w4s,
      row(p["b1"]), row(s1a), row(h1a),
      row(p["b2"]), row(s2a), row(h2a),
      row(p["b3"]), row(s3a), row(h3a),
      row(p["b4"]), wfc_win)

    # --------- input-independent baseline (rows outside the kernel window) ---
    # Conv4 rows outside [o4, o4+n4) see padding only, so their channel-max /
    # FC contribution depends only on the weights: compute it once (batch-
    # independent) in f32.  Baseline conv1 output is a single uniform row c1;
    # baseline conv2 collapses to an active-tap-mask matmul; conv3/conv4
    # baselines are tiny 1-sample convs matching the reference path exactly.
    c1 = jnp.maximum(p["b1"].astype(f32), 0.0) * s1a + h1a            # (C1,)
    jj = jnp.arange(L2)[:, None]
    kk = jnp.arange(K2)[None, :]
    src = 2 * jj + kk - pad2
    msk = ((src >= 0) & (src < L1)).astype(f32)                       # (L2, K2)
    v2 = jnp.einsum("c,kcd->kd", c1,
                    jnp.transpose(p["w2"], (2, 1, 0)).astype(f32))    # (K2, C2)
    a2b = jnp.maximum(msk @ v2 + p["b2"], 0.0) * s2a + h2a            # (L2, C2)

    def conv_ncl(x_ncl, w, b, padv):
        y = lax.conv_general_dilated(x_ncl, w, (1,), [(padv, padv)],
                                     dimension_numbers=("NCH", "OIH", "NCH"),
                                     precision=lax.Precision.HIGHEST)
        return y + b[None, :, None]

    a3b = jnp.maximum(conv_ncl(a2b.T[None], p["w3"], p["b3"], pad3), 0.0)
    a3b = a3b * s3a[None, :, None] + h3a[None, :, None]               # (1, C3, L3)
    a4b = jnp.maximum(conv_ncl(a3b, p["w4"], p["b4"], pad4), 0.0)     # (1, C4, L4)
    m_base = jnp.max(a4b[0], axis=0)                                  # (L4,)
    ridx = jnp.arange(L4)
    base_mask = jnp.where((ridx >= o4) & (ridx < o4 + n4), 0.0, 1.0)
    const_logits = (m_base * base_mask) @ jnp.transpose(p["wfc"]).astype(f32)

    return (win_out.reshape(N, NC)
            + const_logits[None, :]
            + p["bfc"][None, :].astype(f32))


# ----------------------------------------------------------------------------
# Pure-JAX reference (torch NCL layout) for verification
# ----------------------------------------------------------------------------
def reference_forward(text, p, pads):
    x = p["emb"][text]
    x = jnp.transpose(x, (0, 2, 1))                 # (N, E, S)

    def conv(x, w, b, stride, pad):
        y = lax.conv_general_dilated(x, w, (stride,), [(pad, pad)],
                                     dimension_numbers=("NCH", "OIH", "NCH"),
                                     precision=lax.Precision.HIGHEST)
        return y + b[None, :, None]

    def bn(x, g, bt, m, v, eps=1e-5):
        inv = g / jnp.sqrt(v + eps)
        return (x - m[None, :, None]) * inv[None, :, None] + bt[None, :, None]

    x = bn(jax.nn.relu(conv(x, p["w1"], p["b1"], 1, pads[0])), *p["bn1"])
    x = bn(jax.nn.relu(conv(x, p["w2"], p["b2"], 2, pads[1])), *p["bn2"])
    x = bn(jax.nn.relu(conv(x, p["w3"], p["b3"], 1, pads[2])), *p["bn3"])
    x = jax.nn.relu(conv(x, p["w4"], p["b4"], 1, pads[3]))
    x = jnp.transpose(x, (0, 2, 1))                 # (N, L4, 32)
    x = jnp.max(x, axis=2)                          # (N, L4)
    return x @ p["wfc"].T + p["bfc"]


if __name__ == "__main__":
    # fc1 in_features=2303 pins seq_len: final length = (9*seq_len - 2)/2 -> seq_len=512
    vocab_size, seq_len, embedding_dim, num_classes, pad_idx = 100, 512, 32, 4, 0
    batch = 2

    pads = ((3 * seq_len - 1 + 7) // 2,  # conv1
            (seq_len - 2 + 7) // 2,      # conv2
            (seq_len - 1 + 5) // 2,      # conv3
            (seq_len - 1 + 5) // 2)      # conv4

    key = jax.random.PRNGKey(0)
    ks = jax.random.split(key, 16)

    def nrm(k, shape, s):
        return (jax.random.normal(k, shape, jnp.float32) * s)

    emb = nrm(ks[0], (vocab_size, embedding_dim), 0.1).at[pad_idx].set(0.0)
    p = {
        "emb": emb,
        "w1": nrm(ks[1], (256, embedding_dim, 7), 0.05), "b1": nrm(ks[2], (256,), 0.05),
        "w2": nrm(ks[3], (128, 256, 7), 0.05),           "b2": nrm(ks[4], (128,), 0.05),
        "w3": nrm(ks[5], (64, 128, 5), 0.05),            "b3": nrm(ks[6], (64,), 0.05),
        "w4": nrm(ks[7], (32, 64, 5), 0.05),             "b4": nrm(ks[8], (32,), 0.05),
        "bn1": (1.0 + nrm(ks[9], (256,), 0.1), nrm(ks[10], (256,), 0.1),
                nrm(ks[11], (256,), 0.05), 1.0 + jnp.abs(nrm(ks[11], (256,), 0.1))),
        "bn2": (1.0 + nrm(ks[12], (128,), 0.1), nrm(ks[13], (128,), 0.1),
                nrm(ks[14], (128,), 0.05), 1.0 + jnp.abs(nrm(ks[14], (128,), 0.1))),
        "bn3": (1.0 + nrm(ks[15], (64,), 0.1), nrm(ks[0], (64,), 0.1),
                nrm(ks[1], (64,), 0.05), 1.0 + jnp.abs(nrm(ks[2], (64,), 0.1))),
        "wfc": nrm(ks[3], (num_classes, 2303), 0.02),
        "bfc": nrm(ks[4], (num_classes,), 0.02),
    }

    text = jax.random.randint(jax.random.PRNGKey(1), (batch, seq_len), 0, vocab_size,
                              dtype=jnp.int32)

    out = jax.jit(lambda t: model_forward(t, p, pads))(text)
    out = jax.block_until_ready(out)
    assert out.shape == (batch, num_classes), out.shape

    ref = jax.block_until_ready(reference_forward(text, p, pads))
    # bf16 MXU operands (f32 accumulation) -> slightly looser atol than pure-f32.
    assert jnp.allclose(out, ref, atol=1e-2, rtol=5e-2), (out, ref)

    print("KERNEL_OK")
</pallas_src>

<mosaic_0001>
module attributes {stable_mosaic.version = 11 : i64} {
  func.func @kernel(%arg0: i32, %arg1: memref<1x2x288x224xbf16, #tpu.memory_space<vmem>>, %arg2: memref<224x256xbf16, #tpu.memory_space<vmem>>, %arg3: memref<7x256x128xbf16, #tpu.memory_space<vmem>>, %arg4: memref<640x64xbf16, #tpu.memory_space<vmem>>, %arg5: memref<320x32xbf16, #tpu.memory_space<vmem>>, %arg6: memref<1x256xf32, #tpu.memory_space<vmem>>, %arg7: memref<1x256xf32, #tpu.memory_space<vmem>>, %arg8: memref<1x256xf32, #tpu.memory_space<vmem>>, %arg9: memref<1x128xf32, #tpu.memory_space<vmem>>, %arg10: memref<1x128xf32, #tpu.memory_space<vmem>>, %arg11: memref<1x128xf32, #tpu.memory_space<vmem>>, %arg12: memref<1x64xf32, #tpu.memory_space<vmem>>, %arg13: memref<1x64xf32, #tpu.memory_space<vmem>>, %arg14: memref<1x64xf32, #tpu.memory_space<vmem>>, %arg15: memref<1x32xf32, #tpu.memory_space<vmem>>, %arg16: memref<272x4xf32, #tpu.memory_space<vmem>>, %arg17: memref<1x1x4xf32, #tpu.memory_space<vmem>>, %arg18: memref<2x288x256xf32, #tpu.memory_space<vmem>>, %arg19: memref<288x640xf32, #tpu.memory_space<vmem>>, %arg20: memref<288x320xf32, #tpu.memory_space<vmem>>) attributes {dimension_semantics = [#tpu.dimension_semantics<parallel>], iteration_bounds = array<i64: 2>, scalar_prefetch = 0 : i64, scratch_operands = 3 : i64, tpu.core_type = #tpu.core_type<tc>, window_params = [{transform_indices = @transform_0, window_bounds = array<i64: 1, 2, 288, 224>}, {pipeline_mode = #tpu.pipeline_mode<synchronous>, transform_indices = @transform_1, window_bounds = array<i64: 224, 256>}, {pipeline_mode = #tpu.pipeline_mode<synchronous>, transform_indices = @transform_2, window_bounds = array<i64: 7, 256, 128>}, {pipeline_mode = #tpu.pipeline_mode<synchronous>, transform_indices = @transform_3, window_bounds = array<i64: 640, 64>}, {pipeline_mode = #tpu.pipeline_mode<synchronous>, transform_indices = @transform_4, window_bounds = array<i64: 320, 32>}, {pipeline_mode = #tpu.pipeline_mode<synchronous>, transform_indices = @transform_5, window_bounds = array<i64: 1, 256>}, {pipeline_mode = #tpu.pipeline_mode<synchronous>, transform_indices = @transform_6, window_bounds = array<i64: 1, 256>}, {pipeline_mode = #tpu.pipeline_mode<synchronous>, transform_indices = @transform_7, window_bounds = array<i64: 1, 256>}, {pipeline_mode = #tpu.pipeline_mode<synchronous>, transform_indices = @transform_8, window_bounds = array<i64: 1, 128>}, {pipeline_mode = #tpu.pipeline_mode<synchronous>, transform_indices = @transform_9, window_bounds = array<i64: 1, 128>}, {pipeline_mode = #tpu.pipeline_mode<synchronous>, transform_indices = @transform_10, window_bounds = array<i64: 1, 128>}, {pipeline_mode = #tpu.pipeline_mode<synchronous>, transform_indices = @transform_11, window_bounds = array<i64: 1, 64>}, {pipeline_mode = #tpu.pipeline_mode<synchronous>, transform_indices = @transform_12, window_bounds = array<i64: 1, 64>}, {pipeline_mode = #tpu.pipeline_mode<synchronous>, transform_indices = @transform_13, window_bounds = array<i64: 1, 64>}, {pipeline_mode = #tpu.pipeline_mode<synchronous>, transform_indices = @transform_14, window_bounds = array<i64: 1, 32>}, {pipeline_mode = #tpu.pipeline_mode<synchronous>, transform_indices = @transform_15, window_bounds = array<i64: 272, 4>}, {transform_indices = @transform_16, window_bounds = array<i64: 1, 1, 4>}]} {
    %c0 = arith.constant 0 : index
    %c0_0 = arith.constant 0 : index
    %c0_1 = arith.constant 0 : index
    %c0_2 = arith.constant 0 : index
    %0 = vector.load %arg1[%c0, %c0_0, %c0_1, %c0_2] : memref<1x2x288x224xbf16, #tpu.memory_space<vmem>>, vector<1x1x288x224xbf16>
    %1 = vector.shape_cast %0 : vector<1x1x288x224xbf16> to vector<288x224xbf16>
    %c0_3 = arith.constant 0 : index
    %c0_4 = arith.constant 0 : index
    %2 = vector.load %arg2[%c0_3, %c0_4] : memref<224x256xbf16, #tpu.memory_space<vmem>>, vector<224x256xbf16>
    %cst = arith.constant dense<0.000000e+00> : vector<288x256xf32>
    %3 = tpu.matmul %1, %2, %cst {dimension_numbers = #tpu.dot_dimension_numbers<[1], [0], [0], [1], [0, 0, 1, 1], [], []>} : vector<288x224xbf16>, vector<224x256xbf16>, vector<288x256xf32> -> vector<288x256xf32>
    %c0_5 = arith.constant 0 : index
    %c0_6 = arith.constant 0 : index
    %4 = vector.load %arg6[%c0_5, %c0_6] : memref<1x256xf32, #tpu.memory_space<vmem>>, vector<1x256xf32>
    %5 = vector.broadcast %4 : vector<1x256xf32> to vector<288x256xf32>
    %6 = arith.addf %3, %5 : vector<288x256xf32>
    %cst_7 = arith.constant 0.000000e+00 : f32
    %7 = vector.broadcast %cst_7 : f32 to vector<288x256xf32>
    %8 = arith.maximumf %6, %7 : vector<288x256xf32>
    %c0_8 = arith.constant 0 : index
    %c0_9 = arith.constant 0 : index
    %9 = vector.load %arg7[%c0_8, %c0_9] : memref<1x256xf32, #tpu.memory_space<vmem>>, vector<1x256xf32>
    %10 = vector.broadcast %9 : vector<1x256xf32> to vector<288x256xf32>
    %11 = arith.mulf %8, %10 : vector<288x256xf32>
    %c0_10 = arith.constant 0 : index
    %c0_11 = arith.constant 0 : index
    %12 = vector.load %arg8[%c0_10, %c0_11] : memref<1x256xf32, #tpu.memory_space<vmem>>, vector<1x256xf32>
    %13 = vector.broadcast %12 : vector<1x256xf32> to vector<288x256xf32>
    %14 = arith.addf %11, %13 : vector<288x256xf32>
    %c0_12 = arith.constant 0 : index
    %c0_13 = arith.constant 0 : index
    %c0_14 = arith.constant 0 : index
    %15 = vector.load %arg18[%c0_12, %c0_13, %c0_14] : memref<2x288x256xf32, #tpu.memory_space<vmem>>, vector<1x288x256xf32>
    %16 = vector.shape_cast %15 : vector<1x288x256xf32> to vector<288x256xf32>
    %17 = vector.shape_cast %14 : vector<288x256xf32> to vector<1x288x256xf32>
    tpu.vector_store %arg18[%c0_12, %c0_13, %c0_14], %17 {strides = array<i32>} : memref<2x288x256xf32, #tpu.memory_space<vmem>>, vector<1x288x256xf32>,
    %c0_15 = arith.constant 0 : index
    %c1 = arith.constant 1 : index
    %c0_16 = arith.constant 0 : index
    %c0_17 = arith.constant 0 : index
    %18 = vector.load %arg1[%c0_15, %c1, %c0_16, %c0_17] : memref<1x2x288x224xbf16, #tpu.memory_space<vmem>>, vector<1x1x288x224xbf16>
    %19 = vector.shape_cast %18 : vector<1x1x288x224xbf16> to vector<288x224xbf16>
    %c0_18 = arith.constant 0 : index
    %c0_19 = arith.constant 0 : index
    %20 = vector.load %arg2[%c0_18, %c0_19] : memref<224x256xbf16, #tpu.memory_space<vmem>>, vector<224x256xbf16>
    %cst_20 = arith.constant dense<0.000000e+00> : vector<288x256xf32>
    %21 = tpu.matmul %19, %20, %cst_20 {dimension_numbers = #tpu.dot_dimension_numbers<[1], [0], [0], [1], [0, 0, 1, 1], [], []>} : vector<288x224xbf16>, vector<224x256xbf16>, vector<288x256xf32> -> vector<288x256xf32>
    %c0_21 = arith.constant 0 : index
    %c0_22 = arith.constant 0 : index
    %22 = vector.load %arg6[%c0_21, %c0_22] : memref<1x256xf32, #tpu.memory_space<vmem>>, vector<1x256xf32>
    %23 = vector.broadcast %22 : vector<1x256xf32> to vector<288x256xf32>
    %24 = arith.addf %21, %23 : vector<288x256xf32>
    %cst_23 = arith.constant 0.000000e+00 : f32
    %25 = vector.broadcast %cst_23 : f32 to vector<288x256xf32>
    %26 = arith.maximumf %24, %25 : vector<288x256xf32>
    %c0_24 = arith.constant 0 : index
    %c0_25 = arith.constant 0 : index
    %27 = vector.load %arg7[%c0_24, %c0_25] : memref<1x256xf32, #tpu.memory_space<vmem>>, vector<1x256xf32>
    %28 = vector.broadcast %27 : vector<1x256xf32> to vector<288x256xf32>
    %29 = arith.mulf %26, %28 : vector<288x256xf32>
    %c0_26 = arith.constant 0 : index
    %c0_27 = arith.constant 0 : index
    %30 = vector.load %arg8[%c0_26, %c0_27] : memref<1x256xf32, #tpu.memory_space<vmem>>, vector<1x256xf32>
    %31 = vector.broadcast %30 : vector<1x256xf32> to vector<288x256xf32>
    %32 = arith.addf %29, %31 : vector<288x256xf32>
    %c1_28 = arith.constant 1 : index
    %c0_29 = arith.constant 0 : index
    %c0_30 = arith.constant 0 : index
    %33 = vector.load %arg18[%c1_28, %c0_29, %c0_30] : memref<2x288x256xf32, #tpu.memory_space<vmem>>, vector<1x288x256xf32>
    %34 = vector.shape_cast %33 : vector<1x288x256xf32> to vector<288x256xf32>
    %35 = vector.shape_cast %32 : vector<288x256xf32> to vector<1x288x256xf32>
    tpu.vector_store %arg18[%c1_28, %c0_29, %c0_30], %35 {strides = array<i32>} : memref<2x288x256xf32, #tpu.memory_space<vmem>>, vector<1x288x256xf32>,
    %c0_31 = arith.constant 0 : index
    %c0_32 = arith.constant 0 : index
    %c0_33 = arith.constant 0 : index
    %36 = vector.load %arg18[%c0_31, %c0_32, %c0_33] : memref<2x288x256xf32, #tpu.memory_space<vmem>>, vector<1x280x256xf32>
    %37 = vector.shape_cast %36 : vector<1x280x256xf32> to vector<280x256xf32>
    %38 = arith.truncf %37 : vector<280x256xf32> to vector<280x256xbf16>
    %c0_34 = arith.constant 0 : index
    %c0_35 = arith.constant 0 : index
    %c0_36 = arith.constant 0 : index
    %39 = vector.load %arg3[%c0_34, %c0_35, %c0_36] : memref<7x256x128xbf16, #tpu.memory_space<vmem>>, vector<1x256x128xbf16>
    %40 = vector.shape_cast %39 : vector<1x256x128xbf16> to vector<256x128xbf16>
    %cst_37 = arith.constant dense<0.000000e+00> : vector<280x128xf32>
    %41 = tpu.matmul %38, %40, %cst_37 {dimension_numbers = #tpu.dot_dimension_numbers<[1], [0], [0], [1], [0, 0, 1, 1], [], []>} : vector<280x256xbf16>, vector<256x128xbf16>, vector<280x128xf32> -> vector<280x128xf32>
    %c1_38 = arith.constant 1 : index
    %c0_39 = arith.constant 0 : index
    %c0_40 = arith.constant 0 : index
    %42 = vector.load %arg18[%c1_38, %c0_39, %c0_40] : memref<2x288x256xf32, #tpu.memory_space<vmem>>, vector<1x280x256xf32>
    %43 = vector.shape_cast %42 : vector<1x280x256xf32> to vector<280x256xf32>
    %44 = arith.truncf %43 : vector<280x256xf32> to vector<280x256xbf16>
    %c1_41 = arith.constant 1 : index
    %c0_42 = arith.constant 0 : index
    %c0_43 = arith.constant 0 : index
    %45 = vector.load %arg3[%c1_41, %c0_42, %c0_43] : memref<7x256x128xbf16, #tpu.memory_space<vmem>>, vector<1x256x128xbf16>
    %46 = vector.shape_cast %45 : vector<1x256x128xbf16> to vector<256x128xbf16>
    %cst_44 = arith.constant dense<0.000000e+00> : vector<280x128xf32>
    %47 = tpu.matmul %44, %46, %cst_44 {dimension_numbers = #tpu.dot_dimension_numbers<[1], [0], [0], [1], [0, 0, 1, 1], [], []>} : vector<280x256xbf16>, vector<256x128xbf16>, vector<280x128xf32> -> vector<280x128xf32>
    %48 = arith.addf %41, %47 : vector<280x128xf32>
    %c0_45 = arith.constant 0 : index
    %c1_46 = arith.constant 1 : index
    %c0_47 = arith.constant 0 : index
    %49 = vector.load %arg18[%c0_45, %c1_46, %c0_47] : memref<2x288x256xf32, #tpu.memory_space<vmem>>, vector<1x280x256xf32>
    %50 = vector.shape_cast %49 : vector<1x280x256xf32> to vector<280x256xf32>
    %51 = arith.truncf %50 : vector<280x256xf32> to vector<280x256xbf16>
    %c2 = arith.constant 2 : index
    %c0_48 = arith.constant 0 : index
    %c0_49 = arith.constant 0 : index
    %52 = vector.load %arg3[%c2, %c0_48, %c0_49] : memref<7x256x128xbf16, #tpu.memory_space<vmem>>, vector<1x256x128xbf16>
    %53 = vector.shape_cast %52 : vector<1x256x128xbf16> to vector<256x128xbf16>
    %cst_50 = arith.constant dense<0.000000e+00> : vector<280x128xf32>
    %54 = tpu.matmul %51, %53, %cst_50 {dimension_numbers = #tpu.dot_dimension_numbers<[1], [0], [0], [1], [0, 0, 1, 1], [], []>} : vector<280x256xbf16>, vector<256x128xbf16>, vector<280x128xf32> -> vector<280x128xf32>
    %55 = arith.addf %48, %54 : vector<280x128xf32>
    %c1_51 = arith.constant 1 : index
    %c1_52 = arith.constant 1 : index
    %c0_53 = arith.constant 0 : index
    %56 = vector.load %arg18[%c1_51, %c1_52, %c0_53] : memref<2x288x256xf32, #tpu.memory_space<vmem>>, vector<1x280x256xf32>
    %57 = vector.shape_cast %56 : vector<1x280x256xf32> to vector<280x256xf32>
    %58 = arith.truncf %57 : vector<280x256xf32> to vector<280x256xbf16>
    %c3 = arith.constant 3 : index
    %c0_54 = arith.constant 0 : index
    %c0_55 = arith.constant 0 : index
    %59 = vector.load %arg3[%c3, %c0_54, %c0_55] : memref<7x256x128xbf16, #tpu.memory_space<vmem>>, vector<1x256x128xbf16>
    %60 = vector.shape_cast %59 : vector<1x256x128xbf16> to vector<256x128xbf16>
    %cst_56 = arith.constant dense<0.000000e+00> : vector<280x128xf32>
    %61 = tpu.matmul %58, %60, %cst_56 {dimension_numbers = #tpu.dot_dimension_numbers<[1], [0], [0], [1], [0, 0, 1, 1], [], []>} : vector<280x256xbf16>, vector<256x128xbf16>, vector<280x128xf32> -> vector<280x128xf32>
    %62 = arith.addf %55, %61 : vector<280x128xf32>
    %c0_57 = arith.constant 0 : index
    %c2_58 = arith.constant 2 : index
    %c0_59 = arith.constant 0 : index
    %63 = vector.load %arg18[%c0_57, %c2_58, %c0_59] : memref<2x288x256xf32, #tpu.memory_space<vmem>>, vector<1x280x256xf32>
    %64 = vector.shape_cast %63 : vector<1x280x256xf32> to vector<280x256xf32>
    %65 = arith.truncf %64 : vector<280x256xf32> to vector<280x256xbf16>
    %c4 = arith.constant 4 : index
    %c0_60 = arith.constant 0 : index
    %c0_61 = arith.constant 0 : index
    %66 = vector.load %arg3[%c4, %c0_60, %c0_61] : memref<7x256x128xbf16, #tpu.memory_space<vmem>>, vector<1x256x128xbf16>
    %67 = vector.shape_cast %66 : vector<1x256x128xbf16> to vector<256x128xbf16>
    %cst_62 = arith.constant dense<0.000000e+00> : vector<280x128xf32>
    %68 = tpu.matmul %65, %67, %cst_62 {dimension_numbers = #tpu.dot_dimension_numbers<[1], [0], [0], [1], [0, 0, 1, 1], [], []>} : vector<280x256xbf16>, vector<256x128xbf16>, vector<280x128xf32> -> vector<280x128xf32>
    %69 = arith.addf %62, %68 : vector<280x128xf32>
    %c1_63 = arith.constant 1 : index
    %c2_64 = arith.constant 2 : index
    %c0_65 = arith.constant 0 : index
    %70 = vector.load %arg18[%c1_63, %c2_64, %c0_65] : memref<2x288x256xf32, #tpu.memory_space<vmem>>, vector<1x280x256xf32>
    %71 = vector.shape_cast %70 : vector<1x280x256xf32> to vector<280x256xf32>
    %72 = arith.truncf %71 : vector<280x256xf32> to vector<280x256xbf16>
    %c5 = arith.constant 5 : index
    %c0_66 = arith.constant 0 : index
    %c0_67 = arith.constant 0 : index
    %73 = vector.load %arg3[%c5, %c0_66, %c0_67] : memref<7x256x128xbf16, #tpu.memory_space<vmem>>, vector<1x256x128xbf16>
    %74 = vector.shape_cast %73 : vector<1x256x128xbf16> to vector<256x128xbf16>
    %cst_68 = arith.constant dense<0.000000e+00> : vector<280x128xf32>
    %75 = tpu.matmul %72, %74, %cst_68 {dimension_numbers = #tpu.dot_dimension_numbers<[1], [0], [0], [1], [0, 0, 1, 1], [], []>} : vector<280x256xbf16>, vector<256x128xbf16>, vector<280x128xf32> -> vector<280x128xf32>
    %76 = arith.addf %69, %75 : vector<280x128xf32>
    %c0_69 = arith.constant 0 : index
    %c3_70 = arith.constant 3 : index
    %c0_71 = arith.constant 0 : index
    %77 = vector.load %arg18[%c0_69, %c3_70, %c0_71] : memref<2x288x256xf32, #tpu.memory_space<vmem>>, vector<1x280x256xf32>
    %78 = vector.shape_cast %77 : vector<1x280x256xf32> to vector<280x256xf32>
    %79 = arith.truncf %78 : vector<280x256xf32> to vector<280x256xbf16>
    %c6 = arith.constant 6 : index
    %c0_72 = arith.constant 0 : index
    %c0_73 = arith.constant 0 : index
    %80 = vector.load %arg3[%c6, %c0_72, %c0_73] : memref<7x256x128xbf16, #tpu.memory_space<vmem>>, vector<1x256x128xbf16>
    %81 = vector.shape_cast %80 : vector<1x256x128xbf16> to vector<256x128xbf16>
    %cst_74 = arith.constant dense<0.000000e+00> : vector<280x128xf32>
    %82 = tpu.matmul %79, %81, %cst_74 {dimension_numbers = #tpu.dot_dimension_numbers<[1], [0], [0], [1], [0, 0, 1, 1], [], []>} : vector<280x256xbf16>, vector<256x128xbf16>, vector<280x128xf32> -> vector<280x128xf32>
    %83 = arith.addf %76, %82 : vector<280x128xf32>
    %c0_75 = arith.constant 0 : index
    %c0_76 = arith.constant 0 : index
    %84 = vector.load %arg9[%c0_75, %c0_76] : memref<1x128xf32, #tpu.memory_space<vmem>>, vector<1x128xf32>
    %85 = vector.broadcast %84 : vector<1x128xf32> to vector<280x128xf32>
    %86 = arith.addf %83, %85 : vector<280x128xf32>
    %cst_77 = arith.constant 0.000000e+00 : f32
    %87 = vector.broadcast %cst_77 : f32 to vector<280x128xf32>
    %88 = arith.maximumf %86, %87 : vector<280x128xf32>
    %c0_78 = arith.constant 0 : index
    %c0_79 = arith.constant 0 : index
    %89 = vector.load %arg10[%c0_78, %c0_79] : memref<1x128xf32, #tpu.memory_space<vmem>>, vector<1x128xf32>
    %90 = vector.broadcast %89 : vector<1x128xf32> to vector<280x128xf32>
    %91 = arith.mulf %88, %90 : vector<280x128xf32>
    %c0_80 = arith.constant 0 : index
    %c0_81 = arith.constant 0 : index
    %92 = vector.load %arg11[%c0_80, %c0_81] : memref<1x128xf32, #tpu.memory_space<vmem>>, vector<1x128xf32>
    %93 = vector.broadcast %92 : vector<1x128xf32> to vector<280x128xf32>
    %94 = arith.addf %91, %93 : vector<280x128xf32>
    %c8 = arith.constant 8 : index
    %c0_82 = arith.constant 0 : index
    %95 = vector.load %arg19[%c8, %c0_82] : memref<288x640xf32, #tpu.memory_space<vmem>>, vector<280x128xf32>
    tpu.vector_store %arg19[%c8, %c0_82], %94 {strides = array<i32>} : memref<288x640xf32, #tpu.memory_space<vmem>>, vector<280x128xf32>,
    %c7 = arith.constant 7 : index
    %c128 = arith.constant 128 : index
    %96 = vector.load %arg19[%c7, %c128] : memref<288x640xf32, #tpu.memory_space<vmem>>, vector<280x128xf32>
    tpu.vector_store %arg19[%c7, %c128], %94 {strides = array<i32>} : memref<288x640xf32, #tpu.memory_space<vmem>>, vector<280x128xf32>,
    %c6_83 = arith.constant 6 : index
    %c256 = arith.constant 256 : index
    %97 = vector.load %arg19[%c6_83, %c256] : memref<288x640xf32, #tpu.memory_space<vmem>>, vector<280x128xf32>
    tpu.vector_store %arg19[%c6_83, %c256], %94 {strides = array<i32>} : memref<288x640xf32, #tpu.memory_space<vmem>>, vector<280x128xf32>,
    %c5_84 = arith.constant 5 : index
    %c384 = arith.constant 384 : index
    %98 = vector.load %arg19[%c5_84, %c384] : memref<288x640xf32, #tpu.memory_space<vmem>>, vector<280x128xf32>
    tpu.vector_store %arg19[%c5_84, %c384], %94 {strides = array<i32>} : memref<288x640xf32, #tpu.memory_space<vmem>>, vector<280x128xf32>,
    %c4_85 = arith.constant 4 : index
    %c512 = arith.constant 512 : index
    %99 = vector.load %arg19[%c4_85, %c512] : memref<288x640xf32, #tpu.memory_space<vmem>>, vector<280x128xf32>
    tpu.vector_store %arg19[%c4_85, %c512], %94 {strides = array<i32>} : memref<288x640xf32, #tpu.memory_space<vmem>>, vector<280x128xf32>,
    %c8_86 = arith.constant 8 : index
    %c0_87 = arith.constant 0 : index
    %100 = vector.load %arg19[%c8_86, %c0_87] : memref<288x640xf32, #tpu.memory_space<vmem>>, vector<276x640xf32>
    %101 = arith.truncf %100 : vector<276x640xf32> to vector<276x640xbf16>
    %c0_88 = arith.constant 0 : index
    %c0_89 = arith.constant 0 : index
    %102 = vector.load %arg4[%c0_88, %c0_89] : memref<640x64xbf16, #tpu.memory_space<vmem>>, vector<640x64xbf16>
    %cst_90 = arith.constant dense<0.000000e+00> : vector<276x64xf32>
    %103 = tpu.matmul %101, %102, %cst_90 {dimension_numbers = #tpu.dot_dimension_numbers<[1], [0], [0], [1], [0, 0, 1, 1], [], []>} : vector<276x640xbf16>, vector<640x64xbf16>, vector<276x64xf32> -> vector<276x64xf32>
    %c0_91 = arith.constant 0 : index
    %c0_92 = arith.constant 0 : index
    %104 = vector.load %arg12[%c0_91, %c0_92] : memref<1x64xf32, #tpu.memory_space<vmem>>, vector<1x64xf32>
    %105 = vector.broadcast %104 : vector<1x64xf32> to vector<276x64xf32>
    %106 = arith.addf %103, %105 : vector<276x64xf32>
    %cst_93 = arith.constant 0.000000e+00 : f32
    %107 = vector.broadcast %cst_93 : f32 to vector<276x64xf32>
    %108 = arith.maximumf %106, %107 : vector<276x64xf32>
    %c0_94 = arith.constant 0 : index
    %c0_95 = arith.constant 0 : index
    %109 = vector.load %arg13[%c0_94, %c0_95] : memref<1x64xf32, #tpu.memory_space<vmem>>, vector<1x64xf32>
    %110 = vector.broadcast %109 : vector<1x64xf32> to vector<276x64xf32>
    %111 = arith.mulf %108, %110 : vector<276x64xf32>
    %c0_96 = arith.constant 0 : index
    %c0_97 = arith.constant 0 : index
    %112 = vector.load %arg14[%c0_96, %c0_97] : memref<1x64xf32, #tpu.memory_space<vmem>>, vector<1x64xf32>
    %113 = vector.broadcast %112 : vector<1x64xf32> to vector<276x64xf32>
    %114 = arith.addf %111, %113 : vector<276x64xf32>
    %c8_98 = arith.constant 8 : index
    %c0_99 = arith.constant 0 : index
    %115 = vector.load %arg20[%c8_98, %c0_99] : memref<288x320xf32, #tpu.memory_space<vmem>>, vector<276x64xf32>
    tpu.vector_store %arg20[%c8_98, %c0_99], %114 {strides = array<i32>} : memref<288x320xf32, #tpu.memory_space<vmem>>, vector<276x64xf32>,
    %c7_100 = arith.constant 7 : index
    %c64 = arith.constant 64 : index
    %116 = vector.load %arg20[%c7_100, %c64] : memref<288x320xf32, #tpu.memory_space<vmem>>, vector<276x64xf32>
    tpu.vector_store %arg20[%c7_100, %c64], %114 {strides = array<i32>} : memref<288x320xf32, #tpu.memory_space<vmem>>, vector<276x64xf32>,
    %c6_101 = arith.constant 6 : index
    %c128_102 = arith.constant 128 : index
    %117 = vector.load %arg20[%c6_101, %c128_102] : memref<288x320xf32, #tpu.memory_space<vmem>>, vector<276x64xf32>
    tpu.vector_store %arg20[%c6_101, %c128_102], %114 {strides = array<i32>} : memref<288x320xf32, #tpu.memory_space<vmem>>, vector<276x64xf32>,
    %c5_103 = arith.constant 5 : index
    %c192 = arith.constant 192 : index
    %118 = vector.load %arg20[%c5_103, %c192] : memref<288x320xf32, #tpu.memory_space<vmem>>, vector<276x64xf32>
    tpu.vector_store %arg20[%c5_103, %c192], %114 {strides = array<i32>} : memref<288x320xf32, #tpu.memory_space<vmem>>, vector<276x64xf32>,
    %c4_104 = arith.constant 4 : index
    %c256_105 = arith.constant 256 : index
    %119 = vector.load %arg20[%c4_104, %c256_105] : memref<288x320xf32, #tpu.memory_space<vmem>>, vector<276x64xf32>
    tpu.vector_store %arg20[%c4_104, %c256_105], %114 {strides = array<i32>} : memref<288x320xf32, #tpu.memory_space<vmem>>, vector<276x64xf32>,
    %c8_106 = arith.constant 8 : index
    %c0_107 = arith.constant 0 : index
    %120 = vector.load %arg20[%c8_106, %c0_107] : memref<288x320xf32, #tpu.memory_space<vmem>>, vector<272x320xf32>
    %121 = arith.truncf %120 : vector<272x320xf32> to vector<272x320xbf16>
    %c0_108 = arith.constant 0 : index
    %c0_109 = arith.constant 0 : index
    %122 = vector.load %arg5[%c0_108, %c0_109] : memref<320x32xbf16, #tpu.memory_space<vmem>>, vector<320x32xbf16>
    %cst_110 = arith.constant dense<0.000000e+00> : vector<272x32xf32>
    %123 = tpu.matmul %121, %122, %cst_110 {dimension_numbers = #tpu.dot_dimension_numbers<[1], [0], [0], [1], [0, 0, 1, 1], [], []>} : vector<272x320xbf16>, vector<320x32xbf16>, vector<272x32xf32> -> vector<272x32xf32>
    %c0_111 = arith.constant 0 : index
    %c0_112 = arith.constant 0 : index
    %124 = vector.load %arg15[%c0_111, %c0_112] : memref<1x32xf32, #tpu.memory_space<vmem>>, vector<1x32xf32>
    %125 = vector.broadcast %124 : vector<1x32xf32> to vector<272x32xf32>
    %126 = arith.addf %123, %125 : vector<272x32xf32>
    %cst_113 = arith.constant 0.000000e+00 : f32
    %127 = vector.broadcast %cst_113 : f32 to vector<272x32xf32>
    %128 = arith.maximumf %126, %127 : vector<272x32xf32>
    %cst_114 = arith.constant dense<0xFF800000> : vector<272xf32>
    %129 = vector.multi_reduction <maximumf>, %128, %cst_114 [1] : vector<272x32xf32> to vector<272xf32>
    %130 = vector.shape_cast %129 : vector<272xf32> to vector<272x1xf32>
    %c0_115 = arith.constant 0 : index
    %c0_116 = arith.constant 0 : index
    %131 = vector.load %arg16[%c0_115, %c0_116] : memref<272x4xf32, #tpu.memory_space<vmem>>, vector<272x4xf32>
    %132 = vector.broadcast %130 : vector<272x1xf32> to vector<272x4xf32>
    %133 = arith.mulf %132, %131 : vector<272x4xf32>
    %cst_117 = arith.constant dense<0.000000e+00> : vector<4xf32>
    %134 = vector.multi_reduction <add>, %133, %cst_117 [0] : vector<272x4xf32> to vector<4xf32>
    %135 = vector.shape_cast %134 : vector<4xf32> to vector<1x4xf32>
    %c0_118 = arith.constant 0 : index
    %c0_119 = arith.constant 0 : index
    %c0_120 = arith.constant 0 : index
    %136 = vector.load %arg17[%c0_118, %c0_119, %c0_120] : memref<1x1x4xf32, #tpu.memory_space<vmem>>, vector<1x1x4xf32>
    %137 = vector.shape_cast %136 : vector<1x1x4xf32> to vector<1x4xf32>
    %138 = vector.shape_cast %135 : vector<1x4xf32> to vector<1x1x4xf32>
    tpu.vector_store %arg17[%c0_118, %c0_119, %c0_120], %138 {strides = array<i32>} : memref<1x1x4xf32, #tpu.memory_space<vmem>>, vector<1x1x4xf32>,
    return
  }
  func.func @transform_0(%arg0: i32) -> (i32, i32, i32, i32) {
    %c0_i32 = arith.constant 0 : i32
    %c0_i32_0 = arith.constant 0 : i32
    %c0_i32_1 = arith.constant 0 : i32
    %c0_i32_2 = arith.constant 0 : i32
    return %arg0, %c0_i32, %c0_i32_0, %c0_i32_1 : i32, i32, i32, i32
  }
  func.func @transform_1(%arg0: i32) -> (i32, i32) {
    %c0_i32 = arith.constant 0 : i32
    %c0_i32_0 = arith.constant 0 : i32
    %c0_i32_1 = arith.constant 0 : i32
    return %c0_i32, %c0_i32_0 : i32, i32
  }
  func.func @transform_2(%arg0: i32) -> (i32, i32, i32) {
    %c0_i32 = arith.constant 0 : i32
    %c0_i32_0 = arith.constant 0 : i32
    %c0_i32_1 = arith.constant 0 : i32
    %c0_i32_2 = arith.constant 0 : i32
    return %c0_i32, %c0_i32_0, %c0_i32_1 : i32, i32, i32
  }
  func.func @transform_3(%arg0: i32) -> (i32, i32) {
    %c0_i32 = arith.constant 0 : i32
    %c0_i32_0 = arith.constant 0 : i32
    %c0_i32_1 = arith.constant 0 : i32
    return %c0_i32, %c0_i32_0 : i32, i32
  }
  func.func @transform_4(%arg0: i32) -> (i32, i32) {
    %c0_i32 = arith.constant 0 : i32
    %c0_i32_0 = arith.constant 0 : i32
    %c0_i32_1 = arith.constant 0 : i32
    return %c0_i32, %c0_i32_0 : i32, i32
  }
  func.func @transform_5(%arg0: i32) -> (i32, i32) {
    %c0_i32 = arith.constant 0 : i32
    %c0_i32_0 = arith.constant 0 : i32
    %c0_i32_1 = arith.constant 0 : i32
    return %c0_i32, %c0_i32_0 : i32, i32
  }
  func.func @transform_6(%arg0: i32) -> (i32, i32) {
    %c0_i32 = arith.constant 0 : i32
    %c0_i32_0 = arith.constant 0 : i32
    %c0_i32_1 = arith.constant 0 : i32
    return %c0_i32, %c0_i32_0 : i32, i32
  }
  func.func @transform_7(%arg0: i32) -> (i32, i32) {
    %c0_i32 = arith.constant 0 : i32
    %c0_i32_0 = arith.constant 0 : i32
    %c0_i32_1 = arith.constant 0 : i32
    return %c0_i32, %c0_i32_0 : i32, i32
  }
  func.func @transform_8(%arg0: i32) -> (i32, i32) {
    %c0_i32 = arith.constant 0 : i32
    %c0_i32_0 = arith.constant 0 : i32
    %c0_i32_1 = arith.constant 0 : i32
    return %c0_i32, %c0_i32_0 : i32, i32
  }
  func.func @transform_9(%arg0: i32) -> (i32, i32) {
    %c0_i32 = arith.constant 0 : i32
    %c0_i32_0 = arith.constant 0 : i32
    %c0_i32_1 = arith.constant 0 : i32
    return %c0_i32, %c0_i32_0 : i32, i32
  }
  func.func @transform_10(%arg0: i32) -> (i32, i32) {
    %c0_i32 = arith.constant 0 : i32
    %c0_i32_0 = arith.constant 0 : i32
    %c0_i32_1 = arith.constant 0 : i32
    return %c0_i32, %c0_i32_0 : i32, i32
  }
  func.func @transform_11(%arg0: i32) -> (i32, i32) {
    %c0_i32 = arith.constant 0 : i32
    %c0_i32_0 = arith.constant 0 : i32
    %c0_i32_1 = arith.constant 0 : i32
    return %c0_i32, %c0_i32_0 : i32, i32
  }
  func.func @transform_12(%arg0: i32) -> (i32, i32) {
    %c0_i32 = arith.constant 0 : i32
    %c0_i32_0 = arith.constant 0 : i32
    %c0_i32_1 = arith.constant 0 : i32
    return %c0_i32, %c0_i32_0 : i32, i32
  }
  func.func @transform_13(%arg0: i32) -> (i32, i32) {
    %c0_i32 = arith.constant 0 : i32
    %c0_i32_0 = arith.constant 0 : i32
    %c0_i32_1 = arith.constant 0 : i32
    return %c0_i32, %c0_i32_0 : i32, i32
  }
  func.func @transform_14(%arg0: i32) -> (i32, i32) {
    %c0_i32 = arith.constant 0 : i32
    %c0_i32_0 = arith.constant 0 : i32
    %c0_i32_1 = arith.constant 0 : i32
    return %c0_i32, %c0_i32_0 : i32, i32
  }
  func.func @transform_15(%arg0: i32) -> (i32, i32) {
    %c0_i32 = arith.constant 0 : i32
    %c0_i32_0 = arith.constant 0 : i32
    %c0_i32_1 = arith.constant 0 : i32
    return %c0_i32, %c0_i32_0 : i32, i32
  }
  func.func @transform_16(%arg0: i32) -> (i32, i32, i32) {
    %c0_i32 = arith.constant 0 : i32
    %c0_i32_0 = arith.constant 0 : i32
    %c0_i32_1 = arith.constant 0 : i32
    return %arg0, %c0_i32, %c0_i32_0 : i32, i32, i32
  }
}

</mosaic_0001>

<llo_original>
// kernel: _lambda_.1
$region0: #{_lambda_.1}
  #allocation0 [shape = 'u32[]', space=smem, size = 0x4, offset = 0x4, fixed_abs, tag = 'smem constant byte address 0x4 - core index']
  #allocation1 [shape = 'u32[72,128]{1,0:T(1,128)}', space=vmem, size = 0x9000, scoped, tag = 'internal scratch']
  #allocation2 [shape = 'f32[2,288,256]{2,1,0:T(8,128)}', space=vmem, size = 0x90000, scoped, tag = 'scratch operand']
  #allocation3 [shape = 'f32[288,640]{1,0:T(8,128)}', space=vmem, size = 0xb4000, scoped, tag = 'scratch operand']
  #allocation4 [shape = 'f32[288,320]{1,0:T(8,128)}', space=vmem, size = 0x6c000, scoped, tag = 'scratch operand']
  %s0 = inlined_call_operand.vmem [shape: bf16[2,2,288,224], index: 0, kind: input, shape index: {}]
  %s1 = inlined_call_operand.vmem [shape: bf16[224,256], index: 1, kind: input, shape index: {}]
  %s2 = inlined_call_operand.vmem [shape: bf16[7,256,128], index: 2, kind: input, shape index: {}]
  %s3 = inlined_call_operand.vmem [shape: bf16[640,64], index: 3, kind: input, shape index: {}]
  %s4 = inlined_call_operand.vmem [shape: bf16[320,32], index: 4, kind: input, shape index: {}]
  %s5 = inlined_call_operand.vmem [shape: f32[1,256], index: 5, kind: input, shape index: {}]
  %s6 = inlined_call_operand.vmem [shape: f32[1,256], index: 6, kind: input, shape index: {}]
  %s7 = inlined_call_operand.vmem [shape: f32[1,256], index: 7, kind: input, shape index: {}]
  %s8 = inlined_call_operand.vmem [shape: f32[1,128], index: 8, kind: input, shape index: {}]
  %s9 = inlined_call_operand.vmem [shape: f32[1,128], index: 9, kind: input, shape index: {}]
  %s10 = inlined_call_operand.vmem [shape: f32[1,128], index: 10, kind: input, shape index: {}]
  %s11 = inlined_call_operand.vmem [shape: f32[1,64], index: 11, kind: input, shape index: {}]
  %s12 = inlined_call_operand.vmem [shape: f32[1,64], index: 12, kind: input, shape index: {}]
  %s13 = inlined_call_operand.vmem [shape: f32[1,64], index: 13, kind: input, shape index: {}]
  %s14 = inlined_call_operand.vmem [shape: f32[1,32], index: 14, kind: input, shape index: {}]
  %s15 = inlined_call_operand.vmem [shape: f32[272,4], index: 15, kind: input, shape index: {}]
  %s16 = inlined_call_operand.vmem [shape: f32[2,1,4], index: 16, kind: output, shape index: {}]
  %s17 = sld [smem:[#allocation0]]
  $region97: #{_lambda_.1} parent=0
    _
  %s19 = ssub.s32 1, %s17
  %s20 = scalar_select 0, %s19, %s17
  loop: start=0, step=1, limit=4
  $region2: #{_lambda_.1} parent=0 // loop_pre_header
    _
  $region3: #{_lambda_.1} parent=0 // loop_header
    %s22 = sphi 0, %s26
    %p23 = scmp.ge.s32.totalorder %s22, 4
    %s32 = sphi 0, %s34
    %s35 = sphi 0, %s32
    %s36 = sphi 0, %s35
    %s52 = sphi 0, %s36
    %s56 = sphi 0, %s56
    %s58 = sphi 0, %s56
    %s59 = sphi 0, %s58
    %s73 = sphi 0, %s59
    %s77 = sphi 0, %s77
    %s79 = sphi 0, %s77
    %s80 = sphi 0, %s79
    %s94 = sphi 0, %s80
    %s98 = sphi 0, %s98
    %s100 = sphi 0, %s98
    %s101 = sphi 0, %s100
    %s115 = sphi 0, %s101
    %s119 = sphi 0, %s119
    %s121 = sphi 0, %s119
    %s122 = sphi 0, %s121
    %s136 = sphi 0, %s122
    %s140 = sphi 0, %s140
    %s142 = sphi 0, %s140
    %s143 = sphi 0, %s142
    %s157 = sphi 0, %s143
    %s161 = sphi 0, %s161
    %s163 = sphi 0, %s161
    %s164 = sphi 0, %s163
    %s178 = sphi 0, %s164
    %s182 = sphi 0, %s182
    %s184 = sphi 0, %s182
    %s185 = sphi 0, %s184
    %s199 = sphi 0, %s185
    %s203 = sphi 0, %s203
    %s205 = sphi 0, %s203
    %s206 = sphi 0, %s205
    %s220 = sphi 0, %s206
    %s224 = sphi 0, %s224
    %s226 = sphi 0, %s224
    %s227 = sphi 0, %s226
    %s241 = sphi 0, %s227
    %s245 = sphi 0, %s245
    %s247 = sphi 0, %s245
    %s248 = sphi 0, %s247
    %s262 = sphi 0, %s248
    %s266 = sphi 0, %s266
    %s268 = sphi 0, %s266
    %s269 = sphi 0, %s268
    %s283 = sphi 0, %s269
    %s287 = sphi 0, %s287
    %s289 = sphi 0, %s287
    %s290 = sphi 0, %s289
    %s304 = sphi 0, %s290
    %s308 = sphi 0, %s308
    %s310 = sphi 0, %s308
    %s311 = sphi 0, %s310
    %s325 = sphi 0, %s311
    %s329 = sphi 0, %s329
    %s331 = sphi 0, %s329
    %s332 = sphi 0, %s331
    %s346 = sphi 0, %s332
    %s350 = sphi 0, %s350
    %s352 = sphi 0, %s350
    %s353 = sphi 0, %s352
    %s367 = sphi 0, %s353
    %s373 = sphi 0, %s375
    %s376 = sphi 0, %s373
    %s377 = sphi 0, %s376
    %s393 = sphi 0, %s377
  $region4: #{_lambda_.1} parent=0 // loop_header_branch
    %25 = sbr.rel (%p23) target = $region8
  $region5: #{_lambda_.1} parent=0 // loop_body
    %s27 = ssub.s32 %s22, 1
    %s28 = ssub.s32 %s22, 2
    %s29 = sadd.s32 %s22, 1
    %s30 = ssub.s32 %s22, %s29
    %p31 = scmp.eq.s32.totalorder %s30, 0
    %s33 = sadd.s32 %s32, 1
    %s34 = scalar_select %p31, %s32, %s33
    %p37 = pneg %p31
    %p38 = scmp.eq.s32.totalorder %s22, 1
    %p39 = por %p37, %p38
    %p40 = scmp.ne.s32.totalorder %s32, %s35
    %p41 = scmp.eq.s32.totalorder %s22, 0
    %p42 = por %p40, %p41
    %p43 = scmp.ne.s32.totalorder %s32, %s35
    %p44 = scmp.eq.s32.totalorder %s27, 1
    %p45 = por %p43, %p44
    %p46 = scmp.ne.s32.totalorder %s35, %s36
    %p47 = scmp.eq.s32.totalorder %s27, 0
    %p48 = por %p46, %p47
    %p49 = scmp.ne.s32.totalorder %s35, %s36
    %p50 = scmp.eq.s32.totalorder %s28, 1
    %p51 = por %p49, %p50
    %p53 = scmp.ne.s32.totalorder %s36, %s52
    %p54 = scmp.eq.s32.totalorder %s28, 0
    %p55 = por %p53, %p54
    %s57 = sadd.s32 %s56, 1
    %p60 = scmp.eq.s32.totalorder %s22, 1
    %p61 = scmp.ne.s32.totalorder %s56, %s58
    %p62 = scmp.eq.s32.totalorder %s22, 0
    %p63 = por %p61, %p62
    %p64 = scmp.ne.s32.totalorder %s56, %s58
    %p65 = scmp.eq.s32.totalorder %s27, 1
    %p66 = por %p64, %p65
    %p67 = scmp.ne.s32.totalorder %s58, %s59
    %p68 = scmp.eq.s32.totalorder %s27, 0
    %p69 = por %p67, %p68
    %p70 = scmp.ne.s32.totalorder %s58, %s59
    %p71 = scmp.eq.s32.totalorder %s28, 1
    %p72 = por %p70, %p71
    %p74 = scmp.ne.s32.totalorder %s59, %s73
    %p75 = scmp.eq.s32.totalorder %s28, 0
    %p76 = por %p74, %p75
    %s78 = sadd.s32 %s77, 1
    %p81 = scmp.eq.s32.totalorder %s22, 1
    %p82 = scmp.ne.s32.totalorder %s77, %s79
    %p83 = scmp.eq.s32.totalorder %s22, 0
    %p84 = por %p82, %p83
    %p85 = scmp.ne.s32.totalorder %s77, %s79
    %p86 = scmp.eq.s32.totalorder %s27, 1
    %p87 = por %p85, %p86
    %p88 = scmp.ne.s32.totalorder %s79, %s80
    %p89 = scmp.eq.s32.totalorder %s27, 0
    %p90 = por %p88, %p89
    %p91 = scmp.ne.s32.totalorder %s79, %s80
    %p92 = scmp.eq.s32.totalorder %s28, 1
    %p93 = por %p91, %p92
    %p95 = scmp.ne.s32.totalorder %s80, %s94
    %p96 = scmp.eq.s32.totalorder %s28, 0
    %p97 = por %p95, %p96
    %s99 = sadd.s32 %s98, 1
    %p102 = scmp.eq.s32.totalorder %s22, 1
    %p103 = scmp.ne.s32.totalorder %s98, %s100
    %p104 = scmp.eq.s32.totalorder %s22, 0
    %p105 = por %p103, %p104
    %p106 = scmp.ne.s32.totalorder %s98, %s100
    %p107 = scmp.eq.s32.totalorder %s27, 1
    %p108 = por %p106, %p107
    %p109 = scmp.ne.s32.totalorder %s100, %s101
    %p110 = scmp.eq.s32.totalorder %s27, 0
    %p111 = por %p109, %p110
    %p112 = scmp.ne.s32.totalorder %s100, %s101
    %p113 = scmp.eq.s32.totalorder %s28, 1
    %p114 = por %p112, %p113
    %p116 = scmp.ne.s32.totalorder %s101, %s115
    %p117 = scmp.eq.s32.totalorder %s28, 0
    %p118 = por %p116, %p117
    %s120 = sadd.s32 %s119, 1
    %p123 = scmp.eq.s32.totalorder %s22, 1
    %p124 = scmp.ne.s32.totalorder %s119, %s121
    %p125 = scmp.eq.s32.totalorder %s22, 0
    %p126 = por %p124, %p125
    %p127 = scmp.ne.s32.totalorder %s119, %s121
    %p128 = scmp.eq.s32.totalorder %s27, 1
    %p129 = por %p127, %p128
    %p130 = scmp.ne.s32.totalorder %s121, %s122
    %p131 = scmp.eq.s32.totalorder %s27, 0
    %p132 = por %p130, %p131
    %p133 = scmp.ne.s32.totalorder %s121, %s122
    %p134 = scmp.eq.s32.totalorder %s28, 1
    %p135 = por %p133, %p134
    %p137 = scmp.ne.s32.totalorder %s122, %s136
    %p138 = scmp.eq.s32.totalorder %s28, 0
    %p139 = por %p137, %p138
    %s141 = sadd.s32 %s140, 1
    %p144 = scmp.eq.s32.totalorder %s22, 1
    %p145 = scmp.ne.s32.totalorder %s140, %s142
    %p146 = scmp.eq.s32.totalorder %s22, 0
    %p147 = por %p145, %p146
    %p148 = scmp.ne.s32.totalorder %s140, %s142
    %p149 = scmp.eq.s32.totalorder %s27, 1
    %p150 = por %p148, %p149
    %p151 = scmp.ne.s32.totalorder %s142, %s143
    %p152 = scmp.eq.s32.totalorder %s27, 0
    %p153 = por %p151, %p152
    %p154 = scmp.ne.s32.totalorder %s142, %s143
    %p155 = scmp.eq.s32.totalorder %s28, 1
    %p156 = por %p154, %p155
    %p158 = scmp.ne.s32.totalorder %s143, %s157
    %p159 = scmp.eq.s32.totalorder %s28, 0
    %p160 = por %p158, %p159
    %s162 = sadd.s32 %s161, 1
    %p165 = scmp.eq.s32.totalorder %s22, 1
    %p166 = scmp.ne.s32.totalorder %s161, %s163
    %p167 = scmp.eq.s32.totalorder %s22, 0
    %p168 = por %p166, %p167
    %p169 = scmp.ne.s32.totalorder %s161, %s163
    %p170 = scmp.eq.s32.totalorder %s27, 1
    %p171 = por %p169, %p170
    %p172 = scmp.ne.s32.totalorder %s163, %s164
    %p173 = scmp.eq.s32.totalorder %s27, 0
    %p174 = por %p172, %p173
    %p175 = scmp.ne.s32.totalorder %s163, %s164
    %p176 = scmp.eq.s32.totalorder %s28, 1
    %p177 = por %p175, %p176
    %p179 = scmp.ne.s32.totalorder %s164, %s178
    %p180 = scmp.eq.s32.totalorder %s28, 0
    %p181 = por %p179, %p180
    %s183 = sadd.s32 %s182, 1
    %p186 = scmp.eq.s32.totalorder %s22, 1
    %p187 = scmp.ne.s32.totalorder %s182, %s184
    %p188 = scmp.eq.s32.totalorder %s22, 0
    %p189 = por %p187, %p188
    %p190 = scmp.ne.s32.totalorder %s182, %s184
    %p191 = scmp.eq.s32.totalorder %s27, 1
    %p192 = por %p190, %p191
    %p193 = scmp.ne.s32.totalorder %s184, %s185
    %p194 = scmp.eq.s32.totalorder %s27, 0
    %p195 = por %p193, %p194
    %p196 = scmp.ne.s32.totalorder %s184, %s185
    %p197 = scmp.eq.s32.totalorder %s28, 1
    %p198 = por %p196, %p197
    %p200 = scmp.ne.s32.totalorder %s185, %s199
    %p201 = scmp.eq.s32.totalorder %s28, 0
    %p202 = por %p200, %p201
    %s204 = sadd.s32 %s203, 1
    %p207 = scmp.eq.s32.totalorder %s22, 1
    %p208 = scmp.ne.s32.totalorder %s203, %s205
    %p209 = scmp.eq.s32.totalorder %s22, 0
    %p210 = por %p208, %p209
    %p211 = scmp.ne.s32.totalorder %s203, %s205
    %p212 = scmp.eq.s32.totalorder %s27, 1
    %p213 = por %p211, %p212
    %p214 = scmp.ne.s32.totalorder %s205, %s206
    %p215 = scmp.eq.s32.totalorder %s27, 0
    %p216 = por %p214, %p215
    %p217 = scmp.ne.s32.totalorder %s205, %s206
    %p218 = scmp.eq.s32.totalorder %s28, 1
    %p219 = por %p217, %p218
    %p221 = scmp.ne.s32.totalorder %s206, %s220
    %p222 = scmp.eq.s32.totalorder %s28, 0
    %p223 = por %p221, %p222
    %s225 = sadd.s32 %s224, 1
    %p228 = scmp.eq.s32.totalorder %s22, 1
    %p229 = scmp.ne.s32.totalorder %s224, %s226
    %p230 = scmp.eq.s32.totalorder %s22, 0
    %p231 = por %p229, %p230
    %p232 = scmp.ne.s32.totalorder %s224, %s226
    %p233 = scmp.eq.s32.totalorder %s27, 1
    %p234 = por %p232, %p233
    %p235 = scmp.ne.s32.totalorder %s226, %s227
    %p236 = scmp.eq.s32.totalorder %s27, 0
    %p237 = por %p235, %p236
    %p238 = scmp.ne.s32.totalorder %s226, %s227
    %p239 = scmp.eq.s32.totalorder %s28, 1
    %p240 = por %p238, %p239
    %p242 = scmp.ne.s32.totalorder %s227, %s241
    %p243 = scmp.eq.s32.totalorder %s28, 0
    %p244 = por %p242, %p243
    %s246 = sadd.s32 %s245, 1
    %p249 = scmp.eq.s32.totalorder %s22, 1
    %p250 = scmp.ne.s32.totalorder %s245, %s247
    %p251 = scmp.eq.s32.totalorder %s22, 0
    %p252 = por %p250, %p251
    %p253 = scmp.ne.s32.totalorder %s245, %s247
    %p254 = scmp.eq.s32.totalorder %s27, 1
    %p255 = por %p253, %p254
    %p256 = scmp.ne.s32.totalorder %s247, %s248
    %p257 = scmp.eq.s32.totalorder %s27, 0
    %p258 = por %p256, %p257
    %p259 = scmp.ne.s32.totalorder %s247, %s248
    %p260 = scmp.eq.s32.totalorder %s28, 1
    %p261 = por %p259, %p260
    %p263 = scmp.ne.s32.totalorder %s248, %s262
    %p264 = scmp.eq.s32.totalorder %s28, 0
    %p265 = por %p263, %p264
    %s267 = sadd.s32 %s266, 1
    %p270 = scmp.eq.s32.totalorder %s22, 1
    %p271 = scmp.ne.s32.totalorder %s266, %s268
    %p272 = scmp.eq.s32.totalorder %s22, 0
    %p273 = por %p271, %p272
    %p274 = scmp.ne.s32.totalorder %s266, %s268
    %p275 = scmp.eq.s32.totalorder %s27, 1
    %p276 = por %p274, %p275
    %p277 = scmp.ne.s32.totalorder %s268, %s269
    %p278 = scmp.eq.s32.totalorder %s27, 0
    %p279 = por %p277, %p278
    %p280 = scmp.ne.s32.totalorder %s268, %s269
    %p281 = scmp.eq.s32.totalorder %s28, 1
    %p282 = por %p280, %p281
    %p284 = scmp.ne.s32.totalorder %s269, %s283
    %p285 = scmp.eq.s32.totalorder %s28, 0
    %p286 = por %p284, %p285
    %s288 = sadd.s32 %s287, 1
    %p291 = scmp.eq.s32.totalorder %s22, 1
    %p292 = scmp.ne.s32.totalorder %s287, %s289
    %p293 = scmp.eq.s32.totalorder %s22, 0
    %p294 = por %p292, %p293
    %p295 = scmp.ne.s32.totalorder %s287, %s289
    %p296 = scmp.eq.s32.totalorder %s27, 1
    %p297 = por %p295, %p296
    %p298 = scmp.ne.s32.totalorder %s289, %s290
    %p299 = scmp.eq.s32.totalorder %s27, 0
    %p300 = por %p298, %p299
    %p301 = scmp.ne.s32.totalorder %s289, %s290
    %p302 = scmp.eq.s32.totalorder %s28, 1
    %p303 = por %p301, %p302
    %p305 = scmp.ne.s32.totalorder %s290, %s304
    %p306 = scmp.eq.s32.totalorder %s28, 0
    %p307 = por %p305, %p306
    %s309 = sadd.s32 %s308, 1
    %p312 = scmp.eq.s32.totalorder %s22, 1
    %p313 = scmp.ne.s32.totalorder %s308, %s310
    %p314 = scmp.eq.s32.totalorder %s22, 0
    %p315 = por %p313, %p314
    %p316 = scmp.ne.s32.totalorder %s308, %s310
    %p317 = scmp.eq.s32.totalorder %s27, 1
    %p318 = por %p316, %p317
    %p319 = scmp.ne.s32.totalorder %s310, %s311
    %p320 = scmp.eq.s32.totalorder %s27, 0
    %p321 = por %p319, %p320
    %p322 = scmp.ne.s32.totalorder %s310, %s311
    %p323 = scmp.eq.s32.totalorder %s28, 1
    %p324 = por %p322, %p323
    %p326 = scmp.ne.s32.totalorder %s311, %s325
    %p327 = scmp.eq.s32.totalorder %s28, 0
    %p328 = por %p326, %p327
    %s330 = sadd.s32 %s329, 1
    %p333 = scmp.eq.s32.totalorder %s22, 1
    %p334 = scmp.ne.s32.totalorder %s329, %s331
    %p335 = scmp.eq.s32.totalorder %s22, 0
    %p336 = por %p334, %p335
    %p337 = scmp.ne.s32.totalorder %s329, %s331
    %p338 = scmp.eq.s32.totalorder %s27, 1
    %p339 = por %p337, %p338
    %p340 = scmp.ne.s32.totalorder %s331, %s332
    %p341 = scmp.eq.s32.totalorder %s27, 0
    %p342 = por %p340, %p341
    %p343 = scmp.ne.s32.totalorder %s331, %s332
    %p344 = scmp.eq.s32.totalorder %s28, 1
    %p345 = por %p343, %p344
    %p347 = scmp.ne.s32.totalorder %s332, %s346
    %p348 = scmp.eq.s32.totalorder %s28, 0
    %p349 = por %p347, %p348
    %s351 = sadd.s32 %s350, 1
    %p354 = scmp.eq.s32.totalorder %s22, 1
    %p355 = scmp.ne.s32.totalorder %s350, %s352
    %p356 = scmp.eq.s32.totalorder %s22, 0
    %p357 = por %p355, %p356
    %p358 = scmp.ne.s32.totalorder %s350, %s352
    %p359 = scmp.eq.s32.totalorder %s27, 1
    %p360 = por %p358, %p359
    %p361 = scmp.ne.s32.totalorder %s352, %s353
    %p362 = scmp.eq.s32.totalorder %s27, 0
    %p363 = por %p361, %p362
    %p364 = scmp.ne.s32.totalorder %s352, %s353
    %p365 = scmp.eq.s32.totalorder %s28, 1
    %p366 = por %p364, %p365
    %p368 = scmp.ne.s32.totalorder %s353, %s367
    %p369 = scmp.eq.s32.totalorder %s28, 0
    %p370 = por %p368, %p369
    %s371 = ssub.s32 %s22, %s29
    %p372 = scmp.eq.s32.totalorder %s371, 0
    %s374 = sadd.s32 %s373, 1
    %s375 = scalar_select %p372, %s373, %s374
    %p378 = pneg %p372
    %p379 = scmp.eq.s32.totalorder %s22, 1
    %p380 = por %p378, %p379
    %p381 = scmp.ne.s32.totalorder %s373, %s376
    %p382 = scmp.eq.s32.totalorder %s22, 0
    %p383 = por %p381, %p382
    %p384 = scmp.ne.s32.totalorder %s373, %s376
    %p385 = scmp.eq.s32.totalorder %s27, 1
    %p386 = por %p384, %p385
    %p387 = scmp.ne.s32.totalorder %s376, %s377
    %p388 = scmp.eq.s32.totalorder %s27, 0
    %p389 = por %p387, %p388
    %p390 = scmp.ne.s32.totalorder %s376, %s377
    %p391 = scmp.eq.s32.totalorder %s28, 1
    %p392 = por %p390, %p391
    %p394 = scmp.ne.s32.totalorder %s377, %s393
    %p395 = scmp.eq.s32.totalorder %s28, 0
    %p396 = por %p394, %p395
    %p397 = scmp.le.s32.totalorder 1, %s22
    %p398 = scmp.lt.s32.totalorder %s22, 3
    %p399 = pnand %p397, %p398
    %p400 = pneg %p399
    // Predicated region
    $region9: #{_lambda_.1} parent=5 // pred_check
      _
    $region10: #{_lambda_.1} parent=5 // pred_check_branch
      %402 = sbr.rel (%p399) target = $region12
    $region11: #{_lambda_.1} parent=5 // pred_region
      %s403 = ssub.s32 %s22, 1
      // Predicated region
      $region13: #{_lambda_.1} parent=11 // pred_check
        %p404 = pneg %p69
      $region14: #{_lambda_.1} parent=11 // pred_check_branch
        %406 = sbr.rel (%p404) target = $region16
      $region15: #{_lambda_.1} parent=11 // pred_region
        _
      $region16: #{_lambda_.1} parent=11 // pred_fallthru
        _
      // Predicated region
      $region17: #{_lambda_.1} parent=11 // pred_check
        %p407 = pneg %p90
      $region18: #{_lambda_.1} parent=11 // pred_check_branch
        %409 = sbr.rel (%p407) target = $region20
      $region19: #{_lambda_.1} parent=11 // pred_region
        _
      $region20: #{_lambda_.1} parent=11 // pred_fallthru
        _
      // Predicated region
      $region21: #{_lambda_.1} parent=11 // pred_check
        %p410 = pneg %p111
      $region22: #{_lambda_.1} parent=11 // pred_check_branch
        %412 = sbr.rel (%p410) target = $region24
      $region23: #{_lambda_.1} parent=11 // pred_region
        _
      $region24: #{_lambda_.1} parent=11 // pred_fallthru
        _
      // Predicated region
      $region25: #{_lambda_.1} parent=11 // pred_check
        %p413 = pneg %p132
      $region26: #{_lambda_.1} parent=11 // pred_check_branch
        %415 = sbr.rel (%p413) target = $region28
      $region27: #{_lambda_.1} parent=11 // pred_region
        _
      $region28: #{_lambda_.1} parent=11 // pred_fallthru
        _
      // Predicated region
      $region29: #{_lambda_.1} parent=11 // pred_check
        %p416 = pneg %p153
      $region30: #{_lambda_.1} parent=11 // pred_check_branch
        %418 = sbr.rel (%p416) target = $region32
      $region31: #{_lambda_.1} parent=11 // pred_region
        _
      $region32: #{_lambda_.1} parent=11 // pred_fallthru
        _
      // Predicated region
      $region33: #{_lambda_.1} parent=11 // pred_check
        %p419 = pneg %p174
      $region34: #{_lambda_.1} parent=11 // pred_check_branch
        %421 = sbr.rel (%p419) target = $region36
      $region35: #{_lambda_.1} parent=11 // pred_region
        _
      $region36: #{_lambda_.1} parent=11 // pred_fallthru
        _
      // Predicated region
      $region37: #{_lambda_.1} parent=11 // pred_check
        %p422 = pneg %p195
      $region38: #{_lambda_.1} parent=11 // pred_check_branch
        %424 = sbr.rel (%p422) target = $region40
      $region39: #{_lambda_.1} parent=11 // pred_region
        _
      $region40: #{_lambda_.1} parent=11 // pred_fallthru
        _
      // Predicated region
      $region41: #{_lambda_.1} parent=11 // pred_check
        %p425 = pneg %p216
      $region42: #{_lambda_.1} parent=11 // pred_check_branch
        %427 = sbr.rel (%p425) target = $region44
      $region43: #{_lambda_.1} parent=11 // pred_region
        _
      $region44: #{_lambda_.1} parent=11 // pred_fallthru
        _
      // Predicated region
      $region45: #{_lambda_.1} parent=11 // pred_check
        %p428 = pneg %p237
      $region46: #{_lambda_.1} parent=11 // pred_check_branch
        %430 = sbr.rel (%p428) target = $region48
      $region47: #{_lambda_.1} parent=11 // pred_region
        _
      $region48: #{_lambda_.1} parent=11 // pred_fallthru
        _
      // Predicated region
      $region49: #{_lambda_.1} parent=11 // pred_check
        %p431 = pneg %p258
      $region50: #{_lambda_.1} parent=11 // pred_check_branch
        %433 = sbr.rel (%p431) target = $region52
      $region51: #{_lambda_.1} parent=11 // pred_region
        _
      $region52: #{_lambda_.1} parent=11 // pred_fallthru
        _
      // Predicated region
      $region53: #{_lambda_.1} parent=11 // pred_check
        %p434 = pneg %p279
      $region54: #{_lambda_.1} parent=11 // pred_check_branch
        %436 = sbr.rel (%p434) target = $region56
      $region55: #{_lambda_.1} parent=11 // pred_region
        _
      $region56: #{_lambda_.1} parent=11 // pred_fallthru
        _
      // Predicated region
      $region57: #{_lambda_.1} parent=11 // pred_check
        %p437 = pneg %p300
      $region58: #{_lambda_.1} parent=11 // pred_check_branch
        %439 = sbr.rel (%p437) target = $region60
      $region59: #{_lambda_.1} parent=11 // pred_region
        _
      $region60: #{_lambda_.1} parent=11 // pred_fallthru
        _
      // Predicated region
      $region61: #{_lambda_.1} parent=11 // pred_check
        %p440 = pneg %p321
      $region62: #{_lambda_.1} parent=11 // pred_check_branch
        %442 = sbr.rel (%p440) target = $region64
      $region63: #{_lambda_.1} parent=11 // pred_region
        _
      $region64: #{_lambda_.1} parent=11 // pred_fallthru
        _
      // Predicated region
      $region65: #{_lambda_.1} parent=11 // pred_check
        %p443 = pneg %p342
      $region66: #{_lambda_.1} parent=11 // pred_check_branch
        %445 = sbr.rel (%p443) target = $region68
      $region67: #{_lambda_.1} parent=11 // pred_region
        _
      $region68: #{_lambda_.1} parent=11 // pred_fallthru
        _
      // Predicated region
      $region69: #{_lambda_.1} parent=11 // pred_check
        %p446 = pneg %p363
      $region70: #{_lambda_.1} parent=11 // pred_check_branch
        %448 = sbr.rel (%p446) target = $region72
      $region71: #{_lambda_.1} parent=11 // pred_region
        _
      $region72: #{_lambda_.1} parent=11 // pred_fallthru
        _
    $region12: #{_lambda_.1} parent=5 // pred_fallthru
      _
    %p449 = scmp.lt.s32.totalorder %s22, 2
    // Predicated region
    $region73: #{_lambda_.1} parent=5 // pred_check
      %p450 = pneg %p449
    $region74: #{_lambda_.1} parent=5 // pred_check_branch
      %452 = sbr.rel (%p450) target = $region76
    $region75: #{_lambda_.1} parent=5 // pred_region
      // Predicated region
      $region77: #{_lambda_.1} parent=75 // pred_check
        %p453 = pneg %p42
      $region78: #{_lambda_.1} parent=75 // pred_check_branch
        %455 = sbr.rel (%p453) target = $region80
      $region79: #{_lambda_.1} parent=75 // pred_region
        %p456 = scmp.lt.s32.totalorder %s22, 1
        %s457 = scalar_select %p456, %s22, 1
        %s458 = smul.addr %s457, 144
        %s459 = smul.addr %s458, 4
        %s460 = scalar_lea.vmem %s0, %s459
      $region80: #{_lambda_.1} parent=75 // pred_fallthru
        _
    $region76: #{_lambda_.1} parent=5 // pred_fallthru
      _
    %p461 = scmp.le.s32.totalorder 1, %s22
    %p462 = scmp.lt.s32.totalorder %s22, 3
    %p463 = pnand %p461, %p462
    %p464 = pneg %p463
    // Predicated region
    $region81: #{_lambda_.1} parent=5 // pred_check
      _
    $region82: #{_lambda_.1} parent=5 // pred_check_branch
      %466 = sbr.rel (%p463) target = $region84
    $region83: #{_lambda_.1} parent=5 // pred_region
      %s467 = ssub.s32 %s22, 1
      %p468 = scmp.lt.s32.totalorder %s27, 1
      %s469 = scalar_select %p468, %s27, 1
      %s470 = smul.addr %s469, 144
      %s471 = smul.addr %s470, 4
      %s472 = scalar_lea.vmem %s0, %s471
      %p473 = pneg %p48
      %p474 = pneg %p45
      %p475 = pneg %p69
      %p476 = pneg %p66
      %p477 = pneg %p90
      %p478 = pneg %p87
      %p479 = pneg %p111
      %p480 = pneg %p108
      %p481 = pneg %p132
      %p482 = pneg %p129
      %p483 = pneg %p153
      %p484 = pneg %p150
      %p485 = pneg %p174
      %p486 = pneg %p171
      %p487 = pneg %p195
      %p488 = pneg %p192
      %p489 = pneg %p216
      %p490 = pneg %p213
      %p491 = pneg %p237
      %p492 = pneg %p234
      %p493 = pneg %p258
      %p494 = pneg %p255
      %p495 = pneg %p279
      %p496 = pneg %p276
      %p497 = pneg %p300
      %p498 = pneg %p297
      %p499 = pneg %p321
      %p500 = pneg %p318
      %p501 = pneg %p342
      %p502 = pneg %p339
      %p503 = pneg %p363
      %p504 = pneg %p360
      %p505 = pneg %p389
      %p506 = pneg %p386
      %p507 = scmp.lt.s32.totalorder %s27, 1
      %s508 = scalar_select %p507, %s27, 1
      %s509 = scalar_lea.vmem %s16, %s508
      %p510 = scmp.lt.s32.totalorder %s27, 1
      %s511 = scalar_select %p510, %s27, 1
      %s512 = smul.addr %s511, 144
      %s513 = smul.addr %s512, 4
      %s514 = scalar_lea.vmem %s0, %s513
      %p515 = scmp.lt.s32.totalorder %s27, 1
      %s516 = scalar_select %p515, %s27, 1
      %s517 = scalar_lea.vmem %s16, %s516
      %v519 = vld [vmem:[%s514] sm:$0xff]
      %v520 = vld [vmem:[%s514 + $0x8] sm:$0xff]
      %v521 = vld [vmem:[%s514 + $0x10] sm:$0xff]
      %v522 = vld [vmem:[%s514 + $0x18] sm:$0xff]
      %v523 = vld [vmem:[%s514 + $0x20] sm:$0xff]
      %v524 = vld [vmem:[%s514 + $0x28] sm:$0xff]
      %v525 = vld [vmem:[%s514 + $0x30] sm:$0xff]
      %v526 = vld [vmem:[%s514 + $0x38] sm:$0xff]
      %v527 = vld [vmem:[%s514 + $0x40] sm:$0xff]
      %v528 = vld [vmem:[%s514 + $0x48] sm:$0xff]
      %v529 = vld [vmem:[%s514 + $0x50] sm:$0xff]
      %v530 = vld [vmem:[%s514 + $0x58] sm:$0xff]
      %v531 = vld [vmem:[%s514 + $0x60] sm:$0xff]
      %v532 = vld [vmem:[%s514 + $0x68] sm:$0xff]
      %v533 = vld [vmem:[%s514 + $0x70] sm:$0xff]
      %v534 = vld [vmem:[%s514 + $0x78] sm:$0xff]
      %v535 = vld [vmem:[%s514 + $0x80] sm:$0xff]
      %v536 = vld [vmem:[%s514 + $0x88] sm:$0xff]
      %v537 = vld [vmem:[%s514 + $0x90] sm:$0xff]
      %v538 = vld [vmem:[%s514 + $0x98] sm:$0xff]
      %v539 = vld [vmem:[%s514 + $0xa0] sm:$0xff]
      %v540 = vld [vmem:[%s514 + $0xa8] sm:$0xff]
      %v541 = vld [vmem:[%s514 + $0xb0] sm:$0xff]
      %v542 = vld [vmem:[%s514 + $0xb8] sm:$0xff]
      %v543 = vld [vmem:[%s514 + $0xc0] sm:$0xff]
      %v544 = vld [vmem:[%s514 + $0xc8] sm:$0xff]
      %v545 = vld [vmem:[%s514 + $0xd0] sm:$0xff]
      %v546 = vld [vmem:[%s514 + $0xd8] sm:$0xff]
      %v547 = vld [vmem:[%s514 + $0xe0] sm:$0xff]
      %v548 = vld [vmem:[%s514 + $0xe8] sm:$0xff]
      %v549 = vld [vmem:[%s514 + $0xf0] sm:$0xff]
      %v550 = vld [vmem:[%s514 + $0xf8] sm:$0xff]
      %v551 = vld [vmem:[%s514 + $0x100] sm:$0xff]
      %v552 = vld [vmem:[%s514 + $0x108] sm:$0xff]
      %v553 = vld [vmem:[%s514 + $0x110] sm:$0xff]
      %v554 = vld [vmem:[%s514 + $0x118] sm:$0xff]
      %v555 = vld [vmem:[%s1] sm:$0xff]
      %v556 = vld [vmem:[%s1 + $0x8] sm:$0xff]
      %v557 = vld [vmem:[%s1 + $0x10] sm:$0xff]
      %v558 = vld [vmem:[%s1 + $0x18] sm:$0xff]
      %v559 = vld [vmem:[%s1 + $0x20] sm:$0xff]
      %v560 = vld [vmem:[%s1 + $0x28] sm:$0xff]
      %v561 = vld [vmem:[%s1 + $0x30] sm:$0xff]
      %v562 = vld [vmem:[%s1 + $0x38] sm:$0xff]
      %v563 = vld [vmem:[%s1 + $0x40] sm:$0xff]
      %v564 = vld [vmem:[%s1 + $0x48] sm:$0xff]
      %v565 = vld [vmem:[%s1 + $0x50] sm:$0xff]
      %v566 = vld [vmem:[%s1 + $0x58] sm:$0xff]
      %v567 = vld [vmem:[%s1 + $0x60] sm:$0xff]
      %v568 = vld [vmem:[%s1 + $0x68] sm:$0xff]
      %v569 = vld [vmem:[%s1 + $0x70] sm:$0xff]
      %v570 = vld [vmem:[%s1 + $0x78] sm:$0xff]
      %v571 = vld [vmem:[%s1 + $0x80] sm:$0xff]
      %v572 = vld [vmem:[%s1 + $0x88] sm:$0xff]
      %v573 = vld [vmem:[%s1 + $0x90] sm:$0xff]
      %v574 = vld [vmem:[%s1 + $0x98] sm:$0xff]
      %v575 = vld [vmem:[%s1 + $0xa0] sm:$0xff]
      %v576 = vld [vmem:[%s1 + $0xa8] sm:$0xff]
      %v577 = vld [vmem:[%s1 + $0xb0] sm:$0xff]
      %v578 = vld [vmem:[%s1 + $0xb8] sm:$0xff]
      %v579 = vld [vmem:[%s1 + $0xc0] sm:$0xff]
      %v580 = vld [vmem:[%s1 + $0xc8] sm:$0xff]
      %v581 = vld [vmem:[%s1 + $0xd0] sm:$0xff]
      %v582 = vld [vmem:[%s1 + $0xd8] sm:$0xff]
      %v583 = vld [vmem:[%s5] sm:$0x3]
      %v585 = vperm.slane %v583, 0
      %v586 = vperm.slane %v583, 1
      %v625 = vunpack.c.l.b16 %v519
      %v626 = vunpack.c.h.b16 %v519
      %v627 = vunpack.c.l.b16 %v520
      %v628 = vunpack.c.h.b16 %v520
      %v629 = vunpack.c.l.b16 %v521
      %v630 = vunpack.c.h.b16 %v521
      %v631 = vunpack.c.l.b16 %v522
      %v632 = vunpack.c.h.b16 %v522
      %v633 = vunpack.c.l.b16 %v523
      %v634 = vunpack.c.h.b16 %v523
      %v635 = vunpack.c.l.b16 %v524
      %v636 = vunpack.c.h.b16 %v524
      %v637 = vunpack.c.l.b16 %v525
      %v638 = vunpack.c.h.b16 %v525
      %v639 = vunpack.c.l.b16 %v526
      %v640 = vunpack.c.h.b16 %v526
      %v641 = vunpack.c.l.b16 %v527
      %v642 = vunpack.c.h.b16 %v527
      %v643 = vunpack.c.l.b16 %v528
      %v644 = vunpack.c.h.b16 %v528
      %v645 = vunpack.c.l.b16 %v529
      %v646 = vunpack.c.h.b16 %v529
      %v647 = vunpack.c.l.b16 %v530
      %v648 = vunpack.c.h.b16 %v530
      %v649 = vunpack.c.l.b16 %v531
      %v650 = vunpack.c.h.b16 %v531
      %v651 = vunpack.c.l.b16 %v532
      %v652 = vunpack.c.h.b16 %v532
      %v653 = vunpack.c.l.b16 %v533
      %v654 = vunpack.c.h.b16 %v533
      %v655 = vunpack.c.l.b16 %v534
      %v656 = vunpack.c.h.b16 %v534
      %v657 = vunpack.c.l.b16 %v535
      %v658 = vunpack.c.h.b16 %v535
      %v659 = vunpack.c.l.b16 %v536
      %v660 = vunpack.c.h.b16 %v536
      %v661 = vunpack.c.l.b16 %v537
      %v662 = vunpack.c.h.b16 %v537
      %v663 = vunpack.c.l.b16 %v538
      %v664 = vunpack.c.h.b16 %v538
      %v665 = vunpack.c.l.b16 %v539
      %v666 = vunpack.c.h.b16 %v539
      %v667 = vunpack.c.l.b16 %v540
      %v668 = vunpack.c.h.b16 %v540
      %v669 = vunpack.c.l.b16 %v541
      %v670 = vunpack.c.h.b16 %v541
      %v671 = vunpack.c.l.b16 %v542
      %v672 = vunpack.c.h.b16 %v542
      %v673 = vunpack.c.l.b16 %v543
      %v674 = vunpack.c.h.b16 %v543
      %v675 = vunpack.c.l.b16 %v544
      %v676 = vunpack.c.h.b16 %v544
      %v677 = vunpack.c.l.b16 %v545
      %v678 = vunpack.c.h.b16 %v545
      %v679 = vunpack.c.l.b16 %v546
      %v680 = vunpack.c.h.b16 %v546
      %v681 = vunpack.c.l.b16 %v547
      %v682 = vunpack.c.h.b16 %v547
      %v683 = vunpack.c.l.b16 %v548
      %v684 = vunpack.c.h.b16 %v548
      %v685 = vunpack.c.l.b16 %v549
      %v686 = vunpack.c.h.b16 %v549
      %v687 = vunpack.c.l.b16 %v550
      %v688 = vunpack.c.h.b16 %v550
      %v689 = vunpack.c.l.b16 %v551
      %v690 = vunpack.c.h.b16 %v551
      %v691 = vunpack.c.l.b16 %v552
      %v692 = vunpack.c.h.b16 %v552
      %v693 = vunpack.c.l.b16 %v553
      %v694 = vunpack.c.h.b16 %v553
      %v695 = vunpack.c.l.b16 %v554
      %v696 = vunpack.c.h.b16 %v554
      %v697 = vpack.c.b16 %v627, %v625
      %v698 = vpack.c.b16 %v628, %v626
      %v699 = vpack.c.b16 %v631, %v629
      %v700 = vpack.c.b16 %v632, %v630
      %v701 = vpack.c.b16 %v635, %v633
      %v702 = vpack.c.b16 %v636, %v634
      %v703 = vpack.c.b16 %v639, %v637
      %v704 = vpack.c.b16 %v640, %v638
      %v705 = vpack.c.b16 %v643, %v641
      %v706 = vpack.c.b16 %v644, %v642
      %v707 = vpack.c.b16 %v647, %v645
      %v708 = vpack.c.b16 %v648, %v646
      %v709 = vpack.c.b16 %v651, %v649
      %v710 = vpack.c.b16 %v652, %v650
      %v711 = vpack.c.b16 %v655, %v653
      %v712 = vpack.c.b16 %v656, %v654
      %v713 = vpack.c.b16 %v659, %v657
      %v714 = vpack.c.b16 %v660, %v658
      %v715 = vpack.c.b16 %v663, %v661
      %v716 = vpack.c.b16 %v664, %v662
      %v717 = vpack.c.b16 %v667, %v665
      %v718 = vpack.c.b16 %v668, %v666
      %v719 = vpack.c.b16 %v671, %v669
      %v720 = vpack.c.b16 %v672, %v670
      %v721 = vpack.c.b16 %v675, %v673
      %v722 = vpack.c.b16 %v676, %v674
      %v723 = vpack.c.b16 %v679, %v677
      %v724 = vpack.c.b16 %v680, %v678
      %v725 = vpack.c.b16 %v683, %v681
      %v726 = vpack.c.b16 %v684, %v682
      %v727 = vpack.c.b16 %v687, %v685
      %v728 = vpack.c.b16 %v688, %v686
      %v729 = vpack.c.b16 %v691, %v689
      %v730 = vpack.c.b16 %v692, %v690
      %v731 = vpack.c.b16 %v695, %v693
      %v732 = vpack.c.b16 %v696, %v694
      %v779 = vunpack.c.l.b16 %v555
      %v780 = vunpack.c.h.b16 %v555
      %v781 = vunpack.c.l.b16 %v556
      %v782 = vunpack.c.h.b16 %v556
      %v783 = vunpack.c.l.b16 %v557
      %v784 = vunpack.c.h.b16 %v557
      %v785 = vunpack.c.l.b16 %v558
      %v786 = vunpack.c.h.b16 %v558
      %v787 = vunpack.c.l.b16 %v559
      %v788 = vunpack.c.h.b16 %v559
      %v789 = vunpack.c.l.b16 %v560
      %v790 = vunpack.c.h.b16 %v560
      %v791 = vunpack.c.l.b16 %v561
      %v792 = vunpack.c.h.b16 %v561
      %v793 = vunpack.c.l.b16 %v562
      %v794 = vunpack.c.h.b16 %v562
      %v795 = vunpack.c.l.b16 %v563
      %v796 = vunpack.c.h.b16 %v563
      %v797 = vunpack.c.l.b16 %v564
      %v798 = vunpack.c.h.b16 %v564
      %v799 = vunpack.c.l.b16 %v565
      %v800 = vunpack.c.h.b16 %v565
      %v801 = vunpack.c.l.b16 %v566
      %v802 = vunpack.c.h.b16 %v566
      %v803 = vunpack.c.l.b16 %v567
      %v804 = vunpack.c.h.b16 %v567
      %v805 = vunpack.c.l.b16 %v568
      %v806 = vunpack.c.h.b16 %v568
      %v807 = vunpack.c.l.b16 %v569
      %v808 = vunpack.c.h.b16 %v569
      %v809 = vunpack.c.l.b16 %v570
      %v810 = vunpack.c.h.b16 %v570
      %v811 = vunpack.c.l.b16 %v571
      %v812 = vunpack.c.h.b16 %v571
      %v813 = vunpack.c.l.b16 %v572
      %v814 = vunpack.c.h.b16 %v572
      %v815 = vunpack.c.l.b16 %v573
      %v816 = vunpack.c.h.b16 %v573
      %v817 = vunpack.c.l.b16 %v574
      %v818 = vunpack.c.h.b16 %v574
      %v819 = vunpack.c.l.b16 %v575
      %v820 = vunpack.c.h.b16 %v575
      %v821 = vunpack.c.l.b16 %v576
      %v822 = vunpack.c.h.b16 %v576
      %v823 = vunpack.c.l.b16 %v577
      %v824 = vunpack.c.h.b16 %v577
      %v825 = vunpack.c.l.b16 %v578
      %v826 = vunpack.c.h.b16 %v578
      %v827 = vunpack.c.l.b16 %v579
      %v828 = vunpack.c.h.b16 %v579
      %v829 = vunpack.c.l.b16 %v580
      %v830 = vunpack.c.h.b16 %v580
      %v831 = vunpack.c.l.b16 %v581
      %v832 = vunpack.c.h.b16 %v581
      %v833 = vunpack.c.l.b16 %v582
      %v834 = vunpack.c.h.b16 %v582
      %v835 = vpack.c.b16 %v781, %v779
      %v836 = vpack.c.b16 %v782, %v780
      %v837 = vpack.c.b16 %v785, %v783
      %v838 = vpack.c.b16 %v786, %v784
      %v839 = vpack.c.b16 %v789, %v787
      %v840 = vpack.c.b16 %v790, %v788
      %v841 = vpack.c.b16 %v793, %v791
      %v842 = vpack.c.b16 %v794, %v792
      %v843 = vpack.c.b16 %v797, %v795
      %v844 = vpack.c.b16 %v798, %v796
      %v845 = vpack.c.b16 %v801, %v799
      %v846 = vpack.c.b16 %v802, %v800
      %v847 = vpack.c.b16 %v805, %v803
      %v848 = vpack.c.b16 %v806, %v804
      %v849 = vpack.c.b16 %v809, %v807
      %v850 = vpack.c.b16 %v810, %v808
      %v851 = vpack.c.b16 %v813, %v811
      %v852 = vpack.c.b16 %v814, %v812
      %v853 = vpack.c.b16 %v817, %v815
      %v854 = vpack.c.b16 %v818, %v816
      %v855 = vpack.c.b16 %v821, %v819
      %v856 = vpack.c.b16 %v822, %v820
      %v857 = vpack.c.b16 %v825, %v823
      %v858 = vpack.c.b16 %v826, %v824
      %v859 = vpack.c.b16 %v829, %v827
      %v860 = vpack.c.b16 %v830, %v828
      %v861 = vpack.c.b16 %v833, %v831
      %v862 = vpack.c.b16 %v834, %v832
      %vm891 = vcmask 785408
      %v893 = vsel %vm891, %v698, 0
      %v896 = vsel %vm891, %v700, 0
      %v899 = vsel %vm891, %v702, 0
      %v902 = vsel %vm891, %v704, 0
      %v905 = vsel %vm891, %v706, 0
      %v908 = vsel %vm891, %v708, 0
      %v911 = vsel %vm891, %v710, 0
      %v914 = vsel %vm891, %v712, 0
      %v917 = vsel %vm891, %v714, 0
      %v920 = vsel %vm891, %v716, 0
      %v923 = vsel %vm891, %v718, 0
      %v926 = vsel %vm891, %v720, 0
      %v929 = vsel %vm891, %v722, 0
      %v932 = vsel %vm891, %v724, 0
      %v935 = vsel %vm891, %v726, 0
      %v938 = vsel %vm891, %v728, 0
      %v941 = vsel %vm891, %v730, 0
      %v944 = vsel %vm891, %v732, 0
      %946 = vmatpush.bf16.msra.mxu0 %v849
      %947 = vmatpush.bf16.msra.mxu0 %v847
      %948 = vmatpush.bf16.msra.mxu0 %v845
      %949 = vmatpush.bf16.msra.mxu0 %v843
      %950 = vmatpush.bf16.msra.mxu0 %v841
      %951 = vmatpush.bf16.msra.mxu0 %v839
      %952 = vmatpush.bf16.msra.mxu0 %v837
      %953 = vmatpush.bf16.msra.mxu0 %v835
      %954 = vmatmul.bf16.gmra.mxu0 %v697
      %v955 = vpop.f32.mrf.mxu0
      %v956 = vadd.f32 %v585, %v955
      %v957 = vpop.f32.mrf.mxu0
      %v958 = vadd.f32 %v585, %v957
      %959 = vmatmul.bf16.gmra.mxu0 %v699
      %v960 = vpop.f32.mrf.mxu0
      %v961 = vadd.f32 %v585, %v960
      %v962 = vpop.f32.mrf.mxu0
      %v963 = vadd.f32 %v585, %v962
      %964 = vmatmul.bf16.gmra.mxu0 %v701
      %v965 = vpop.f32.mrf.mxu0
      %v966 = vadd.f32 %v585, %v965
      %v967 = vpop.f32.mrf.mxu0
      %v968 = vadd.f32 %v585, %v967
      %969 = vmatmul.bf16.gmra.mxu0 %v703
      %v970 = vpop.f32.mrf.mxu0
      %v971 = vadd.f32 %v585, %v970
      %v972 = vpop.f32.mrf.mxu0
      %v973 = vadd.f32 %v585, %v972
      %974 = vmatmul.bf16.gmra.mxu0 %v705
      %v975 = vpop.f32.mrf.mxu0
      %v976 = vadd.f32 %v585, %v975
      %v977 = vpop.f32.mrf.mxu0
      %v978 = vadd.f32 %v585, %v977
      %979 = vmatmul.bf16.gmra.mxu0 %v707
      %v980 = vpop.f32.mrf.mxu0
      %v981 = vadd.f32 %v585, %v980
      %v982 = vpop.f32.mrf.mxu0
      %v983 = vadd.f32 %v585, %v982
      %984 = vmatmul.bf16.gmra.mxu0 %v709
      %v985 = vpop.f32.mrf.mxu0
      %v986 = vadd.f32 %v585, %v985
      %v987 = vpop.f32.mrf.mxu0
      %v988 = vadd.f32 %v585, %v987
      %989 = vmatmul.bf16.gmra.mxu0 %v711
      %v990 = vpop.f32.mrf.mxu0
      %v991 = vadd.f32 %v585, %v990
      %v992 = vpop.f32.mrf.mxu0
      %v993 = vadd.f32 %v585, %v992
      %994 = vmatmul.bf16.gmra.mxu0 %v713
      %v995 = vpop.f32.mrf.mxu0
      %v996 = vadd.f32 %v585, %v995
      %v997 = vpop.f32.mrf.mxu0
      %v998 = vadd.f32 %v585, %v997
      %999 = vmatmul.bf16.gmra.mxu0 %v715
      %v1000 = vpop.f32.mrf.mxu0
      %v1001 = vadd.f32 %v585, %v1000
      %v1002 = vpop.f32.mrf.mxu0
      %v1003 = vadd.f32 %v585, %v1002
      %1004 = vmatmul.bf16.gmra.mxu0 %v717
      %v1005 = vpop.f32.mrf.mxu0
      %v1006 = vadd.f32 %v585, %v1005
      %v1007 = vpop.f32.mrf.mxu0
      %v1008 = vadd.f32 %v585, %v1007
      %1009 = vmatmul.bf16.gmra.mxu0 %v719
      %v1010 = vpop.f32.mrf.mxu0
      %v1011 = vadd.f32 %v585, %v1010
      %v1012 = vpop.f32.mrf.mxu0
      %v1013 = vadd.f32 %v585, %v1012
      %1014 = vmatmul.bf16.gmra.mxu0 %v721
      %v1015 = vpop.f32.mrf.mxu0
      %v1016 = vadd.f32 %v585, %v1015
      %v1017 = vpop.f32.mrf.mxu0
      %v1018 = vadd.f32 %v585, %v1017
      %1019 = vmatmul.bf16.gmra.mxu0 %v723
      %v1020 = vpop.f32.mrf.mxu0
      %v1021 = vadd.f32 %v585, %v1020
      %v1022 = vpop.f32.mrf.mxu0
      %v1023 = vadd.f32 %v585, %v1022
      %1024 = vmatmul.bf16.gmra.mxu0 %v725
      %v1025 = vpop.f32.mrf.mxu0
      %v1026 = vadd.f32 %v585, %v1025
      %v1027 = vpop.f32.mrf.mxu0
      %v1028 = vadd.f32 %v585, %v1027
      %1029 = vmatmul.bf16.gmra.mxu0 %v727
      %v1030 = vpop.f32.mrf.mxu0
      %v1031 = vadd.f32 %v585, %v1030
      %v1032 = vpop.f32.mrf.mxu0
      %v1033 = vadd.f32 %v585, %v1032
      %1034 = vmatmul.bf16.gmra.mxu0 %v729
      %v1035 = vpop.f32.mrf.mxu0
      %v1036 = vadd.f32 %v585, %v1035
      %v1037 = vpop.f32.mrf.mxu0
      %v1038 = vadd.f32 %v585, %v1037
      %1039 = vmatmul.bf16.gmra.mxu0 %v731
      %v1040 = vpop.f32.mrf.mxu0
      %v1041 = vadd.f32 %v585, %v1040
      %v1042 = vpop.f32.mrf.mxu0
      %v1043 = vadd.f32 %v585, %v1042
      %1044 = vdwg.mxu0
      %1045 = vmatpush.bf16.msra.mxu0 0
      %1046 = vmatpush.bf16.msra.mxu0 0
      %1047 = vmatpush.bf16.msra.mxu0 %v861
      %1048 = vmatpush.bf16.msra.mxu0 %v859
      %1049 = vmatpush.bf16.msra.mxu0 %v857
      %1050 = vmatpush.bf16.msra.mxu0 %v855
      %1051 = vmatpush.bf16.msra.mxu0 %v853
      %1052 = vmatpush.bf16.msra.mxu0 %v851
      %1053 = vmatmul.bf16.gmra.mxu0 %v893
      %v1054 = vpop.f32.mrf.mxu0
      %v1055 = vadd.f32 %v956, %v1054
      %v1056 = vpop.f32.mrf.mxu0
      %v1057 = vadd.f32 %v958, %v1056
      %1058 = vmatmul.bf16.gmra.mxu0 %v896
      %v1059 = vpop.f32.mrf.mxu0
      %v1060 = vadd.f32 %v961, %v1059
      %v1061 = vpop.f32.mrf.mxu0
      %v1062 = vadd.f32 %v963, %v1061
      %1063 = vmatmul.bf16.gmra.mxu0 %v899
      %v1064 = vpop.f32.mrf.mxu0
      %v1065 = vadd.f32 %v966, %v1064
      %v1066 = vpop.f32.mrf.mxu0
      %v1067 = vadd.f32 %v968, %v1066
      %1068 = vmatmul.bf16.gmra.mxu0 %v902
      %v1069 = vpop.f32.mrf.mxu0
      %v1070 = vadd.f32 %v971, %v1069
      %v1071 = vpop.f32.mrf.mxu0
      %v1072 = vadd.f32 %v973, %v1071
      %1073 = vmatmul.bf16.gmra.mxu0 %v905
      %v1074 = vpop.f32.mrf.mxu0
      %v1075 = vadd.f32 %v976, %v1074
      %v1076 = vpop.f32.mrf.mxu0
      %v1077 = vadd.f32 %v978, %v1076
      %1078 = vmatmul.bf16.gmra.mxu0 %v908
      %v1079 = vpop.f32.mrf.mxu0
      %v1080 = vadd.f32 %v981, %v1079
      %v1081 = vpop.f32.mrf.mxu0
      %v1082 = vadd.f32 %v983, %v1081
      %1083 = vmatmul.bf16.gmra.mxu0 %v911
      %v1084 = vpop.f32.mrf.mxu0
      %v1085 = vadd.f32 %v986, %v1084
      %v1086 = vpop.f32.mrf.mxu0
      %v1087 = vadd.f32 %v988, %v1086
      %1088 = vmatmul.bf16.gmra.mxu0 %v914
      %v1089 = vpop.f32.mrf.mxu0
      %v1090 = vadd.f32 %v991, %v1089
      %v1091 = vpop.f32.mrf.mxu0
      %v1092 = vadd.f32 %v993, %v1091
      %1093 = vmatmul.bf16.gmra.mxu0 %v917
      %v1094 = vpop.f32.mrf.mxu0
      %v1095 = vadd.f32 %v996, %v1094
      %v1096 = vpop.f32.mrf.mxu0
      %v1097 = vadd.f32 %v998, %v1096
      %1098 = vmatmul.bf16.gmra.mxu0 %v920
      %v1099 = vpop.f32.mrf.mxu0
      %v1100 = vadd.f32 %v1001, %v1099
      %v1101 = vpop.f32.mrf.mxu0
      %v1102 = vadd.f32 %v1003, %v1101
      %1103 = vmatmul.bf16.gmra.mxu0 %v923
      %v1104 = vpop.f32.mrf.mxu0
      %v1105 = vadd.f32 %v1006, %v1104
      %v1106 = vpop.f32.mrf.mxu0
      %v1107 = vadd.f32 %v1008, %v1106
      %1108 = vmatmul.bf16.gmra.mxu0 %v926
      %v1109 = vpop.f32.mrf.mxu0
      %v1110 = vadd.f32 %v1011, %v1109
      %v1111 = vpop.f32.mrf.mxu0
      %v1112 = vadd.f32 %v1013, %v1111
      %1113 = vmatmul.bf16.gmra.mxu0 %v929
      %v1114 = vpop.f32.mrf.mxu0
      %v1115 = vadd.f32 %v1016, %v1114
      %v1116 = vpop.f32.mrf.mxu0
      %v1117 = vadd.f32 %v1018, %v1116
      %1118 = vmatmul.bf16.gmra.mxu0 %v932
      %v1119 = vpop.f32.mrf.mxu0
      %v1120 = vadd.f32 %v1021, %v1119
      %v1121 = vpop.f32.mrf.mxu0
      %v1122 = vadd.f32 %v1023, %v1121
      %1123 = vmatmul.bf16.gmra.mxu0 %v935
      %v1124 = vpop.f32.mrf.mxu0
      %v1125 = vadd.f32 %v1026, %v1124
      %v1126 = vpop.f32.mrf.mxu0
      %v1127 = vadd.f32 %v1028, %v1126
      %1128 = vmatmul.bf16.gmra.mxu0 %v938
      %v1129 = vpop.f32.mrf.mxu0
      %v1130 = vadd.f32 %v1031, %v1129
      %v1131 = vpop.f32.mrf.mxu0
      %v1132 = vadd.f32 %v1033, %v1131
      %1133 = vmatmul.bf16.gmra.mxu0 %v941
      %v1134 = vpop.f32.mrf.mxu0
      %v1135 = vadd.f32 %v1036, %v1134
      %v1136 = vpop.f32.mrf.mxu0
      %v1137 = vadd.f32 %v1038, %v1136
      %1138 = vmatmul.bf16.gmra.mxu0 %v944
      %v1139 = vpop.f32.mrf.mxu0
      %v1140 = vadd.f32 %v1041, %v1139
      %v1141 = vpop.f32.mrf.mxu0
      %v1142 = vadd.f32 %v1043, %v1141
      %1143 = vdwg.mxu0
      %1144 = vmatpush.bf16.msra.mxu0 %v850
      %1145 = vmatpush.bf16.msra.mxu0 %v848
      %1146 = vmatpush.bf16.msra.mxu0 %v846
      %1147 = vmatpush.bf16.msra.mxu0 %v844
      %1148 = vmatpush.bf16.msra.mxu0 %v842
      %1149 = vmatpush.bf16.msra.mxu0 %v840
      %1150 = vmatpush.bf16.msra.mxu0 %v838
      %1151 = vmatpush.bf16.msra.mxu0 %v836
      %1152 = vmatmul.bf16.gmra.mxu0 %v697
      %v1153 = vpop.f32.mrf.mxu0
      %v1154 = vadd.f32 %v586, %v1153
      %v1155 = vpop.f32.mrf.mxu0
      %v1156 = vadd.f32 %v586, %v1155
      %1157 = vmatmul.bf16.gmra.mxu0 %v699
      %v1158 = vpop.f32.mrf.mxu0
      %v1159 = vadd.f32 %v586, %v1158
      %v1160 = vpop.f32.mrf.mxu0
      %v1161 = vadd.f32 %v586, %v1160
      %1162 = vmatmul.bf16.gmra.mxu0 %v701
      %v1163 = vpop.f32.mrf.mxu0
      %v1164 = vadd.f32 %v586, %v1163
      %v1165 = vpop.f32.mrf.mxu0
      %v1166 = vadd.f32 %v586, %v1165
      %1167 = vmatmul.bf16.gmra.mxu0 %v703
      %v1168 = vpop.f32.mrf.mxu0
      %v1169 = vadd.f32 %v586, %v1168
      %v1170 = vpop.f32.mrf.mxu0
      %v1171 = vadd.f32 %v586, %v1170
      %1172 = vmatmul.bf16.gmra.mxu0 %v705
      %v1173 = vpop.f32.mrf.mxu0
      %v1174 = vadd.f32 %v586, %v1173
      %v1175 = vpop.f32.mrf.mxu0
      %v1176 = vadd.f32 %v586, %v1175
      %1177 = vmatmul.bf16.gmra.mxu0 %v707
      %v1178 = vpop.f32.mrf.mxu0
      %v1179 = vadd.f32 %v586, %v1178
      %v1180 = vpop.f32.mrf.mxu0
      %v1181 = vadd.f32 %v586, %v1180
      %1182 = vmatmul.bf16.gmra.mxu0 %v709
      %v1183 = vpop.f32.mrf.mxu0
      %v1184 = vadd.f32 %v586, %v1183
      %v1185 = vpop.f32.mrf.mxu0
      %v1186 = vadd.f32 %v586, %v1185
      %1187 = vmatmul.bf16.gmra.mxu0 %v711
      %v1188 = vpop.f32.mrf.mxu0
      %v1189 = vadd.f32 %v586, %v1188
      %v1190 = vpop.f32.mrf.mxu0
      %v1191 = vadd.f32 %v586, %v1190
      %1192 = vmatmul.bf16.gmra.mxu0 %v713
      %v1193 = vpop.f32.mrf.mxu0
      %v1194 = vadd.f32 %v586, %v1193
      %v1195 = vpop.f32.mrf.mxu0
      %v1196 = vadd.f32 %v586, %v1195
      %1197 = vmatmul.bf16.gmra.mxu0 %v715
      %v1198 = vpop.f32.mrf.mxu0
      %v1199 = vadd.f32 %v586, %v1198
      %v1200 = vpop.f32.mrf.mxu0
      %v1201 = vadd.f32 %v586, %v1200
      %1202 = vmatmul.bf16.gmra.mxu0 %v717
      %v1203 = vpop.f32.mrf.mxu0
      %v1204 = vadd.f32 %v586, %v1203
      %v1205 = vpop.f32.mrf.mxu0
      %v1206 = vadd.f32 %v586, %v1205
      %1207 = vmatmul.bf16.gmra.mxu0 %v719
      %v1208 = vpop.f32.mrf.mxu0
      %v1209 = vadd.f32 %v586, %v1208
      %v1210 = vpop.f32.mrf.mxu0
      %v1211 = vadd.f32 %v586, %v1210
      %1212 = vmatmul.bf16.gmra.mxu0 %v721
      %v1213 = vpop.f32.mrf.mxu0
      %v1214 = vadd.f32 %v586, %v1213
      %v1215 = vpop.f32.mrf.mxu0
      %v1216 = vadd.f32 %v586, %v1215
      %1217 = vmatmul.bf16.gmra.mxu0 %v723
      %v1218 = vpop.f32.mrf.mxu0
      %v1219 = vadd.f32 %v586, %v1218
      %v1220 = vpop.f32.mrf.mxu0
      %v1221 = vadd.f32 %v586, %v1220
      %1222 = vmatmul.bf16.gmra.mxu0 %v725
      %v1223 = vpop.f32.mrf.mxu0
      %v1224 = vadd.f32 %v586, %v1223
      %v1225 = vpop.f32.mrf.mxu0
      %v1226 = vadd.f32 %v586, %v1225
      %1227 = vmatmul.bf16.gmra.mxu0 %v727
      %v1228 = vpop.f32.mrf.mxu0
      %v1229 = vadd.f32 %v586, %v1228
      %v1230 = vpop.f32.mrf.mxu0
      %v1231 = vadd.f32 %v586, %v1230
      %1232 = vmatmul.bf16.gmra.mxu0 %v729
      %v1233 = vpop.f32.mrf.mxu0
      %v1234 = vadd.f32 %v586, %v1233
      %v1235 = vpop.f32.mrf.mxu0
      %v1236 = vadd.f32 %v586, %v1235
      %1237 = vmatmul.bf16.gmra.mxu0 %v731
      %v1238 = vpop.f32.mrf.mxu0
      %v1239 = vadd.f32 %v586, %v1238
      %v1240 = vpop.f32.mrf.mxu0
      %v1241 = vadd.f32 %v586, %v1240
      %1242 = vdwg.mxu0
      %1243 = vmatpush.bf16.msra.mxu0 0
      %1244 = vmatpush.bf16.msra.mxu0 0
      %1245 = vmatpush.bf16.msra.mxu0 %v862
      %1246 = vmatpush.bf16.msra.mxu0 %v860
      %1247 = vmatpush.bf16.msra.mxu0 %v858
      %1248 = vmatpush.bf16.msra.mxu0 %v856
      %1249 = vmatpush.bf16.msra.mxu0 %v854
      %1250 = vmatpush.bf16.msra.mxu0 %v852
      %1251 = vmatmul.bf16.gmra.mxu0 %v893
      %v1252 = vpop.f32.mrf.mxu0
      %v1253 = vadd.f32 %v1154, %v1252
      %v1254 = vpop.f32.mrf.mxu0
      %v1255 = vadd.f32 %v1156, %v1254
      %1256 = vmatmul.bf16.gmra.mxu0 %v896
      %v1257 = vpop.f32.mrf.mxu0
      %v1258 = vadd.f32 %v1159, %v1257
      %v1259 = vpop.f32.mrf.mxu0
      %v1260 = vadd.f32 %v1161, %v1259
      %1261 = vmatmul.bf16.gmra.mxu0 %v899
      %v1262 = vpop.f32.mrf.mxu0
      %v1263 = vadd.f32 %v1164, %v1262
      %v1264 = vpop.f32.mrf.mxu0
      %v1265 = vadd.f32 %v1166, %v1264
      %1266 = vmatmul.bf16.gmra.mxu0 %v902
      %v1267 = vpop.f32.mrf.mxu0
      %v1268 = vadd.f32 %v1169, %v1267
      %v1269 = vpop.f32.mrf.mxu0
      %v1270 = vadd.f32 %v1171, %v1269
      %1271 = vmatmul.bf16.gmra.mxu0 %v905
      %v1272 = vpop.f32.mrf.mxu0
      %v1273 = vadd.f32 %v1174, %v1272
      %v1274 = vpop.f32.mrf.mxu0
      %v1275 = vadd.f32 %v1176, %v1274
      %1276 = vmatmul.bf16.gmra.mxu0 %v908
      %v1277 = vpop.f32.mrf.mxu0
      %v1278 = vadd.f32 %v1179, %v1277
      %v1279 = vpop.f32.mrf.mxu0
      %v1280 = vadd.f32 %v1181, %v1279
      %1281 = vmatmul.bf16.gmra.mxu0 %v911
      %v1282 = vpop.f32.mrf.mxu0
      %v1283 = vadd.f32 %v1184, %v1282
      %v1284 = vpop.f32.mrf.mxu0
      %v1285 = vadd.f32 %v1186, %v1284
      %1286 = vmatmul.bf16.gmra.mxu0 %v914
      %v1287 = vpop.f32.mrf.mxu0
      %v1288 = vadd.f32 %v1189, %v1287
      %v1289 = vpop.f32.mrf.mxu0
      %v1290 = vadd.f32 %v1191, %v1289
      %1291 = vmatmul.bf16.gmra.mxu0 %v917
      %v1292 = vpop.f32.mrf.mxu0
      %v1293 = vadd.f32 %v1194, %v1292
      %v1294 = vpop.f32.mrf.mxu0
      %v1295 = vadd.f32 %v1196, %v1294
      %1296 = vmatmul.bf16.gmra.mxu0 %v920
      %v1297 = vpop.f32.mrf.mxu0
      %v1298 = vadd.f32 %v1199, %v1297
      %v1299 = vpop.f32.mrf.mxu0
      %v1300 = vadd.f32 %v1201, %v1299
      %1301 = vmatmul.bf16.gmra.mxu0 %v923
      %v1302 = vpop.f32.mrf.mxu0
      %v1303 = vadd.f32 %v1204, %v1302
      %v1304 = vpop.f32.mrf.mxu0
      %v1305 = vadd.f32 %v1206, %v1304
      %1306 = vmatmul.bf16.gmra.mxu0 %v926
      %v1307 = vpop.f32.mrf.mxu0
      %v1308 = vadd.f32 %v1209, %v1307
      %v1309 = vpop.f32.mrf.mxu0
      %v1310 = vadd.f32 %v1211, %v1309
      %1311 = vmatmul.bf16.gmra.mxu0 %v929
      %v1312 = vpop.f32.mrf.mxu0
      %v1313 = vadd.f32 %v1214, %v1312
      %v1314 = vpop.f32.mrf.mxu0
      %v1315 = vadd.f32 %v1216, %v1314
      %1316 = vmatmul.bf16.gmra.mxu0 %v932
      %v1317 = vpop.f32.mrf.mxu0
      %v1318 = vadd.f32 %v1219, %v1317
      %v1319 = vpop.f32.mrf.mxu0
      %v1320 = vadd.f32 %v1221, %v1319
      %1321 = vmatmul.bf16.gmra.mxu0 %v935
      %v1322 = vpop.f32.mrf.mxu0
      %v1323 = vadd.f32 %v1224, %v1322
      %v1324 = vpop.f32.mrf.mxu0
      %v1325 = vadd.f32 %v1226, %v1324
      %1326 = vmatmul.bf16.gmra.mxu0 %v938
      %v1327 = vpop.f32.mrf.mxu0
      %v1328 = vadd.f32 %v1229, %v1327
      %v1329 = vpop.f32.mrf.mxu0
      %v1330 = vadd.f32 %v1231, %v1329
      %1331 = vmatmul.bf16.gmra.mxu0 %v941
      %v1332 = vpop.f32.mrf.mxu0
      %v1333 = vadd.f32 %v1234, %v1332
      %v1334 = vpop.f32.mrf.mxu0
      %v1335 = vadd.f32 %v1236, %v1334
      %1336 = vmatmul.bf16.gmra.mxu0 %v944
      %v1337 = vpop.f32.mrf.mxu0
      %v1338 = vadd.f32 %v1239, %v1337
      %v1339 = vpop.f32.mrf.mxu0
      %v1340 = vadd.f32 %v1241, %v1339
      %1341 = vdwg.mxu0
      %v1342 = vmax.f32 %v1055, 0.0
      %v1343 = vmax.f32 %v1253, 0.0
      %v1344 = vmax.f32 %v1057, 0.0
      %v1345 = vmax.f32 %v1255, 0.0
      %v1346 = vmax.f32 %v1060, 0.0
      %v1347 = vmax.f32 %v1258, 0.0
      %v1348 = vmax.f32 %v1062, 0.0
      %v1349 = vmax.f32 %v1260, 0.0
      %v1350 = vmax.f32 %v1065, 0.0
      %v1351 = vmax.f32 %v1263, 0.0
      %v1352 = vmax.f32 %v1067, 0.0
      %v1353 = vmax.f32 %v1265, 0.0
      %v1354 = vmax.f32 %v1070, 0.0
      %v1355 = vmax.f32 %v1268, 0.0
      %v1356 = vmax.f32 %v1072, 0.0
      %v1357 = vmax.f32 %v1270, 0.0
      %v1358 = vmax.f32 %v1075, 0.0
      %v1359 = vmax.f32 %v1273, 0.0
      %v1360 = vmax.f32 %v1077, 0.0
      %v1361 = vmax.f32 %v1275, 0.0
      %v1362 = vmax.f32 %v1080, 0.0
      %v1363 = vmax.f32 %v1278, 0.0
      %v1364 = vmax.f32 %v1082, 0.0
      %v1365 = vmax.f32 %v1280, 0.0
      %v1366 = vmax.f32 %v1085, 0.0
      %v1367 = vmax.f32 %v1283, 0.0
      %v1368 = vmax.f32 %v1087, 0.0
      %v1369 = vmax.f32 %v1285, 0.0
      %v1370 = vmax.f32 %v1090, 0.0
      %v1371 = vmax.f32 %v1288, 0.0
      %v1372 = vmax.f32 %v1092, 0.0
      %v1373 = vmax.f32 %v1290, 0.0
      %v1374 = vmax.f32 %v1095, 0.0
      %v1375 = vmax.f32 %v1293, 0.0
      %v1376 = vmax.f32 %v1097, 0.0
      %v1377 = vmax.f32 %v1295, 0.0
      %v1378 = vmax.f32 %v1100, 0.0
      %v1379 = vmax.f32 %v1298, 0.0
      %v1380 = vmax.f32 %v1102, 0.0
      %v1381 = vmax.f32 %v1300, 0.0
      %v1382 = vmax.f32 %v1105, 0.0
      %v1383 = vmax.f32 %v1303, 0.0
      %v1384 = vmax.f32 %v1107, 0.0
      %v1385 = vmax.f32 %v1305, 0.0
      %v1386 = vmax.f32 %v1110, 0.0
      %v1387 = vmax.f32 %v1308, 0.0
      %v1388 = vmax.f32 %v1112, 0.0
      %v1389 = vmax.f32 %v1310, 0.0
      %v1390 = vmax.f32 %v1115, 0.0
      %v1391 = vmax.f32 %v1313, 0.0
      %v1392 = vmax.f32 %v1117, 0.0
      %v1393 = vmax.f32 %v1315, 0.0
      %v1394 = vmax.f32 %v1120, 0.0
      %v1395 = vmax.f32 %v1318, 0.0
      %v1396 = vmax.f32 %v1122, 0.0
      %v1397 = vmax.f32 %v1320, 0.0
      %v1398 = vmax.f32 %v1125, 0.0
      %v1399 = vmax.f32 %v1323, 0.0
      %v1400 = vmax.f32 %v1127, 0.0
      %v1401 = vmax.f32 %v1325, 0.0
      %v1402 = vmax.f32 %v1130, 0.0
      %v1403 = vmax.f32 %v1328, 0.0
      %v1404 = vmax.f32 %v1132, 0.0
      %v1405 = vmax.f32 %v1330, 0.0
      %v1406 = vmax.f32 %v1135, 0.0
      %v1407 = vmax.f32 %v1333, 0.0
      %v1408 = vmax.f32 %v1137, 0.0
      %v1409 = vmax.f32 %v1335, 0.0
      %v1410 = vmax.f32 %v1140, 0.0
      %v1411 = vmax.f32 %v1338, 0.0
      %v1412 = vmax.f32 %v1142, 0.0
      %v1413 = vmax.f32 %v1340, 0.0
      %v1414 = vld [vmem:[%s6] sm:$0x3]
      %v1416 = vperm.slane %v1414, 0
      %v1417 = vperm.slane %v1414, 1
      %v1420 = vmul.f32 %v1342, %v1416
      %v1421 = vmul.f32 %v1343, %v1417
      %v1422 = vmul.f32 %v1344, %v1416
      %v1423 = vmul.f32 %v1345, %v1417
      %v1424 = vmul.f32 %v1346, %v1416
      %v1425 = vmul.f32 %v1347, %v1417
      %v1426 = vmul.f32 %v1348, %v1416
      %v1427 = vmul.f32 %v1349, %v1417
      %v1428 = vmul.f32 %v1350, %v1416
      %v1429 = vmul.f32 %v1351, %v1417
      %v1430 = vmul.f32 %v1352, %v1416
      %v1431 = vmul.f32 %v1353, %v1417
      %v1432 = vmul.f32 %v1354, %v1416
      %v1433 = vmul.f32 %v1355, %v1417
      %v1434 = vmul.f32 %v1356, %v1416
      %v1435 = vmul.f32 %v1357, %v1417
      %v1436 = vmul.f32 %v1358, %v1416
      %v1437 = vmul.f32 %v1359, %v1417
      %v1438 = vmul.f32 %v1360, %v1416
      %v1439 = vmul.f32 %v1361, %v1417
      %v1440 = vmul.f32 %v1362, %v1416
      %v1441 = vmul.f32 %v1363, %v1417
      %v1442 = vmul.f32 %v1364, %v1416
      %v1443 = vmul.f32 %v1365, %v1417
      %v1444 = vmul.f32 %v1366, %v1416
      %v1445 = vmul.f32 %v1367, %v1417
      %v1446 = vmul.f32 %v1368, %v1416
      %v1447 = vmul.f32 %v1369, %v1417
      %v1448 = vmul.f32 %v1370, %v1416
      %v1449 = vmul.f32 %v1371, %v1417
      %v1450 = vmul.f32 %v1372, %v1416
      %v1451 = vmul.f32 %v1373, %v1417
      %v1452 = vmul.f32 %v1374, %v1416
      %v1453 = vmul.f32 %v1375, %v1417
      %v1454 = vmul.f32 %v1376, %v1416
      %v1455 = vmul.f32 %v1377, %v1417
      %v1456 = vmul.f32 %v1378, %v1416
      %v1457 = vmul.f32 %v1379, %v1417
      %v1458 = vmul.f32 %v1380, %v1416
      %v1459 = vmul.f32 %v1381, %v1417
      %v1460 = vmul.f32 %v1382, %v1416
      %v1461 = vmul.f32 %v1383, %v1417
      %v1462 = vmul.f32 %v1384, %v1416
      %v1463 = vmul.f32 %v1385, %v1417
      %v1464 = vmul.f32 %v1386, %v1416
      %v1465 = vmul.f32 %v1387, %v1417
      %v1466 = vmul.f32 %v1388, %v1416
      %v1467 = vmul.f32 %v1389, %v1417
      %v1468 = vmul.f32 %v1390, %v1416
      %v1469 = vmul.f32 %v1391, %v1417
      %v1470 = vmul.f32 %v1392, %v1416
      %v1471 = vmul.f32 %v1393, %v1417
      %v1472 = vmul.f32 %v1394, %v1416
      %v1473 = vmul.f32 %v1395, %v1417
      %v1474 = vmul.f32 %v1396, %v1416
      %v1475 = vmul.f32 %v1397, %v1417
      %v1476 = vmul.f32 %v1398, %v1416
      %v1477 = vmul.f32 %v1399, %v1417
      %v1478 = vmul.f32 %v1400, %v1416
      %v1479 = vmul.f32 %v1401, %v1417
      %v1480 = vmul.f32 %v1402, %v1416
      %v1481 = vmul.f32 %v1403, %v1417
      %v1482 = vmul.f32 %v1404, %v1416
      %v1483 = vmul.f32 %v1405, %v1417
      %v1484 = vmul.f32 %v1406, %v1416
      %v1485 = vmul.f32 %v1407, %v1417
      %v1486 = vmul.f32 %v1408, %v1416
      %v1487 = vmul.f32 %v1409, %v1417
      %v1488 = vmul.f32 %v1410, %v1416
      %v1489 = vmul.f32 %v1411, %v1417
      %v1490 = vmul.f32 %v1412, %v1416
      %v1491 = vmul.f32 %v1413, %v1417
      %v1492 = vld [vmem:[%s7] sm:$0x3]
      %v1494 = vperm.slane %v1492, 0
      %v1495 = vperm.slane %v1492, 1
      %v1498 = vadd.f32 %v1420, %v1494
      %v1499 = vadd.f32 %v1421, %v1495
      %v1500 = vadd.f32 %v1422, %v1494
      %v1501 = vadd.f32 %v1423, %v1495
      %v1502 = vadd.f32 %v1424, %v1494
      %v1503 = vadd.f32 %v1425, %v1495
      %v1504 = vadd.f32 %v1426, %v1494
      %v1505 = vadd.f32 %v1427, %v1495
      %v1506 = vadd.f32 %v1428, %v1494
      %v1507 = vadd.f32 %v1429, %v1495
      %v1508 = vadd.f32 %v1430, %v1494
      %v1509 = vadd.f32 %v1431, %v1495
      %v1510 = vadd.f32 %v1432, %v1494
      %v1511 = vadd.f32 %v1433, %v1495
      %v1512 = vadd.f32 %v1434, %v1494
      %v1513 = vadd.f32 %v1435, %v1495
      %v1514 = vadd.f32 %v1436, %v1494
      %v1515 = vadd.f32 %v1437, %v1495
      %v1516 = vadd.f32 %v1438, %v1494
      %v1517 = vadd.f32 %v1439, %v1495
      %v1518 = vadd.f32 %v1440, %v1494
      %v1519 = vadd.f32 %v1441, %v1495
      %v1520 = vadd.f32 %v1442, %v1494
      %v1521 = vadd.f32 %v1443, %v1495
      %v1522 = vadd.f32 %v1444, %v1494
      %v1523 = vadd.f32 %v1445, %v1495
      %v1524 = vadd.f32 %v1446, %v1494
      %v1525 = vadd.f32 %v1447, %v1495
      %v1526 = vadd.f32 %v1448, %v1494
      %v1527 = vadd.f32 %v1449, %v1495
      %v1528 = vadd.f32 %v1450, %v1494
      %v1529 = vadd.f32 %v1451, %v1495
      %v1530 = vadd.f32 %v1452, %v1494
      %v1531 = vadd.f32 %v1453, %v1495
      %v1532 = vadd.f32 %v1454, %v1494
      %v1533 = vadd.f32 %v1455, %v1495
      %v1534 = vadd.f32 %v1456, %v1494
      %v1535 = vadd.f32 %v1457, %v1495
      %v1536 = vadd.f32 %v1458, %v1494
      %v1537 = vadd.f32 %v1459, %v1495
      %v1538 = vadd.f32 %v1460, %v1494
      %v1539 = vadd.f32 %v1461, %v1495
      %v1540 = vadd.f32 %v1462, %v1494
      %v1541 = vadd.f32 %v1463, %v1495
      %v1542 = vadd.f32 %v1464, %v1494
      %v1543 = vadd.f32 %v1465, %v1495
      %v1544 = vadd.f32 %v1466, %v1494
      %v1545 = vadd.f32 %v1467, %v1495
      %v1546 = vadd.f32 %v1468, %v1494
      %v1547 = vadd.f32 %v1469, %v1495
      %v1548 = vadd.f32 %v1470, %v1494
      %v1549 = vadd.f32 %v1471, %v1495
      %v1550 = vadd.f32 %v1472, %v1494
      %v1551 = vadd.f32 %v1473, %v1495
      %v1552 = vadd.f32 %v1474, %v1494
      %v1553 = vadd.f32 %v1475, %v1495
      %v1554 = vadd.f32 %v1476, %v1494
      %v1555 = vadd.f32 %v1477, %v1495
      %v1556 = vadd.f32 %v1478, %v1494
      %v1557 = vadd.f32 %v1479, %v1495
      %v1558 = vadd.f32 %v1480, %v1494
      %v1559 = vadd.f32 %v1481, %v1495
      %v1560 = vadd.f32 %v1482, %v1494
      %v1561 = vadd.f32 %v1483, %v1495
      %v1562 = vadd.f32 %v1484, %v1494
      %v1563 = vadd.f32 %v1485, %v1495
      %v1564 = vadd.f32 %v1486, %v1494
      %v1565 = vadd.f32 %v1487, %v1495
      %v1566 = vadd.f32 %v1488, %v1494
      %v1567 = vadd.f32 %v1489, %v1495
      %v1568 = vadd.f32 %v1490, %v1494
      %v1569 = vadd.f32 %v1491, %v1495
      %1570 = vst [vmem:[#allocation2] sm:$0xff] %v1498
      %1571 = vst [vmem:[#allocation2 + $0x8] sm:$0xff] %v1499
      %1572 = vst [vmem:[#allocation2 + $0x10] sm:$0xff] %v1500
      %1573 = vst [vmem:[#allocation2 + $0x18] sm:$0xff] %v1501
      %1574 = vst [vmem:[#allocation2 + $0x20] sm:$0xff] %v1502
      %1575 = vst [vmem:[#allocation2 + $0x28] sm:$0xff] %v1503
      %1576 = vst [vmem:[#allocation2 + $0x30] sm:$0xff] %v1504
      %1577 = vst [vmem:[#allocation2 + $0x38] sm:$0xff] %v1505
      %1578 = vst [vmem:[#allocation2 + $0x40] sm:$0xff] %v1506
      %1579 = vst [vmem:[#allocation2 + $0x48] sm:$0xff] %v1507
      %1580 = vst [vmem:[#allocation2 + $0x50] sm:$0xff] %v1508
      %1581 = vst [vmem:[#allocation2 + $0x58] sm:$0xff] %v1509
      %1582 = vst [vmem:[#allocation2 + $0x60] sm:$0xff] %v1510
      %1583 = vst [vmem:[#allocation2 + $0x68] sm:$0xff] %v1511
      %1584 = vst [vmem:[#allocation2 + $0x70] sm:$0xff] %v1512
      %1585 = vst [vmem:[#allocation2 + $0x78] sm:$0xff] %v1513
      %1586 = vst [vmem:[#allocation2 + $0x80] sm:$0xff] %v1514
      %1587 = vst [vmem:[#allocation2 + $0x88] sm:$0xff] %v1515
      %1588 = vst [vmem:[#allocation2 + $0x90] sm:$0xff] %v1516
      %1589 = vst [vmem:[#allocation2 + $0x98] sm:$0xff] %v1517
      %1590 = vst [vmem:[#allocation2 + $0xa0] sm:$0xff] %v1518
      %1591 = vst [vmem:[#allocation2 + $0xa8] sm:$0xff] %v1519
      %1592 = vst [vmem:[#allocation2 + $0xb0] sm:$0xff] %v1520
      %1593 = vst [vmem:[#allocation2 + $0xb8] sm:$0xff] %v1521
      %1594 = vst [vmem:[#allocation2 + $0xc0] sm:$0xff] %v1522
      %1595 = vst [vmem:[#allocation2 + $0xc8] sm:$0xff] %v1523
      %1596 = vst [vmem:[#allocation2 + $0xd0] sm:$0xff] %v1524
      %1597 = vst [vmem:[#allocation2 + $0xd8] sm:$0xff] %v1525
      %1598 = vst [vmem:[#allocation2 + $0xe0] sm:$0xff] %v1526
      %1599 = vst [vmem:[#allocation2 + $0xe8] sm:$0xff] %v1527
      %1600 = vst [vmem:[#allocation2 + $0xf0] sm:$0xff] %v1528
      %1601 = vst [vmem:[#allocation2 + $0xf8] sm:$0xff] %v1529
      %1602 = vst [vmem:[#allocation2 + $0x100] sm:$0xff] %v1530
      %1603 = vst [vmem:[#allocation2 + $0x108] sm:$0xff] %v1531
      %1604 = vst [vmem:[#allocation2 + $0x110] sm:$0xff] %v1532
      %1605 = vst [vmem:[#allocation2 + $0x118] sm:$0xff] %v1533
      %1606 = vst [vmem:[#allocation2 + $0x120] sm:$0xff] %v1534
      %1607 = vst [vmem:[#allocation2 + $0x128] sm:$0xff] %v1535
      %1608 = vst [vmem:[#allocation2 + $0x130] sm:$0xff] %v1536
      %1609 = vst [vmem:[#allocation2 + $0x138] sm:$0xff] %v1537
      %1610 = vst [vmem:[#allocation2 + $0x140] sm:$0xff] %v1538
      %1611 = vst [vmem:[#allocation2 + $0x148] sm:$0xff] %v1539
      %1612 = vst [vmem:[#allocation2 + $0x150] sm:$0xff] %v1540
      %1613 = vst [vmem:[#allocation2 + $0x158] sm:$0xff] %v1541
      %1614 = vst [vmem:[#allocation2 + $0x160] sm:$0xff] %v1542
      %1615 = vst [vmem:[#allocation2 + $0x168] sm:$0xff] %v1543
      %1616 = vst [vmem:[#allocation2 + $0x170] sm:$0xff] %v1544
      %1617 = vst [vmem:[#allocation2 + $0x178] sm:$0xff] %v1545
      %1618 = vst [vmem:[#allocation2 + $0x180] sm:$0xff] %v1546
      %1619 = vst [vmem:[#allocation2 + $0x188] sm:$0xff] %v1547
      %1620 = vst [vmem:[#allocation2 + $0x190] sm:$0xff] %v1548
      %1621 = vst [vmem:[#allocation2 + $0x198] sm:$0xff] %v1549
      %1622 = vst [vmem:[#allocation2 + $0x1a0] sm:$0xff] %v1550
      %1623 = vst [vmem:[#allocation2 + $0x1a8] sm:$0xff] %v1551
      %1624 = vst [vmem:[#allocation2 + $0x1b0] sm:$0xff] %v1552
      %1625 = vst [vmem:[#allocation2 + $0x1b8] sm:$0xff] %v1553
      %1626 = vst [vmem:[#allocation2 + $0x1c0] sm:$0xff] %v1554
      %1627 = vst [vmem:[#allocation2 + $0x1c8] sm:$0xff] %v1555
      %1628 = vst [vmem:[#allocation2 + $0x1d0] sm:$0xff] %v1556
      %1629 = vst [vmem:[#allocation2 + $0x1d8] sm:$0xff] %v1557
      %1630 = vst [vmem:[#allocation2 + $0x1e0] sm:$0xff] %v1558
      %1631 = vst [vmem:[#allocation2 + $0x1e8] sm:$0xff] %v1559
      %1632 = vst [vmem:[#allocation2 + $0x1f0] sm:$0xff] %v1560
      %1633 = vst [vmem:[#allocation2 + $0x1f8] sm:$0xff] %v1561
      %1634 = vst [vmem:[#allocation2 + $0x200] sm:$0xff] %v1562
      %1635 = vst [vmem:[#allocation2 + $0x208] sm:$0xff] %v1563
      %1636 = vst [vmem:[#allocation2 + $0x210] sm:$0xff] %v1564
      %1637 = vst [vmem:[#allocation2 + $0x218] sm:$0xff] %v1565
      %1638 = vst [vmem:[#allocation2 + $0x220] sm:$0xff] %v1566
      %1639 = vst [vmem:[#allocation2 + $0x228] sm:$0xff] %v1567
      %1640 = vst [vmem:[#allocation2 + $0x230] sm:$0xff] %v1568
      %1641 = vst [vmem:[#allocation2 + $0x238] sm:$0xff] %v1569
      %s1642 = scalar_lea.vmem %s514, 288
      %v1643 = vld [vmem:[%s1642] sm:$0xff]
      %v1644 = vld [vmem:[%s1642 + $0x8] sm:$0xff]
      %v1645 = vld [vmem:[%s1642 + $0x10] sm:$0xff]
      %v1646 = vld [vmem:[%s1642 + $0x18] sm:$0xff]
      %v1647 = vld [vmem:[%s1642 + $0x20] sm:$0xff]
      %v1648 = vld [vmem:[%s1642 + $0x28] sm:$0xff]
      %v1649 = vld [vmem:[%s1642 + $0x30] sm:$0xff]
      %v1650 = vld [vmem:[%s1642 + $0x38] sm:$0xff]
      %v1651 = vld [vmem:[%s1642 + $0x40] sm:$0xff]
      %v1652 = vld [vmem:[%s1642 + $0x48] sm:$0xff]
      %v1653 = vld [vmem:[%s1642 + $0x50] sm:$0xff]
      %v1654 = vld [vmem:[%s1642 + $0x58] sm:$0xff]
      %v1655 = vld [vmem:[%s1642 + $0x60] sm:$0xff]
      %v1656 = vld [vmem:[%s1642 + $0x68] sm:$0xff]
      %v1657 = vld [vmem:[%s1642 + $0x70] sm:$0xff]
      %v1658 = vld [vmem:[%s1642 + $0x78] sm:$0xff]
      %v1659 = vld [vmem:[%s1642 + $0x80] sm:$0xff]
      %v1660 = vld [vmem:[%s1642 + $0x88] sm:$0xff]
      %v1661 = vld [vmem:[%s1642 + $0x90] sm:$0xff]
      %v1662 = vld [vmem:[%s1642 + $0x98] sm:$0xff]
      %v1663 = vld [vmem:[%s1642 + $0xa0] sm:$0xff]
      %v1664 = vld [vmem:[%s1642 + $0xa8] sm:$0xff]
      %v1665 = vld [vmem:[%s1642 + $0xb0] sm:$0xff]
      %v1666 = vld [vmem:[%s1642 + $0xb8] sm:$0xff]
      %v1667 = vld [vmem:[%s1642 + $0xc0] sm:$0xff]
      %v1668 = vld [vmem:[%s1642 + $0xc8] sm:$0xff]
      %v1669 = vld [vmem:[%s1642 + $0xd0] sm:$0xff]
      %v1670 = vld [vmem:[%s1642 + $0xd8] sm:$0xff]
      %v1671 = vld [vmem:[%s1642 + $0xe0] sm:$0xff]
      %v1672 = vld [vmem:[%s1642 + $0xe8] sm:$0xff]
      %v1673 = vld [vmem:[%s1642 + $0xf0] sm:$0xff]
      %v1674 = vld [vmem:[%s1642 + $0xf8] sm:$0xff]
      %v1675 = vld [vmem:[%s1642 + $0x100] sm:$0xff]
      %v1676 = vld [vmem:[%s1642 + $0x108] sm:$0xff]
      %v1677 = vld [vmem:[%s1642 + $0x110] sm:$0xff]
      %v1678 = vld [vmem:[%s1642 + $0x118] sm:$0xff]
      %v1679 = vld [vmem:[%s1] sm:$0xff]
      %v1680 = vld [vmem:[%s1 + $0x8] sm:$0xff]
      %v1681 = vld [vmem:[%s1 + $0x10] sm:$0xff]
      %v1682 = vld [vmem:[%s1 + $0x18] sm:$0xff]
      %v1683 = vld [vmem:[%s1 + $0x20] sm:$0xff]
      %v1684 = vld [vmem:[%s1 + $0x28] sm:$0xff]
      %v1685 = vld [vmem:[%s1 + $0x30] sm:$0xff]
      %v1686 = vld [vmem:[%s1 + $0x38] sm:$0xff]
      %v1687 = vld [vmem:[%s1 + $0x40] sm:$0xff]
      %v1688 = vld [vmem:[%s1 + $0x48] sm:$0xff]
      %v1689 = vld [vmem:[%s1 + $0x50] sm:$0xff]
      %v1690 = vld [vmem:[%s1 + $0x58] sm:$0xff]
      %v1691 = vld [vmem:[%s1 + $0x60] sm:$0xff]
      %v1692 = vld [vmem:[%s1 + $0x68] sm:$0xff]
      %v1693 = vld [vmem:[%s1 + $0x70] sm:$0xff]
      %v1694 = vld [vmem:[%s1 + $0x78] sm:$0xff]
      %v1695 = vld [vmem:[%s1 + $0x80] sm:$0xff]
      %v1696 = vld [vmem:[%s1 + $0x88] sm:$0xff]
      %v1697 = vld [vmem:[%s1 + $0x90] sm:$0xff]
      %v1698 = vld [vmem:[%s1 + $0x98] sm:$0xff]
      %v1699 = vld [vmem:[%s1 + $0xa0] sm:$0xff]
      %v1700 = vld [vmem:[%s1 + $0xa8] sm:$0xff]
      %v1701 = vld [vmem:[%s1 + $0xb0] sm:$0xff]
      %v1702 = vld [vmem:[%s1 + $0xb8] sm:$0xff]
      %v1703 = vld [vmem:[%s1 + $0xc0] sm:$0xff]
      %v1704 = vld [vmem:[%s1 + $0xc8] sm:$0xff]
      %v1705 = vld [vmem:[%s1 + $0xd0] sm:$0xff]
      %v1706 = vld [vmem:[%s1 + $0xd8] sm:$0xff]
      %v1707 = vld [vmem:[%s5] sm:$0x3]
      %v1709 = vperm.slane %v1707, 0
      %v1710 = vperm.slane %v1707, 1
      %v1749 = vunpack.c.l.b16 %v1643
      %v1750 = vunpack.c.h.b16 %v1643
      %v1751 = vunpack.c.l.b16 %v1644
      %v1752 = vunpack.c.h.b16 %v1644
      %v1753 = vunpack.c.l.b16 %v1645
      %v1754 = vunpack.c.h.b16 %v1645
      %v1755 = vunpack.c.l.b16 %v1646
      %v1756 = vunpack.c.h.b16 %v1646
      %v1757 = vunpack.c.l.b16 %v1647
      %v1758 = vunpack.c.h.b16 %v1647
      %v1759 = vunpack.c.l.b16 %v1648
      %v1760 = vunpack.c.h.b16 %v1648
      %v1761 = vunpack.c.l.b16 %v1649
      %v1762 = vunpack.c.h.b16 %v1649
      %v1763 = vunpack.c.l.b16 %v1650
      %v1764 = vunpack.c.h.b16 %v1650
      %v1765 = vunpack.c.l.b16 %v1651
      %v1766 = vunpack.c.h.b16 %v1651
      %v1767 = vunpack.c.l.b16 %v1652
      %v1768 = vunpack.c.h.b16 %v1652
      %v1769 = vunpack.c.l.b16 %v1653
      %v1770 = vunpack.c.h.b16 %v1653
      %v1771 = vunpack.c.l.b16 %v1654
      %v1772 = vunpack.c.h.b16 %v1654
      %v1773 = vunpack.c.l.b16 %v1655
      %v1774 = vunpack.c.h.b16 %v1655
      %v1775 = vunpack.c.l.b16 %v1656
      %v1776 = vunpack.c.h.b16 %v1656
      %v1777 = vunpack.c.l.b16 %v1657
      %v1778 = vunpack.c.h.b16 %v1657
      %v1779 = vunpack.c.l.b16 %v1658
      %v1780 = vunpack.c.h.b16 %v1658
      %v1781 = vunpack.c.l.b16 %v1659
      %v1782 = vunpack.c.h.b16 %v1659
      %v1783 = vunpack.c.l.b16 %v1660
      %v1784 = vunpack.c.h.b16 %v1660
      %v1785 = vunpack.c.l.b16 %v1661
      %v1786 = vunpack.c.h.b16 %v1661
      %v1787 = vunpack.c.l.b16 %v1662
      %v1788 = vunpack.c.h.b16 %v1662
      %v1789 = vunpack.c.l.b16 %v1663
      %v1790 = vunpack.c.h.b16 %v1663
      %v1791 = vunpack.c.l.b16 %v1664
      %v1792 = vunpack.c.h.b16 %v1664
      %v1793 = vunpack.c.l.b16 %v1665
      %v1794 = vunpack.c.h.b16 %v1665
      %v1795 = vunpack.c.l.b16 %v1666
      %v1796 = vunpack.c.h.b16 %v1666
      %v1797 = vunpack.c.l.b16 %v1667
      %v1798 = vunpack.c.h.b16 %v1667
      %v1799 = vunpack.c.l.b16 %v1668
      %v1800 = vunpack.c.h.b16 %v1668
      %v1801 = vunpack.c.l.b16 %v1669
      %v1802 = vunpack.c.h.b16 %v1669
      %v1803 = vunpack.c.l.b16 %v1670
      %v1804 = vunpack.c.h.b16 %v1670
      %v1805 = vunpack.c.l.b16 %v1671
      %v1806 = vunpack.c.h.b16 %v1671
      %v1807 = vunpack.c.l.b16 %v1672
      %v1808 = vunpack.c.h.b16 %v1672
      %v1809 = vunpack.c.l.b16 %v1673
      %v1810 = vunpack.c.h.b16 %v1673
      %v1811 = vunpack.c.l.b16 %v1674
      %v1812 = vunpack.c.h.b16 %v1674
      %v1813 = vunpack.c.l.b16 %v1675
      %v1814 = vunpack.c.h.b16 %v1675
      %v1815 = vunpack.c.l.b16 %v1676
      %v1816 = vunpack.c.h.b16 %v1676
      %v1817 = vunpack.c.l.b16 %v1677
      %v1818 = vunpack.c.h.b16 %v1677
      %v1819 = vunpack.c.l.b16 %v1678
      %v1820 = vunpack.c.h.b16 %v1678
      %v1821 = vpack.c.b16 %v1751, %v1749
      %v1822 = vpack.c.b16 %v1752, %v1750
      %v1823 = vpack.c.b16 %v1755, %v1753
      %v1824 = vpack.c.b16 %v1756, %v1754
      %v1825 = vpack.c.b16 %v1759, %v1757
      %v1826 = vpack.c.b16 %v1760, %v1758
      %v1827 = vpack.c.b16 %v1763, %v1761
      %v1828 = vpack.c.b16 %v1764, %v1762
      %v1829 = vpack.c.b16 %v1767, %v1765
      %v1830 = vpack.c.b16 %v1768, %v1766
      %v1831 = vpack.c.b16 %v1771, %v1769
      %v1832 = vpack.c.b16 %v1772, %v1770
      %v1833 = vpack.c.b16 %v1775, %v1773
      %v1834 = vpack.c.b16 %v1776, %v1774
      %v1835 = vpack.c.b16 %v1779, %v1777
      %v1836 = vpack.c.b16 %v1780, %v1778
      %v1837 = vpack.c.b16 %v1783, %v1781
      %v1838 = vpack.c.b16 %v1784, %v1782
      %v1839 = vpack.c.b16 %v1787, %v1785
      %v1840 = vpack.c.b16 %v1788, %v1786
      %v1841 = vpack.c.b16 %v1791, %v1789
      %v1842 = vpack.c.b16 %v1792, %v1790
      %v1843 = vpack.c.b16 %v1795, %v1793
      %v1844 = vpack.c.b16 %v1796, %v1794
      %v1845 = vpack.c.b16 %v1799, %v1797
      %v1846 = vpack.c.b16 %v1800, %v1798
      %v1847 = vpack.c.b16 %v1803, %v1801
      %v1848 = vpack.c.b16 %v1804, %v1802
      %v1849 = vpack.c.b16 %v1807, %v1805
      %v1850 = vpack.c.b16 %v1808, %v1806
      %v1851 = vpack.c.b16 %v1811, %v1809
      %v1852 = vpack.c.b16 %v1812, %v1810
      %v1853 = vpack.c.b16 %v1815, %v1813
      %v1854 = vpack.c.b16 %v1816, %v1814
      %v1855 = vpack.c.b16 %v1819, %v1817
      %v1856 = vpack.c.b16 %v1820, %v1818
      %v1903 = vunpack.c.l.b16 %v1679
      %v1904 = vunpack.c.h.b16 %v1679
      %v1905 = vunpack.c.l.b16 %v1680
      %v1906 = vunpack.c.h.b16 %v1680
      %v1907 = vunpack.c.l.b16 %v1681
      %v1908 = vunpack.c.h.b16 %v1681
      %v1909 = vunpack.c.l.b16 %v1682
      %v1910 = vunpack.c.h.b16 %v1682
      %v1911 = vunpack.c.l.b16 %v1683
      %v1912 = vunpack.c.h.b16 %v1683
      %v1913 = vunpack.c.l.b16 %v1684
      %v1914 = vunpack.c.h.b16 %v1684
      %v1915 = vunpack.c.l.b16 %v1685
      %v1916 = vunpack.c.h.b16 %v1685
      %v1917 = vunpack.c.l.b16 %v1686
      %v1918 = vunpack.c.h.b16 %v1686
      %v1919 = vunpack.c.l.b16 %v1687
      %v1920 = vunpack.c.h.b16 %v1687
      %v1921 = vunpack.c.l.b16 %v1688
      %v1922 = vunpack.c.h.b16 %v1688
      %v1923 = vunpack.c.l.b16 %v1689
      %v1924 = vunpack.c.h.b16 %v1689
      %v1925 = vunpack.c.l.b16 %v1690
      %v1926 = vunpack.c.h.b16 %v1690
      %v1927 = vunpack.c.l.b16 %v1691
      %v1928 = vunpack.c.h.b16 %v1691
      %v1929 = vunpack.c.l.b16 %v1692
      %v1930 = vunpack.c.h.b16 %v1692
      %v1931 = vunpack.c.l.b16 %v1693
      %v1932 = vunpack.c.h.b16 %v1693
      %v1933 = vunpack.c.l.b16 %v1694
      %v1934 = vunpack.c.h.b16 %v1694
      %v1935 = vunpack.c.l.b16 %v1695
      %v1936 = vunpack.c.h.b16 %v1695
      %v1937 = vunpack.c.l.b16 %v1696
      %v1938 = vunpack.c.h.b16 %v1696
      %v1939 = vunpack.c.l.b16 %v1697
      %v1940 = vunpack.c.h.b16 %v1697
      %v1941 = vunpack.c.l.b16 %v1698
      %v1942 = vunpack.c.h.b16 %v1698
      %v1943 = vunpack.c.l.b16 %v1699
      %v1944 = vunpack.c.h.b16 %v1699
      %v1945 = vunpack.c.l.b16 %v1700
      %v1946 = vunpack.c.h.b16 %v1700
      %v1947 = vunpack.c.l.b16 %v1701
      %v1948 = vunpack.c.h.b16 %v1701
      %v1949 = vunpack.c.l.b16 %v1702
      %v1950 = vunpack.c.h.b16 %v1702
      %v1951 = vunpack.c.l.b16 %v1703
      %v1952 = vunpack.c.h.b16 %v1703
      %v1953 = vunpack.c.l.b16 %v1704
      %v1954 = vunpack.c.h.b16 %v1704
      %v1955 = vunpack.c.l.b16 %v1705
      %v1956 = vunpack.c.h.b16 %v1705
      %v1957 = vunpack.c.l.b16 %v1706
      %v1958 = vunpack.c.h.b16 %v1706
      %v1959 = vpack.c.b16 %v1905, %v1903
      %v1960 = vpack.c.b16 %v1906, %v1904
      %v1961 = vpack.c.b16 %v1909, %v1907
      %v1962 = vpack.c.b16 %v1910, %v1908
      %v1963 = vpack.c.b16 %v1913, %v1911
      %v1964 = vpack.c.b16 %v1914, %v1912
      %v1965 = vpack.c.b16 %v1917, %v1915
      %v1966 = vpack.c.b16 %v1918, %v1916
      %v1967 = vpack.c.b16 %v1921, %v1919
      %v1968 = vpack.c.b16 %v1922, %v1920
      %v1969 = vpack.c.b16 %v1925, %v1923
      %v1970 = vpack.c.b16 %v1926, %v1924
      %v1971 = vpack.c.b16 %v1929, %v1927
      %v1972 = vpack.c.b16 %v1930, %v1928
      %v1973 = vpack.c.b16 %v1933, %v1931
      %v1974 = vpack.c.b16 %v1934, %v1932
      %v1975 = vpack.c.b16 %v1937, %v1935
      %v1976 = vpack.c.b16 %v1938, %v1936
      %v1977 = vpack.c.b16 %v1941, %v1939
      %v1978 = vpack.c.b16 %v1942, %v1940
      %v1979 = vpack.c.b16 %v1945, %v1943
      %v1980 = vpack.c.b16 %v1946, %v1944
      %v1981 = vpack.c.b16 %v1949, %v1947
      %v1982 = vpack.c.b16 %v1950, %v1948
      %v1983 = vpack.c.b16 %v1953, %v1951
      %v1984 = vpack.c.b16 %v1954, %v1952
      %v1985 = vpack.c.b16 %v1957, %v1955
      %v1986 = vpack.c.b16 %v1958, %v1956
      %v2016 = vsel %vm891, %v1822, 0
      %v2019 = vsel %vm891, %v1824, 0
      %v2022 = vsel %vm891, %v1826, 0
      %v2025 = vsel %vm891, %v1828, 0
      %v2028 = vsel %vm891, %v1830, 0
      %v2031 = vsel %vm891, %v1832, 0
      %v2034 = vsel %vm891, %v1834, 0
      %v2037 = vsel %vm891, %v1836, 0
      %v2040 = vsel %vm891, %v1838, 0
      %v2043 = vsel %vm891, %v1840, 0
      %v2046 = vsel %vm891, %v1842, 0
      %v2049 = vsel %vm891, %v1844, 0
      %v2052 = vsel %vm891, %v1846, 0
      %v2055 = vsel %vm891, %v1848, 0
      %v2058 = vsel %vm891, %v1850, 0
      %v2061 = vsel %vm891, %v1852, 0
      %v2064 = vsel %vm891, %v1854, 0
      %v2067 = vsel %vm891, %v1856, 0
      %2069 = vmatpush.bf16.msra.mxu0 %v1973
      %2070 = vmatpush.bf16.msra.mxu0 %v1971
      %2071 = vmatpush.bf16.msra.mxu0 %v1969
      %2072 = vmatpush.bf16.msra.mxu0 %v1967
      %2073 = vmatpush.bf16.msra.mxu0 %v1965
      %2074 = vmatpush.bf16.msra.mxu0 %v1963
      %2075 = vmatpush.bf16.msra.mxu0 %v1961
      %2076 = vmatpush.bf16.msra.mxu0 %v1959
      %2077 = vmatmul.bf16.gmra.mxu0 %v1821
      %v2078 = vpop.f32.mrf.mxu0
      %v2079 = vadd.f32 %v1709, %v2078
      %v2080 = vpop.f32.mrf.mxu0
      %v2081 = vadd.f32 %v1709, %v2080
      %2082 = vmatmul.bf16.gmra.mxu0 %v1823
      %v2083 = vpop.f32.mrf.mxu0
      %v2084 = vadd.f32 %v1709, %v2083
      %v2085 = vpop.f32.mrf.mxu0
      %v2086 = vadd.f32 %v1709, %v2085
      %2087 = vmatmul.bf16.gmra.mxu0 %v1825
      %v2088 = vpop.f32.mrf.mxu0
      %v2089 = vadd.f32 %v1709, %v2088
      %v2090 = vpop.f32.mrf.mxu0
      %v2091 = vadd.f32 %v1709, %v2090
      %2092 = vmatmul.bf16.gmra.mxu0 %v1827
      %v2093 = vpop.f32.mrf.mxu0
      %v2094 = vadd.f32 %v1709, %v2093
      %v2095 = vpop.f32.mrf.mxu0
      %v2096 = vadd.f32 %v1709, %v2095
      %2097 = vmatmul.bf16.gmra.mxu0 %v1829
      %v2098 = vpop.f32.mrf.mxu0
      %v2099 = vadd.f32 %v1709, %v2098
      %v2100 = vpop.f32.mrf.mxu0
      %v2101 = vadd.f32 %v1709, %v2100
      %2102 = vmatmul.bf16.gmra.mxu0 %v1831
      %v2103 = vpop.f32.mrf.mxu0
      %v2104 = vadd.f32 %v1709, %v2103
      %v2105 = vpop.f32.mrf.mxu0
      %v2106 = vadd.f32 %v1709, %v2105
      %2107 = vmatmul.bf16.gmra.mxu0 %v1833
      %v2108 = vpop.f32.mrf.mxu0
      %v2109 = vadd.f32 %v1709, %v2108
      %v2110 = vpop.f32.mrf.mxu0
      %v2111 = vadd.f32 %v1709, %v2110
      %2112 = vmatmul.bf16.gmra.mxu0 %v1835
      %v2113 = vpop.f32.mrf.mxu0
      %v2114 = vadd.f32 %v1709, %v2113
      %v2115 = vpop.f32.mrf.mxu0
      %v2116 = vadd.f32 %v1709, %v2115
      %2117 = vmatmul.bf16.gmra.mxu0 %v1837
      %v2118 = vpop.f32.mrf.mxu0
      %v2119 = vadd.f32 %v1709, %v2118
      %v2120 = vpop.f32.mrf.mxu0
      %v2121 = vadd.f32 %v1709, %v2120
      %2122 = vmatmul.bf16.gmra.mxu0 %v1839
      %v2123 = vpop.f32.mrf.mxu0
      %v2124 = vadd.f32 %v1709, %v2123
      %v2125 = vpop.f32.mrf.mxu0
      %v2126 = vadd.f32 %v1709, %v2125
      %2127 = vmatmul.bf16.gmra.mxu0 %v1841
      %v2128 = vpop.f32.mrf.mxu0
      %v2129 = vadd.f32 %v1709, %v2128
      %v2130 = vpop.f32.mrf.mxu0
      %v2131 = vadd.f32 %v1709, %v2130
      %2132 = vmatmul.bf16.gmra.mxu0 %v1843
      %v2133 = vpop.f32.mrf.mxu0
      %v2134 = vadd.f32 %v1709, %v2133
      %v2135 = vpop.f32.mrf.mxu0
      %v2136 = vadd.f32 %v1709, %v2135
      %2137 = vmatmul.bf16.gmra.mxu0 %v1845
      %v2138 = vpop.f32.mrf.mxu0
      %v2139 = vadd.f32 %v1709, %v2138
      %v2140 = vpop.f32.mrf.mxu0
      %v2141 = vadd.f32 %v1709, %v2140
      %2142 = vmatmul.bf16.gmra.mxu0 %v1847
      %v2143 = vpop.f32.mrf.mxu0
      %v2144 = vadd.f32 %v1709, %v2143
      %v2145 = vpop.f32.mrf.mxu0
      %v2146 = vadd.f32 %v1709, %v2145
      %2147 = vmatmul.bf16.gmra.mxu0 %v1849
      %v2148 = vpop.f32.mrf.mxu0
      %v2149 = vadd.f32 %v1709, %v2148
      %v2150 = vpop.f32.mrf.mxu0
      %v2151 = vadd.f32 %v1709, %v2150
      %2152 = vmatmul.bf16.gmra.mxu0 %v1851
      %v2153 = vpop.f32.mrf.mxu0
      %v2154 = vadd.f32 %v1709, %v2153
      %v2155 = vpop.f32.mrf.mxu0
      %v2156 = vadd.f32 %v1709, %v2155
      %2157 = vmatmul.bf16.gmra.mxu0 %v1853
      %v2158 = vpop.f32.mrf.mxu0
      %v2159 = vadd.f32 %v1709, %v2158
      %v2160 = vpop.f32.mrf.mxu0
      %v2161 = vadd.f32 %v1709, %v2160
      %2162 = vmatmul.bf16.gmra.mxu0 %v1855
      %v2163 = vpop.f32.mrf.mxu0
      %v2164 = vadd.f32 %v1709, %v2163
      %v2165 = vpop.f32.mrf.mxu0
      %v2166 = vadd.f32 %v1709, %v2165
      %2167 = vdwg.mxu0
      %2168 = vmatpush.bf16.msra.mxu0 0
      %2169 = vmatpush.bf16.msra.mxu0 0
      %2170 = vmatpush.bf16.msra.mxu0 %v1985
      %2171 = vmatpush.bf16.msra.mxu0 %v1983
      %2172 = vmatpush.bf16.msra.mxu0 %v1981
      %2173 = vmatpush.bf16.msra.mxu0 %v1979
      %2174 = vmatpush.bf16.msra.mxu0 %v1977
      %2175 = vmatpush.bf16.msra.mxu0 %v1975
      %2176 = vmatmul.bf16.gmra.mxu0 %v2016
      %v2177 = vpop.f32.mrf.mxu0
      %v2178 = vadd.f32 %v2079, %v2177
      %v2179 = vpop.f32.mrf.mxu0
      %v2180 = vadd.f32 %v2081, %v2179
      %2181 = vmatmul.bf16.gmra.mxu0 %v2019
      %v2182 = vpop.f32.mrf.mxu0
      %v2183 = vadd.f32 %v2084, %v2182
      %v2184 = vpop.f32.mrf.mxu0
      %v2185 = vadd.f32 %v2086, %v2184
      %2186 = vmatmul.bf16.gmra.mxu0 %v2022
      %v2187 = vpop.f32.mrf.mxu0
      %v2188 = vadd.f32 %v2089, %v2187
      %v2189 = vpop.f32.mrf.mxu0
      %v2190 = vadd.f32 %v2091, %v2189
      %2191 = vmatmul.bf16.gmra.mxu0 %v2025
      %v2192 = vpop.f32.mrf.mxu0
      %v2193 = vadd.f32 %v2094, %v2192
      %v2194 = vpop.f32.mrf.mxu0
      %v2195 = vadd.f32 %v2096, %v2194
      %2196 = vmatmul.bf16.gmra.mxu0 %v2028
      %v2197 = vpop.f32.mrf.mxu0
      %v2198 = vadd.f32 %v2099, %v2197
      %v2199 = vpop.f32.mrf.mxu0
      %v2200 = vadd.f32 %v2101, %v2199
      %2201 = vmatmul.bf16.gmra.mxu0 %v2031
      %v2202 = vpop.f32.mrf.mxu0
      %v2203 = vadd.f32 %v2104, %v2202
      %v2204 = vpop.f32.mrf.mxu0
      %v2205 = vadd.f32 %v2106, %v2204
      %2206 = vmatmul.bf16.gmra.mxu0 %v2034
      %v2207 = vpop.f32.mrf.mxu0
      %v2208 = vadd.f32 %v2109, %v2207
      %v2209 = vpop.f32.mrf.mxu0
      %v2210 = vadd.f32 %v2111, %v2209
      %2211 = vmatmul.bf16.gmra.mxu0 %v2037
      %v2212 = vpop.f32.mrf.mxu0
      %v2213 = vadd.f32 %v2114, %v2212
      %v2214 = vpop.f32.mrf.mxu0
      %v2215 = vadd.f32 %v2116, %v2214
      %2216 = vmatmul.bf16.gmra.mxu0 %v2040
      %v2217 = vpop.f32.mrf.mxu0
      %v2218 = vadd.f32 %v2119, %v2217
      %v2219 = vpop.f32.mrf.mxu0
      %v2220 = vadd.f32 %v2121, %v2219
      %2221 = vmatmul.bf16.gmra.mxu0 %v2043
      %v2222 = vpop.f32.mrf.mxu0
      %v2223 = vadd.f32 %v2124, %v2222
      %v2224 = vpop.f32.mrf.mxu0
      %v2225 = vadd.f32 %v2126, %v2224
      %2226 = vmatmul.bf16.gmra.mxu0 %v2046
      %v2227 = vpop.f32.mrf.mxu0
      %v2228 = vadd.f32 %v2129, %v2227
      %v2229 = vpop.f32.mrf.mxu0
      %v2230 = vadd.f32 %v2131, %v2229
      %2231 = vmatmul.bf16.gmra.mxu0 %v2049
      %v2232 = vpop.f32.mrf.mxu0
      %v2233 = vadd.f32 %v2134, %v2232
      %v2234 = vpop.f32.mrf.mxu0
      %v2235 = vadd.f32 %v2136, %v2234
      %2236 = vmatmul.bf16.gmra.mxu0 %v2052
      %v2237 = vpop.f32.mrf.mxu0
      %v2238 = vadd.f32 %v2139, %v2237
      %v2239 = vpop.f32.mrf.mxu0
      %v2240 = vadd.f32 %v2141, %v2239
      %2241 = vmatmul.bf16.gmra.mxu0 %v2055
      %v2242 = vpop.f32.mrf.mxu0
      %v2243 = vadd.f32 %v2144, %v2242
      %v2244 = vpop.f32.mrf.mxu0
      %v2245 = vadd.f32 %v2146, %v2244
      %2246 = vmatmul.bf16.gmra.mxu0 %v2058
      %v2247 = vpop.f32.mrf.mxu0
      %v2248 = vadd.f32 %v2149, %v2247
      %v2249 = vpop.f32.mrf.mxu0
      %v2250 = vadd.f32 %v2151, %v2249
      %2251 = vmatmul.bf16.gmra.mxu0 %v2061
      %v2252 = vpop.f32.mrf.mxu0
      %v2253 = vadd.f32 %v2154, %v2252
      %v2254 = vpop.f32.mrf.mxu0
      %v2255 = vadd.f32 %v2156, %v2254
      %2256 = vmatmul.bf16.gmra.mxu0 %v2064
      %v2257 = vpop.f32.mrf.mxu0
      %v2258 = vadd.f32 %v2159, %v2257
      %v2259 = vpop.f32.mrf.mxu0
      %v2260 = vadd.f32 %v2161, %v2259
      %2261 = vmatmul.bf16.gmra.mxu0 %v2067
      %v2262 = vpop.f32.mrf.mxu0
      %v2263 = vadd.f32 %v2164, %v2262
      %v2264 = vpop.f32.mrf.mxu0
      %v2265 = vadd.f32 %v2166, %v2264
      %2266 = vdwg.mxu0
      %2267 = vmatpush.bf16.msra.mxu0 %v1974
      %2268 = vmatpush.bf16.msra.mxu0 %v1972
      %2269 = vmatpush.bf16.msra.mxu0 %v1970
      %2270 = vmatpush.bf16.msra.mxu0 %v1968
      %2271 = vmatpush.bf16.msra.mxu0 %v1966
      %2272 = vmatpush.bf16.msra.mxu0 %v1964
      %2273 = vmatpush.bf16.msra.mxu0 %v1962
      %2274 = vmatpush.bf16.msra.mxu0 %v1960
      %2275 = vmatmul.bf16.gmra.mxu0 %v1821
      %v2276 = vpop.f32.mrf.mxu0
      %v2277 = vadd.f32 %v1710, %v2276
      %v2278 = vpop.f32.mrf.mxu0
      %v2279 = vadd.f32 %v1710, %v2278
      %2280 = vmatmul.bf16.gmra.mxu0 %v1823
      %v2281 = vpop.f32.mrf.mxu0
      %v2282 = vadd.f32 %v1710, %v2281
      %v2283 = vpop.f32.mrf.mxu0
      %v2284 = vadd.f32 %v1710, %v2283
      %2285 = vmatmul.bf16.gmra.mxu0 %v1825
      %v2286 = vpop.f32.mrf.mxu0
      %v2287 = vadd.f32 %v1710, %v2286
      %v2288 = vpop.f32.mrf.mxu0
      %v2289 = vadd.f32 %v1710, %v2288
      %2290 = vmatmul.bf16.gmra.mxu0 %v1827
      %v2291 = vpop.f32.mrf.mxu0
      %v2292 = vadd.f32 %v1710, %v2291
      %v2293 = vpop.f32.mrf.mxu0
      %v2294 = vadd.f32 %v1710, %v2293
      %2295 = vmatmul.bf16.gmra.mxu0 %v1829
      %v2296 = vpop.f32.mrf.mxu0
      %v2297 = vadd.f32 %v1710, %v2296
      %v2298 = vpop.f32.mrf.mxu0
      %v2299 = vadd.f32 %v1710, %v2298
      %2300 = vmatmul.bf16.gmra.mxu0 %v1831
      %v2301 = vpop.f32.mrf.mxu0
      %v2302 = vadd.f32 %v1710, %v2301
      %v2303 = vpop.f32.mrf.mxu0
      %v2304 = vadd.f32 %v1710, %v2303
      %2305 = vmatmul.bf16.gmra.mxu0 %v1833
      %v2306 = vpop.f32.mrf.mxu0
      %v2307 = vadd.f32 %v1710, %v2306
      %v2308 = vpop.f32.mrf.mxu0
      %v2309 = vadd.f32 %v1710, %v2308
      %2310 = vmatmul.bf16.gmra.mxu0 %v1835
      %v2311 = vpop.f32.mrf.mxu0
      %v2312 = vadd.f32 %v1710, %v2311
      %v2313 = vpop.f32.mrf.mxu0
      %v2314 = vadd.f32 %v1710, %v2313
      %2315 = vmatmul.bf16.gmra.mxu0 %v1837
      %v2316 = vpop.f32.mrf.mxu0
      %v2317 = vadd.f32 %v1710, %v2316
      %v2318 = vpop.f32.mrf.mxu0
      %v2319 = vadd.f32 %v1710, %v2318
      %2320 = vmatmul.bf16.gmra.mxu0 %v1839
      %v2321 = vpop.f32.mrf.mxu0
      %v2322 = vadd.f32 %v1710, %v2321
      %v2323 = vpop.f32.mrf.mxu0
      %v2324 = vadd.f32 %v1710, %v2323
      %2325 = vmatmul.bf16.gmra.mxu0 %v1841
      %v2326 = vpop.f32.mrf.mxu0
      %v2327 = vadd.f32 %v1710, %v2326
      %v2328 = vpop.f32.mrf.mxu0
      %v2329 = vadd.f32 %v1710, %v2328
      %2330 = vmatmul.bf16.gmra.mxu0 %v1843
      %v2331 = vpop.f32.mrf.mxu0
      %v2332 = vadd.f32 %v1710, %v2331
      %v2333 = vpop.f32.mrf.mxu0
      %v2334 = vadd.f32 %v1710, %v2333
      %2335 = vmatmul.bf16.gmra.mxu0 %v1845
      %v2336 = vpop.f32.mrf.mxu0
      %v2337 = vadd.f32 %v1710, %v2336
      %v2338 = vpop.f32.mrf.mxu0
      %v2339 = vadd.f32 %v1710, %v2338
      %2340 = vmatmul.bf16.gmra.mxu0 %v1847
      %v2341 = vpop.f32.mrf.mxu0
      %v2342 = vadd.f32 %v1710, %v2341
      %v2343 = vpop.f32.mrf.mxu0
      %v2344 = vadd.f32 %v1710, %v2343
      %2345 = vmatmul.bf16.gmra.mxu0 %v1849
      %v2346 = vpop.f32.mrf.mxu0
      %v2347 = vadd.f32 %v1710, %v2346
      %v2348 = vpop.f32.mrf.mxu0
      %v2349 = vadd.f32 %v1710, %v2348
      %2350 = vmatmul.bf16.gmra.mxu0 %v1851
      %v2351 = vpop.f32.mrf.mxu0
      %v2352 = vadd.f32 %v1710, %v2351
      %v2353 = vpop.f32.mrf.mxu0
      %v2354 = vadd.f32 %v1710, %v2353
      %2355 = vmatmul.bf16.gmra.mxu0 %v1853
      %v2356 = vpop.f32.mrf.mxu0
      %v2357 = vadd.f32 %v1710, %v2356
      %v2358 = vpop.f32.mrf.mxu0
      %v2359 = vadd.f32 %v1710, %v2358
      %2360 = vmatmul.bf16.gmra.mxu0 %v1855
      %v2361 = vpop.f32.mrf.mxu0
      %v2362 = vadd.f32 %v1710, %v2361
      %v2363 = vpop.f32.mrf.mxu0
      %v2364 = vadd.f32 %v1710, %v2363
      %2365 = vdwg.mxu0
      %2366 = vmatpush.bf16.msra.mxu0 0
      %2367 = vmatpush.bf16.msra.mxu0 0
      %2368 = vmatpush.bf16.msra.mxu0 %v1986
      %2369 = vmatpush.bf16.msra.mxu0 %v1984
      %2370 = vmatpush.bf16.msra.mxu0 %v1982
      %2371 = vmatpush.bf16.msra.mxu0 %v1980
      %2372 = vmatpush.bf16.msra.mxu0 %v1978
      %2373 = vmatpush.bf16.msra.mxu0 %v1976
      %2374 = vmatmul.bf16.gmra.mxu0 %v2016
      %v2375 = vpop.f32.mrf.mxu0
      %v2376 = vadd.f32 %v2277, %v2375
      %v2377 = vpop.f32.mrf.mxu0
      %v2378 = vadd.f32 %v2279, %v2377
      %2379 = vmatmul.bf16.gmra.mxu0 %v2019
      %v2380 = vpop.f32.mrf.mxu0
      %v2381 = vadd.f32 %v2282, %v2380
      %v2382 = vpop.f32.mrf.mxu0
      %v2383 = vadd.f32 %v2284, %v2382
      %2384 = vmatmul.bf16.gmra.mxu0 %v2022
      %v2385 = vpop.f32.mrf.mxu0
      %v2386 = vadd.f32 %v2287, %v2385
      %v2387 = vpop.f32.mrf.mxu0
      %v2388 = vadd.f32 %v2289, %v2387
      %2389 = vmatmul.bf16.gmra.mxu0 %v2025
      %v2390 = vpop.f32.mrf.mxu0
      %v2391 = vadd.f32 %v2292, %v2390
      %v2392 = vpop.f32.mrf.mxu0
      %v2393 = vadd.f32 %v2294, %v2392
      %2394 = vmatmul.bf16.gmra.mxu0 %v2028
      %v2395 = vpop.f32.mrf.mxu0
      %v2396 = vadd.f32 %v2297, %v2395
      %v2397 = vpop.f32.mrf.mxu0
      %v2398 = vadd.f32 %v2299, %v2397
      %2399 = vmatmul.bf16.gmra.mxu0 %v2031
      %v2400 = vpop.f32.mrf.mxu0
      %v2401 = vadd.f32 %v2302, %v2400
      %v2402 = vpop.f32.mrf.mxu0
      %v2403 = vadd.f32 %v2304, %v2402
      %2404 = vmatmul.bf16.gmra.mxu0 %v2034
      %v2405 = vpop.f32.mrf.mxu0
      %v2406 = vadd.f32 %v2307, %v2405
      %v2407 = vpop.f32.mrf.mxu0
      %v2408 = vadd.f32 %v2309, %v2407
      %2409 = vmatmul.bf16.gmra.mxu0 %v2037
      %v2410 = vpop.f32.mrf.mxu0
      %v2411 = vadd.f32 %v2312, %v2410
      %v2412 = vpop.f32.mrf.mxu0
      %v2413 = vadd.f32 %v2314, %v2412
      %2414 = vmatmul.bf16.gmra.mxu0 %v2040
      %v2415 = vpop.f32.mrf.mxu0
      %v2416 = vadd.f32 %v2317, %v2415
      %v2417 = vpop.f32.mrf.mxu0
      %v2418 = vadd.f32 %v2319, %v2417
      %2419 = vmatmul.bf16.gmra.mxu0 %v2043
      %v2420 = vpop.f32.mrf.mxu0
      %v2421 = vadd.f32 %v2322, %v2420
      %v2422 = vpop.f32.mrf.mxu0
      %v2423 = vadd.f32 %v2324, %v2422
      %2424 = vmatmul.bf16.gmra.mxu0 %v2046
      %v2425 = vpop.f32.mrf.mxu0
      %v2426 = vadd.f32 %v2327, %v2425
      %v2427 = vpop.f32.mrf.mxu0
      %v2428 = vadd.f32 %v2329, %v2427
      %2429 = vmatmul.bf16.gmra.mxu0 %v2049
      %v2430 = vpop.f32.mrf.mxu0
      %v2431 = vadd.f32 %v2332, %v2430
      %v2432 = vpop.f32.mrf.mxu0
      %v2433 = vadd.f32 %v2334, %v2432
      %2434 = vmatmul.bf16.gmra.mxu0 %v2052
      %v2435 = vpop.f32.mrf.mxu0
      %v2436 = vadd.f32 %v2337, %v2435
      %v2437 = vpop.f32.mrf.mxu0
      %v2438 = vadd.f32 %v2339, %v2437
      %2439 = vmatmul.bf16.gmra.mxu0 %v2055
      %v2440 = vpop.f32.mrf.mxu0
      %v2441 = vadd.f32 %v2342, %v2440
      %v2442 = vpop.f32.mrf.mxu0
      %v2443 = vadd.f32 %v2344, %v2442
      %2444 = vmatmul.bf16.gmra.mxu0 %v2058
      %v2445 = vpop.f32.mrf.mxu0
      %v2446 = vadd.f32 %v2347, %v2445
      %v2447 = vpop.f32.mrf.mxu0
      %v2448 = vadd.f32 %v2349, %v2447
      %2449 = vmatmul.bf16.gmra.mxu0 %v2061
      %v2450 = vpop.f32.mrf.mxu0
      %v2451 = vadd.f32 %v2352, %v2450
      %v2452 = vpop.f32.mrf.mxu0
      %v2453 = vadd.f32 %v2354, %v2452
      %2454 = vmatmul.bf16.gmra.mxu0 %v2064
      %v2455 = vpop.f32.mrf.mxu0
      %v2456 = vadd.f32 %v2357, %v2455
      %v2457 = vpop.f32.mrf.mxu0
      %v2458 = vadd.f32 %v2359, %v2457
      %2459 = vmatmul.bf16.gmra.mxu0 %v2067
      %v2460 = vpop.f32.mrf.mxu0
      %v2461 = vadd.f32 %v2362, %v2460
      %v2462 = vpop.f32.mrf.mxu0
      %v2463 = vadd.f32 %v2364, %v2462
      %2464 = vdwg.mxu0
      %v2465 = vmax.f32 %v2178, 0.0
      %v2466 = vmax.f32 %v2376, 0.0
      %v2467 = vmax.f32 %v2180, 0.0
      %v2468 = vmax.f32 %v2378, 0.0
      %v2469 = vmax.f32 %v2183, 0.0
      %v2470 = vmax.f32 %v2381, 0.0
      %v2471 = vmax.f32 %v2185, 0.0
      %v2472 = vmax.f32 %v2383, 0.0
      %v2473 = vmax.f32 %v2188, 0.0
      %v2474 = vmax.f32 %v2386, 0.0
      %v2475 = vmax.f32 %v2190, 0.0
      %v2476 = vmax.f32 %v2388, 0.0
      %v2477 = vmax.f32 %v2193, 0.0
      %v2478 = vmax.f32 %v2391, 0.0
      %v2479 = vmax.f32 %v2195, 0.0
      %v2480 = vmax.f32 %v2393, 0.0
      %v2481 = vmax.f32 %v2198, 0.0
      %v2482 = vmax.f32 %v2396, 0.0
      %v2483 = vmax.f32 %v2200, 0.0
      %v2484 = vmax.f32 %v2398, 0.0
      %v2485 = vmax.f32 %v2203, 0.0
      %v2486 = vmax.f32 %v2401, 0.0
      %v2487 = vmax.f32 %v2205, 0.0
      %v2488 = vmax.f32 %v2403, 0.0
      %v2489 = vmax.f32 %v2208, 0.0
      %v2490 = vmax.f32 %v2406, 0.0
      %v2491 = vmax.f32 %v2210, 0.0
      %v2492 = vmax.f32 %v2408, 0.0
      %v2493 = vmax.f32 %v2213, 0.0
      %v2494 = vmax.f32 %v2411, 0.0
      %v2495 = vmax.f32 %v2215, 0.0
      %v2496 = vmax.f32 %v2413, 0.0
      %v2497 = vmax.f32 %v2218, 0.0
      %v2498 = vmax.f32 %v2416, 0.0
      %v2499 = vmax.f32 %v2220, 0.0
      %v2500 = vmax.f32 %v2418, 0.0
      %v2501 = vmax.f32 %v2223, 0.0
      %v2502 = vmax.f32 %v2421, 0.0
      %v2503 = vmax.f32 %v2225, 0.0
      %v2504 = vmax.f32 %v2423, 0.0
      %v2505 = vmax.f32 %v2228, 0.0
      %v2506 = vmax.f32 %v2426, 0.0
      %v2507 = vmax.f32 %v2230, 0.0
      %v2508 = vmax.f32 %v2428, 0.0
      %v2509 = vmax.f32 %v2233, 0.0
      %v2510 = vmax.f32 %v2431, 0.0
      %v2511 = vmax.f32 %v2235, 0.0
      %v2512 = vmax.f32 %v2433, 0.0
      %v2513 = vmax.f32 %v2238, 0.0
      %v2514 = vmax.f32 %v2436, 0.0
      %v2515 = vmax.f32 %v2240, 0.0
      %v2516 = vmax.f32 %v2438, 0.0
      %v2517 = vmax.f32 %v2243, 0.0
      %v2518 = vmax.f32 %v2441, 0.0
      %v2519 = vmax.f32 %v2245, 0.0
      %v2520 = vmax.f32 %v2443, 0.0
      %v2521 = vmax.f32 %v2248, 0.0
      %v2522 = vmax.f32 %v2446, 0.0
      %v2523 = vmax.f32 %v2250, 0.0
      %v2524 = vmax.f32 %v2448, 0.0
      %v2525 = vmax.f32 %v2253, 0.0
      %v2526 = vmax.f32 %v2451, 0.0
      %v2527 = vmax.f32 %v2255, 0.0
      %v2528 = vmax.f32 %v2453, 0.0
      %v2529 = vmax.f32 %v2258, 0.0
      %v2530 = vmax.f32 %v2456, 0.0
      %v2531 = vmax.f32 %v2260, 0.0
      %v2532 = vmax.f32 %v2458, 0.0
      %v2533 = vmax.f32 %v2263, 0.0
      %v2534 = vmax.f32 %v2461, 0.0
      %v2535 = vmax.f32 %v2265, 0.0
      %v2536 = vmax.f32 %v2463, 0.0
      %v2537 = vld [vmem:[%s6] sm:$0x3]
      %v2539 = vperm.slane %v2537, 0
      %v2540 = vperm.slane %v2537, 1
      %v2543 = vmul.f32 %v2465, %v2539
      %v2544 = vmul.f32 %v2466, %v2540
      %v2545 = vmul.f32 %v2467, %v2539
      %v2546 = vmul.f32 %v2468, %v2540
      %v2547 = vmul.f32 %v2469, %v2539
      %v2548 = vmul.f32 %v2470, %v2540
      %v2549 = vmul.f32 %v2471, %v2539
      %v2550 = vmul.f32 %v2472, %v2540
      %v2551 = vmul.f32 %v2473, %v2539
      %v2552 = vmul.f32 %v2474, %v2540
      %v2553 = vmul.f32 %v2475, %v2539
      %v2554 = vmul.f32 %v2476, %v2540
      %v2555 = vmul.f32 %v2477, %v2539
      %v2556 = vmul.f32 %v2478, %v2540
      %v2557 = vmul.f32 %v2479, %v2539
      %v2558 = vmul.f32 %v2480, %v2540
      %v2559 = vmul.f32 %v2481, %v2539
      %v2560 = vmul.f32 %v2482, %v2540
      %v2561 = vmul.f32 %v2483, %v2539
      %v2562 = vmul.f32 %v2484, %v2540
      %v2563 = vmul.f32 %v2485, %v2539
      %v2564 = vmul.f32 %v2486, %v2540
      %v2565 = vmul.f32 %v2487, %v2539
      %v2566 = vmul.f32 %v2488, %v2540
      %v2567 = vmul.f32 %v2489, %v2539
      %v2568 = vmul.f32 %v2490, %v2540
      %v2569 = vmul.f32 %v2491, %v2539
      %v2570 = vmul.f32 %v2492, %v2540
      %v2571 = vmul.f32 %v2493, %v2539
      %v2572 = vmul.f32 %v2494, %v2540
      %v2573 = vmul.f32 %v2495, %v2539
      %v2574 = vmul.f32 %v2496, %v2540
      %v2575 = vmul.f32 %v2497, %v2539
      %v2576 = vmul.f32 %v2498, %v2540
      %v2577 = vmul.f32 %v2499, %v2539
      %v2578 = vmul.f32 %v2500, %v2540
      %v2579 = vmul.f32 %v2501, %v2539
      %v2580 = vmul.f32 %v2502, %v2540
      %v2581 = vmul.f32 %v2503, %v2539
      %v2582 = vmul.f32 %v2504, %v2540
      %v2583 = vmul.f32 %v2505, %v2539
      %v2584 = vmul.f32 %v2506, %v2540
      %v2585 = vmul.f32 %v2507, %v2539
      %v2586 = vmul.f32 %v2508, %v2540
      %v2587 = vmul.f32 %v2509, %v2539
      %v2588 = vmul.f32 %v2510, %v2540
      %v2589 = vmul.f32 %v2511, %v2539
      %v2590 = vmul.f32 %v2512, %v2540
      %v2591 = vmul.f32 %v2513, %v2539
      %v2592 = vmul.f32 %v2514, %v2540
      %v2593 = vmul.f32 %v2515, %v2539
      %v2594 = vmul.f32 %v2516, %v2540
      %v2595 = vmul.f32 %v2517, %v2539
      %v2596 = vmul.f32 %v2518, %v2540
      %v2597 = vmul.f32 %v2519, %v2539
      %v2598 = vmul.f32 %v2520, %v2540
      %v2599 = vmul.f32 %v2521, %v2539
      %v2600 = vmul.f32 %v2522, %v2540
      %v2601 = vmul.f32 %v2523, %v2539
      %v2602 = vmul.f32 %v2524, %v2540
      %v2603 = vmul.f32 %v2525, %v2539
      %v2604 = vmul.f32 %v2526, %v2540
      %v2605 = vmul.f32 %v2527, %v2539
      %v2606 = vmul.f32 %v2528, %v2540
      %v2607 = vmul.f32 %v2529, %v2539
      %v2608 = vmul.f32 %v2530, %v2540
      %v2609 = vmul.f32 %v2531, %v2539
      %v2610 = vmul.f32 %v2532, %v2540
      %v2611 = vmul.f32 %v2533, %v2539
      %v2612 = vmul.f32 %v2534, %v2540
      %v2613 = vmul.f32 %v2535, %v2539
      %v2614 = vmul.f32 %v2536, %v2540
      %v2615 = vld [vmem:[%s7] sm:$0x3]
      %v2617 = vperm.slane %v2615, 0
      %v2618 = vperm.slane %v2615, 1
      %v2621 = vadd.f32 %v2543, %v2617
      %v2622 = vadd.f32 %v2544, %v2618
      %v2623 = vadd.f32 %v2545, %v2617
      %v2624 = vadd.f32 %v2546, %v2618
      %v2625 = vadd.f32 %v2547, %v2617
      %v2626 = vadd.f32 %v2548, %v2618
      %v2627 = vadd.f32 %v2549, %v2617
      %v2628 = vadd.f32 %v2550, %v2618
      %v2629 = vadd.f32 %v2551, %v2617
      %v2630 = vadd.f32 %v2552, %v2618
      %v2631 = vadd.f32 %v2553, %v2617
      %v2632 = vadd.f32 %v2554, %v2618
      %v2633 = vadd.f32 %v2555, %v2617
      %v2634 = vadd.f32 %v2556, %v2618
      %v2635 = vadd.f32 %v2557, %v2617
      %v2636 = vadd.f32 %v2558, %v2618
      %v2637 = vadd.f32 %v2559, %v2617
      %v2638 = vadd.f32 %v2560, %v2618
      %v2639 = vadd.f32 %v2561, %v2617
      %v2640 = vadd.f32 %v2562, %v2618
      %v2641 = vadd.f32 %v2563, %v2617
      %v2642 = vadd.f32 %v2564, %v2618
      %v2643 = vadd.f32 %v2565, %v2617
      %v2644 = vadd.f32 %v2566, %v2618
      %v2645 = vadd.f32 %v2567, %v2617
      %v2646 = vadd.f32 %v2568, %v2618
      %v2647 = vadd.f32 %v2569, %v2617
      %v2648 = vadd.f32 %v2570, %v2618
      %v2649 = vadd.f32 %v2571, %v2617
      %v2650 = vadd.f32 %v2572, %v2618
      %v2651 = vadd.f32 %v2573, %v2617
      %v2652 = vadd.f32 %v2574, %v2618
      %v2653 = vadd.f32 %v2575, %v2617
      %v2654 = vadd.f32 %v2576, %v2618
      %v2655 = vadd.f32 %v2577, %v2617
      %v2656 = vadd.f32 %v2578, %v2618
      %v2657 = vadd.f32 %v2579, %v2617
      %v2658 = vadd.f32 %v2580, %v2618
      %v2659 = vadd.f32 %v2581, %v2617
      %v2660 = vadd.f32 %v2582, %v2618
      %v2661 = vadd.f32 %v2583, %v2617
      %v2662 = vadd.f32 %v2584, %v2618
      %v2663 = vadd.f32 %v2585, %v2617
      %v2664 = vadd.f32 %v2586, %v2618
      %v2665 = vadd.f32 %v2587, %v2617
      %v2666 = vadd.f32 %v2588, %v2618
      %v2667 = vadd.f32 %v2589, %v2617
      %v2668 = vadd.f32 %v2590, %v2618
      %v2669 = vadd.f32 %v2591, %v2617
      %v2670 = vadd.f32 %v2592, %v2618
      %v2671 = vadd.f32 %v2593, %v2617
      %v2672 = vadd.f32 %v2594, %v2618
      %v2673 = vadd.f32 %v2595, %v2617
      %v2674 = vadd.f32 %v2596, %v2618
      %v2675 = vadd.f32 %v2597, %v2617
      %v2676 = vadd.f32 %v2598, %v2618
      %v2677 = vadd.f32 %v2599, %v2617
      %v2678 = vadd.f32 %v2600, %v2618
      %v2679 = vadd.f32 %v2601, %v2617
      %v2680 = vadd.f32 %v2602, %v2618
      %v2681 = vadd.f32 %v2603, %v2617
      %v2682 = vadd.f32 %v2604, %v2618
      %v2683 = vadd.f32 %v2605, %v2617
      %v2684 = vadd.f32 %v2606, %v2618
      %v2685 = vadd.f32 %v2607, %v2617
      %v2686 = vadd.f32 %v2608, %v2618
      %v2687 = vadd.f32 %v2609, %v2617
      %v2688 = vadd.f32 %v2610, %v2618
      %v2689 = vadd.f32 %v2611, %v2617
      %v2690 = vadd.f32 %v2612, %v2618
      %v2691 = vadd.f32 %v2613, %v2617
      %v2692 = vadd.f32 %v2614, %v2618
      %s2693 = scalar_lea.vmem [#allocation2], 576
      %2694 = vst [vmem:[%s2693] sm:$0xff] %v2621
      %2695 = vst [vmem:[%s2693 + $0x8] sm:$0xff] %v2622
      %2696 = vst [vmem:[%s2693 + $0x10] sm:$0xff] %v2623
      %2697 = vst [vmem:[%s2693 + $0x18] sm:$0xff] %v2624
      %2698 = vst [vmem:[%s2693 + $0x20] sm:$0xff] %v2625
      %2699 = vst [vmem:[%s2693 + $0x28] sm:$0xff] %v2626
      %2700 = vst [vmem:[%s2693 + $0x30] sm:$0xff] %v2627
      %2701 = vst [vmem:[%s2693 + $0x38] sm:$0xff] %v2628
      %2702 = vst [vmem:[%s2693 + $0x40] sm:$0xff] %v2629
      %2703 = vst [vmem:[%s2693 + $0x48] sm:$0xff] %v2630
      %2704 = vst [vmem:[%s2693 + $0x50] sm:$0xff] %v2631
      %2705 = vst [vmem:[%s2693 + $0x58] sm:$0xff] %v2632
      %2706 = vst [vmem:[%s2693 + $0x60] sm:$0xff] %v2633
      %2707 = vst [vmem:[%s2693 + $0x68] sm:$0xff] %v2634
      %2708 = vst [vmem:[%s2693 + $0x70] sm:$0xff] %v2635
      %2709 = vst [vmem:[%s2693 + $0x78] sm:$0xff] %v2636
      %2710 = vst [vmem:[%s2693 + $0x80] sm:$0xff] %v2637
      %2711 = vst [vmem:[%s2693 + $0x88] sm:$0xff] %v2638
      %2712 = vst [vmem:[%s2693 + $0x90] sm:$0xff] %v2639
      %2713 = vst [vmem:[%s2693 + $0x98] sm:$0xff] %v2640
      %2714 = vst [vmem:[%s2693 + $0xa0] sm:$0xff] %v2641
      %2715 = vst [vmem:[%s2693 + $0xa8] sm:$0xff] %v2642
      %2716 = vst [vmem:[%s2693 + $0xb0] sm:$0xff] %v2643
      %2717 = vst [vmem:[%s2693 + $0xb8] sm:$0xff] %v2644
      %2718 = vst [vmem:[%s2693 + $0xc0] sm:$0xff] %v2645
      %2719 = vst [vmem:[%s2693 + $0xc8] sm:$0xff] %v2646
      %2720 = vst [vmem:[%s2693 + $0xd0] sm:$0xff] %v2647
      %2721 = vst [vmem:[%s2693 + $0xd8] sm:$0xff] %v2648
      %2722 = vst [vmem:[%s2693 + $0xe0] sm:$0xff] %v2649
      %2723 = vst [vmem:[%s2693 + $0xe8] sm:$0xff] %v2650
      %2724 = vst [vmem:[%s2693 + $0xf0] sm:$0xff] %v2651
      %2725 = vst [vmem:[%s2693 + $0xf8] sm:$0xff] %v2652
      %2726 = vst [vmem:[%s2693 + $0x100] sm:$0xff] %v2653
      %2727 = vst [vmem:[%s2693 + $0x108] sm:$0xff] %v2654
      %2728 = vst [vmem:[%s2693 + $0x110] sm:$0xff] %v2655
      %2729 = vst [vmem:[%s2693 + $0x118] sm:$0xff] %v2656
      %2730 = vst [vmem:[%s2693 + $0x120] sm:$0xff] %v2657
      %2731 = vst [vmem:[%s2693 + $0x128] sm:$0xff] %v2658
      %2732 = vst [vmem:[%s2693 + $0x130] sm:$0xff] %v2659
      %2733 = vst [vmem:[%s2693 + $0x138] sm:$0xff] %v2660
      %2734 = vst [vmem:[%s2693 + $0x140] sm:$0xff] %v2661
      %2735 = vst [vmem:[%s2693 + $0x148] sm:$0xff] %v2662
      %2736 = vst [vmem:[%s2693 + $0x150] sm:$0xff] %v2663
      %2737 = vst [vmem:[%s2693 + $0x158] sm:$0xff] %v2664
      %2738 = vst [vmem:[%s2693 + $0x160] sm:$0xff] %v2665
      %2739 = vst [vmem:[%s2693 + $0x168] sm:$0xff] %v2666
      %2740 = vst [vmem:[%s2693 + $0x170] sm:$0xff] %v2667
      %2741 = vst [vmem:[%s2693 + $0x178] sm:$0xff] %v2668
      %2742 = vst [vmem:[%s2693 + $0x180] sm:$0xff] %v2669
      %2743 = vst [vmem:[%s2693 + $0x188] sm:$0xff] %v2670
      %2744 = vst [vmem:[%s2693 + $0x190] sm:$0xff] %v2671
      %2745 = vst [vmem:[%s2693 + $0x198] sm:$0xff] %v2672
      %2746 = vst [vmem:[%s2693 + $0x1a0] sm:$0xff] %v2673
      %2747 = vst [vmem:[%s2693 + $0x1a8] sm:$0xff] %v2674
      %2748 = vst [vmem:[%s2693 + $0x1b0] sm:$0xff] %v2675
      %2749 = vst [vmem:[%s2693 + $0x1b8] sm:$0xff] %v2676
      %2750 = vst [vmem:[%s2693 + $0x1c0] sm:$0xff] %v2677
      %2751 = vst [vmem:[%s2693 + $0x1c8] sm:$0xff] %v2678
      %2752 = vst [vmem:[%s2693 + $0x1d0] sm:$0xff] %v2679
      %2753 = vst [vmem:[%s2693 + $0x1d8] sm:$0xff] %v2680
      %2754 = vst [vmem:[%s2693 + $0x1e0] sm:$0xff] %v2681
      %2755 = vst [vmem:[%s2693 + $0x1e8] sm:$0xff] %v2682
      %2756 = vst [vmem:[%s2693 + $0x1f0] sm:$0xff] %v2683
      %2757 = vst [vmem:[%s2693 + $0x1f8] sm:$0xff] %v2684
      %2758 = vst [vmem:[%s2693 + $0x200] sm:$0xff] %v2685
      %2759 = vst [vmem:[%s2693 + $0x208] sm:$0xff] %v2686
      %2760 = vst [vmem:[%s2693 + $0x210] sm:$0xff] %v2687
      %2761 = vst [vmem:[%s2693 + $0x218] sm:$0xff] %v2688
      %2762 = vst [vmem:[%s2693 + $0x220] sm:$0xff] %v2689
      %2763 = vst [vmem:[%s2693 + $0x228] sm:$0xff] %v2690
      %2764 = vst [vmem:[%s2693 + $0x230] sm:$0xff] %v2691
      %2765 = vst [vmem:[%s2693 + $0x238] sm:$0xff] %v2692
      %v2766 = vld [vmem:[#allocation2] sm:$0xff]
      %v2767 = vld [vmem:[#allocation2 + $0x8] sm:$0xff]
      %v2768 = vld [vmem:[#allocation2 + $0x10] sm:$0xff]
      %v2769 = vld [vmem:[#allocation2 + $0x18] sm:$0xff]
      %v2770 = vld [vmem:[#allocation2 + $0x20] sm:$0xff]
      %v2771 = vld [vmem:[#allocation2 + $0x28] sm:$0xff]
      %v2772 = vld [vmem:[#allocation2 + $0x30] sm:$0xff]
      %v2773 = vld [vmem:[#allocation2 + $0x38] sm:$0xff]
      %v2774 = vld [vmem:[#allocation2 + $0x40] sm:$0xff]
      %v2775 = vld [vmem:[#allocation2 + $0x48] sm:$0xff]
      %v2776 = vld [vmem:[#allocation2 + $0x50] sm:$0xff]
      %v2777 = vld [vmem:[#allocation2 + $0x58] sm:$0xff]
      %v2778 = vld [vmem:[#allocation2 + $0x60] sm:$0xff]
      %v2779 = vld [vmem:[#allocation2 + $0x68] sm:$0xff]
      %v2780 = vld [vmem:[#allocation2 + $0x70] sm:$0xff]
      %v2781 = vld [vmem:[#allocation2 + $0x78] sm:$0xff]
      %v2782 = vld [vmem:[#allocation2 + $0x80] sm:$0xff]
      %v2783 = vld [vmem:[#allocation2 + $0x88] sm:$0xff]
      %v2784 = vld [vmem:[#allocation2 + $0x90] sm:$0xff]
      %v2785 = vld [vmem:[#allocation2 + $0x98] sm:$0xff]
      %v2786 = vld [vmem:[#allocation2 + $0xa0] sm:$0xff]
      %v2787 = vld [vmem:[#allocation2 + $0xa8] sm:$0xff]
      %v2788 = vld [vmem:[#allocation2 + $0xb0] sm:$0xff]
      %v2789 = vld [vmem:[#allocation2 + $0xb8] sm:$0xff]
      %v2790 = vld [vmem:[#allocation2 + $0xc0] sm:$0xff]
      %v2791 = vld [vmem:[#allocation2 + $0xc8] sm:$0xff]
      %v2792 = vld [vmem:[#allocation2 + $0xd0] sm:$0xff]
      %v2793 = vld [vmem:[#allocation2 + $0xd8] sm:$0xff]
      %v2794 = vld [vmem:[#allocation2 + $0xe0] sm:$0xff]
      %v2795 = vld [vmem:[#allocation2 + $0xe8] sm:$0xff]
      %v2796 = vld [vmem:[#allocation2 + $0xf0] sm:$0xff]
      %v2797 = vld [vmem:[#allocation2 + $0xf8] sm:$0xff]
      %v2798 = vld [vmem:[#allocation2 + $0x100] sm:$0xff]
      %v2799 = vld [vmem:[#allocation2 + $0x108] sm:$0xff]
      %v2800 = vld [vmem:[#allocation2 + $0x110] sm:$0xff]
      %v2801 = vld [vmem:[#allocation2 + $0x118] sm:$0xff]
      %v2802 = vld [vmem:[#allocation2 + $0x120] sm:$0xff]
      %v2803 = vld [vmem:[#allocation2 + $0x128] sm:$0xff]
      %v2804 = vld [vmem:[#allocation2 + $0x130] sm:$0xff]
      %v2805 = vld [vmem:[#allocation2 + $0x138] sm:$0xff]
      %v2806 = vld [vmem:[#allocation2 + $0x140] sm:$0xff]
      %v2807 = vld [vmem:[#allocation2 + $0x148] sm:$0xff]
      %v2808 = vld [vmem:[#allocation2 + $0x150] sm:$0xff]
      %v2809 = vld [vmem:[#allocation2 + $0x158] sm:$0xff]
      %v2810 = vld [vmem:[#allocation2 + $0x160] sm:$0xff]
      %v2811 = vld [vmem:[#allocation2 + $0x168] sm:$0xff]
      %v2812 = vld [vmem:[#allocation2 + $0x170] sm:$0xff]
      %v2813 = vld [vmem:[#allocation2 + $0x178] sm:$0xff]
      %v2814 = vld [vmem:[#allocation2 + $0x180] sm:$0xff]
      %v2815 = vld [vmem:[#allocation2 + $0x188] sm:$0xff]
      %v2816 = vld [vmem:[#allocation2 + $0x190] sm:$0xff]
      %v2817 = vld [vmem:[#allocation2 + $0x198] sm:$0xff]
      %v2818 = vld [vmem:[#allocation2 + $0x1a0] sm:$0xff]
      %v2819 = vld [vmem:[#allocation2 + $0x1a8] sm:$0xff]
      %v2820 = vld [vmem:[#allocation2 + $0x1b0] sm:$0xff]
      %v2821 = vld [vmem:[#allocation2 + $0x1b8] sm:$0xff]
      %v2822 = vld [vmem:[#allocation2 + $0x1c0] sm:$0xff]
      %v2823 = vld [vmem:[#allocation2 + $0x1c8] sm:$0xff]
      %v2824 = vld [vmem:[#allocation2 + $0x1d0] sm:$0xff]
      %v2825 = vld [vmem:[#allocation2 + $0x1d8] sm:$0xff]
      %v2826 = vld [vmem:[#allocation2 + $0x1e0] sm:$0xff]
      %v2827 = vld [vmem:[#allocation2 + $0x1e8] sm:$0xff]
      %v2828 = vld [vmem:[#allocation2 + $0x1f0] sm:$0xff]
      %v2829 = vld [vmem:[#allocation2 + $0x1f8] sm:$0xff]
      %v2830 = vld [vmem:[#allocation2 + $0x200] sm:$0xff]
      %v2831 = vld [vmem:[#allocation2 + $0x208] sm:$0xff]
      %v2832 = vld [vmem:[#allocation2 + $0x210] sm:$0xff]
      %v2833 = vld [vmem:[#allocation2 + $0x218] sm:$0xff]
      %v2834 = vld [vmem:[#allocation2 + $0x220] sm:$0xff]
      %v2835 = vld [vmem:[#allocation2 + $0x228] sm:$0xff]
      %v2836 = vpack.c.bf16 %v2768, %v2766
      %v2837 = vpack.c.bf16 %v2769, %v2767
      %v2838 = vpack.c.bf16 %v2772, %v2770
      %v2839 = vpack.c.bf16 %v2773, %v2771
      %v2840 = vpack.c.bf16 %v2776, %v2774
      %v2841 = vpack.c.bf16 %v2777, %v2775
      %v2842 = vpack.c.bf16 %v2780, %v2778
      %v2843 = vpack.c.bf16 %v2781, %v2779
      %v2844 = vpack.c.bf16 %v2784, %v2782
      %v2845 = vpack.c.bf16 %v2785, %v2783
      %v2846 = vpack.c.bf16 %v2788, %v2786
      %v2847 = vpack.c.bf16 %v2789, %v2787
      %v2848 = vpack.c.bf16 %v2792, %v2790
      %v2849 = vpack.c.bf16 %v2793, %v2791
      %v2850 = vpack.c.bf16 %v2796, %v2794
      %v2851 = vpack.c.bf16 %v2797, %v2795
      %v2852 = vpack.c.bf16 %v2800, %v2798
      %v2853 = vpack.c.bf16 %v2801, %v2799
      %v2854 = vpack.c.bf16 %v2804, %v2802
      %v2855 = vpack.c.bf16 %v2805, %v2803
      %v2856 = vpack.c.bf16 %v2808, %v2806
      %v2857 = vpack.c.bf16 %v2809, %v2807
      %v2858 = vpack.c.bf16 %v2812, %v2810
      %v2859 = vpack.c.bf16 %v2813, %v2811
      %v2860 = vpack.c.bf16 %v2816, %v2814
      %v2861 = vpack.c.bf16 %v2817, %v2815
      %v2862 = vpack.c.bf16 %v2820, %v2818
      %v2863 = vpack.c.bf16 %v2821, %v2819
      %v2864 = vpack.c.bf16 %v2824, %v2822
      %v2865 = vpack.c.bf16 %v2825, %v2823
      %v2866 = vpack.c.bf16 %v2828, %v2826
      %v2867 = vpack.c.bf16 %v2829, %v2827
      %v2868 = vpack.c.bf16 %v2832, %v2830
      %v2869 = vpack.c.bf16 %v2833, %v2831
      %v2870 = vpack.c.bf16 %v2834, %v2834
      %v2871 = vpack.c.bf16 %v2835, %v2835
      %v2872 = vld [vmem:[%s2] sm:$0xf]
      %v2873 = vld [vmem:[%s2 + $0x4] sm:$0xf]
      %v2874 = vld [vmem:[%s2 + $0x8] sm:$0xf]
      %v2875 = vld [vmem:[%s2 + $0xc] sm:$0xf]
      %v2876 = vld [vmem:[%s2 + $0x10] sm:$0xf]
      %v2877 = vld [vmem:[%s2 + $0x14] sm:$0xf]
      %v2878 = vld [vmem:[%s2 + $0x18] sm:$0xf]
      %v2879 = vld [vmem:[%s2 + $0x1c] sm:$0xf]
      %v2880 = vld [vmem:[%s2 + $0x20] sm:$0xf]
      %v2881 = vld [vmem:[%s2 + $0x24] sm:$0xf]
      %v2882 = vld [vmem:[%s2 + $0x28] sm:$0xf]
      %v2883 = vld [vmem:[%s2 + $0x2c] sm:$0xf]
      %v2884 = vld [vmem:[%s2 + $0x30] sm:$0xf]
      %v2885 = vld [vmem:[%s2 + $0x34] sm:$0xf]
      %v2886 = vld [vmem:[%s2 + $0x38] sm:$0xf]
      %v2887 = vld [vmem:[%s2 + $0x3c] sm:$0xf]
      %v2888 = vld [vmem:[%s2 + $0x40] sm:$0xf]
      %v2889 = vld [vmem:[%s2 + $0x44] sm:$0xf]
      %v2890 = vld [vmem:[%s2 + $0x48] sm:$0xf]
      %v2891 = vld [vmem:[%s2 + $0x4c] sm:$0xf]
      %v2892 = vld [vmem:[%s2 + $0x50] sm:$0xf]
      %v2893 = vld [vmem:[%s2 + $0x54] sm:$0xf]
      %v2894 = vld [vmem:[%s2 + $0x58] sm:$0xf]
      %v2895 = vld [vmem:[%s2 + $0x5c] sm:$0xf]
      %v2896 = vld [vmem:[%s2 + $0x60] sm:$0xf]
      %v2897 = vld [vmem:[%s2 + $0x64] sm:$0xf]
      %v2898 = vld [vmem:[%s2 + $0x68] sm:$0xf]
      %v2899 = vld [vmem:[%s2 + $0x6c] sm:$0xf]
      %v2900 = vld [vmem:[%s2 + $0x70] sm:$0xf]
      %v2901 = vld [vmem:[%s2 + $0x74] sm:$0xf]
      %v2902 = vld [vmem:[%s2 + $0x78] sm:$0xf]
      %v2903 = vld [vmem:[%s2 + $0x7c] sm:$0xf]
      %v2904 = vld [vmem:[%s2693] sm:$0xff]
      %v2905 = vld [vmem:[%s2693 + $0x8] sm:$0xff]
      %v2906 = vld [vmem:[%s2693 + $0x10] sm:$0xff]
      %v2907 = vld [vmem:[%s2693 + $0x18] sm:$0xff]
      %v2908 = vld [vmem:[%s2693 + $0x20] sm:$0xff]
      %v2909 = vld [vmem:[%s2693 + $0x28] sm:$0xff]
      %v2910 = vld [vmem:[%s2693 + $0x30] sm:$0xff]
      %v2911 = vld [vmem:[%s2693 + $0x38] sm:$0xff]
      %v2912 = vld [vmem:[%s2693 + $0x40] sm:$0xff]
      %v2913 = vld [vmem:[%s2693 + $0x48] sm:$0xff]
      %v2914 = vld [vmem:[%s2693 + $0x50] sm:$0xff]
      %v2915 = vld [vmem:[%s2693 + $0x58] sm:$0xff]
      %v2916 = vld [vmem:[%s2693 + $0x60] sm:$0xff]
      %v2917 = vld [vmem:[%s2693 + $0x68] sm:$0xff]
      %v2918 = vld [vmem:[%s2693 + $0x70] sm:$0xff]
      %v2919 = vld [vmem:[%s2693 + $0x78] sm:$0xff]
      %v2920 = vld [vmem:[%s2693 + $0x80] sm:$0xff]
      %v2921 = vld [vmem:[%s2693 + $0x88] sm:$0xff]
      %v2922 = vld [vmem:[%s2693 + $0x90] sm:$0xff]
      %v2923 = vld [vmem:[%s2693 + $0x98] sm:$0xff]
      %v2924 = vld [vmem:[%s2693 + $0xa0] sm:$0xff]
      %v2925 = vld [vmem:[%s2693 + $0xa8] sm:$0xff]
      %v2926 = vld [vmem:[%s2693 + $0xb0] sm:$0xff]
      %v2927 = vld [vmem:[%s2693 + $0xb8] sm:$0xff]
      %v2928 = vld [vmem:[%s2693 + $0xc0] sm:$0xff]
      %v2929 = vld [vmem:[%s2693 + $0xc8] sm:$0xff]
      %v2930 = vld [vmem:[%s2693 + $0xd0] sm:$0xff]
      %v2931 = vld [vmem:[%s2693 + $0xd8] sm:$0xff]
      %v2932 = vld [vmem:[%s2693 + $0xe0] sm:$0xff]
      %v2933 = vld [vmem:[%s2693 + $0xe8] sm:$0xff]
      %v2934 = vld [vmem:[%s2693 + $0xf0] sm:$0xff]
      %v2935 = vld [vmem:[%s2693 + $0xf8] sm:$0xff]
      %v2936 = vld [vmem:[%s2693 + $0x100] sm:$0xff]
      %v2937 = vld [vmem:[%s2693 + $0x108] sm:$0xff]
      %v2938 = vld [vmem:[%s2693 + $0x110] sm:$0xff]
      %v2939 = vld [vmem:[%s2693 + $0x118] sm:$0xff]
      %v2940 = vld [vmem:[%s2693 + $0x120] sm:$0xff]
      %v2941 = vld [vmem:[%s2693 + $0x128] sm:$0xff]
      %v2942 = vld [vmem:[%s2693 + $0x130] sm:$0xff]
      %v2943 = vld [vmem:[%s2693 + $0x138] sm:$0xff]
      %v2944 = vld [vmem:[%s2693 + $0x140] sm:$0xff]
      %v2945 = vld [vmem:[%s2693 + $0x148] sm:$0xff]
      %v2946 = vld [vmem:[%s2693 + $0x150] sm:$0xff]
      %v2947 = vld [vmem:[%s2693 + $0x158] sm:$0xff]
      %v2948 = vld [vmem:[%s2693 + $0x160] sm:$0xff]
      %v2949 = vld [vmem:[%s2693 + $0x168] sm:$0xff]
      %v2950 = vld [vmem:[%s2693 + $0x170] sm:$0xff]
      %v2951 = vld [vmem:[%s2693 + $0x178] sm:$0xff]
      %v2952 = vld [vmem:[%s2693 + $0x180] sm:$0xff]
      %v2953 = vld [vmem:[%s2693 + $0x188] sm:$0xff]
      %v2954 = vld [vmem:[%s2693 + $0x190] sm:$0xff]
      %v2955 = vld [vmem:[%s2693 + $0x198] sm:$0xff]
      %v2956 = vld [vmem:[%s2693 + $0x1a0] sm:$0xff]
      %v2957 = vld [vmem:[%s2693 + $0x1a8] sm:$0xff]
      %v2958 = vld [vmem:[%s2693 + $0x1b0] sm:$0xff]
      %v2959 = vld [vmem:[%s2693 + $0x1b8] sm:$0xff]
      %v2960 = vld [vmem:[%s2693 + $0x1c0] sm:$0xff]
      %v2961 = vld [vmem:[%s2693 + $0x1c8] sm:$0xff]
      %v2962 = vld [vmem:[%s2693 + $0x1d0] sm:$0xff]
      %v2963 = vld [vmem:[%s2693 + $0x1d8] sm:$0xff]
      %v2964 = vld [vmem:[%s2693 + $0x1e0] sm:$0xff]
      %v2965 = vld [vmem:[%s2693 + $0x1e8] sm:$0xff]
      %v2966 = vld [vmem:[%s2693 + $0x1f0] sm:$0xff]
      %v2967 = vld [vmem:[%s2693 + $0x1f8] sm:$0xff]
      %v2968 = vld [vmem:[%s2693 + $0x200] sm:$0xff]
      %v2969 = vld [vmem:[%s2693 + $0x208] sm:$0xff]
      %v2970 = vld [vmem:[%s2693 + $0x210] sm:$0xff]
      %v2971 = vld [vmem:[%s2693 + $0x218] sm:$0xff]
      %v2972 = vld [vmem:[%s2693 + $0x220] sm:$0xff]
      %v2973 = vld [vmem:[%s2693 + $0x228] sm:$0xff]
      %v2974 = vpack.c.bf16 %v2906, %v2904
      %v2975 = vpack.c.bf16 %v2907, %v2905
      %v2976 = vpack.c.bf16 %v2910, %v2908
      %v2977 = vpack.c.bf16 %v2911, %v2909
      %v2978 = vpack.c.bf16 %v2914, %v2912
      %v2979 = vpack.c.bf16 %v2915, %v2913
      %v2980 = vpack.c.bf16 %v2918, %v2916
      %v2981 = vpack.c.bf16 %v2919, %v2917
      %v2982 = vpack.c.bf16 %v2922, %v2920
      %v2983 = vpack.c.bf16 %v2923, %v2921
      %v2984 = vpack.c.bf16 %v2926, %v2924
      %v2985 = vpack.c.bf16 %v2927, %v2925
      %v2986 = vpack.c.bf16 %v2930, %v2928
      %v2987 = vpack.c.bf16 %v2931, %v2929
      %v2988 = vpack.c.bf16 %v2934, %v2932
      %v2989 = vpack.c.bf16 %v2935, %v2933
      %v2990 = vpack.c.bf16 %v2938, %v2936
      %v2991 = vpack.c.bf16 %v2939, %v2937
      %v2992 = vpack.c.bf16 %v2942, %v2940
      %v2993 = vpack.c.bf16 %v2943, %v2941
      %v2994 = vpack.c.bf16 %v2946, %v2944
      %v2995 = vpack.c.bf16 %v2947, %v2945
      %v2996 = vpack.c.bf16 %v2950, %v2948
      %v2997 = vpack.c.bf16 %v2951, %v2949
      %v2998 = vpack.c.bf16 %v2954, %v2952
      %v2999 = vpack.c.bf16 %v2955, %v2953
      %v3000 = vpack.c.bf16 %v2958, %v2956
      %v3001 = vpack.c.bf16 %v2959, %v2957
      %v3002 = vpack.c.bf16 %v2962, %v2960
      %v3003 = vpack.c.bf16 %v2963, %v2961
      %v3004 = vpack.c.bf16 %v2966, %v2964
      %v3005 = vpack.c.bf16 %v2967, %v2965
      %v3006 = vpack.c.bf16 %v2970, %v2968
      %v3007 = vpack.c.bf16 %v2971, %v2969
      %v3008 = vpack.c.bf16 %v2972, %v2972
      %v3009 = vpack.c.bf16 %v2973, %v2973
      %s3010 = scalar_lea.vmem %s2, 128
      %v3011 = vld [vmem:[%s3010] sm:$0xf]
      %v3012 = vld [vmem:[%s3010 + $0x4] sm:$0xf]
      %v3013 = vld [vmem:[%s3010 + $0x8] sm:$0xf]
      %v3014 = vld [vmem:[%s3010 + $0xc] sm:$0xf]
      %v3015 = vld [vmem:[%s3010 + $0x10] sm:$0xf]
      %v3016 = vld [vmem:[%s3010 + $0x14] sm:$0xf]
      %v3017 = vld [vmem:[%s3010 + $0x18] sm:$0xf]
      %v3018 = vld [vmem:[%s3010 + $0x1c] sm:$0xf]
      %v3019 = vld [vmem:[%s3010 + $0x20] sm:$0xf]
      %v3020 = vld [vmem:[%s3010 + $0x24] sm:$0xf]
      %v3021 = vld [vmem:[%s3010 + $0x28] sm:$0xf]
      %v3022 = vld [vmem:[%s3010 + $0x2c] sm:$0xf]
      %v3023 = vld [vmem:[%s3010 + $0x30] sm:$0xf]
      %v3024 = vld [vmem:[%s3010 + $0x34] sm:$0xf]
      %v3025 = vld [vmem:[%s3010 + $0x38] sm:$0xf]
      %v3026 = vld [vmem:[%s3010 + $0x3c] sm:$0xf]
      %v3027 = vld [vmem:[%s3010 + $0x40] sm:$0xf]
      %v3028 = vld [vmem:[%s3010 + $0x44] sm:$0xf]
      %v3029 = vld [vmem:[%s3010 + $0x48] sm:$0xf]
      %v3030 = vld [vmem:[%s3010 + $0x4c] sm:$0xf]
      %v3031 = vld [vmem:[%s3010 + $0x50] sm:$0xf]
      %v3032 = vld [vmem:[%s3010 + $0x54] sm:$0xf]
      %v3033 = vld [vmem:[%s3010 + $0x58] sm:$0xf]
      %v3034 = vld [vmem:[%s3010 + $0x5c] sm:$0xf]
      %v3035 = vld [vmem:[%s3010 + $0x60] sm:$0xf]
      %v3036 = vld [vmem:[%s3010 + $0x64] sm:$0xf]
      %v3037 = vld [vmem:[%s3010 + $0x68] sm:$0xf]
      %v3038 = vld [vmem:[%s3010 + $0x6c] sm:$0xf]
      %v3039 = vld [vmem:[%s3010 + $0x70] sm:$0xf]
      %v3040 = vld [vmem:[%s3010 + $0x74] sm:$0xf]
      %v3041 = vld [vmem:[%s3010 + $0x78] sm:$0xf]
      %v3042 = vld [vmem:[%s3010 + $0x7c] sm:$0xf]
      %v3075 = vunpack.c.l.b16 %v3011
      %v3076 = vunpack.c.l.b16 %v3012
      %v3077 = vunpack.c.l.b16 %v3013
      %v3078 = vunpack.c.l.b16 %v3014
      %v3079 = vunpack.c.l.b16 %v3015
      %v3080 = vunpack.c.l.b16 %v3016
      %v3081 = vunpack.c.l.b16 %v3017
      %v3082 = vunpack.c.l.b16 %v3018
      %v3083 = vunpack.c.l.b16 %v3019
      %v3084 = vunpack.c.l.b16 %v3020
      %v3085 = vunpack.c.l.b16 %v3021
      %v3086 = vunpack.c.l.b16 %v3022
      %v3087 = vunpack.c.l.b16 %v3023
      %v3088 = vunpack.c.l.b16 %v3024
      %v3089 = vunpack.c.l.b16 %v3025
      %v3090 = vunpack.c.l.b16 %v3026
      %v3091 = vunpack.c.l.b16 %v3027
      %v3092 = vunpack.c.l.b16 %v3028
      %v3093 = vunpack.c.l.b16 %v3029
      %v3094 = vunpack.c.l.b16 %v3030
      %v3095 = vunpack.c.l.b16 %v3031
      %v3096 = vunpack.c.l.b16 %v3032
      %v3097 = vunpack.c.l.b16 %v3033
      %v3098 = vunpack.c.l.b16 %v3034
      %v3099 = vunpack.c.l.b16 %v3035
      %v3100 = vunpack.c.l.b16 %v3036
      %v3101 = vunpack.c.l.b16 %v3037
      %v3102 = vunpack.c.l.b16 %v3038
      %v3103 = vunpack.c.l.b16 %v3039
      %v3104 = vunpack.c.l.b16 %v3040
      %v3105 = vunpack.c.l.b16 %v3041
      %v3106 = vunpack.c.l.b16 %v3042
      %v3107 = vpack.c.b16 %v3076, %v3075
      %v3108 = vpack.c.b16 %v3078, %v3077
      %v3109 = vpack.c.b16 %v3080, %v3079
      %v3110 = vpack.c.b16 %v3082, %v3081
      %v3111 = vpack.c.b16 %v3084, %v3083
      %v3112 = vpack.c.b16 %v3086, %v3085
      %v3113 = vpack.c.b16 %v3088, %v3087
      %v3114 = vpack.c.b16 %v3090, %v3089
      %v3115 = vpack.c.b16 %v3092, %v3091
      %v3116 = vpack.c.b16 %v3094, %v3093
      %v3117 = vpack.c.b16 %v3096, %v3095
      %v3118 = vpack.c.b16 %v3098, %v3097
      %v3119 = vpack.c.b16 %v3100, %v3099
      %v3120 = vpack.c.b16 %v3102, %v3101
      %v3121 = vpack.c.b16 %v3104, %v3103
      %v3122 = vpack.c.b16 %v3106, %v3105
      %3139 = vmatpush.bf16.msra.mxu0 %v3114
      %3140 = vmatpush.bf16.msra.mxu0 %v3113
      %3141 = vmatpush.bf16.msra.mxu0 %v3112
      %3142 = vmatpush.bf16.msra.mxu0 %v3111
      %3143 = vmatpush.bf16.msra.mxu0 %v3110
      %3144 = vmatpush.bf16.msra.mxu0 %v3109
      %3145 = vmatpush.bf16.msra.mxu0 %v3108
      %3146 = vmatpush.bf16.msra.mxu0 %v3107
      %3147 = vmatmul.bf16.gmra.mxu0 %v2974
      %v3148 = vpop.f32.mrf.mxu0
      %v3149 = vadd.f32 0.0, %v3148
      %v3150 = vpop.f32.mrf.mxu0
      %v3151 = vadd.f32 0.0, %v3150
      %3152 = vmatmul.bf16.gmra.mxu0 %v2976
      %v3153 = vpop.f32.mrf.mxu0
      %v3154 = vadd.f32 0.0, %v3153
      %v3155 = vpop.f32.mrf.mxu0
      %v3156 = vadd.f32 0.0, %v3155
      %3157 = vmatmul.bf16.gmra.mxu0 %v2978
      %v3158 = vpop.f32.mrf.mxu0
      %v3159 = vadd.f32 0.0, %v3158
      %v3160 = vpop.f32.mrf.mxu0
      %v3161 = vadd.f32 0.0, %v3160
      %3162 = vmatmul.bf16.gmra.mxu0 %v2980
      %v3163 = vpop.f32.mrf.mxu0
      %v3164 = vadd.f32 0.0, %v3163
      %v3165 = vpop.f32.mrf.mxu0
      %v3166 = vadd.f32 0.0, %v3165
      %3167 = vmatmul.bf16.gmra.mxu0 %v2982
      %v3168 = vpop.f32.mrf.mxu0
      %v3169 = vadd.f32 0.0, %v3168
      %v3170 = vpop.f32.mrf.mxu0
      %v3171 = vadd.f32 0.0, %v3170
      %3172 = vmatmul.bf16.gmra.mxu0 %v2984
      %v3173 = vpop.f32.mrf.mxu0
      %v3174 = vadd.f32 0.0, %v3173
      %v3175 = vpop.f32.mrf.mxu0
      %v3176 = vadd.f32 0.0, %v3175
      %3177 = vmatmul.bf16.gmra.mxu0 %v2986
      %v3178 = vpop.f32.mrf.mxu0
      %v3179 = vadd.f32 0.0, %v3178
      %v3180 = vpop.f32.mrf.mxu0
      %v3181 = vadd.f32 0.0, %v3180
      %3182 = vmatmul.bf16.gmra.mxu0 %v2988
      %v3183 = vpop.f32.mrf.mxu0
      %v3184 = vadd.f32 0.0, %v3183
      %v3185 = vpop.f32.mrf.mxu0
      %v3186 = vadd.f32 0.0, %v3185
      %3187 = vmatmul.bf16.gmra.mxu0 %v2990
      %v3188 = vpop.f32.mrf.mxu0
      %v3189 = vadd.f32 0.0, %v3188
      %v3190 = vpop.f32.mrf.mxu0
      %v3191 = vadd.f32 0.0, %v3190
      %3192 = vmatmul.bf16.gmra.mxu0 %v2992
      %v3193 = vpop.f32.mrf.mxu0
      %v3194 = vadd.f32 0.0, %v3193
      %v3195 = vpop.f32.mrf.mxu0
      %v3196 = vadd.f32 0.0, %v3195
      %3197 = vmatmul.bf16.gmra.mxu0 %v2994
      %v3198 = vpop.f32.mrf.mxu0
      %v3199 = vadd.f32 0.0, %v3198
      %v3200 = vpop.f32.mrf.mxu0
      %v3201 = vadd.f32 0.0, %v3200
      %3202 = vmatmul.bf16.gmra.mxu0 %v2996
      %v3203 = vpop.f32.mrf.mxu0
      %v3204 = vadd.f32 0.0, %v3203
      %v3205 = vpop.f32.mrf.mxu0
      %v3206 = vadd.f32 0.0, %v3205
      %3207 = vmatmul.bf16.gmra.mxu0 %v2998
      %v3208 = vpop.f32.mrf.mxu0
      %v3209 = vadd.f32 0.0, %v3208
      %v3210 = vpop.f32.mrf.mxu0
      %v3211 = vadd.f32 0.0, %v3210
      %3212 = vmatmul.bf16.gmra.mxu0 %v3000
      %v3213 = vpop.f32.mrf.mxu0
      %v3214 = vadd.f32 0.0, %v3213
      %v3215 = vpop.f32.mrf.mxu0
      %v3216 = vadd.f32 0.0, %v3215
      %3217 = vmatmul.bf16.gmra.mxu0 %v3002
      %v3218 = vpop.f32.mrf.mxu0
      %v3219 = vadd.f32 0.0, %v3218
      %v3220 = vpop.f32.mrf.mxu0
      %v3221 = vadd.f32 0.0, %v3220
      %3222 = vmatmul.bf16.gmra.mxu0 %v3004
      %v3223 = vpop.f32.mrf.mxu0
      %v3224 = vadd.f32 0.0, %v3223
      %v3225 = vpop.f32.mrf.mxu0
      %v3226 = vadd.f32 0.0, %v3225
      %3227 = vmatmul.bf16.gmra.mxu0 %v3006
      %v3228 = vpop.f32.mrf.mxu0
      %v3229 = vadd.f32 0.0, %v3228
      %v3230 = vpop.f32.mrf.mxu0
      %v3231 = vadd.f32 0.0, %v3230
      %3232 = vmatmul.bf16.gmra.mxu0 %v3008
      %v3233 = vpop.f32.mrf.mxu0
      %v3234 = vadd.f32 0.0, %v3233
      %v3235 = vpop.f32.mrf.mxu0
      %3236 = vdwg.mxu0
      %3237 = vmatpush.bf16.msra.mxu0 %v3122
      %3238 = vmatpush.bf16.msra.mxu0 %v3121
      %3239 = vmatpush.bf16.msra.mxu0 %v3120
      %3240 = vmatpush.bf16.msra.mxu0 %v3119
      %3241 = vmatpush.bf16.msra.mxu0 %v3118
      %3242 = vmatpush.bf16.msra.mxu0 %v3117
      %3243 = vmatpush.bf16.msra.mxu0 %v3116
      %3244 = vmatpush.bf16.msra.mxu0 %v3115
      %3245 = vmatmul.bf16.gmra.mxu0 %v2975
      %v3246 = vpop.f32.mrf.mxu0
      %v3247 = vadd.f32 %v3149, %v3246
      %v3248 = vpop.f32.mrf.mxu0
      %v3249 = vadd.f32 %v3151, %v3248
      %3250 = vmatmul.bf16.gmra.mxu0 %v2977
      %v3251 = vpop.f32.mrf.mxu0
      %v3252 = vadd.f32 %v3154, %v3251
      %v3253 = vpop.f32.mrf.mxu0
      %v3254 = vadd.f32 %v3156, %v3253
      %3255 = vmatmul.bf16.gmra.mxu0 %v2979
      %v3256 = vpop.f32.mrf.mxu0
      %v3257 = vadd.f32 %v3159, %v3256
      %v3258 = vpop.f32.mrf.mxu0
      %v3259 = vadd.f32 %v3161, %v3258
      %3260 = vmatmul.bf16.gmra.mxu0 %v2981
      %v3261 = vpop.f32.mrf.mxu0
      %v3262 = vadd.f32 %v3164, %v3261
      %v3263 = vpop.f32.mrf.mxu0
      %v3264 = vadd.f32 %v3166, %v3263
      %3265 = vmatmul.bf16.gmra.mxu0 %v2983
      %v3266 = vpop.f32.mrf.mxu0
      %v3267 = vadd.f32 %v3169, %v3266
      %v3268 = vpop.f32.mrf.mxu0
      %v3269 = vadd.f32 %v3171, %v3268
      %3270 = vmatmul.bf16.gmra.mxu0 %v2985
      %v3271 = vpop.f32.mrf.mxu0
      %v3272 = vadd.f32 %v3174, %v3271
      %v3273 = vpop.f32.mrf.mxu0
      %v3274 = vadd.f32 %v3176, %v3273
      %3275 = vmatmul.bf16.gmra.mxu0 %v2987
      %v3276 = vpop.f32.mrf.mxu0
      %v3277 = vadd.f32 %v3179, %v3276
      %v3278 = vpop.f32.mrf.mxu0
      %v3279 = vadd.f32 %v3181, %v3278
      %3280 = vmatmul.bf16.gmra.mxu0 %v2989
      %v3281 = vpop.f32.mrf.mxu0
      %v3282 = vadd.f32 %v3184, %v3281
      %v3283 = vpop.f32.mrf.mxu0
      %v3284 = vadd.f32 %v3186, %v3283
      %3285 = vmatmul.bf16.gmra.mxu0 %v2991
      %v3286 = vpop.f32.mrf.mxu0
      %v3287 = vadd.f32 %v3189, %v3286
      %v3288 = vpop.f32.mrf.mxu0
      %v3289 = vadd.f32 %v3191, %v3288
      %3290 = vmatmul.bf16.gmra.mxu0 %v2993
      %v3291 = vpop.f32.mrf.mxu0
      %v3292 = vadd.f32 %v3194, %v3291
      %v3293 = vpop.f32.mrf.mxu0
      %v3294 = vadd.f32 %v3196, %v3293
      %3295 = vmatmul.bf16.gmra.mxu0 %v2995
      %v3296 = vpop.f32.mrf.mxu0
      %v3297 = vadd.f32 %v3199, %v3296
      %v3298 = vpop.f32.mrf.mxu0
      %v3299 = vadd.f32 %v3201, %v3298
      %3300 = vmatmul.bf16.gmra.mxu0 %v2997
      %v3301 = vpop.f32.mrf.mxu0
      %v3302 = vadd.f32 %v3204, %v3301
      %v3303 = vpop.f32.mrf.mxu0
      %v3304 = vadd.f32 %v3206, %v3303
      %3305 = vmatmul.bf16.gmra.mxu0 %v2999
      %v3306 = vpop.f32.mrf.mxu0
      %v3307 = vadd.f32 %v3209, %v3306
      %v3308 = vpop.f32.mrf.mxu0
      %v3309 = vadd.f32 %v3211, %v3308
      %3310 = vmatmul.bf16.gmra.mxu0 %v3001
      %v3311 = vpop.f32.mrf.mxu0
      %v3312 = vadd.f32 %v3214, %v3311
      %v3313 = vpop.f32.mrf.mxu0
      %v3314 = vadd.f32 %v3216, %v3313
      %3315 = vmatmul.bf16.gmra.mxu0 %v3003
      %v3316 = vpop.f32.mrf.mxu0
      %v3317 = vadd.f32 %v3219, %v3316
      %v3318 = vpop.f32.mrf.mxu0
      %v3319 = vadd.f32 %v3221, %v3318
      %3320 = vmatmul.bf16.gmra.mxu0 %v3005
      %v3321 = vpop.f32.mrf.mxu0
      %v3322 = vadd.f32 %v3224, %v3321
      %v3323 = vpop.f32.mrf.mxu0
      %v3324 = vadd.f32 %v3226, %v3323
      %3325 = vmatmul.bf16.gmra.mxu0 %v3007
      %v3326 = vpop.f32.mrf.mxu0
      %v3327 = vadd.f32 %v3229, %v3326
      %v3328 = vpop.f32.mrf.mxu0
      %v3329 = vadd.f32 %v3231, %v3328
      %3330 = vmatmul.bf16.gmra.mxu0 %v3009
      %v3331 = vpop.f32.mrf.mxu0
      %v3332 = vadd.f32 %v3234, %v3331
      %v3333 = vpop.f32.mrf.mxu0
      %3334 = vdwg.mxu0
      %v3367 = vunpack.c.l.b16 %v2872
      %v3368 = vunpack.c.l.b16 %v2873
      %v3369 = vunpack.c.l.b16 %v2874
      %v3370 = vunpack.c.l.b16 %v2875
      %v3371 = vunpack.c.l.b16 %v2876
      %v3372 = vunpack.c.l.b16 %v2877
      %v3373 = vunpack.c.l.b16 %v2878
      %v3374 = vunpack.c.l.b16 %v2879
      %v3375 = vunpack.c.l.b16 %v2880
      %v3376 = vunpack.c.l.b16 %v2881
      %v3377 = vunpack.c.l.b16 %v2882
      %v3378 = vunpack.c.l.b16 %v2883
      %v3379 = vunpack.c.l.b16 %v2884
      %v3380 = vunpack.c.l.b16 %v2885
      %v3381 = vunpack.c.l.b16 %v2886
      %v3382 = vunpack.c.l.b16 %v2887
      %v3383 = vunpack.c.l.b16 %v2888
      %v3384 = vunpack.c.l.b16 %v2889
      %v3385 = vunpack.c.l.b16 %v2890
      %v3386 = vunpack.c.l.b16 %v2891
      %v3387 = vunpack.c.l.b16 %v2892
      %v3388 = vunpack.c.l.b16 %v2893
      %v3389 = vunpack.c.l.b16 %v2894
      %v3390 = vunpack.c.l.b16 %v2895
      %v3391 = vunpack.c.l.b16 %v2896
      %v3392 = vunpack.c.l.b16 %v2897
      %v3393 = vunpack.c.l.b16 %v2898
      %v3394 = vunpack.c.l.b16 %v2899
      %v3395 = vunpack.c.l.b16 %v2900
      %v3396 = vunpack.c.l.b16 %v2901
      %v3397 = vunpack.c.l.b16 %v2902
      %v3398 = vunpack.c.l.b16 %v2903
      %v3399 = vpack.c.b16 %v3368, %v3367
      %v3400 = vpack.c.b16 %v3370, %v3369
      %v3401 = vpack.c.b16 %v3372, %v3371
      %v3402 = vpack.c.b16 %v3374, %v3373
      %v3403 = vpack.c.b16 %v3376, %v3375
      %v3404 = vpack.c.b16 %v3378, %v3377
      %v3405 = vpack.c.b16 %v3380, %v3379
      %v3406 = vpack.c.b16 %v3382, %v3381
      %v3407 = vpack.c.b16 %v3384, %v3383
      %v3408 = vpack.c.b16 %v3386, %v3385
      %v3409 = vpack.c.b16 %v3388, %v3387
      %v3410 = vpack.c.b16 %v3390, %v3389
      %v3411 = vpack.c.b16 %v3392, %v3391
      %v3412 = vpack.c.b16 %v3394, %v3393
      %v3413 = vpack.c.b16 %v3396, %v3395
      %v3414 = vpack.c.b16 %v3398, %v3397
      %3431 = vmatpush.bf16.msra.mxu0 %v3406
      %3432 = vmatpush.bf16.msra.mxu0 %v3405
      %3433 = vmatpush.bf16.msra.mxu0 %v3404
      %3434 = vmatpush.bf16.msra.mxu0 %v3403
      %3435 = vmatpush.bf16.msra.mxu0 %v3402
      %3436 = vmatpush.bf16.msra.mxu0 %v3401
      %3437 = vmatpush.bf16.msra.mxu0 %v3400
      %3438 = vmatpush.bf16.msra.mxu0 %v3399
      %3439 = vmatmul.bf16.gmra.mxu0 %v2836
      %v3440 = vpop.f32.mrf.mxu0
      %v3441 = vadd.f32 %v3247, %v3440
      %v3442 = vpop.f32.mrf.mxu0
      %v3443 = vadd.f32 %v3249, %v3442
      %3444 = vmatmul.bf16.gmra.mxu0 %v2838
      %v3445 = vpop.f32.mrf.mxu0
      %v3446 = vadd.f32 %v3252, %v3445
      %v3447 = vpop.f32.mrf.mxu0
      %v3448 = vadd.f32 %v3254, %v3447
      %3449 = vmatmul.bf16.gmra.mxu0 %v2840
      %v3450 = vpop.f32.mrf.mxu0
      %v3451 = vadd.f32 %v3257, %v3450
      %v3452 = vpop.f32.mrf.mxu0
      %v3453 = vadd.f32 %v3259, %v3452
      %3454 = vmatmul.bf16.gmra.mxu0 %v2842
      %v3455 = vpop.f32.mrf.mxu0
      %v3456 = vadd.f32 %v3262, %v3455
      %v3457 = vpop.f32.mrf.mxu0
      %v3458 = vadd.f32 %v3264, %v3457
      %3459 = vmatmul.bf16.gmra.mxu0 %v2844
      %v3460 = vpop.f32.mrf.mxu0
      %v3461 = vadd.f32 %v3267, %v3460
      %v3462 = vpop.f32.mrf.mxu0
      %v3463 = vadd.f32 %v3269, %v3462
      %3464 = vmatmul.bf16.gmra.mxu0 %v2846
      %v3465 = vpop.f32.mrf.mxu0
      %v3466 = vadd.f32 %v3272, %v3465
      %v3467 = vpop.f32.mrf.mxu0
      %v3468 = vadd.f32 %v3274, %v3467
      %3469 = vmatmul.bf16.gmra.mxu0 %v2848
      %v3470 = vpop.f32.mrf.mxu0
      %v3471 = vadd.f32 %v3277, %v3470
      %v3472 = vpop.f32.mrf.mxu0
      %v3473 = vadd.f32 %v3279, %v3472
      %3474 = vmatmul.bf16.gmra.mxu0 %v2850
      %v3475 = vpop.f32.mrf.mxu0
      %v3476 = vadd.f32 %v3282, %v3475
      %v3477 = vpop.f32.mrf.mxu0
      %v3478 = vadd.f32 %v3284, %v3477
      %3479 = vmatmul.bf16.gmra.mxu0 %v2852
      %v3480 = vpop.f32.mrf.mxu0
      %v3481 = vadd.f32 %v3287, %v3480
      %v3482 = vpop.f32.mrf.mxu0
      %v3483 = vadd.f32 %v3289, %v3482
      %3484 = vmatmul.bf16.gmra.mxu0 %v2854
      %v3485 = vpop.f32.mrf.mxu0
      %v3486 = vadd.f32 %v3292, %v3485
      %v3487 = vpop.f32.mrf.mxu0
      %v3488 = vadd.f32 %v3294, %v3487
      %3489 = vmatmul.bf16.gmra.mxu0 %v2856
      %v3490 = vpop.f32.mrf.mxu0
      %v3491 = vadd.f32 %v3297, %v3490
      %v3492 = vpop.f32.mrf.mxu0
      %v3493 = vadd.f32 %v3299, %v3492
      %3494 = vmatmul.bf16.gmra.mxu0 %v2858
      %v3495 = vpop.f32.mrf.mxu0
      %v3496 = vadd.f32 %v3302, %v3495
      %v3497 = vpop.f32.mrf.mxu0
      %v3498 = vadd.f32 %v3304, %v3497
      %3499 = vmatmul.bf16.gmra.mxu0 %v2860
      %v3500 = vpop.f32.mrf.mxu0
      %v3501 = vadd.f32 %v3307, %v3500
      %v3502 = vpop.f32.mrf.mxu0
      %v3503 = vadd.f32 %v3309, %v3502
      %3504 = vmatmul.bf16.gmra.mxu0 %v2862
      %v3505 = vpop.f32.mrf.mxu0
      %v3506 = vadd.f32 %v3312, %v3505
      %v3507 = vpop.f32.mrf.mxu0
      %v3508 = vadd.f32 %v3314, %v3507
      %3509 = vmatmul.bf16.gmra.mxu0 %v2864
      %v3510 = vpop.f32.mrf.mxu0
      %v3511 = vadd.f32 %v3317, %v3510
      %v3512 = vpop.f32.mrf.mxu0
      %v3513 = vadd.f32 %v3319, %v3512
      %3514 = vmatmul.bf16.gmra.mxu0 %v2866
      %v3515 = vpop.f32.mrf.mxu0
      %v3516 = vadd.f32 %v3322, %v3515
      %v3517 = vpop.f32.mrf.mxu0
      %v3518 = vadd.f32 %v3324, %v3517
      %3519 = vmatmul.bf16.gmra.mxu0 %v2868
      %v3520 = vpop.f32.mrf.mxu0
      %v3521 = vadd.f32 %v3327, %v3520
      %v3522 = vpop.f32.mrf.mxu0
      %v3523 = vadd.f32 %v3329, %v3522
      %3524 = vmatmul.bf16.gmra.mxu0 %v2870
      %v3525 = vpop.f32.mrf.mxu0
      %v3526 = vadd.f32 %v3332, %v3525
      %v3527 = vpop.f32.mrf.mxu0
      %3528 = vdwg.mxu0
      %3529 = vmatpush.bf16.msra.mxu0 %v3414
      %3530 = vmatpush.bf16.msra.mxu0 %v3413
      %3531 = vmatpush.bf16.msra.mxu0 %v3412
      %3532 = vmatpush.bf16.msra.mxu0 %v3411
      %3533 = vmatpush.bf16.msra.mxu0 %v3410
      %3534 = vmatpush.bf16.msra.mxu0 %v3409
      %3535 = vmatpush.bf16.msra.mxu0 %v3408
      %3536 = vmatpush.bf16.msra.mxu0 %v3407
      %3537 = vmatmul.bf16.gmra.mxu0 %v2837
      %v3538 = vpop.f32.mrf.mxu0
      %v3539 = vadd.f32 %v3441, %v3538
      %v3540 = vpop.f32.mrf.mxu0
      %v3541 = vadd.f32 %v3443, %v3540
      %3542 = vmatmul.bf16.gmra.mxu0 %v2839
      %v3543 = vpop.f32.mrf.mxu0
      %v3544 = vadd.f32 %v3446, %v3543
      %v3545 = vpop.f32.mrf.mxu0
      %v3546 = vadd.f32 %v3448, %v3545
      %3547 = vmatmul.bf16.gmra.mxu0 %v2841
      %v3548 = vpop.f32.mrf.mxu0
      %v3549 = vadd.f32 %v3451, %v3548
      %v3550 = vpop.f32.mrf.mxu0
      %v3551 = vadd.f32 %v3453, %v3550
      %3552 = vmatmul.bf16.gmra.mxu0 %v2843
      %v3553 = vpop.f32.mrf.mxu0
      %v3554 = vadd.f32 %v3456, %v3553
      %v3555 = vpop.f32.mrf.mxu0
      %v3556 = vadd.f32 %v3458, %v3555
      %3557 = vmatmul.bf16.gmra.mxu0 %v2845
      %v3558 = vpop.f32.mrf.mxu0
      %v3559 = vadd.f32 %v3461, %v3558
      %v3560 = vpop.f32.mrf.mxu0
      %v3561 = vadd.f32 %v3463, %v3560
      %3562 = vmatmul.bf16.gmra.mxu0 %v2847
      %v3563 = vpop.f32.mrf.mxu0
      %v3564 = vadd.f32 %v3466, %v3563
      %v3565 = vpop.f32.mrf.mxu0
      %v3566 = vadd.f32 %v3468, %v3565
      %3567 = vmatmul.bf16.gmra.mxu0 %v2849
      %v3568 = vpop.f32.mrf.mxu0
      %v3569 = vadd.f32 %v3471, %v3568
      %v3570 = vpop.f32.mrf.mxu0
      %v3571 = vadd.f32 %v3473, %v3570
      %3572 = vmatmul.bf16.gmra.mxu0 %v2851
      %v3573 = vpop.f32.mrf.mxu0
      %v3574 = vadd.f32 %v3476, %v3573
      %v3575 = vpop.f32.mrf.mxu0
      %v3576 = vadd.f32 %v3478, %v3575
      %3577 = vmatmul.bf16.gmra.mxu0 %v2853
      %v3578 = vpop.f32.mrf.mxu0
      %v3579 = vadd.f32 %v3481, %v3578
      %v3580 = vpop.f32.mrf.mxu0
      %v3581 = vadd.f32 %v3483, %v3580
      %3582 = vmatmul.bf16.gmra.mxu0 %v2855
      %v3583 = vpop.f32.mrf.mxu0
      %v3584 = vadd.f32 %v3486, %v3583
      %v3585 = vpop.f32.mrf.mxu0
      %v3586 = vadd.f32 %v3488, %v3585
      %3587 = vmatmul.bf16.gmra.mxu0 %v2857
      %v3588 = vpop.f32.mrf.mxu0
      %v3589 = vadd.f32 %v3491, %v3588
      %v3590 = vpop.f32.mrf.mxu0
      %v3591 = vadd.f32 %v3493, %v3590
      %3592 = vmatmul.bf16.gmra.mxu0 %v2859
      %v3593 = vpop.f32.mrf.mxu0
      %v3594 = vadd.f32 %v3496, %v3593
      %v3595 = vpop.f32.mrf.mxu0
      %v3596 = vadd.f32 %v3498, %v3595
      %3597 = vmatmul.bf16.gmra.mxu0 %v2861
      %v3598 = vpop.f32.mrf.mxu0
      %v3599 = vadd.f32 %v3501, %v3598
      %v3600 = vpop.f32.mrf.mxu0
      %v3601 = vadd.f32 %v3503, %v3600
      %3602 = vmatmul.bf16.gmra.mxu0 %v2863
      %v3603 = vpop.f32.mrf.mxu0
      %v3604 = vadd.f32 %v3506, %v3603
      %v3605 = vpop.f32.mrf.mxu0
      %v3606 = vadd.f32 %v3508, %v3605
      %3607 = vmatmul.bf16.gmra.mxu0 %v2865
      %v3608 = vpop.f32.mrf.mxu0
      %v3609 = vadd.f32 %v3511, %v3608
      %v3610 = vpop.f32.mrf.mxu0
      %v3611 = vadd.f32 %v3513, %v3610
      %3612 = vmatmul.bf16.gmra.mxu0 %v2867
      %v3613 = vpop.f32.mrf.mxu0
      %v3614 = vadd.f32 %v3516, %v3613
      %v3615 = vpop.f32.mrf.mxu0
      %v3616 = vadd.f32 %v3518, %v3615
      %3617 = vmatmul.bf16.gmra.mxu0 %v2869
      %v3618 = vpop.f32.mrf.mxu0
      %v3619 = vadd.f32 %v3521, %v3618
      %v3620 = vpop.f32.mrf.mxu0
      %v3621 = vadd.f32 %v3523, %v3620
      %3622 = vmatmul.bf16.gmra.mxu0 %v2871
      %v3623 = vpop.f32.mrf.mxu0
      %v3624 = vadd.f32 %v3526, %v3623
      %v3625 = vpop.f32.mrf.mxu0
      %3626 = vdwg.mxu0
      %v3627 = vld [vmem:[#allocation2] sm:$0xfe]
      %v3628 = vld [vmem:[#allocation2 + $0x8] sm:$0xfe]
      %v3629 = vld [vmem:[#allocation2 + $0x10] sm:$0xff]
      %v3630 = vld [vmem:[#allocation2 + $0x18] sm:$0xff]
      %v3631 = vld [vmem:[#allocation2 + $0x20] sm:$0xff]
      %v3632 = vld [vmem:[#allocation2 + $0x28] sm:$0xff]
      %v3633 = vld [vmem:[#allocation2 + $0x30] sm:$0xff]
      %v3634 = vld [vmem:[#allocation2 + $0x38] sm:$0xff]
      %v3635 = vld [vmem:[#allocation2 + $0x40] sm:$0xff]
      %v3636 = vld [vmem:[#allocation2 + $0x48] sm:$0xff]
      %v3637 = vld [vmem:[#allocation2 + $0x50] sm:$0xff]
      %v3638 = vld [vmem:[#allocation2 + $0x58] sm:$0xff]
      %v3639 = vld [vmem:[#allocation2 + $0x60] sm:$0xff]
      %v3640 = vld [vmem:[#allocation2 + $0x68] sm:$0xff]
      %v3641 = vld [vmem:[#allocation2 + $0x70] sm:$0xff]
      %v3642 = vld [vmem:[#allocation2 + $0x78] sm:$0xff]
      %v3643 = vld [vmem:[#allocation2 + $0x80] sm:$0xff]
      %v3644 = vld [vmem:[#allocation2 + $0x88] sm:$0xff]
      %v3645 = vld [vmem:[#allocation2 + $0x90] sm:$0xff]
      %v3646 = vld [vmem:[#allocation2 + $0x98] sm:$0xff]
      %v3647 = vld [vmem:[#allocation2 + $0xa0] sm:$0xff]
      %v3648 = vld [vmem:[#allocation2 + $0xa8] sm:$0xff]
      %v3649 = vld [vmem:[#allocation2 + $0xb0] sm:$0xff]
      %v3650 = vld [vmem:[#allocation2 + $0xb8] sm:$0xff]
      %v3651 = vld [vmem:[#allocation2 + $0xc0] sm:$0xff]
      %v3652 = vld [vmem:[#allocation2 + $0xc8] sm:$0xff]
      %v3653 = vld [vmem:[#allocation2 + $0xd0] sm:$0xff]
      %v3654 = vld [vmem:[#allocation2 + $0xd8] sm:$0xff]
      %v3655 = vld [vmem:[#allocation2 + $0xe0] sm:$0xff]
      %v3656 = vld [vmem:[#allocation2 + $0xe8] sm:$0xff]
      %v3657 = vld [vmem:[#allocation2 + $0xf0] sm:$0xff]
      %v3658 = vld [vmem:[#allocation2 + $0xf8] sm:$0xff]
      %v3659 = vld [vmem:[#allocation2 + $0x100] sm:$0xff]
      %v3660 = vld [vmem:[#allocation2 + $0x108] sm:$0xff]
      %v3661 = vld [vmem:[#allocation2 + $0x110] sm:$0xff]
      %v3662 = vld [vmem:[#allocation2 + $0x118] sm:$0xff]
      %v3663 = vld [vmem:[#allocation2 + $0x120] sm:$0xff]
      %v3664 = vld [vmem:[#allocation2 + $0x128] sm:$0xff]
      %v3665 = vld [vmem:[#allocation2 + $0x130] sm:$0xff]
      %v3666 = vld [vmem:[#allocation2 + $0x138] sm:$0xff]
      %v3667 = vld [vmem:[#allocation2 + $0x140] sm:$0xff]
      %v3668 = vld [vmem:[#allocation2 + $0x148] sm:$0xff]
      %v3669 = vld [vmem:[#allocation2 + $0x150] sm:$0xff]
      %v3670 = vld [vmem:[#allocation2 + $0x158] sm:$0xff]
      %v3671 = vld [vmem:[#allocation2 + $0x160] sm:$0xff]
      %v3672 = vld [vmem:[#allocation2 + $0x168] sm:$0xff]
      %v3673 = vld [vmem:[#allocation2 + $0x170] sm:$0xff]
      %v3674 = vld [vmem:[#allocation2 + $0x178] sm:$0xff]
      %v3675 = vld [vmem:[#allocation2 + $0x180] sm:$0xff]
      %v3676 = vld [vmem:[#allocation2 + $0x188] sm:$0xff]
      %v3677 = vld [vmem:[#allocation2 + $0x190] sm:$0xff]
      %v3678 = vld [vmem:[#allocation2 + $0x198] sm:$0xff]
      %v3679 = vld [vmem:[#allocation2 + $0x1a0] sm:$0xff]
      %v3680 = vld [vmem:[#allocation2 + $0x1a8] sm:$0xff]
      %v3681 = vld [vmem:[#allocation2 + $0x1b0] sm:$0xff]
      %v3682 = vld [vmem:[#allocation2 + $0x1b8] sm:$0xff]
      %v3683 = vld [vmem:[#allocation2 + $0x1c0] sm:$0xff]
      %v3684 = vld [vmem:[#allocation2 + $0x1c8] sm:$0xff]
      %v3685 = vld [vmem:[#allocation2 + $0x1d0] sm:$0xff]
      %v3686 = vld [vmem:[#allocation2 + $0x1d8] sm:$0xff]
      %v3687 = vld [vmem:[#allocation2 + $0x1e0] sm:$0xff]
      %v3688 = vld [vmem:[#allocation2 + $0x1e8] sm:$0xff]
      %v3689 = vld [vmem:[#allocation2 + $0x1f0] sm:$0xff]
      %v3690 = vld [vmem:[#allocation2 + $0x1f8] sm:$0xff]
      %v3691 = vld [vmem:[#allocation2 + $0x200] sm:$0xff]
      %v3692 = vld [vmem:[#allocation2 + $0x208] sm:$0xff]
      %v3693 = vld [vmem:[#allocation2 + $0x210] sm:$0xff]
      %v3694 = vld [vmem:[#allocation2 + $0x218] sm:$0xff]
      %v3695 = vld [vmem:[#allocation2 + $0x220] sm:$0xff]
      %v3696 = vld [vmem:[#allocation2 + $0x228] sm:$0xff]
      %v3697 = vld [vmem:[#allocation2 + $0x230] sm:$0x1]
      %v3698 = vld [vmem:[#allocation2 + $0x238] sm:$0x1]
      %v3699 = vpack.c.bf16 %v3629, %v3627
      %v3700 = vpack.c.bf16 %v3630, %v3628
      %v3701 = vpack.c.bf16 %v3633, %v3631
      %v3702 = vpack.c.bf16 %v3634, %v3632
      %v3703 = vpack.c.bf16 %v3637, %v3635
      %v3704 = vpack.c.bf16 %v3638, %v3636
      %v3705 = vpack.c.bf16 %v3641, %v3639
      %v3706 = vpack.c.bf16 %v3642, %v3640
      %v3707 = vpack.c.bf16 %v3645, %v3643
      %v3708 = vpack.c.bf16 %v3646, %v3644
      %v3709 = vpack.c.bf16 %v3649, %v3647
      %v3710 = vpack.c.bf16 %v3650, %v3648
      %v3711 = vpack.c.bf16 %v3653, %v3651
      %v3712 = vpack.c.bf16 %v3654, %v3652
      %v3713 = vpack.c.bf16 %v3657, %v3655
      %v3714 = vpack.c.bf16 %v3658, %v3656
      %v3715 = vpack.c.bf16 %v3661, %v3659
      %v3716 = vpack.c.bf16 %v3662, %v3660
      %v3717 = vpack.c.bf16 %v3665, %v3663
      %v3718 = vpack.c.bf16 %v3666, %v3664
      %v3719 = vpack.c.bf16 %v3669, %v3667
      %v3720 = vpack.c.bf16 %v3670, %v3668
      %v3721 = vpack.c.bf16 %v3673, %v3671
      %v3722 = vpack.c.bf16 %v3674, %v3672
      %v3723 = vpack.c.bf16 %v3677, %v3675
      %v3724 = vpack.c.bf16 %v3678, %v3676
      %v3725 = vpack.c.bf16 %v3681, %v3679
      %v3726 = vpack.c.bf16 %v3682, %v3680
      %v3727 = vpack.c.bf16 %v3685, %v3683
      %v3728 = vpack.c.bf16 %v3686, %v3684
      %v3729 = vpack.c.bf16 %v3689, %v3687
      %v3730 = vpack.c.bf16 %v3690, %v3688
      %v3731 = vpack.c.bf16 %v3693, %v3691
      %v3732 = vpack.c.bf16 %v3694, %v3692
      %v3733 = vpack.c.bf16 %v3697, %v3695
      %v3734 = vpack.c.bf16 %v3698, %v3696
      %s3735 = scalar_lea.vmem %s2, 256
      %v3736 = vld [vmem:[%s3735] sm:$0xf]
      %v3737 = vld [vmem:[%s3735 + $0x4] sm:$0xf]
      %v3738 = vld [vmem:[%s3735 + $0x8] sm:$0xf]
      %v3739 = vld [vmem:[%s3735 + $0xc] sm:$0xf]
      %v3740 = vld [vmem:[%s3735 + $0x10] sm:$0xf]
      %v3741 = vld [vmem:[%s3735 + $0x14] sm:$0xf]
      %v3742 = vld [vmem:[%s3735 + $0x18] sm:$0xf]
      %v3743 = vld [vmem:[%s3735 + $0x1c] sm:$0xf]
      %v3744 = vld [vmem:[%s3735 + $0x20] sm:$0xf]
      %v3745 = vld [vmem:[%s3735 + $0x24] sm:$0xf]
      %v3746 = vld [vmem:[%s3735 + $0x28] sm:$0xf]
      %v3747 = vld [vmem:[%s3735 + $0x2c] sm:$0xf]
      %v3748 = vld [vmem:[%s3735 + $0x30] sm:$0xf]
      %v3749 = vld [vmem:[%s3735 + $0x34] sm:$0xf]
      %v3750 = vld [vmem:[%s3735 + $0x38] sm:$0xf]
      %v3751 = vld [vmem:[%s3735 + $0x3c] sm:$0xf]
      %v3752 = vld [vmem:[%s3735 + $0x40] sm:$0xf]
      %v3753 = vld [vmem:[%s3735 + $0x44] sm:$0xf]
      %v3754 = vld [vmem:[%s3735 + $0x48] sm:$0xf]
      %v3755 = vld [vmem:[%s3735 + $0x4c] sm:$0xf]
      %v3756 = vld [vmem:[%s3735 + $0x50] sm:$0xf]
      %v3757 = vld [vmem:[%s3735 + $0x54] sm:$0xf]
      %v3758 = vld [vmem:[%s3735 + $0x58] sm:$0xf]
      %v3759 = vld [vmem:[%s3735 + $0x5c] sm:$0xf]
      %v3760 = vld [vmem:[%s3735 + $0x60] sm:$0xf]
      %v3761 = vld [vmem:[%s3735 + $0x64] sm:$0xf]
      %v3762 = vld [vmem:[%s3735 + $0x68] sm:$0xf]
      %v3763 = vld [vmem:[%s3735 + $0x6c] sm:$0xf]
      %v3764 = vld [vmem:[%s3735 + $0x70] sm:$0xf]
      %v3765 = vld [vmem:[%s3735 + $0x74] sm:$0xf]
      %v3766 = vld [vmem:[%s3735 + $0x78] sm:$0xf]
      %v3767 = vld [vmem:[%s3735 + $0x7c] sm:$0xf]
      %vm3768 = vsmask.f32 7424
      %v3770 = vshrl.u32 %v3699, 16
      %v3772 = vshll.u32 %v3699, 16
      %v3774 = vrot.slane %v3772, 1
      %v3775 = vor.u32 %v3770, %v3774
      %v3777 = vshll.u32 %v3701, 16
      %v3779 = vrot.slane %v3777, 1
      %v3780 = vsel %vm3768, %v3775, %v3779
      %v3782 = vshrl.u32 %v3700, 16
      %v3784 = vshll.u32 %v3700, 16
      %v3786 = vrot.slane %v3784, 1
      %v3787 = vor.u32 %v3782, %v3786
      %v3789 = vshll.u32 %v3702, 16
      %v3791 = vrot.slane %v3789, 1
      %v3792 = vsel %vm3768, %v3787, %v3791
      %v3793 = vshrl.u32 %v3701, 16
      %v3795 = vor.u32 %v3793, %v3779
      %v3797 = vshll.u32 %v3703, 16
      %v3799 = vrot.slane %v3797, 1
      %v3800 = vsel %vm3768, %v3795, %v3799
      %v3801 = vshrl.u32 %v3702, 16
      %v3803 = vor.u32 %v3801, %v3791
      %v3805 = vshll.u32 %v3704, 16
      %v3807 = vrot.slane %v3805, 1
      %v3808 = vsel %vm3768, %v3803, %v3807
      %v3809 = vshrl.u32 %v3703, 16
      %v3811 = vor.u32 %v3809, %v3799
      %v3813 = vshll.u32 %v3705, 16
      %v3815 = vrot.slane %v3813, 1
      %v3816 = vsel %vm3768, %v3811, %v3815
      %v3817 = vshrl.u32 %v3704, 16
      %v3819 = vor.u32 %v3817, %v3807
      %v3821 = vshll.u32 %v3706, 16
      %v3823 = vrot.slane %v3821, 1
      %v3824 = vsel %vm3768, %v3819, %v3823
      %v3825 = vshrl.u32 %v3705, 16
      %v3827 = vor.u32 %v3825, %v3815
      %v3829 = vshll.u32 %v3707, 16
      %v3831 = vrot.slane %v3829, 1
      %v3832 = vsel %vm3768, %v3827, %v3831
      %v3833 = vshrl.u32 %v3706, 16
      %v3835 = vor.u32 %v3833, %v3823
      %v3837 = vshll.u32 %v3708, 16
      %v3839 = vrot.slane %v3837, 1
      %v3840 = vsel %vm3768, %v3835, %v3839
      %v3841 = vshrl.u32 %v3707, 16
      %v3843 = vor.u32 %v3841, %v3831
      %v3845 = vshll.u32 %v3709, 16
      %v3847 = vrot.slane %v3845, 1
      %v3848 = vsel %vm3768, %v3843, %v3847
      %v3849 = vshrl.u32 %v3708, 16
      %v3851 = vor.u32 %v3849, %v3839
      %v3853 = vshll.u32 %v3710, 16
      %v3855 = vrot.slane %v3853, 1
      %v3856 = vsel %vm3768, %v3851, %v3855
      %v3857 = vshrl.u32 %v3709, 16
      %v3859 = vor.u32 %v3857, %v3847
      %v3861 = vshll.u32 %v3711, 16
      %v3863 = vrot.slane %v3861, 1
      %v3864 = vsel %vm3768, %v3859, %v3863
      %v3865 = vshrl.u32 %v3710, 16
      %v3867 = vor.u32 %v3865, %v3855
      %v3869 = vshll.u32 %v3712, 16
      %v3871 = vrot.slane %v3869, 1
      %v3872 = vsel %vm3768, %v3867, %v3871
      %v3873 = vshrl.u32 %v3711, 16
      %v3875 = vor.u32 %v3873, %v3863
      %v3877 = vshll.u32 %v3713, 16
      %v3879 = vrot.slane %v3877, 1
      %v3880 = vsel %vm3768, %v3875, %v3879
      %v3881 = vshrl.u32 %v3712, 16
      %v3883 = vor.u32 %v3881, %v3871
      %v3885 = vshll.u32 %v3714, 16
      %v3887 = vrot.slane %v3885, 1
      %v3888 = vsel %vm3768, %v3883, %v3887
      %v3889 = vshrl.u32 %v3713, 16
      %v3891 = vor.u32 %v3889, %v3879
      %v3893 = vshll.u32 %v3715, 16
      %v3895 = vrot.slane %v3893, 1
      %v3896 = vsel %vm3768, %v3891, %v3895
      %v3897 = vshrl.u32 %v3714, 16
      %v3899 = vor.u32 %v3897, %v3887
      %v3901 = vshll.u32 %v3716, 16
      %v3903 = vrot.slane %v3901, 1
      %v3904 = vsel %vm3768, %v3899, %v3903
      %v3905 = vshrl.u32 %v3715, 16
      %v3907 = vor.u32 %v3905, %v3895
      %v3909 = vshll.u32 %v3717, 16
      %v3911 = vrot.slane %v3909, 1
      %v3912 = vsel %vm3768, %v3907, %v3911
      %v3913 = vshrl.u32 %v3716, 16
      %v3915 = vor.u32 %v3913, %v3903
      %v3917 = vshll.u32 %v3718, 16
      %v3919 = vrot.slane %v3917, 1
      %v3920 = vsel %vm3768, %v3915, %v3919
      %v3921 = vshrl.u32 %v3717, 16
      %v3923 = vor.u32 %v3921, %v3911
      %v3925 = vshll.u32 %v3719, 16
      %v3927 = vrot.slane %v3925, 1
      %v3928 = vsel %vm3768, %v3923, %v3927
      %v3929 = vshrl.u32 %v3718, 16
      %v3931 = vor.u32 %v3929, %v3919
      %v3933 = vshll.u32 %v3720, 16
      %v3935 = vrot.slane %v3933, 1
      %v3936 = vsel %vm3768, %v3931, %v3935
      %v3937 = vshrl.u32 %v3719, 16
      %v3939 = vor.u32 %v3937, %v3927
      %v3941 = vshll.u32 %v3721, 16
      %v3943 = vrot.slane %v3941, 1
      %v3944 = vsel %vm3768, %v3939, %v3943
      %v3945 = vshrl.u32 %v3720, 16
      %v3947 = vor.u32 %v3945, %v3935
      %v3949 = vshll.u32 %v3722, 16
      %v3951 = vrot.slane %v3949, 1
      %v3952 = vsel %vm3768, %v3947, %v3951
      %v3953 = vshrl.u32 %v3721, 16
      %v3955 = vor.u32 %v3953, %v3943
      %v3957 = vshll.u32 %v3723, 16
      %v3959 = vrot.slane %v3957, 1
      %v3960 = vsel %vm3768, %v3955, %v3959
      %v3961 = vshrl.u32 %v3722, 16
      %v3963 = vor.u32 %v3961, %v3951
      %v3965 = vshll.u32 %v3724, 16
      %v3967 = vrot.slane %v3965, 1
      %v3968 = vsel %vm3768, %v3963, %v3967
      %v3969 = vshrl.u32 %v3723, 16
      %v3971 = vor.u32 %v3969, %v3959
      %v3973 = vshll.u32 %v3725, 16
      %v3975 = vrot.slane %v3973, 1
      %v3976 = vsel %vm3768, %v3971, %v3975
      %v3977 = vshrl.u32 %v3724, 16
      %v3979 = vor.u32 %v3977, %v3967
      %v3981 = vshll.u32 %v3726, 16
      %v3983 = vrot.slane %v3981, 1
      %v3984 = vsel %vm3768, %v3979, %v3983
      %v3985 = vshrl.u32 %v3725, 16
      %v3987 = vor.u32 %v3985, %v3975
      %v3989 = vshll.u32 %v3727, 16
      %v3991 = vrot.slane %v3989, 1
      %v3992 = vsel %vm3768, %v3987, %v3991
      %v3993 = vshrl.u32 %v3726, 16
      %v3995 = vor.u32 %v3993, %v3983
      %v3997 = vshll.u32 %v3728, 16
      %v3999 = vrot.slane %v3997, 1
      %v4000 = vsel %vm3768, %v3995, %v3999
      %v4001 = vshrl.u32 %v3727, 16
      %v4003 = vor.u32 %v4001, %v3991
      %v4005 = vshll.u32 %v3729, 16
      %v4007 = vrot.slane %v4005, 1
      %v4008 = vsel %vm3768, %v4003, %v4007
      %v4009 = vshrl.u32 %v3728, 16
      %v4011 = vor.u32 %v4009, %v3999
      %v4013 = vshll.u32 %v3730, 16
      %v4015 = vrot.slane %v4013, 1
      %v4016 = vsel %vm3768, %v4011, %v4015
      %v4017 = vshrl.u32 %v3729, 16
      %v4019 = vor.u32 %v4017, %v4007
      %v4021 = vshll.u32 %v3731, 16
      %v4023 = vrot.slane %v4021, 1
      %v4024 = vsel %vm3768, %v4019, %v4023
      %v4025 = vshrl.u32 %v3730, 16
      %v4027 = vor.u32 %v4025, %v4015
      %v4029 = vshll.u32 %v3732, 16
      %v4031 = vrot.slane %v4029, 1
      %v4032 = vsel %vm3768, %v4027, %v4031
      %v4033 = vshrl.u32 %v3731, 16
      %v4035 = vor.u32 %v4033, %v4023
      %v4037 = vshll.u32 %v3733, 16
      %v4039 = vrot.slane %v4037, 1
      %v4040 = vsel %vm3768, %v4035, %v4039
      %v4041 = vshrl.u32 %v3732, 16
      %v4043 = vor.u32 %v4041, %v4031
      %v4045 = vshll.u32 %v3734, 16
      %v4047 = vrot.slane %v4045, 1
      %v4048 = vsel %vm3768, %v4043, %v4047
      %v4049 = vshrl.u32 %v3733, 16
      %v4051 = vor.u32 %v4049, %v4039
      %v4052 = vshrl.u32 %v3734, 16
      %v4054 = vor.u32 %v4052, %v4047
      %v4123 = vunpack.c.l.b16 %v3736
      %v4124 = vunpack.c.l.b16 %v3737
      %v4125 = vunpack.c.l.b16 %v3738
      %v4126 = vunpack.c.l.b16 %v3739
      %v4127 = vunpack.c.l.b16 %v3740
      %v4128 = vunpack.c.l.b16 %v3741
      %v4129 = vunpack.c.l.b16 %v3742
      %v4130 = vunpack.c.l.b16 %v3743
      %v4131 = vunpack.c.l.b16 %v3744
      %v4132 = vunpack.c.l.b16 %v3745
      %v4133 = vunpack.c.l.b16 %v3746
      %v4134 = vunpack.c.l.b16 %v3747
      %v4135 = vunpack.c.l.b16 %v3748
      %v4136 = vunpack.c.l.b16 %v3749
      %v4137 = vunpack.c.l.b16 %v3750
      %v4138 = vunpack.c.l.b16 %v3751
      %v4139 = vunpack.c.l.b16 %v3752
      %v4140 = vunpack.c.l.b16 %v3753
      %v4141 = vunpack.c.l.b16 %v3754
      %v4142 = vunpack.c.l.b16 %v3755
      %v4143 = vunpack.c.l.b16 %v3756
      %v4144 = vunpack.c.l.b16 %v3757
      %v4145 = vunpack.c.l.b16 %v3758
      %v4146 = vunpack.c.l.b16 %v3759
      %v4147 = vunpack.c.l.b16 %v3760
      %v4148 = vunpack.c.l.b16 %v3761
      %v4149 = vunpack.c.l.b16 %v3762
      %v4150 = vunpack.c.l.b16 %v3763
      %v4151 = vunpack.c.l.b16 %v3764
      %v4152 = vunpack.c.l.b16 %v3765
      %v4153 = vunpack.c.l.b16 %v3766
      %v4154 = vunpack.c.l.b16 %v3767
      %v4155 = vpack.c.b16 %v4124, %v4123
      %v4156 = vpack.c.b16 %v4126, %v4125
      %v4157 = vpack.c.b16 %v4128, %v4127
      %v4158 = vpack.c.b16 %v4130, %v4129
      %v4159 = vpack.c.b16 %v4132, %v4131
      %v4160 = vpack.c.b16 %v4134, %v4133
      %v4161 = vpack.c.b16 %v4136, %v4135
      %v4162 = vpack.c.b16 %v4138, %v4137
      %v4163 = vpack.c.b16 %v4140, %v4139
      %v4164 = vpack.c.b16 %v4142, %v4141
      %v4165 = vpack.c.b16 %v4144, %v4143
      %v4166 = vpack.c.b16 %v4146, %v4145
      %v4167 = vpack.c.b16 %v4148, %v4147
      %v4168 = vpack.c.b16 %v4150, %v4149
      %v4169 = vpack.c.b16 %v4152, %v4151
      %v4170 = vpack.c.b16 %v4154, %v4153
      %4187 = vmatpush.bf16.msra.mxu0 %v4162
      %4188 = vmatpush.bf16.msra.mxu0 %v4161
      %4189 = vmatpush.bf16.msra.mxu0 %v4160
      %4190 = vmatpush.bf16.msra.mxu0 %v4159
      %4191 = vmatpush.bf16.msra.mxu0 %v4158
      %4192 = vmatpush.bf16.msra.mxu0 %v4157
      %4193 = vmatpush.bf16.msra.mxu0 %v4156
      %4194 = vmatpush.bf16.msra.mxu0 %v4155
      %4195 = vmatmul.bf16.gmra.mxu0 %v3780
      %v4196 = vpop.f32.mrf.mxu0
      %v4197 = vadd.f32 0.0, %v4196
      %v4198 = vpop.f32.mrf.mxu0
      %v4199 = vadd.f32 0.0, %v4198
      %4200 = vmatmul.bf16.gmra.mxu0 %v3800
      %v4201 = vpop.f32.mrf.mxu0
      %v4202 = vadd.f32 0.0, %v4201
      %v4203 = vpop.f32.mrf.mxu0
      %v4204 = vadd.f32 0.0, %v4203
      %4205 = vmatmul.bf16.gmra.mxu0 %v3816
      %v4206 = vpop.f32.mrf.mxu0
      %v4207 = vadd.f32 0.0, %v4206
      %v4208 = vpop.f32.mrf.mxu0
      %v4209 = vadd.f32 0.0, %v4208
      %4210 = vmatmul.bf16.gmra.mxu0 %v3832
      %v4211 = vpop.f32.mrf.mxu0
      %v4212 = vadd.f32 0.0, %v4211
      %v4213 = vpop.f32.mrf.mxu0
      %v4214 = vadd.f32 0.0, %v4213
      %4215 = vmatmul.bf16.gmra.mxu0 %v3848
      %v4216 = vpop.f32.mrf.mxu0
      %v4217 = vadd.f32 0.0, %v4216
      %v4218 = vpop.f32.mrf.mxu0
      %v4219 = vadd.f32 0.0, %v4218
      %4220 = vmatmul.bf16.gmra.mxu0 %v3864
      %v4221 = vpop.f32.mrf.mxu0
      %v4222 = vadd.f32 0.0, %v4221
      %v4223 = vpop.f32.mrf.mxu0
      %v4224 = vadd.f32 0.0, %v4223
      %4225 = vmatmul.bf16.gmra.mxu0 %v3880
      %v4226 = vpop.f32.mrf.mxu0
      %v4227 = vadd.f32 0.0, %v4226
      %v4228 = vpop.f32.mrf.mxu0
      %v4229 = vadd.f32 0.0, %v4228
      %4230 = vmatmul.bf16.gmra.mxu0 %v3896
      %v4231 = vpop.f32.mrf.mxu0
      %v4232 = vadd.f32 0.0, %v4231
      %v4233 = vpop.f32.mrf.mxu0
      %v4234 = vadd.f32 0.0, %v4233
      %4235 = vmatmul.bf16.gmra.mxu0 %v3912
      %v4236 = vpop.f32.mrf.mxu0
      %v4237 = vadd.f32 0.0, %v4236
      %v4238 = vpop.f32.mrf.mxu0
      %v4239 = vadd.f32 0.0, %v4238
      %4240 = vmatmul.bf16.gmra.mxu0 %v3928
      %v4241 = vpop.f32.mrf.mxu0
      %v4242 = vadd.f32 0.0, %v4241
      %v4243 = vpop.f32.mrf.mxu0
      %v4244 = vadd.f32 0.0, %v4243
      %4245 = vmatmul.bf16.gmra.mxu0 %v3944
      %v4246 = vpop.f32.mrf.mxu0
      %v4247 = vadd.f32 0.0, %v4246
      %v4248 = vpop.f32.mrf.mxu0
      %v4249 = vadd.f32 0.0, %v4248
      %4250 = vmatmul.bf16.gmra.mxu0 %v3960
      %v4251 = vpop.f32.mrf.mxu0
      %v4252 = vadd.f32 0.0, %v4251
      %v4253 = vpop.f32.mrf.mxu0
      %v4254 = vadd.f32 0.0, %v4253
      %4255 = vmatmul.bf16.gmra.mxu0 %v3976
      %v4256 = vpop.f32.mrf.mxu0
      %v4257 = vadd.f32 0.0, %v4256
      %v4258 = vpop.f32.mrf.mxu0
      %v4259 = vadd.f32 0.0, %v4258
      %4260 = vmatmul.bf16.gmra.mxu0 %v3992
      %v4261 = vpop.f32.mrf.mxu0
      %v4262 = vadd.f32 0.0, %v4261
      %v4263 = vpop.f32.mrf.mxu0
      %v4264 = vadd.f32 0.0, %v4263
      %4265 = vmatmul.bf16.gmra.mxu0 %v4008
      %v4266 = vpop.f32.mrf.mxu0
      %v4267 = vadd.f32 0.0, %v4266
      %v4268 = vpop.f32.mrf.mxu0
      %v4269 = vadd.f32 0.0, %v4268
      %4270 = vmatmul.bf16.gmra.mxu0 %v4024
      %v4271 = vpop.f32.mrf.mxu0
      %v4272 = vadd.f32 0.0, %v4271
      %v4273 = vpop.f32.mrf.mxu0
      %v4274 = vadd.f32 0.0, %v4273
      %4275 = vmatmul.bf16.gmra.mxu0 %v4040
      %v4276 = vpop.f32.mrf.mxu0
      %v4277 = vadd.f32 0.0, %v4276
      %v4278 = vpop.f32.mrf.mxu0
      %v4279 = vadd.f32 0.0, %v4278
      %4280 = vmatmul.bf16.gmra.mxu0 %v4051
      %v4281 = vpop.f32.mrf.mxu0
      %v4282 = vadd.f32 0.0, %v4281
      %v4283 = vpop.f32.mrf.mxu0
      %4284 = vdwg.mxu0
      %4285 = vmatpush.bf16.msra.mxu0 %v4170
      %4286 = vmatpush.bf16.msra.mxu0 %v4169
      %4287 = vmatpush.bf16.msra.mxu0 %v4168
      %4288 = vmatpush.bf16.msra.mxu0 %v4167
      %4289 = vmatpush.bf16.msra.mxu0 %v4166
      %4290 = vmatpush.bf16.msra.mxu0 %v4165
      %4291 = vmatpush.bf16.msra.mxu0 %v4164
      %4292 = vmatpush.bf16.msra.mxu0 %v4163
      %4293 = vmatmul.bf16.gmra.mxu0 %v3792
      %v4294 = vpop.f32.mrf.mxu0
      %v4295 = vadd.f32 %v4197, %v4294
      %v4296 = vpop.f32.mrf.mxu0
      %v4297 = vadd.f32 %v4199, %v4296
      %4298 = vmatmul.bf16.gmra.mxu0 %v3808
      %v4299 = vpop.f32.mrf.mxu0
      %v4300 = vadd.f32 %v4202, %v4299
      %v4301 = vpop.f32.mrf.mxu0
      %v4302 = vadd.f32 %v4204, %v4301
      %4303 = vmatmul.bf16.gmra.mxu0 %v3824
      %v4304 = vpop.f32.mrf.mxu0
      %v4305 = vadd.f32 %v4207, %v4304
      %v4306 = vpop.f32.mrf.mxu0
      %v4307 = vadd.f32 %v4209, %v4306
      %4308 = vmatmul.bf16.gmra.mxu0 %v3840
      %v4309 = vpop.f32.mrf.mxu0
      %v4310 = vadd.f32 %v4212, %v4309
      %v4311 = vpop.f32.mrf.mxu0
      %v4312 = vadd.f32 %v4214, %v4311
      %4313 = vmatmul.bf16.gmra.mxu0 %v3856
      %v4314 = vpop.f32.mrf.mxu0
      %v4315 = vadd.f32 %v4217, %v4314
      %v4316 = vpop.f32.mrf.mxu0
      %v4317 = vadd.f32 %v4219, %v4316
      %4318 = vmatmul.bf16.gmra.mxu0 %v3872
      %v4319 = vpop.f32.mrf.mxu0
      %v4320 = vadd.f32 %v4222, %v4319
      %v4321 = vpop.f32.mrf.mxu0
      %v4322 = vadd.f32 %v4224, %v4321
      %4323 = vmatmul.bf16.gmra.mxu0 %v3888
      %v4324 = vpop.f32.mrf.mxu0
      %v4325 = vadd.f32 %v4227, %v4324
      %v4326 = vpop.f32.mrf.mxu0
      %v4327 = vadd.f32 %v4229, %v4326
      %4328 = vmatmul.bf16.gmra.mxu0 %v3904
      %v4329 = vpop.f32.mrf.mxu0
      %v4330 = vadd.f32 %v4232, %v4329
      %v4331 = vpop.f32.mrf.mxu0
      %v4332 = vadd.f32 %v4234, %v4331
      %4333 = vmatmul.bf16.gmra.mxu0 %v3920
      %v4334 = vpop.f32.mrf.mxu0
      %v4335 = vadd.f32 %v4237, %v4334
      %v4336 = vpop.f32.mrf.mxu0
      %v4337 = vadd.f32 %v4239, %v4336
      %4338 = vmatmul.bf16.gmra.mxu0 %v3936
      %v4339 = vpop.f32.mrf.mxu0
      %v4340 = vadd.f32 %v4242, %v4339
      %v4341 = vpop.f32.mrf.mxu0
      %v4342 = vadd.f32 %v4244, %v4341
      %4343 = vmatmul.bf16.gmra.mxu0 %v3952
      %v4344 = vpop.f32.mrf.mxu0
      %v4345 = vadd.f32 %v4247, %v4344
      %v4346 = vpop.f32.mrf.mxu0
      %v4347 = vadd.f32 %v4249, %v4346
      %4348 = vmatmul.bf16.gmra.mxu0 %v3968
      %v4349 = vpop.f32.mrf.mxu0
      %v4350 = vadd.f32 %v4252, %v4349
      %v4351 = vpop.f32.mrf.mxu0
      %v4352 = vadd.f32 %v4254, %v4351
      %4353 = vmatmul.bf16.gmra.mxu0 %v3984
      %v4354 = vpop.f32.mrf.mxu0
      %v4355 = vadd.f32 %v4257, %v4354
      %v4356 = vpop.f32.mrf.mxu0
      %v4357 = vadd.f32 %v4259, %v4356
      %4358 = vmatmul.bf16.gmra.mxu0 %v4000
      %v4359 = vpop.f32.mrf.mxu0
      %v4360 = vadd.f32 %v4262, %v4359
      %v4361 = vpop.f32.mrf.mxu0
      %v4362 = vadd.f32 %v4264, %v4361
      %4363 = vmatmul.bf16.gmra.mxu0 %v4016
      %v4364 = vpop.f32.mrf.mxu0
      %v4365 = vadd.f32 %v4267, %v4364
      %v4366 = vpop.f32.mrf.mxu0
      %v4367 = vadd.f32 %v4269, %v4366
      %4368 = vmatmul.bf16.gmra.mxu0 %v4032
      %v4369 = vpop.f32.mrf.mxu0
      %v4370 = vadd.f32 %v4272, %v4369
      %v4371 = vpop.f32.mrf.mxu0
      %v4372 = vadd.f32 %v4274, %v4371
      %4373 = vmatmul.bf16.gmra.mxu0 %v4048
      %v4374 = vpop.f32.mrf.mxu0
      %v4375 = vadd.f32 %v4277, %v4374
      %v4376 = vpop.f32.mrf.mxu0
      %v4377 = vadd.f32 %v4279, %v4376
      %4378 = vmatmul.bf16.gmra.mxu0 %v4054
      %v4379 = vpop.f32.mrf.mxu0
      %v4380 = vadd.f32 %v4282, %v4379
      %v4381 = vpop.f32.mrf.mxu0
      %4382 = vdwg.mxu0
      %v4383 = vadd.f32 %v3539, %v4295
      %v4384 = vadd.f32 %v3541, %v4297
      %v4385 = vadd.f32 %v3544, %v4300
      %v4386 = vadd.f32 %v3546, %v4302
      %v4387 = vadd.f32 %v3549, %v4305
      %v4388 = vadd.f32 %v3551, %v4307
      %v4389 = vadd.f32 %v3554, %v4310
      %v4390 = vadd.f32 %v3556, %v4312
      %v4391 = vadd.f32 %v3559, %v4315
      %v4392 = vadd.f32 %v3561, %v4317
      %v4393 = vadd.f32 %v3564, %v4320
      %v4394 = vadd.f32 %v3566, %v4322
      %v4395 = vadd.f32 %v3569, %v4325
      %v4396 = vadd.f32 %v3571, %v4327
      %v4397 = vadd.f32 %v3574, %v4330
      %v4398 = vadd.f32 %v3576, %v4332
      %v4399 = vadd.f32 %v3579, %v4335
      %v4400 = vadd.f32 %v3581, %v4337
      %v4401 = vadd.f32 %v3584, %v4340
      %v4402 = vadd.f32 %v3586, %v4342
      %v4403 = vadd.f32 %v3589, %v4345
      %v4404 = vadd.f32 %v3591, %v4347
      %v4405 = vadd.f32 %v3594, %v4350
      %v4406 = vadd.f32 %v3596, %v4352
      %v4407 = vadd.f32 %v3599, %v4355
      %v4408 = vadd.f32 %v3601, %v4357
      %v4409 = vadd.f32 %v3604, %v4360
      %v4410 = vadd.f32 %v3606, %v4362
      %v4411 = vadd.f32 %v3609, %v4365
      %v4412 = vadd.f32 %v3611, %v4367
      %v4413 = vadd.f32 %v3614, %v4370
      %v4414 = vadd.f32 %v3616, %v4372
      %v4415 = vadd.f32 %v3619, %v4375
      %v4416 = vadd.f32 %v3621, %v4377
      %v4417 = vadd.f32 %v3624, %v4380
      %v4418 = vld [vmem:[%s2693] sm:$0xfe]
      %v4419 = vld [vmem:[%s2693 + $0x8] sm:$0xfe]
      %v4420 = vld [vmem:[%s2693 + $0x10] sm:$0xff]
      %v4421 = vld [vmem:[%s2693 + $0x18] sm:$0xff]
      %v4422 = vld [vmem:[%s2693 + $0x20] sm:$0xff]
      %v4423 = vld [vmem:[%s2693 + $0x28] sm:$0xff]
      %v4424 = vld [vmem:[%s2693 + $0x30] sm:$0xff]
      %v4425 = vld [vmem:[%s2693 + $0x38] sm:$0xff]
      %v4426 = vld [vmem:[%s2693 + $0x40] sm:$0xff]
      %v4427 = vld [vmem:[%s2693 + $0x48] sm:$0xff]
      %v4428 = vld [vmem:[%s2693 + $0x50] sm:$0xff]
      %v4429 = vld [vmem:[%s2693 + $0x58] sm:$0xff]
      %v4430 = vld [vmem:[%s2693 + $0x60] sm:$0xff]
      %v4431 = vld [vmem:[%s2693 + $0x68] sm:$0xff]
      %v4432 = vld [vmem:[%s2693 + $0x70] sm:$0xff]
      %v4433 = vld [vmem:[%s2693 + $0x78] sm:$0xff]
      %v4434 = vld [vmem:[%s2693 + $0x80] sm:$0xff]
      %v4435 = vld [vmem:[%s2693 + $0x88] sm:$0xff]
      %v4436 = vld [vmem:[%s2693 + $0x90] sm:$0xff]
      %v4437 = vld [vmem:[%s2693 + $0x98] sm:$0xff]
      %v4438 = vld [vmem:[%s2693 + $0xa0] sm:$0xff]
      %v4439 = vld [vmem:[%s2693 + $0xa8] sm:$0xff]
      %v4440 = vld [vmem:[%s2693 + $0xb0] sm:$0xff]
      %v4441 = vld [vmem:[%s2693 + $0xb8] sm:$0xff]
      %v4442 = vld [vmem:[%s2693 + $0xc0] sm:$0xff]
      %v4443 = vld [vmem:[%s2693 + $0xc8] sm:$0xff]
      %v4444 = vld [vmem:[%s2693 + $0xd0] sm:$0xff]
      %v4445 = vld [vmem:[%s2693 + $0xd8] sm:$0xff]
      %v4446 = vld [vmem:[%s2693 + $0xe0] sm:$0xff]
      %v4447 = vld [vmem:[%s2693 + $0xe8] sm:$0xff]
      %v4448 = vld [vmem:[%s2693 + $0xf0] sm:$0xff]
      %v4449 = vld [vmem:[%s2693 + $0xf8] sm:$0xff]
      %v4450 = vld [vmem:[%s2693 + $0x100] sm:$0xff]
      %v4451 = vld [vmem:[%s2693 + $0x108] sm:$0xff]
      %v4452 = vld [vmem:[%s2693 + $0x110] sm:$0xff]
      %v4453 = vld [vmem:[%s2693 + $0x118] sm:$0xff]
      %v4454 = vld [vmem:[%s2693 + $0x120] sm:$0xff]
      %v4455 = vld [vmem:[%s2693 + $0x128] sm:$0xff]
      %v4456 = vld [vmem:[%s2693 + $0x130] sm:$0xff]
      %v4457 = vld [vmem:[%s2693 + $0x138] sm:$0xff]
      %v4458 = vld [vmem:[%s2693 + $0x140] sm:$0xff]
      %v4459 = vld [vmem:[%s2693 + $0x148] sm:$0xff]
      %v4460 = vld [vmem:[%s2693 + $0x150] sm:$0xff]
      %v4461 = vld [vmem:[%s2693 + $0x158] sm:$0xff]
      %v4462 = vld [vmem:[%s2693 + $0x160] sm:$0xff]
      %v4463 = vld [vmem:[%s2693 + $0x168] sm:$0xff]
      %v4464 = vld [vmem:[%s2693 + $0x170] sm:$0xff]
      %v4465 = vld [vmem:[%s2693 + $0x178] sm:$0xff]
      %v4466 = vld [vmem:[%s2693 + $0x180] sm:$0xff]
      %v4467 = vld [vmem:[%s2693 + $0x188] sm:$0xff]
      %v4468 = vld [vmem:[%s2693 + $0x190] sm:$0xff]
      %v4469 = vld [vmem:[%s2693 + $0x198] sm:$0xff]
      %v4470 = vld [vmem:[%s2693 + $0x1a0] sm:$0xff]
      %v4471 = vld [vmem:[%s2693 + $0x1a8] sm:$0xff]
      %v4472 = vld [vmem:[%s2693 + $0x1b0] sm:$0xff]
      %v4473 = vld [vmem:[%s2693 + $0x1b8] sm:$0xff]
      %v4474 = vld [vmem:[%s2693 + $0x1c0] sm:$0xff]
      %v4475 = vld [vmem:[%s2693 + $0x1c8] sm:$0xff]
      %v4476 = vld [vmem:[%s2693 + $0x1d0] sm:$0xff]
      %v4477 = vld [vmem:[%s2693 + $0x1d8] sm:$0xff]
      %v4478 = vld [vmem:[%s2693 + $0x1e0] sm:$0xff]
      %v4479 = vld [vmem:[%s2693 + $0x1e8] sm:$0xff]
      %v4480 = vld [vmem:[%s2693 + $0x1f0] sm:$0xff]
      %v4481 = vld [vmem:[%s2693 + $0x1f8] sm:$0xff]
      %v4482 = vld [vmem:[%s2693 + $0x200] sm:$0xff]
      %v4483 = vld [vmem:[%s2693 + $0x208] sm:$0xff]
      %v4484 = vld [vmem:[%s2693 + $0x210] sm:$0xff]
      %v4485 = vld [vmem:[%s2693 + $0x218] sm:$0xff]
      %v4486 = vld [vmem:[%s2693 + $0x220] sm:$0xff]
      %v4487 = vld [vmem:[%s2693 + $0x228] sm:$0xff]
      %v4488 = vld [vmem:[%s2693 + $0x230] sm:$0x1]
      %v4489 = vld [vmem:[%s2693 + $0x238] sm:$0x1]
      %v4490 = vpack.c.bf16 %v4420, %v4418
      %v4491 = vpack.c.bf16 %v4421, %v4419
      %v4492 = vpack.c.bf16 %v4424, %v4422
      %v4493 = vpack.c.bf16 %v4425, %v4423
      %v4494 = vpack.c.bf16 %v4428, %v4426
      %v4495 = vpack.c.bf16 %v4429, %v4427
      %v4496 = vpack.c.bf16 %v4432, %v4430
      %v4497 = vpack.c.bf16 %v4433, %v4431
      %v4498 = vpack.c.bf16 %v4436, %v4434
      %v4499 = vpack.c.bf16 %v4437, %v4435
      %v4500 = vpack.c.bf16 %v4440, %v4438
      %v4501 = vpack.c.bf16 %v4441, %v4439
      %v4502 = vpack.c.bf16 %v4444, %v4442
      %v4503 = vpack.c.bf16 %v4445, %v4443
      %v4504 = vpack.c.bf16 %v4448, %v4446
      %v4505 = vpack.c.bf16 %v4449, %v4447
      %v4506 = vpack.c.bf16 %v4452, %v4450
      %v4507 = vpack.c.bf16 %v4453, %v4451
      %v4508 = vpack.c.bf16 %v4456, %v4454
      %v4509 = vpack.c.bf16 %v4457, %v4455
      %v4510 = vpack.c.bf16 %v4460, %v4458
      %v4511 = vpack.c.bf16 %v4461, %v4459
      %v4512 = vpack.c.bf16 %v4464, %v4462
      %v4513 = vpack.c.bf16 %v4465, %v4463
      %v4514 = vpack.c.bf16 %v4468, %v4466
      %v4515 = vpack.c.bf16 %v4469, %v4467
      %v4516 = vpack.c.bf16 %v4472, %v4470
      %v4517 = vpack.c.bf16 %v4473, %v4471
      %v4518 = vpack.c.bf16 %v4476, %v4474
      %v4519 = vpack.c.bf16 %v4477, %v4475
      %v4520 = vpack.c.bf16 %v4480, %v4478
      %v4521 = vpack.c.bf16 %v4481, %v4479
      %v4522 = vpack.c.bf16 %v4484, %v4482
      %v4523 = vpack.c.bf16 %v4485, %v4483
      %v4524 = vpack.c.bf16 %v4488, %v4486
      %v4525 = vpack.c.bf16 %v4489, %v4487
      %s4526 = scalar_lea.vmem %s2, 384
      %v4527 = vld [vmem:[%s4526] sm:$0xf]
      %v4528 = vld [vmem:[%s4526 + $0x4] sm:$0xf]
      %v4529 = vld [vmem:[%s4526 + $0x8] sm:$0xf]
      %v4530 = vld [vmem:[%s4526 + $0xc] sm:$0xf]
      %v4531 = vld [vmem:[%s4526 + $0x10] sm:$0xf]
      %v4532 = vld [vmem:[%s4526 + $0x14] sm:$0xf]
      %v4533 = vld [vmem:[%s4526 + $0x18] sm:$0xf]
      %v4534 = vld [vmem:[%s4526 + $0x1c] sm:$0xf]
      %v4535 = vld [vmem:[%s4526 + $0x20] sm:$0xf]
      %v4536 = vld [vmem:[%s4526 + $0x24] sm:$0xf]
      %v4537 = vld [vmem:[%s4526 + $0x28] sm:$0xf]
      %v4538 = vld [vmem:[%s4526 + $0x2c] sm:$0xf]
      %v4539 = vld [vmem:[%s4526 + $0x30] sm:$0xf]
      %v4540 = vld [vmem:[%s4526 + $0x34] sm:$0xf]
      %v4541 = vld [vmem:[%s4526 + $0x38] sm:$0xf]
      %v4542 = vld [vmem:[%s4526 + $0x3c] sm:$0xf]
      %v4543 = vld [vmem:[%s4526 + $0x40] sm:$0xf]
      %v4544 = vld [vmem:[%s4526 + $0x44] sm:$0xf]
      %v4545 = vld [vmem:[%s4526 + $0x48] sm:$0xf]
      %v4546 = vld [vmem:[%s4526 + $0x4c] sm:$0xf]
      %v4547 = vld [vmem:[%s4526 + $0x50] sm:$0xf]
      %v4548 = vld [vmem:[%s4526 + $0x54] sm:$0xf]
      %v4549 = vld [vmem:[%s4526 + $0x58] sm:$0xf]
      %v4550 = vld [vmem:[%s4526 + $0x5c] sm:$0xf]
      %v4551 = vld [vmem:[%s4526 + $0x60] sm:$0xf]
      %v4552 = vld [vmem:[%s4526 + $0x64] sm:$0xf]
      %v4553 = vld [vmem:[%s4526 + $0x68] sm:$0xf]
      %v4554 = vld [vmem:[%s4526 + $0x6c] sm:$0xf]
      %v4555 = vld [vmem:[%s4526 + $0x70] sm:$0xf]
      %v4556 = vld [vmem:[%s4526 + $0x74] sm:$0xf]
      %v4557 = vld [vmem:[%s4526 + $0x78] sm:$0xf]
      %v4558 = vld [vmem:[%s4526 + $0x7c] sm:$0xf]
      %v4560 = vshrl.u32 %v4490, 16
      %v4562 = vshll.u32 %v4490, 16
      %v4564 = vrot.slane %v4562, 1
      %v4565 = vor.u32 %v4560, %v4564
      %v4567 = vshll.u32 %v4492, 16
      %v4569 = vrot.slane %v4567, 1
      %v4570 = vsel %vm3768, %v4565, %v4569
      %v4572 = vshrl.u32 %v4491, 16
      %v4574 = vshll.u32 %v4491, 16
      %v4576 = vrot.slane %v4574, 1
      %v4577 = vor.u32 %v4572, %v4576
      %v4579 = vshll.u32 %v4493, 16
      %v4581 = vrot.slane %v4579, 1
      %v4582 = vsel %vm3768, %v4577, %v4581
      %v4583 = vshrl.u32 %v4492, 16
      %v4585 = vor.u32 %v4583, %v4569
      %v4587 = vshll.u32 %v4494, 16
      %v4589 = vrot.slane %v4587, 1
      %v4590 = vsel %vm3768, %v4585, %v4589
      %v4591 = vshrl.u32 %v4493, 16
      %v4593 = vor.u32 %v4591, %v4581
      %v4595 = vshll.u32 %v4495, 16
      %v4597 = vrot.slane %v4595, 1
      %v4598 = vsel %vm3768, %v4593, %v4597
      %v4599 = vshrl.u32 %v4494, 16
      %v4601 = vor.u32 %v4599, %v4589
      %v4603 = vshll.u32 %v4496, 16
      %v4605 = vrot.slane %v4603, 1
      %v4606 = vsel %vm3768, %v4601, %v4605
      %v4607 = vshrl.u32 %v4495, 16
      %v4609 = vor.u32 %v4607, %v4597
      %v4611 = vshll.u32 %v4497, 16
      %v4613 = vrot.slane %v4611, 1
      %v4614 = vsel %vm3768, %v4609, %v4613
      %v4615 = vshrl.u32 %v4496, 16
      %v4617 = vor.u32 %v4615, %v4605
      %v4619 = vshll.u32 %v4498, 16
      %v4621 = vrot.slane %v4619, 1
      %v4622 = vsel %vm3768, %v4617, %v4621
      %v4623 = vshrl.u32 %v4497, 16
      %v4625 = vor.u32 %v4623, %v4613
      %v4627 = vshll.u32 %v4499, 16
      %v4629 = vrot.slane %v4627, 1
      %v4630 = vsel %vm3768, %v4625, %v4629
      %v4631 = vshrl.u32 %v4498, 16
      %v4633 = vor.u32 %v4631, %v4621
      %v4635 = vshll.u32 %v4500, 16
      %v4637 = vrot.slane %v4635, 1
      %v4638 = vsel %vm3768, %v4633, %v4637
      %v4639 = vshrl.u32 %v4499, 16
      %v4641 = vor.u32 %v4639, %v4629
      %v4643 = vshll.u32 %v4501, 16
      %v4645 = vrot.slane %v4643, 1
      %v4646 = vsel %vm3768, %v4641, %v4645
      %v4647 = vshrl.u32 %v4500, 16
      %v4649 = vor.u32 %v4647, %v4637
      %v4651 = vshll.u32 %v4502, 16
      %v4653 = vrot.slane %v4651, 1
      %v4654 = vsel %vm3768, %v4649, %v4653
      %v4655 = vshrl.u32 %v4501, 16
      %v4657 = vor.u32 %v4655, %v4645
      %v4659 = vshll.u32 %v4503, 16
      %v4661 = vrot.slane %v4659, 1
      %v4662 = vsel %vm3768, %v4657, %v4661
      %v4663 = vshrl.u32 %v4502, 16
      %v4665 = vor.u32 %v4663, %v4653
      %v4667 = vshll.u32 %v4504, 16
      %v4669 = vrot.slane %v4667, 1
      %v4670 = vsel %vm3768, %v4665, %v4669
      %v4671 = vshrl.u32 %v4503, 16
      %v4673 = vor.u32 %v4671, %v4661
      %v4675 = vshll.u32 %v4505, 16
      %v4677 = vrot.slane %v4675, 1
      %v4678 = vsel %vm3768, %v4673, %v4677
      %v4679 = vshrl.u32 %v4504, 16
      %v4681 = vor.u32 %v4679, %v4669
      %v4683 = vshll.u32 %v4506, 16
      %v4685 = vrot.slane %v4683, 1
      %v4686 = vsel %vm3768, %v4681, %v4685
      %v4687 = vshrl.u32 %v4505, 16
      %v4689 = vor.u32 %v4687, %v4677
      %v4691 = vshll.u32 %v4507, 16
      %v4693 = vrot.slane %v4691, 1
      %v4694 = vsel %vm3768, %v4689, %v4693
      %v4695 = vshrl.u32 %v4506, 16
      %v4697 = vor.u32 %v4695, %v4685
      %v4699 = vshll.u32 %v4508, 16
      %v4701 = vrot.slane %v4699, 1
      %v4702 = vsel %vm3768, %v4697, %v4701
      %v4703 = vshrl.u32 %v4507, 16
      %v4705 = vor.u32 %v4703, %v4693
      %v4707 = vshll.u32 %v4509, 16
      %v4709 = vrot.slane %v4707, 1
      %v4710 = vsel %vm3768, %v4705, %v4709
      %v4711 = vshrl.u32 %v4508, 16
      %v4713 = vor.u32 %v4711, %v4701
      %v4715 = vshll.u32 %v4510, 16
      %v4717 = vrot.slane %v4715, 1
      %v4718 = vsel %vm3768, %v4713, %v4717
      %v4719 = vshrl.u32 %v4509, 16
      %v4721 = vor.u32 %v4719, %v4709
      %v4723 = vshll.u32 %v4511, 16
      %v4725 = vrot.slane %v4723, 1
      %v4726 = vsel %vm3768, %v4721, %v4725
      %v4727 = vshrl.u32 %v4510, 16
      %v4729 = vor.u32 %v4727, %v4717
      %v4731 = vshll.u32 %v4512, 16
      %v4733 = vrot.slane %v4731, 1
      %v4734 = vsel %vm3768, %v4729, %v4733
      %v4735 = vshrl.u32 %v4511, 16
      %v4737 = vor.u32 %v4735, %v4725
      %v4739 = vshll.u32 %v4513, 16
      %v4741 = vrot.slane %v4739, 1
      %v4742 = vsel %vm3768, %v4737, %v4741
      %v4743 = vshrl.u32 %v4512, 16
      %v4745 = vor.u32 %v4743, %v4733
      %v4747 = vshll.u32 %v4514, 16
      %v4749 = vrot.slane %v4747, 1
      %v4750 = vsel %vm3768, %v4745, %v4749
      %v4751 = vshrl.u32 %v4513, 16
      %v4753 = vor.u32 %v4751, %v4741
      %v4755 = vshll.u32 %v4515, 16
      %v4757 = vrot.slane %v4755, 1
      %v4758 = vsel %vm3768, %v4753, %v4757
      %v4759 = vshrl.u32 %v4514, 16
      %v4761 = vor.u32 %v4759, %v4749
      %v4763 = vshll.u32 %v4516, 16
      %v4765 = vrot.slane %v4763, 1
      %v4766 = vsel %vm3768, %v4761, %v4765
      %v4767 = vshrl.u32 %v4515, 16
      %v4769 = vor.u32 %v4767, %v4757
      %v4771 = vshll.u32 %v4517, 16
      %v4773 = vrot.slane %v4771, 1
      %v4774 = vsel %vm3768, %v4769, %v4773
      %v4775 = vshrl.u32 %v4516, 16
      %v4777 = vor.u32 %v4775, %v4765
      %v4779 = vshll.u32 %v4518, 16
      %v4781 = vrot.slane %v4779, 1
      %v4782 = vsel %vm3768, %v4777, %v4781
      %v4783 = vshrl.u32 %v4517, 16
      %v4785 = vor.u32 %v4783, %v4773
      %v4787 = vshll.u32 %v4519, 16
      %v4789 = vrot.slane %v4787, 1
      %v4790 = vsel %vm3768, %v4785, %v4789
      %v4791 = vshrl.u32 %v4518, 16
      %v4793 = vor.u32 %v4791, %v4781
      %v4795 = vshll.u32 %v4520, 16
      %v4797 = vrot.slane %v4795, 1
      %v4798 = vsel %vm3768, %v4793, %v4797
      %v4799 = vshrl.u32 %v4519, 16
      %v4801 = vor.u32 %v4799, %v4789
      %v4803 = vshll.u32 %v4521, 16
      %v4805 = vrot.slane %v4803, 1
      %v4806 = vsel %vm3768, %v4801, %v4805
      %v4807 = vshrl.u32 %v4520, 16
      %v4809 = vor.u32 %v4807, %v4797
      %v4811 = vshll.u32 %v4522, 16
      %v4813 = vrot.slane %v4811, 1
      %v4814 = vsel %vm3768, %v4809, %v4813
      %v4815 = vshrl.u32 %v4521, 16
      %v4817 = vor.u32 %v4815, %v4805
      %v4819 = vshll.u32 %v4523, 16
      %v4821 = vrot.slane %v4819, 1
      %v4822 = vsel %vm3768, %v4817, %v4821
      %v4823 = vshrl.u32 %v4522, 16
      %v4825 = vor.u32 %v4823, %v4813
      %v4827 = vshll.u32 %v4524, 16
      %v4829 = vrot.slane %v4827, 1
      %v4830 = vsel %vm3768, %v4825, %v4829
      %v4831 = vshrl.u32 %v4523, 16
      %v4833 = vor.u32 %v4831, %v4821
      %v4835 = vshll.u32 %v4525, 16
      %v4837 = vrot.slane %v4835, 1
      %v4838 = vsel %vm3768, %v4833, %v4837
      %v4839 = vshrl.u32 %v4524, 16
      %v4841 = vor.u32 %v4839, %v4829
      %v4842 = vshrl.u32 %v4525, 16
      %v4844 = vor.u32 %v4842, %v4837
      %v4913 = vunpack.c.l.b16 %v4527
      %v4914 = vunpack.c.l.b16 %v4528
      %v4915 = vunpack.c.l.b16 %v4529
      %v4916 = vunpack.c.l.b16 %v4530
      %v4917 = vunpack.c.l.b16 %v4531
      %v4918 = vunpack.c.l.b16 %v4532
      %v4919 = vunpack.c.l.b16 %v4533
      %v4920 = vunpack.c.l.b16 %v4534
      %v4921 = vunpack.c.l.b16 %v4535
      %v4922 = vunpack.c.l.b16 %v4536
      %v4923 = vunpack.c.l.b16 %v4537
      %v4924 = vunpack.c.l.b16 %v4538
      %v4925 = vunpack.c.l.b16 %v4539
      %v4926 = vunpack.c.l.b16 %v4540
      %v4927 = vunpack.c.l.b16 %v4541
      %v4928 = vunpack.c.l.b16 %v4542
      %v4929 = vunpack.c.l.b16 %v4543
      %v4930 = vunpack.c.l.b16 %v4544
      %v4931 = vunpack.c.l.b16 %v4545
      %v4932 = vunpack.c.l.b16 %v4546
      %v4933 = vunpack.c.l.b16 %v4547
      %v4934 = vunpack.c.l.b16 %v4548
      %v4935 = vunpack.c.l.b16 %v4549
      %v4936 = vunpack.c.l.b16 %v4550
      %v4937 = vunpack.c.l.b16 %v4551
      %v4938 = vunpack.c.l.b16 %v4552
      %v4939 = vunpack.c.l.b16 %v4553
      %v4940 = vunpack.c.l.b16 %v4554
      %v4941 = vunpack.c.l.b16 %v4555
      %v4942 = vunpack.c.l.b16 %v4556
      %v4943 = vunpack.c.l.b16 %v4557
      %v4944 = vunpack.c.l.b16 %v4558
      %v4945 = vpack.c.b16 %v4914, %v4913
      %v4946 = vpack.c.b16 %v4916, %v4915
      %v4947 = vpack.c.b16 %v4918, %v4917
      %v4948 = vpack.c.b16 %v4920, %v4919
      %v4949 = vpack.c.b16 %v4922, %v4921
      %v4950 = vpack.c.b16 %v4924, %v4923
      %v4951 = vpack.c.b16 %v4926, %v4925
      %v4952 = vpack.c.b16 %v4928, %v4927
      %v4953 = vpack.c.b16 %v4930, %v4929
      %v4954 = vpack.c.b16 %v4932, %v4931
      %v4955 = vpack.c.b16 %v4934, %v4933
      %v4956 = vpack.c.b16 %v4936, %v4935
      %v4957 = vpack.c.b16 %v4938, %v4937
      %v4958 = vpack.c.b16 %v4940, %v4939
      %v4959 = vpack.c.b16 %v4942, %v4941
      %v4960 = vpack.c.b16 %v4944, %v4943
      %4977 = vmatpush.bf16.msra.mxu0 %v4952
      %4978 = vmatpush.bf16.msra.mxu0 %v4951
      %4979 = vmatpush.bf16.msra.mxu0 %v4950
      %4980 = vmatpush.bf16.msra.mxu0 %v4949
      %4981 = vmatpush.bf16.msra.mxu0 %v4948
      %4982 = vmatpush.bf16.msra.mxu0 %v4947
      %4983 = vmatpush.bf16.msra.mxu0 %v4946
      %4984 = vmatpush.bf16.msra.mxu0 %v4945
      %4985 = vmatmul.bf16.gmra.mxu0 %v4570
      %v4986 = vpop.f32.mrf.mxu0
      %v4987 = vadd.f32 0.0, %v4986
      %v4988 = vpop.f32.mrf.mxu0
      %v4989 = vadd.f32 0.0, %v4988
      %4990 = vmatmul.bf16.gmra.mxu0 %v4590
      %v4991 = vpop.f32.mrf.mxu0
      %v4992 = vadd.f32 0.0, %v4991
      %v4993 = vpop.f32.mrf.mxu0
      %v4994 = vadd.f32 0.0, %v4993
      %4995 = vmatmul.bf16.gmra.mxu0 %v4606
      %v4996 = vpop.f32.mrf.mxu0
      %v4997 = vadd.f32 0.0, %v4996
      %v4998 = vpop.f32.mrf.mxu0
      %v4999 = vadd.f32 0.0, %v4998
      %5000 = vmatmul.bf16.gmra.mxu0 %v4622
      %v5001 = vpop.f32.mrf.mxu0
      %v5002 = vadd.f32 0.0, %v5001
      %v5003 = vpop.f32.mrf.mxu0
      %v5004 = vadd.f32 0.0, %v5003
      %5005 = vmatmul.bf16.gmra.mxu0 %v4638
      %v5006 = vpop.f32.mrf.mxu0
      %v5007 = vadd.f32 0.0, %v5006
      %v5008 = vpop.f32.mrf.mxu0
      %v5009 = vadd.f32 0.0, %v5008
      %5010 = vmatmul.bf16.gmra.mxu0 %v4654
      %v5011 = vpop.f32.mrf.mxu0
      %v5012 = vadd.f32 0.0, %v5011
      %v5013 = vpop.f32.mrf.mxu0
      %v5014 = vadd.f32 0.0, %v5013
      %5015 = vmatmul.bf16.gmra.mxu0 %v4670
      %v5016 = vpop.f32.mrf.mxu0
      %v5017 = vadd.f32 0.0, %v5016
      %v5018 = vpop.f32.mrf.mxu0
      %v5019 = vadd.f32 0.0, %v5018
      %5020 = vmatmul.bf16.gmra.mxu0 %v4686
      %v5021 = vpop.f32.mrf.mxu0
      %v5022 = vadd.f32 0.0, %v5021
      %v5023 = vpop.f32.mrf.mxu0
      %v5024 = vadd.f32 0.0, %v5023
      %5025 = vmatmul.bf16.gmra.mxu0 %v4702
      %v5026 = vpop.f32.mrf.mxu0
      %v5027 = vadd.f32 0.0, %v5026
      %v5028 = vpop.f32.mrf.mxu0
      %v5029 = vadd.f32 0.0, %v5028
      %5030 = vmatmul.bf16.gmra.mxu0 %v4718
      %v5031 = vpop.f32.mrf.mxu0
      %v5032 = vadd.f32 0.0, %v5031
      %v5033 = vpop.f32.mrf.mxu0
      %v5034 = vadd.f32 0.0, %v5033
      %5035 = vmatmul.bf16.gmra.mxu0 %v4734
      %v5036 = vpop.f32.mrf.mxu0
      %v5037 = vadd.f32 0.0, %v5036
      %v5038 = vpop.f32.mrf.mxu0
      %v5039 = vadd.f32 0.0, %v5038
      %5040 = vmatmul.bf16.gmra.mxu0 %v4750
      %v5041 = vpop.f32.mrf.mxu0
      %v5042 = vadd.f32 0.0, %v5041
      %v5043 = vpop.f32.mrf.mxu0
      %v5044 = vadd.f32 0.0, %v5043
      %5045 = vmatmul.bf16.gmra.mxu0 %v4766
      %v5046 = vpop.f32.mrf.mxu0
      %v5047 = vadd.f32 0.0, %v5046
      %v5048 = vpop.f32.mrf.mxu0
      %v5049 = vadd.f32 0.0, %v5048
      %5050 = vmatmul.bf16.gmra.mxu0 %v4782
      %v5051 = vpop.f32.mrf.mxu0
      %v5052 = vadd.f32 0.0, %v5051
      %v5053 = vpop.f32.mrf.mxu0
      %v5054 = vadd.f32 0.0, %v5053
      %5055 = vmatmul.bf16.gmra.mxu0 %v4798
      %v5056 = vpop.f32.mrf.mxu0
      %v5057 = vadd.f32 0.0, %v5056
      %v5058 = vpop.f32.mrf.mxu0
      %v5059 = vadd.f32 0.0, %v5058
      %5060 = vmatmul.bf16.gmra.mxu0 %v4814
      %v5061 = vpop.f32.mrf.mxu0
      %v5062 = vadd.f32 0.0, %v5061
      %v5063 = vpop.f32.mrf.mxu0
      %v5064 = vadd.f32 0.0, %v5063
      %5065 = vmatmul.bf16.gmra.mxu0 %v4830
      %v5066 = vpop.f32.mrf.mxu0
      %v5067 = vadd.f32 0.0, %v5066
      %v5068 = vpop.f32.mrf.mxu0
      %v5069 = vadd.f32 0.0, %v5068
      %5070 = vmatmul.bf16.gmra.mxu0 %v4841
      %v5071 = vpop.f32.mrf.mxu0
      %v5072 = vadd.f32 0.0, %v5071
      %v5073 = vpop.f32.mrf.mxu0
      %5074 = vdwg.mxu0
      %5075 = vmatpush.bf16.msra.mxu0 %v4960
      %5076 = vmatpush.bf16.msra.mxu0 %v4959
      %5077 = vmatpush.bf16.msra.mxu0 %v4958
      %5078 = vmatpush.bf16.msra.mxu0 %v4957
      %5079 = vmatpush.bf16.msra.mxu0 %v4956
      %5080 = vmatpush.bf16.msra.mxu0 %v4955
      %5081 = vmatpush.bf16.msra.mxu0 %v4954
      %5082 = vmatpush.bf16.msra.mxu0 %v4953
      %5083 = vmatmul.bf16.gmra.mxu0 %v4582
      %v5084 = vpop.f32.mrf.mxu0
      %v5085 = vadd.f32 %v4987, %v5084
      %v5086 = vpop.f32.mrf.mxu0
      %v5087 = vadd.f32 %v4989, %v5086
      %5088 = vmatmul.bf16.gmra.mxu0 %v4598
      %v5089 = vpop.f32.mrf.mxu0
      %v5090 = vadd.f32 %v4992, %v5089
      %v5091 = vpop.f32.mrf.mxu0
      %v5092 = vadd.f32 %v4994, %v5091
      %5093 = vmatmul.bf16.gmra.mxu0 %v4614
      %v5094 = vpop.f32.mrf.mxu0
      %v5095 = vadd.f32 %v4997, %v5094
      %v5096 = vpop.f32.mrf.mxu0
      %v5097 = vadd.f32 %v4999, %v5096
      %5098 = vmatmul.bf16.gmra.mxu0 %v4630
      %v5099 = vpop.f32.mrf.mxu0
      %v5100 = vadd.f32 %v5002, %v5099
      %v5101 = vpop.f32.mrf.mxu0
      %v5102 = vadd.f32 %v5004, %v5101
      %5103 = vmatmul.bf16.gmra.mxu0 %v4646
      %v5104 = vpop.f32.mrf.mxu0
      %v5105 = vadd.f32 %v5007, %v5104
      %v5106 = vpop.f32.mrf.mxu0
      %v5107 = vadd.f32 %v5009, %v5106
      %5108 = vmatmul.bf16.gmra.mxu0 %v4662
      %v5109 = vpop.f32.mrf.mxu0
      %v5110 = vadd.f32 %v5012, %v5109
      %v5111 = vpop.f32.mrf.mxu0
      %v5112 = vadd.f32 %v5014, %v5111
      %5113 = vmatmul.bf16.gmra.mxu0 %v4678
      %v5114 = vpop.f32.mrf.mxu0
      %v5115 = vadd.f32 %v5017, %v5114
      %v5116 = vpop.f32.mrf.mxu0
      %v5117 = vadd.f32 %v5019, %v5116
      %5118 = vmatmul.bf16.gmra.mxu0 %v4694
      %v5119 = vpop.f32.mrf.mxu0
      %v5120 = vadd.f32 %v5022, %v5119
      %v5121 = vpop.f32.mrf.mxu0
      %v5122 = vadd.f32 %v5024, %v5121
      %5123 = vmatmul.bf16.gmra.mxu0 %v4710
      %v5124 = vpop.f32.mrf.mxu0
      %v5125 = vadd.f32 %v5027, %v5124
      %v5126 = vpop.f32.mrf.mxu0
      %v5127 = vadd.f32 %v5029, %v5126
      %5128 = vmatmul.bf16.gmra.mxu0 %v4726
      %v5129 = vpop.f32.mrf.mxu0
      %v5130 = vadd.f32 %v5032, %v5129
      %v5131 = vpop.f32.mrf.mxu0
      %v5132 = vadd.f32 %v5034, %v5131
      %5133 = vmatmul.bf16.gmra.mxu0 %v4742
      %v5134 = vpop.f32.mrf.mxu0
      %v5135 = vadd.f32 %v5037, %v5134
      %v5136 = vpop.f32.mrf.mxu0
      %v5137 = vadd.f32 %v5039, %v5136
      %5138 = vmatmul.bf16.gmra.mxu0 %v4758
      %v5139 = vpop.f32.mrf.mxu0
      %v5140 = vadd.f32 %v5042, %v5139
      %v5141 = vpop.f32.mrf.mxu0
      %v5142 = vadd.f32 %v5044, %v5141
      %5143 = vmatmul.bf16.gmra.mxu0 %v4774
      %v5144 = vpop.f32.mrf.mxu0
      %v5145 = vadd.f32 %v5047, %v5144
      %v5146 = vpop.f32.mrf.mxu0
      %v5147 = vadd.f32 %v5049, %v5146
      %5148 = vmatmul.bf16.gmra.mxu0 %v4790
      %v5149 = vpop.f32.mrf.mxu0
      %v5150 = vadd.f32 %v5052, %v5149
      %v5151 = vpop.f32.mrf.mxu0
      %v5152 = vadd.f32 %v5054, %v5151
      %5153 = vmatmul.bf16.gmra.mxu0 %v4806
      %v5154 = vpop.f32.mrf.mxu0
      %v5155 = vadd.f32 %v5057, %v5154
      %v5156 = vpop.f32.mrf.mxu0
      %v5157 = vadd.f32 %v5059, %v5156
      %5158 = vmatmul.bf16.gmra.mxu0 %v4822
      %v5159 = vpop.f32.mrf.mxu0
      %v5160 = vadd.f32 %v5062, %v5159
      %v5161 = vpop.f32.mrf.mxu0
      %v5162 = vadd.f32 %v5064, %v5161
      %5163 = vmatmul.bf16.gmra.mxu0 %v4838
      %v5164 = vpop.f32.mrf.mxu0
      %v5165 = vadd.f32 %v5067, %v5164
      %v5166 = vpop.f32.mrf.mxu0
      %v5167 = vadd.f32 %v5069, %v5166
      %5168 = vmatmul.bf16.gmra.mxu0 %v4844
      %v5169 = vpop.f32.mrf.mxu0
      %v5170 = vadd.f32 %v5072, %v5169
      %v5171 = vpop.f32.mrf.mxu0
      %5172 = vdwg.mxu0
      %v5173 = vadd.f32 %v4383, %v5085
      %v5174 = vadd.f32 %v4384, %v5087
      %v5175 = vadd.f32 %v4385, %v5090
      %v5176 = vadd.f32 %v4386, %v5092
      %v5177 = vadd.f32 %v4387, %v5095
      %v5178 = vadd.f32 %v4388, %v5097
      %v5179 = vadd.f32 %v4389, %v5100
      %v5180 = vadd.f32 %v4390, %v5102
      %v5181 = vadd.f32 %v4391, %v5105
      %v5182 = vadd.f32 %v4392, %v5107
      %v5183 = vadd.f32 %v4393, %v5110
      %v5184 = vadd.f32 %v4394, %v5112
      %v5185 = vadd.f32 %v4395, %v5115
      %v5186 = vadd.f32 %v4396, %v5117
      %v5187 = vadd.f32 %v4397, %v5120
      %v5188 = vadd.f32 %v4398, %v5122
      %v5189 = vadd.f32 %v4399, %v5125
      %v5190 = vadd.f32 %v4400, %v5127
      %v5191 = vadd.f32 %v4401, %v5130
      %v5192 = vadd.f32 %v4402, %v5132
      %v5193 = vadd.f32 %v4403, %v5135
      %v5194 = vadd.f32 %v4404, %v5137
      %v5195 = vadd.f32 %v4405, %v5140
      %v5196 = vadd.f32 %v4406, %v5142
      %v5197 = vadd.f32 %v4407, %v5145
      %v5198 = vadd.f32 %v4408, %v5147
      %v5199 = vadd.f32 %v4409, %v5150
      %v5200 = vadd.f32 %v4410, %v5152
      %v5201 = vadd.f32 %v4411, %v5155
      %v5202 = vadd.f32 %v4412, %v5157
      %v5203 = vadd.f32 %v4413, %v5160
      %v5204 = vadd.f32 %v4414, %v5162
      %v5205 = vadd.f32 %v4415, %v5165
      %v5206 = vadd.f32 %v4416, %v5167
      %v5207 = vadd.f32 %v4417, %v5170
      %v5208 = vld [vmem:[#allocation2] sm:$0xfc]
      %v5209 = vld [vmem:[#allocation2 + $0x8] sm:$0xfc]
      %v5210 = vld [vmem:[#allocation2 + $0x230] sm:$0x3]
      %v5211 = vld [vmem:[#allocation2 + $0x238] sm:$0x3]
      %v5212 = vpack.c.bf16 %v3629, %v5208
      %v5213 = vpack.c.bf16 %v3630, %v5209
      %v5214 = vpack.c.bf16 %v5210, %v3695
      %v5215 = vpack.c.bf16 %v5211, %v3696
      %s5216 = scalar_lea.vmem %s2, 512
      %v5217 = vld [vmem:[%s5216] sm:$0xf]
      %v5218 = vld [vmem:[%s5216 + $0x4] sm:$0xf]
      %v5219 = vld [vmem:[%s5216 + $0x8] sm:$0xf]
      %v5220 = vld [vmem:[%s5216 + $0xc] sm:$0xf]
      %v5221 = vld [vmem:[%s5216 + $0x10] sm:$0xf]
      %v5222 = vld [vmem:[%s5216 + $0x14] sm:$0xf]
      %v5223 = vld [vmem:[%s5216 + $0x18] sm:$0xf]
      %v5224 = vld [vmem:[%s5216 + $0x1c] sm:$0xf]
      %v5225 = vld [vmem:[%s5216 + $0x20] sm:$0xf]
      %v5226 = vld [vmem:[%s5216 + $0x24] sm:$0xf]
      %v5227 = vld [vmem:[%s5216 + $0x28] sm:$0xf]
      %v5228 = vld [vmem:[%s5216 + $0x2c] sm:$0xf]
      %v5229 = vld [vmem:[%s5216 + $0x30] sm:$0xf]
      %v5230 = vld [vmem:[%s5216 + $0x34] sm:$0xf]
      %v5231 = vld [vmem:[%s5216 + $0x38] sm:$0xf]
      %v5232 = vld [vmem:[%s5216 + $0x3c] sm:$0xf]
      %v5233 = vld [vmem:[%s5216 + $0x40] sm:$0xf]
      %v5234 = vld [vmem:[%s5216 + $0x44] sm:$0xf]
      %v5235 = vld [vmem:[%s5216 + $0x48] sm:$0xf]
      %v5236 = vld [vmem:[%s5216 + $0x4c] sm:$0xf]
      %v5237 = vld [vmem:[%s5216 + $0x50] sm:$0xf]
      %v5238 = vld [vmem:[%s5216 + $0x54] sm:$0xf]
      %v5239 = vld [vmem:[%s5216 + $0x58] sm:$0xf]
      %v5240 = vld [vmem:[%s5216 + $0x5c] sm:$0xf]
      %v5241 = vld [vmem:[%s5216 + $0x60] sm:$0xf]
      %v5242 = vld [vmem:[%s5216 + $0x64] sm:$0xf]
      %v5243 = vld [vmem:[%s5216 + $0x68] sm:$0xf]
      %v5244 = vld [vmem:[%s5216 + $0x6c] sm:$0xf]
      %v5245 = vld [vmem:[%s5216 + $0x70] sm:$0xf]
      %v5246 = vld [vmem:[%s5216 + $0x74] sm:$0xf]
      %v5247 = vld [vmem:[%s5216 + $0x78] sm:$0xf]
      %v5248 = vld [vmem:[%s5216 + $0x7c] sm:$0xf]
      %vm5285 = vcmask 1046528
      %v5286 = vrot.slane %v5212, 1
      %v5287 = vrot.slane %v3701, 1
      %v5288 = vsel %vm5285, %v5286, %v5287
      %v5289 = vrot.slane %v5213, 1
      %v5290 = vrot.slane %v3702, 1
      %v5291 = vsel %vm5285, %v5289, %v5290
      %v5292 = vrot.slane %v3703, 1
      %v5293 = vsel %vm5285, %v5287, %v5292
      %v5294 = vrot.slane %v3704, 1
      %v5295 = vsel %vm5285, %v5290, %v5294
      %v5296 = vrot.slane %v3705, 1
      %v5297 = vsel %vm5285, %v5292, %v5296
      %v5298 = vrot.slane %v3706, 1
      %v5299 = vsel %vm5285, %v5294, %v5298
      %v5300 = vrot.slane %v3707, 1
      %v5301 = vsel %vm5285, %v5296, %v5300
      %v5302 = vrot.slane %v3708, 1
      %v5303 = vsel %vm5285, %v5298, %v5302
      %v5304 = vrot.slane %v3709, 1
      %v5305 = vsel %vm5285, %v5300, %v5304
      %v5306 = vrot.slane %v3710, 1
      %v5307 = vsel %vm5285, %v5302, %v5306
      %v5308 = vrot.slane %v3711, 1
      %v5309 = vsel %vm5285, %v5304, %v5308
      %v5310 = vrot.slane %v3712, 1
      %v5311 = vsel %vm5285, %v5306, %v5310
      %v5312 = vrot.slane %v3713, 1
      %v5313 = vsel %vm5285, %v5308, %v5312
      %v5314 = vrot.slane %v3714, 1
      %v5315 = vsel %vm5285, %v5310, %v5314
      %v5316 = vrot.slane %v3715, 1
      %v5317 = vsel %vm5285, %v5312, %v5316
      %v5318 = vrot.slane %v3716, 1
      %v5319 = vsel %vm5285, %v5314, %v5318
      %v5320 = vrot.slane %v3717, 1
      %v5321 = vsel %vm5285, %v5316, %v5320
      %v5322 = vrot.slane %v3718, 1
      %v5323 = vsel %vm5285, %v5318, %v5322
      %v5324 = vrot.slane %v3719, 1
      %v5325 = vsel %vm5285, %v5320, %v5324
      %v5326 = vrot.slane %v3720, 1
      %v5327 = vsel %vm5285, %v5322, %v5326
      %v5328 = vrot.slane %v3721, 1
      %v5329 = vsel %vm5285, %v5324, %v5328
      %v5330 = vrot.slane %v3722, 1
      %v5331 = vsel %vm5285, %v5326, %v5330
      %v5332 = vrot.slane %v3723, 1
      %v5333 = vsel %vm5285, %v5328, %v5332
      %v5334 = vrot.slane %v3724, 1
      %v5335 = vsel %vm5285, %v5330, %v5334
      %v5336 = vrot.slane %v3725, 1
      %v5337 = vsel %vm5285, %v5332, %v5336
      %v5338 = vrot.slane %v3726, 1
      %v5339 = vsel %vm5285, %v5334, %v5338
      %v5340 = vrot.slane %v3727, 1
      %v5341 = vsel %vm5285, %v5336, %v5340
      %v5342 = vrot.slane %v3728, 1
      %v5343 = vsel %vm5285, %v5338, %v5342
      %v5344 = vrot.slane %v3729, 1
      %v5345 = vsel %vm5285, %v5340, %v5344
      %v5346 = vrot.slane %v3730, 1
      %v5347 = vsel %vm5285, %v5342, %v5346
      %v5348 = vrot.slane %v3731, 1
      %v5349 = vsel %vm5285, %v5344, %v5348
      %v5350 = vrot.slane %v3732, 1
      %v5351 = vsel %vm5285, %v5346, %v5350
      %v5352 = vrot.slane %v5214, 1
      %v5353 = vsel %vm5285, %v5348, %v5352
      %v5354 = vrot.slane %v5215, 1
      %v5355 = vsel %vm5285, %v5350, %v5354
      %v5424 = vunpack.c.l.b16 %v5217
      %v5425 = vunpack.c.l.b16 %v5218
      %v5426 = vunpack.c.l.b16 %v5219
      %v5427 = vunpack.c.l.b16 %v5220
      %v5428 = vunpack.c.l.b16 %v5221
      %v5429 = vunpack.c.l.b16 %v5222
      %v5430 = vunpack.c.l.b16 %v5223
      %v5431 = vunpack.c.l.b16 %v5224
      %v5432 = vunpack.c.l.b16 %v5225
      %v5433 = vunpack.c.l.b16 %v5226
      %v5434 = vunpack.c.l.b16 %v5227
      %v5435 = vunpack.c.l.b16 %v5228
      %v5436 = vunpack.c.l.b16 %v5229
      %v5437 = vunpack.c.l.b16 %v5230
      %v5438 = vunpack.c.l.b16 %v5231
      %v5439 = vunpack.c.l.b16 %v5232
      %v5440 = vunpack.c.l.b16 %v5233
      %v5441 = vunpack.c.l.b16 %v5234
      %v5442 = vunpack.c.l.b16 %v5235
      %v5443 = vunpack.c.l.b16 %v5236
      %v5444 = vunpack.c.l.b16 %v5237
      %v5445 = vunpack.c.l.b16 %v5238
      %v5446 = vunpack.c.l.b16 %v5239
      %v5447 = vunpack.c.l.b16 %v5240
      %v5448 = vunpack.c.l.b16 %v5241
      %v5449 = vunpack.c.l.b16 %v5242
      %v5450 = vunpack.c.l.b16 %v5243
      %v5451 = vunpack.c.l.b16 %v5244
      %v5452 = vunpack.c.l.b16 %v5245
      %v5453 = vunpack.c.l.b16 %v5246
      %v5454 = vunpack.c.l.b16 %v5247
      %v5455 = vunpack.c.l.b16 %v5248
      %v5456 = vpack.c.b16 %v5425, %v5424
      %v5457 = vpack.c.b16 %v5427, %v5426
      %v5458 = vpack.c.b16 %v5429, %v5428
      %v5459 = vpack.c.b16 %v5431, %v5430
      %v5460 = vpack.c.b16 %v5433, %v5432
      %v5461 = vpack.c.b16 %v5435, %v5434
      %v5462 = vpack.c.b16 %v5437, %v5436
      %v5463 = vpack.c.b16 %v5439, %v5438
      %v5464 = vpack.c.b16 %v5441, %v5440
      %v5465 = vpack.c.b16 %v5443, %v5442
      %v5466 = vpack.c.b16 %v5445, %v5444
      %v5467 = vpack.c.b16 %v5447, %v5446
      %v5468 = vpack.c.b16 %v5449, %v5448
      %v5469 = vpack.c.b16 %v5451, %v5450
      %v5470 = vpack.c.b16 %v5453, %v5452
      %v5471 = vpack.c.b16 %v5455, %v5454
      %5488 = vmatpush.bf16.msra.mxu0 %v5463
      %5489 = vmatpush.bf16.msra.mxu0 %v5462
      %5490 = vmatpush.bf16.msra.mxu0 %v5461
      %5491 = vmatpush.bf16.msra.mxu0 %v5460
      %5492 = vmatpush.bf16.msra.mxu0 %v5459
      %5493 = vmatpush.bf16.msra.mxu0 %v5458
      %5494 = vmatpush.bf16.msra.mxu0 %v5457
      %5495 = vmatpush.bf16.msra.mxu0 %v5456
      %5496 = vmatmul.bf16.gmra.mxu0 %v5288
      %v5497 = vpop.f32.mrf.mxu0
      %v5498 = vadd.f32 0.0, %v5497
      %v5499 = vpop.f32.mrf.mxu0
      %v5500 = vadd.f32 0.0, %v5499
      %5501 = vmatmul.bf16.gmra.mxu0 %v5293
      %v5502 = vpop.f32.mrf.mxu0
      %v5503 = vadd.f32 0.0, %v5502
      %v5504 = vpop.f32.mrf.mxu0
      %v5505 = vadd.f32 0.0, %v5504
      %5506 = vmatmul.bf16.gmra.mxu0 %v5297
      %v5507 = vpop.f32.mrf.mxu0
      %v5508 = vadd.f32 0.0, %v5507
      %v5509 = vpop.f32.mrf.mxu0
      %v5510 = vadd.f32 0.0, %v5509
      %5511 = vmatmul.bf16.gmra.mxu0 %v5301
      %v5512 = vpop.f32.mrf.mxu0
      %v5513 = vadd.f32 0.0, %v5512
      %v5514 = vpop.f32.mrf.mxu0
      %v5515 = vadd.f32 0.0, %v5514
      %5516 = vmatmul.bf16.gmra.mxu0 %v5305
      %v5517 = vpop.f32.mrf.mxu0
      %v5518 = vadd.f32 0.0, %v5517
      %v5519 = vpop.f32.mrf.mxu0
      %v5520 = vadd.f32 0.0, %v5519
      %5521 = vmatmul.bf16.gmra.mxu0 %v5309
      %v5522 = vpop.f32.mrf.mxu0
      %v5523 = vadd.f32 0.0, %v5522
      %v5524 = vpop.f32.mrf.mxu0
      %v5525 = vadd.f32 0.0, %v5524
      %5526 = vmatmul.bf16.gmra.mxu0 %v5313
      %v5527 = vpop.f32.mrf.mxu0
      %v5528 = vadd.f32 0.0, %v5527
      %v5529 = vpop.f32.mrf.mxu0
      %v5530 = vadd.f32 0.0, %v5529
      %5531 = vmatmul.bf16.gmra.mxu0 %v5317
      %v5532 = vpop.f32.mrf.mxu0
      %v5533 = vadd.f32 0.0, %v5532
      %v5534 = vpop.f32.mrf.mxu0
      %v5535 = vadd.f32 0.0, %v5534
      %5536 = vmatmul.bf16.gmra.mxu0 %v5321
      %v5537 = vpop.f32.mrf.mxu0
      %v5538 = vadd.f32 0.0, %v5537
      %v5539 = vpop.f32.mrf.mxu0
      %v5540 = vadd.f32 0.0, %v5539
      %5541 = vmatmul.bf16.gmra.mxu0 %v5325
      %v5542 = vpop.f32.mrf.mxu0
      %v5543 = vadd.f32 0.0, %v5542
      %v5544 = vpop.f32.mrf.mxu0
      %v5545 = vadd.f32 0.0, %v5544
      %5546 = vmatmul.bf16.gmra.mxu0 %v5329
      %v5547 = vpop.f32.mrf.mxu0
      %v5548 = vadd.f32 0.0, %v5547
      %v5549 = vpop.f32.mrf.mxu0
      %v5550 = vadd.f32 0.0, %v5549
      %5551 = vmatmul.bf16.gmra.mxu0 %v5333
      %v5552 = vpop.f32.mrf.mxu0
      %v5553 = vadd.f32 0.0, %v5552
      %v5554 = vpop.f32.mrf.mxu0
      %v5555 = vadd.f32 0.0, %v5554
      %5556 = vmatmul.bf16.gmra.mxu0 %v5337
      %v5557 = vpop.f32.mrf.mxu0
      %v5558 = vadd.f32 0.0, %v5557
      %v5559 = vpop.f32.mrf.mxu0
      %v5560 = vadd.f32 0.0, %v5559
      %5561 = vmatmul.bf16.gmra.mxu0 %v5341
      %v5562 = vpop.f32.mrf.mxu0
      %v5563 = vadd.f32 0.0, %v5562
      %v5564 = vpop.f32.mrf.mxu0
      %v5565 = vadd.f32 0.0, %v5564
      %5566 = vmatmul.bf16.gmra.mxu0 %v5345
      %v5567 = vpop.f32.mrf.mxu0
      %v5568 = vadd.f32 0.0, %v5567
      %v5569 = vpop.f32.mrf.mxu0
      %v5570 = vadd.f32 0.0, %v5569
      %5571 = vmatmul.bf16.gmra.mxu0 %v5349
      %v5572 = vpop.f32.mrf.mxu0
      %v5573 = vadd.f32 0.0, %v5572
      %v5574 = vpop.f32.mrf.mxu0
      %v5575 = vadd.f32 0.0, %v5574
      %5576 = vmatmul.bf16.gmra.mxu0 %v5353
      %v5577 = vpop.f32.mrf.mxu0
      %v5578 = vadd.f32 0.0, %v5577
      %v5579 = vpop.f32.mrf.mxu0
      %v5580 = vadd.f32 0.0, %v5579
      %5581 = vmatmul.bf16.gmra.mxu0 %v5352
      %v5582 = vpop.f32.mrf.mxu0
      %v5583 = vadd.f32 0.0, %v5582
      %v5584 = vpop.f32.mrf.mxu0
      %5585 = vdwg.mxu0
      %5586 = vmatpush.bf16.msra.mxu0 %v5471
      %5587 = vmatpush.bf16.msra.mxu0 %v5470
      %5588 = vmatpush.bf16.msra.mxu0 %v5469
      %5589 = vmatpush.bf16.msra.mxu0 %v5468
      %5590 = vmatpush.bf16.msra.mxu0 %v5467
      %5591 = vmatpush.bf16.msra.mxu0 %v5466
      %5592 = vmatpush.bf16.msra.mxu0 %v5465
      %5593 = vmatpush.bf16.msra.mxu0 %v5464
      %5594 = vmatmul.bf16.gmra.mxu0 %v5291
      %v5595 = vpop.f32.mrf.mxu0
      %v5596 = vadd.f32 %v5498, %v5595
      %v5597 = vpop.f32.mrf.mxu0
      %v5598 = vadd.f32 %v5500, %v5597
      %5599 = vmatmul.bf16.gmra.mxu0 %v5295
      %v5600 = vpop.f32.mrf.mxu0
      %v5601 = vadd.f32 %v5503, %v5600
      %v5602 = vpop.f32.mrf.mxu0
      %v5603 = vadd.f32 %v5505, %v5602
      %5604 = vmatmul.bf16.gmra.mxu0 %v5299
      %v5605 = vpop.f32.mrf.mxu0
      %v5606 = vadd.f32 %v5508, %v5605
      %v5607 = vpop.f32.mrf.mxu0
      %v5608 = vadd.f32 %v5510, %v5607
      %5609 = vmatmul.bf16.gmra.mxu0 %v5303
      %v5610 = vpop.f32.mrf.mxu0
      %v5611 = vadd.f32 %v5513, %v5610
      %v5612 = vpop.f32.mrf.mxu0
      %v5613 = vadd.f32 %v5515, %v5612
      %5614 = vmatmul.bf16.gmra.mxu0 %v5307
      %v5615 = vpop.f32.mrf.mxu0
      %v5616 = vadd.f32 %v5518, %v5615
      %v5617 = vpop.f32.mrf.mxu0
      %v5618 = vadd.f32 %v5520, %v5617
      %5619 = vmatmul.bf16.gmra.mxu0 %v5311
      %v5620 = vpop.f32.mrf.mxu0
      %v5621 = vadd.f32 %v5523, %v5620
      %v5622 = vpop.f32.mrf.mxu0
      %v5623 = vadd.f32 %v5525, %v5622
      %5624 = vmatmul.bf16.gmra.mxu0 %v5315
      %v5625 = vpop.f32.mrf.mxu0
      %v5626 = vadd.f32 %v5528, %v5625
      %v5627 = vpop.f32.mrf.mxu0
      %v5628 = vadd.f32 %v5530, %v5627
      %5629 = vmatmul.bf16.gmra.mxu0 %v5319
      %v5630 = vpop.f32.mrf.mxu0
      %v5631 = vadd.f32 %v5533, %v5630
      %v5632 = vpop.f32.mrf.mxu0
      %v5633 = vadd.f32 %v5535, %v5632
      %5634 = vmatmul.bf16.gmra.mxu0 %v5323
      %v5635 = vpop.f32.mrf.mxu0
      %v5636 = vadd.f32 %v5538, %v5635
      %v5637 = vpop.f32.mrf.mxu0
      %v5638 = vadd.f32 %v5540, %v5637
      %5639 = vmatmul.bf16.gmra.mxu0 %v5327
      %v5640 = vpop.f32.mrf.mxu0
      %v5641 = vadd.f32 %v5543, %v5640
      %v5642 = vpop.f32.mrf.mxu0
      %v5643 = vadd.f32 %v5545, %v5642
      %5644 = vmatmul.bf16.gmra.mxu0 %v5331
      %v5645 = vpop.f32.mrf.mxu0
      %v5646 = vadd.f32 %v5548, %v5645
      %v5647 = vpop.f32.mrf.mxu0
      %v5648 = vadd.f32 %v5550, %v5647
      %5649 = vmatmul.bf16.gmra.mxu0 %v5335
      %v5650 = vpop.f32.mrf.mxu0
      %v5651 = vadd.f32 %v5553, %v5650
      %v5652 = vpop.f32.mrf.mxu0
      %v5653 = vadd.f32 %v5555, %v5652
      %5654 = vmatmul.bf16.gmra.mxu0 %v5339
      %v5655 = vpop.f32.mrf.mxu0
      %v5656 = vadd.f32 %v5558, %v5655
      %v5657 = vpop.f32.mrf.mxu0
      %v5658 = vadd.f32 %v5560, %v5657
      %5659 = vmatmul.bf16.gmra.mxu0 %v5343
      %v5660 = vpop.f32.mrf.mxu0
      %v5661 = vadd.f32 %v5563, %v5660
      %v5662 = vpop.f32.mrf.mxu0
      %v5663 = vadd.f32 %v5565, %v5662
      %5664 = vmatmul.bf16.gmra.mxu0 %v5347
      %v5665 = vpop.f32.mrf.mxu0
      %v5666 = vadd.f32 %v5568, %v5665
      %v5667 = vpop.f32.mrf.mxu0
      %v5668 = vadd.f32 %v5570, %v5667
      %5669 = vmatmul.bf16.gmra.mxu0 %v5351
      %v5670 = vpop.f32.mrf.mxu0
      %v5671 = vadd.f32 %v5573, %v5670
      %v5672 = vpop.f32.mrf.mxu0
      %v5673 = vadd.f32 %v5575, %v5672
      %5674 = vmatmul.bf16.gmra.mxu0 %v5355
      %v5675 = vpop.f32.mrf.mxu0
      %v5676 = vadd.f32 %v5578, %v5675
      %v5677 = vpop.f32.mrf.mxu0
      %v5678 = vadd.f32 %v5580, %v5677
      %5679 = vmatmul.bf16.gmra.mxu0 %v5354
      %v5680 = vpop.f32.mrf.mxu0
      %v5681 = vadd.f32 %v5583, %v5680
      %v5682 = vpop.f32.mrf.mxu0
      %5683 = vdwg.mxu0
      %v5684 = vadd.f32 %v5173, %v5596
      %v5685 = vadd.f32 %v5174, %v5598
      %v5686 = vadd.f32 %v5175, %v5601
      %v5687 = vadd.f32 %v5176, %v5603
      %v5688 = vadd.f32 %v5177, %v5606
      %v5689 = vadd.f32 %v5178, %v5608
      %v5690 = vadd.f32 %v5179, %v5611
      %v5691 = vadd.f32 %v5180, %v5613
      %v5692 = vadd.f32 %v5181, %v5616
      %v5693 = vadd.f32 %v5182, %v5618
      %v5694 = vadd.f32 %v5183, %v5621
      %v5695 = vadd.f32 %v5184, %v5623
      %v5696 = vadd.f32 %v5185, %v5626
      %v5697 = vadd.f32 %v5186, %v5628
      %v5698 = vadd.f32 %v5187, %v5631
      %v5699 = vadd.f32 %v5188, %v5633
      %v5700 = vadd.f32 %v5189, %v5636
      %v5701 = vadd.f32 %v5190, %v5638
      %v5702 = vadd.f32 %v5191, %v5641
      %v5703 = vadd.f32 %v5192, %v5643
      %v5704 = vadd.f32 %v5193, %v5646
      %v5705 = vadd.f32 %v5194, %v5648
      %v5706 = vadd.f32 %v5195, %v5651
      %v5707 = vadd.f32 %v5196, %v5653
      %v5708 = vadd.f32 %v5197, %v5656
      %v5709 = vadd.f32 %v5198, %v5658
      %v5710 = vadd.f32 %v5199, %v5661
      %v5711 = vadd.f32 %v5200, %v5663
      %v5712 = vadd.f32 %v5201, %v5666
      %v5713 = vadd.f32 %v5202, %v5668
      %v5714 = vadd.f32 %v5203, %v5671
      %v5715 = vadd.f32 %v5204, %v5673
      %v5716 = vadd.f32 %v5205, %v5676
      %v5717 = vadd.f32 %v5206, %v5678
      %v5718 = vadd.f32 %v5207, %v5681
      %v5719 = vld [vmem:[%s2693] sm:$0xfc]
      %v5720 = vld [vmem:[%s2693 + $0x8] sm:$0xfc]
      %v5721 = vld [vmem:[%s2693 + $0x230] sm:$0x3]
      %v5722 = vld [vmem:[%s2693 + $0x238] sm:$0x3]
      %v5723 = vpack.c.bf16 %v4420, %v5719
      %v5724 = vpack.c.bf16 %v4421, %v5720
      %v5725 = vpack.c.bf16 %v5721, %v4486
      %v5726 = vpack.c.bf16 %v5722, %v4487
      %s5727 = scalar_lea.vmem %s2, 640
      %v5728 = vld [vmem:[%s5727] sm:$0xf]
      %v5729 = vld [vmem:[%s5727 + $0x4] sm:$0xf]
      %v5730 = vld [vmem:[%s5727 + $0x8] sm:$0xf]
      %v5731 = vld [vmem:[%s5727 + $0xc] sm:$0xf]
      %v5732 = vld [vmem:[%s5727 + $0x10] sm:$0xf]
      %v5733 = vld [vmem:[%s5727 + $0x14] sm:$0xf]
      %v5734 = vld [vmem:[%s5727 + $0x18] sm:$0xf]
      %v5735 = vld [vmem:[%s5727 + $0x1c] sm:$0xf]
      %v5736 = vld [vmem:[%s5727 + $0x20] sm:$0xf]
      %v5737 = vld [vmem:[%s5727 + $0x24] sm:$0xf]
      %v5738 = vld [vmem:[%s5727 + $0x28] sm:$0xf]
      %v5739 = vld [vmem:[%s5727 + $0x2c] sm:$0xf]
      %v5740 = vld [vmem:[%s5727 + $0x30] sm:$0xf]
      %v5741 = vld [vmem:[%s5727 + $0x34] sm:$0xf]
      %v5742 = vld [vmem:[%s5727 + $0x38] sm:$0xf]
      %v5743 = vld [vmem:[%s5727 + $0x3c] sm:$0xf]
      %v5744 = vld [vmem:[%s5727 + $0x40] sm:$0xf]
      %v5745 = vld [vmem:[%s5727 + $0x44] sm:$0xf]
      %v5746 = vld [vmem:[%s5727 + $0x48] sm:$0xf]
      %v5747 = vld [vmem:[%s5727 + $0x4c] sm:$0xf]
      %v5748 = vld [vmem:[%s5727 + $0x50] sm:$0xf]
      %v5749 = vld [vmem:[%s5727 + $0x54] sm:$0xf]
      %v5750 = vld [vmem:[%s5727 + $0x58] sm:$0xf]
      %v5751 = vld [vmem:[%s5727 + $0x5c] sm:$0xf]
      %v5752 = vld [vmem:[%s5727 + $0x60] sm:$0xf]
      %v5753 = vld [vmem:[%s5727 + $0x64] sm:$0xf]
      %v5754 = vld [vmem:[%s5727 + $0x68] sm:$0xf]
      %v5755 = vld [vmem:[%s5727 + $0x6c] sm:$0xf]
      %v5756 = vld [vmem:[%s5727 + $0x70] sm:$0xf]
      %v5757 = vld [vmem:[%s5727 + $0x74] sm:$0xf]
      %v5758 = vld [vmem:[%s5727 + $0x78] sm:$0xf]
      %v5759 = vld [vmem:[%s5727 + $0x7c] sm:$0xf]
      %v5796 = vrot.slane %v5723, 1
      %v5797 = vrot.slane %v4492, 1
      %v5798 = vsel %vm5285, %v5796, %v5797
      %v5799 = vrot.slane %v5724, 1
      %v5800 = vrot.slane %v4493, 1
      %v5801 = vsel %vm5285, %v5799, %v5800
      %v5802 = vrot.slane %v4494, 1
      %v5803 = vsel %vm5285, %v5797, %v5802
      %v5804 = vrot.slane %v4495, 1
      %v5805 = vsel %vm5285, %v5800, %v5804
      %v5806 = vrot.slane %v4496, 1
      %v5807 = vsel %vm5285, %v5802, %v5806
      %v5808 = vrot.slane %v4497, 1
      %v5809 = vsel %vm5285, %v5804, %v5808
      %v5810 = vrot.slane %v4498, 1
      %v5811 = vsel %vm5285, %v5806, %v5810
      %v5812 = vrot.slane %v4499, 1
      %v5813 = vsel %vm5285, %v5808, %v5812
      %v5814 = vrot.slane %v4500, 1
      %v5815 = vsel %vm5285, %v5810, %v5814
      %v5816 = vrot.slane %v4501, 1
      %v5817 = vsel %vm5285, %v5812, %v5816
      %v5818 = vrot.slane %v4502, 1
      %v5819 = vsel %vm5285, %v5814, %v5818
      %v5820 = vrot.slane %v4503, 1
      %v5821 = vsel %vm5285, %v5816, %v5820
      %v5822 = vrot.slane %v4504, 1
      %v5823 = vsel %vm5285, %v5818, %v5822
      %v5824 = vrot.slane %v4505, 1
      %v5825 = vsel %vm5285, %v5820, %v5824
      %v5826 = vrot.slane %v4506, 1
      %v5827 = vsel %vm5285, %v5822, %v5826
      %v5828 = vrot.slane %v4507, 1
      %v5829 = vsel %vm5285, %v5824, %v5828
      %v5830 = vrot.slane %v4508, 1
      %v5831 = vsel %vm5285, %v5826, %v5830
      %v5832 = vrot.slane %v4509, 1
      %v5833 = vsel %vm5285, %v5828, %v5832
      %v5834 = vrot.slane %v4510, 1
      %v5835 = vsel %vm5285, %v5830, %v5834
      %v5836 = vrot.slane %v4511, 1
      %v5837 = vsel %vm5285, %v5832, %v5836
      %v5838 = vrot.slane %v4512, 1
      %v5839 = vsel %vm5285, %v5834, %v5838
      %v5840 = vrot.slane %v4513, 1
      %v5841 = vsel %vm5285, %v5836, %v5840
      %v5842 = vrot.slane %v4514, 1
      %v5843 = vsel %vm5285, %v5838, %v5842
      %v5844 = vrot.slane %v4515, 1
      %v5845 = vsel %vm5285, %v5840, %v5844
      %v5846 = vrot.slane %v4516, 1
      %v5847 = vsel %vm5285, %v5842, %v5846
      %v5848 = vrot.slane %v4517, 1
      %v5849 = vsel %vm5285, %v5844, %v5848
      %v5850 = vrot.slane %v4518, 1
      %v5851 = vsel %vm5285, %v5846, %v5850
      %v5852 = vrot.slane %v4519, 1
      %v5853 = vsel %vm5285, %v5848, %v5852
      %v5854 = vrot.slane %v4520, 1
      %v5855 = vsel %vm5285, %v5850, %v5854
      %v5856 = vrot.slane %v4521, 1
      %v5857 = vsel %vm5285, %v5852, %v5856
      %v5858 = vrot.slane %v4522, 1
      %v5859 = vsel %vm5285, %v5854, %v5858
      %v5860 = vrot.slane %v4523, 1
      %v5861 = vsel %vm5285, %v5856, %v5860
      %v5862 = vrot.slane %v5725, 1
      %v5863 = vsel %vm5285, %v5858, %v5862
      %v5864 = vrot.slane %v5726, 1
      %v5865 = vsel %vm5285, %v5860, %v5864
      %v5934 = vunpack.c.l.b16 %v5728
      %v5935 = vunpack.c.l.b16 %v5729
      %v5936 = vunpack.c.l.b16 %v5730
      %v5937 = vunpack.c.l.b16 %v5731
      %v5938 = vunpack.c.l.b16 %v5732
      %v5939 = vunpack.c.l.b16 %v5733
      %v5940 = vunpack.c.l.b16 %v5734
      %v5941 = vunpack.c.l.b16 %v5735
      %v5942 = vunpack.c.l.b16 %v5736
      %v5943 = vunpack.c.l.b16 %v5737
      %v5944 = vunpack.c.l.b16 %v5738
      %v5945 = vunpack.c.l.b16 %v5739
      %v5946 = vunpack.c.l.b16 %v5740
      %v5947 = vunpack.c.l.b16 %v5741
      %v5948 = vunpack.c.l.b16 %v5742
      %v5949 = vunpack.c.l.b16 %v5743
      %v5950 = vunpack.c.l.b16 %v5744
      %v5951 = vunpack.c.l.b16 %v5745
      %v5952 = vunpack.c.l.b16 %v5746
      %v5953 = vunpack.c.l.b16 %v5747
      %v5954 = vunpack.c.l.b16 %v5748
      %v5955 = vunpack.c.l.b16 %v5749
      %v5956 = vunpack.c.l.b16 %v5750
      %v5957 = vunpack.c.l.b16 %v5751
      %v5958 = vunpack.c.l.b16 %v5752
      %v5959 = vunpack.c.l.b16 %v5753
      %v5960 = vunpack.c.l.b16 %v5754
      %v5961 = vunpack.c.l.b16 %v5755
      %v5962 = vunpack.c.l.b16 %v5756
      %v5963 = vunpack.c.l.b16 %v5757
      %v5964 = vunpack.c.l.b16 %v5758
      %v5965 = vunpack.c.l.b16 %v5759
      %v5966 = vpack.c.b16 %v5935, %v5934
      %v5967 = vpack.c.b16 %v5937, %v5936
      %v5968 = vpack.c.b16 %v5939, %v5938
      %v5969 = vpack.c.b16 %v5941, %v5940
      %v5970 = vpack.c.b16 %v5943, %v5942
      %v5971 = vpack.c.b16 %v5945, %v5944
      %v5972 = vpack.c.b16 %v5947, %v5946
      %v5973 = vpack.c.b16 %v5949, %v5948
      %v5974 = vpack.c.b16 %v5951, %v5950
      %v5975 = vpack.c.b16 %v5953, %v5952
      %v5976 = vpack.c.b16 %v5955, %v5954
      %v5977 = vpack.c.b16 %v5957, %v5956
      %v5978 = vpack.c.b16 %v5959, %v5958
      %v5979 = vpack.c.b16 %v5961, %v5960
      %v5980 = vpack.c.b16 %v5963, %v5962
      %v5981 = vpack.c.b16 %v5965, %v5964
      %5998 = vmatpush.bf16.msra.mxu0 %v5973
      %5999 = vmatpush.bf16.msra.mxu0 %v5972
      %6000 = vmatpush.bf16.msra.mxu0 %v5971
      %6001 = vmatpush.bf16.msra.mxu0 %v5970
      %6002 = vmatpush.bf16.msra.mxu0 %v5969
      %6003 = vmatpush.bf16.msra.mxu0 %v5968
      %6004 = vmatpush.bf16.msra.mxu0 %v5967
      %6005 = vmatpush.bf16.msra.mxu0 %v5966
      %6006 = vmatmul.bf16.gmra.mxu0 %v5798
      %v6007 = vpop.f32.mrf.mxu0
      %v6008 = vadd.f32 0.0, %v6007
      %v6009 = vpop.f32.mrf.mxu0
      %v6010 = vadd.f32 0.0, %v6009
      %6011 = vmatmul.bf16.gmra.mxu0 %v5803
      %v6012 = vpop.f32.mrf.mxu0
      %v6013 = vadd.f32 0.0, %v6012
      %v6014 = vpop.f32.mrf.mxu0
      %v6015 = vadd.f32 0.0, %v6014
      %6016 = vmatmul.bf16.gmra.mxu0 %v5807
      %v6017 = vpop.f32.mrf.mxu0
      %v6018 = vadd.f32 0.0, %v6017
      %v6019 = vpop.f32.mrf.mxu0
      %v6020 = vadd.f32 0.0, %v6019
      %6021 = vmatmul.bf16.gmra.mxu0 %v5811
      %v6022 = vpop.f32.mrf.mxu0
      %v6023 = vadd.f32 0.0, %v6022
      %v6024 = vpop.f32.mrf.mxu0
      %v6025 = vadd.f32 0.0, %v6024
      %6026 = vmatmul.bf16.gmra.mxu0 %v5815
      %v6027 = vpop.f32.mrf.mxu0
      %v6028 = vadd.f32 0.0, %v6027
      %v6029 = vpop.f32.mrf.mxu0
      %v6030 = vadd.f32 0.0, %v6029
      %6031 = vmatmul.bf16.gmra.mxu0 %v5819
      %v6032 = vpop.f32.mrf.mxu0
      %v6033 = vadd.f32 0.0, %v6032
      %v6034 = vpop.f32.mrf.mxu0
      %v6035 = vadd.f32 0.0, %v6034
      %6036 = vmatmul.bf16.gmra.mxu0 %v5823
      %v6037 = vpop.f32.mrf.mxu0
      %v6038 = vadd.f32 0.0, %v6037
      %v6039 = vpop.f32.mrf.mxu0
      %v6040 = vadd.f32 0.0, %v6039
      %6041 = vmatmul.bf16.gmra.mxu0 %v5827
      %v6042 = vpop.f32.mrf.mxu0
      %v6043 = vadd.f32 0.0, %v6042
      %v6044 = vpop.f32.mrf.mxu0
      %v6045 = vadd.f32 0.0, %v6044
      %6046 = vmatmul.bf16.gmra.mxu0 %v5831
      %v6047 = vpop.f32.mrf.mxu0
      %v6048 = vadd.f32 0.0, %v6047
      %v6049 = vpop.f32.mrf.mxu0
      %v6050 = vadd.f32 0.0, %v6049
      %6051 = vmatmul.bf16.gmra.mxu0 %v5835
      %v6052 = vpop.f32.mrf.mxu0
      %v6053 = vadd.f32 0.0, %v6052
      %v6054 = vpop.f32.mrf.mxu0
      %v6055 = vadd.f32 0.0, %v6054
      %6056 = vmatmul.bf16.gmra.mxu0 %v5839
      %v6057 = vpop.f32.mrf.mxu0
      %v6058 = vadd.f32 0.0, %v6057
      %v6059 = vpop.f32.mrf.mxu0
      %v6060 = vadd.f32 0.0, %v6059
      %6061 = vmatmul.bf16.gmra.mxu0 %v5843
      %v6062 = vpop.f32.mrf.mxu0
      %v6063 = vadd.f32 0.0, %v6062
      %v6064 = vpop.f32.mrf.mxu0
      %v6065 = vadd.f32 0.0, %v6064
      %6066 = vmatmul.bf16.gmra.mxu0 %v5847
      %v6067 = vpop.f32.mrf.mxu0
      %v6068 = vadd.f32 0.0, %v6067
      %v6069 = vpop.f32.mrf.mxu0
      %v6070 = vadd.f32 0.0, %v6069
      %6071 = vmatmul.bf16.gmra.mxu0 %v5851
      %v6072 = vpop.f32.mrf.mxu0
      %v6073 = vadd.f32 0.0, %v6072
      %v6074 = vpop.f32.mrf.mxu0
      %v6075 = vadd.f32 0.0, %v6074
      %6076 = vmatmul.bf16.gmra.mxu0 %v5855
      %v6077 = vpop.f32.mrf.mxu0
      %v6078 = vadd.f32 0.0, %v6077
      %v6079 = vpop.f32.mrf.mxu0
      %v6080 = vadd.f32 0.0, %v6079
      %6081 = vmatmul.bf16.gmra.mxu0 %v5859
      %v6082 = vpop.f32.mrf.mxu0
      %v6083 = vadd.f32 0.0, %v6082
      %v6084 = vpop.f32.mrf.mxu0
      %v6085 = vadd.f32 0.0, %v6084
      %6086 = vmatmul.bf16.gmra.mxu0 %v5863
      %v6087 = vpop.f32.mrf.mxu0
      %v6088 = vadd.f32 0.0, %v6087
      %v6089 = vpop.f32.mrf.mxu0
      %v6090 = vadd.f32 0.0, %v6089
      %6091 = vmatmul.bf16.gmra.mxu0 %v5862
      %v6092 = vpop.f32.mrf.mxu0
      %v6093 = vadd.f32 0.0, %v6092
      %v6094 = vpop.f32.mrf.mxu0
      %6095 = vdwg.mxu0
      %6096 = vmatpush.bf16.msra.mxu0 %v5981
      %6097 = vmatpush.bf16.msra.mxu0 %v5980
      %6098 = vmatpush.bf16.msra.mxu0 %v5979
      %6099 = vmatpush.bf16.msra.mxu0 %v5978
      %6100 = vmatpush.bf16.msra.mxu0 %v5977
      %6101 = vmatpush.bf16.msra.mxu0 %v5976
      %6102 = vmatpush.bf16.msra.mxu0 %v5975
      %6103 = vmatpush.bf16.msra.mxu0 %v5974
      %6104 = vmatmul.bf16.gmra.mxu0 %v5801
      %v6105 = vpop.f32.mrf.mxu0
      %v6106 = vadd.f32 %v6008, %v6105
      %v6107 = vpop.f32.mrf.mxu0
      %v6108 = vadd.f32 %v6010, %v6107
      %6109 = vmatmul.bf16.gmra.mxu0 %v5805
      %v6110 = vpop.f32.mrf.mxu0
      %v6111 = vadd.f32 %v6013, %v6110
      %v6112 = vpop.f32.mrf.mxu0
      %v6113 = vadd.f32 %v6015, %v6112
      %6114 = vmatmul.bf16.gmra.mxu0 %v5809
      %v6115 = vpop.f32.mrf.mxu0
      %v6116 = vadd.f32 %v6018, %v6115
      %v6117 = vpop.f32.mrf.mxu0
      %v6118 = vadd.f32 %v6020, %v6117
      %6119 = vmatmul.bf16.gmra.mxu0 %v5813
      %v6120 = vpop.f32.mrf.mxu0
      %v6121 = vadd.f32 %v6023, %v6120
      %v6122 = vpop.f32.mrf.mxu0
      %v6123 = vadd.f32 %v6025, %v6122
      %6124 = vmatmul.bf16.gmra.mxu0 %v5817
      %v6125 = vpop.f32.mrf.mxu0
      %v6126 = vadd.f32 %v6028, %v6125
      %v6127 = vpop.f32.mrf.mxu0
      %v6128 = vadd.f32 %v6030, %v6127
      %6129 = vmatmul.bf16.gmra.mxu0 %v5821
      %v6130 = vpop.f32.mrf.mxu0
      %v6131 = vadd.f32 %v6033, %v6130
      %v6132 = vpop.f32.mrf.mxu0
      %v6133 = vadd.f32 %v6035, %v6132
      %6134 = vmatmul.bf16.gmra.mxu0 %v5825
      %v6135 = vpop.f32.mrf.mxu0
      %v6136 = vadd.f32 %v6038, %v6135
      %v6137 = vpop.f32.mrf.mxu0
      %v6138 = vadd.f32 %v6040, %v6137
      %6139 = vmatmul.bf16.gmra.mxu0 %v5829
      %v6140 = vpop.f32.mrf.mxu0
      %v6141 = vadd.f32 %v6043, %v6140
      %v6142 = vpop.f32.mrf.mxu0
      %v6143 = vadd.f32 %v6045, %v6142
      %6144 = vmatmul.bf16.gmra.mxu0 %v5833
      %v6145 = vpop.f32.mrf.mxu0
      %v6146 = vadd.f32 %v6048, %v6145
      %v6147 = vpop.f32.mrf.mxu0
      %v6148 = vadd.f32 %v6050, %v6147
      %6149 = vmatmul.bf16.gmra.mxu0 %v5837
      %v6150 = vpop.f32.mrf.mxu0
      %v6151 = vadd.f32 %v6053, %v6150
      %v6152 = vpop.f32.mrf.mxu0
      %v6153 = vadd.f32 %v6055, %v6152
      %6154 = vmatmul.bf16.gmra.mxu0 %v5841
      %v6155 = vpop.f32.mrf.mxu0
      %v6156 = vadd.f32 %v6058, %v6155
      %v6157 = vpop.f32.mrf.mxu0
      %v6158 = vadd.f32 %v6060, %v6157
      %6159 = vmatmul.bf16.gmra.mxu0 %v5845
      %v6160 = vpop.f32.mrf.mxu0
      %v6161 = vadd.f32 %v6063, %v6160
      %v6162 = vpop.f32.mrf.mxu0
      %v6163 = vadd.f32 %v6065, %v6162
      %6164 = vmatmul.bf16.gmra.mxu0 %v5849
      %v6165 = vpop.f32.mrf.mxu0
      %v6166 = vadd.f32 %v6068, %v6165
      %v6167 = vpop.f32.mrf.mxu0
      %v6168 = vadd.f32 %v6070, %v6167
      %6169 = vmatmul.bf16.gmra.mxu0 %v5853
      %v6170 = vpop.f32.mrf.mxu0
      %v6171 = vadd.f32 %v6073, %v6170
      %v6172 = vpop.f32.mrf.mxu0
      %v6173 = vadd.f32 %v6075, %v6172
      %6174 = vmatmul.bf16.gmra.mxu0 %v5857
      %v6175 = vpop.f32.mrf.mxu0
      %v6176 = vadd.f32 %v6078, %v6175
      %v6177 = vpop.f32.mrf.mxu0
      %v6178 = vadd.f32 %v6080, %v6177
      %6179 = vmatmul.bf16.gmra.mxu0 %v5861
      %v6180 = vpop.f32.mrf.mxu0
      %v6181 = vadd.f32 %v6083, %v6180
      %v6182 = vpop.f32.mrf.mxu0
      %v6183 = vadd.f32 %v6085, %v6182
      %6184 = vmatmul.bf16.gmra.mxu0 %v5865
      %v6185 = vpop.f32.mrf.mxu0
      %v6186 = vadd.f32 %v6088, %v6185
      %v6187 = vpop.f32.mrf.mxu0
      %v6188 = vadd.f32 %v6090, %v6187
      %6189 = vmatmul.bf16.gmra.mxu0 %v5864
      %v6190 = vpop.f32.mrf.mxu0
      %v6191 = vadd.f32 %v6093, %v6190
      %v6192 = vpop.f32.mrf.mxu0
      %6193 = vdwg.mxu0
      %v6194 = vadd.f32 %v5684, %v6106
      %v6195 = vadd.f32 %v5685, %v6108
      %v6196 = vadd.f32 %v5686, %v6111
      %v6197 = vadd.f32 %v5687, %v6113
      %v6198 = vadd.f32 %v5688, %v6116
      %v6199 = vadd.f32 %v5689, %v6118
      %v6200 = vadd.f32 %v5690, %v6121
      %v6201 = vadd.f32 %v5691, %v6123
      %v6202 = vadd.f32 %v5692, %v6126
      %v6203 = vadd.f32 %v5693, %v6128
      %v6204 = vadd.f32 %v5694, %v6131
      %v6205 = vadd.f32 %v5695, %v6133
      %v6206 = vadd.f32 %v5696, %v6136
      %v6207 = vadd.f32 %v5697, %v6138
      %v6208 = vadd.f32 %v5698, %v6141
      %v6209 = vadd.f32 %v5699, %v6143
      %v6210 = vadd.f32 %v5700, %v6146
      %v6211 = vadd.f32 %v5701, %v6148
      %v6212 = vadd.f32 %v5702, %v6151
      %v6213 = vadd.f32 %v5703, %v6153
      %v6214 = vadd.f32 %v5704, %v6156
      %v6215 = vadd.f32 %v5705, %v6158
      %v6216 = vadd.f32 %v5706, %v6161
      %v6217 = vadd.f32 %v5707, %v6163
      %v6218 = vadd.f32 %v5708, %v6166
      %v6219 = vadd.f32 %v5709, %v6168
      %v6220 = vadd.f32 %v5710, %v6171
      %v6221 = vadd.f32 %v5711, %v6173
      %v6222 = vadd.f32 %v5712, %v6176
      %v6223 = vadd.f32 %v5713, %v6178
      %v6224 = vadd.f32 %v5714, %v6181
      %v6225 = vadd.f32 %v5715, %v6183
      %v6226 = vadd.f32 %v5716, %v6186
      %v6227 = vadd.f32 %v5717, %v6188
      %v6228 = vadd.f32 %v5718, %v6191
      %v6229 = vld [vmem:[#allocation2] sm:$0xf8]
      %v6230 = vld [vmem:[#allocation2 + $0x8] sm:$0xf8]
      %v6231 = vld [vmem:[#allocation2 + $0x230] sm:$0x7]
      %v6232 = vld [vmem:[#allocation2 + $0x238] sm:$0x7]
      %v6233 = vpack.c.bf16 %v3629, %v6229
      %v6234 = vpack.c.bf16 %v3630, %v6230
      %v6235 = vpack.c.bf16 %v6231, %v3695
      %v6236 = vpack.c.bf16 %v6232, %v3696
      %s6237 = scalar_lea.vmem %s2, 768
      %v6238 = vld [vmem:[%s6237] sm:$0xf]
      %v6239 = vld [vmem:[%s6237 + $0x4] sm:$0xf]
      %v6240 = vld [vmem:[%s6237 + $0x8] sm:$0xf]
      %v6241 = vld [vmem:[%s6237 + $0xc] sm:$0xf]
      %v6242 = vld [vmem:[%s6237 + $0x10] sm:$0xf]
      %v6243 = vld [vmem:[%s6237 + $0x14] sm:$0xf]
      %v6244 = vld [vmem:[%s6237 + $0x18] sm:$0xf]
      %v6245 = vld [vmem:[%s6237 + $0x1c] sm:$0xf]
      %v6246 = vld [vmem:[%s6237 + $0x20] sm:$0xf]
      %v6247 = vld [vmem:[%s6237 + $0x24] sm:$0xf]
      %v6248 = vld [vmem:[%s6237 + $0x28] sm:$0xf]
      %v6249 = vld [vmem:[%s6237 + $0x2c] sm:$0xf]
      %v6250 = vld [vmem:[%s6237 + $0x30] sm:$0xf]
      %v6251 = vld [vmem:[%s6237 + $0x34] sm:$0xf]
      %v6252 = vld [vmem:[%s6237 + $0x38] sm:$0xf]
      %v6253 = vld [vmem:[%s6237 + $0x3c] sm:$0xf]
      %v6254 = vld [vmem:[%s6237 + $0x40] sm:$0xf]
      %v6255 = vld [vmem:[%s6237 + $0x44] sm:$0xf]
      %v6256 = vld [vmem:[%s6237 + $0x48] sm:$0xf]
      %v6257 = vld [vmem:[%s6237 + $0x4c] sm:$0xf]
      %v6258 = vld [vmem:[%s6237 + $0x50] sm:$0xf]
      %v6259 = vld [vmem:[%s6237 + $0x54] sm:$0xf]
      %v6260 = vld [vmem:[%s6237 + $0x58] sm:$0xf]
      %v6261 = vld [vmem:[%s6237 + $0x5c] sm:$0xf]
      %v6262 = vld [vmem:[%s6237 + $0x60] sm:$0xf]
      %v6263 = vld [vmem:[%s6237 + $0x64] sm:$0xf]
      %v6264 = vld [vmem:[%s6237 + $0x68] sm:$0xf]
      %v6265 = vld [vmem:[%s6237 + $0x6c] sm:$0xf]
      %v6266 = vld [vmem:[%s6237 + $0x70] sm:$0xf]
      %v6267 = vld [vmem:[%s6237 + $0x74] sm:$0xf]
      %v6268 = vld [vmem:[%s6237 + $0x78] sm:$0xf]
      %v6269 = vld [vmem:[%s6237 + $0x7c] sm:$0xf]
      %vm6270 = vsmask.f32 6400
      %v6272 = vshrl.u32 %v6233, 16
      %v6274 = vrot.slane %v6272, 1
      %v6275 = vshll.u32 %v6233, 16
      %v6277 = vrot.slane %v6275, 2
      %v6278 = vor.u32 %v6274, %v6277
      %v6279 = vrot.slane %v3793, 1
      %v6280 = vrot.slane %v3777, 2
      %v6281 = vor.u32 %v6279, %v6280
      %v6282 = vsel %vm6270, %v6278, %v6281
      %v6284 = vshrl.u32 %v6234, 16
      %v6286 = vrot.slane %v6284, 1
      %v6287 = vshll.u32 %v6234, 16
      %v6289 = vrot.slane %v6287, 2
      %v6290 = vor.u32 %v6286, %v6289
      %v6291 = vrot.slane %v3801, 1
      %v6292 = vrot.slane %v3789, 2
      %v6293 = vor.u32 %v6291, %v6292
      %v6294 = vsel %vm6270, %v6290, %v6293
      %v6295 = vrot.slane %v3809, 1
      %v6296 = vrot.slane %v3797, 2
      %v6297 = vor.u32 %v6295, %v6296
      %v6298 = vsel %vm6270, %v6281, %v6297
      %v6299 = vrot.slane %v3817, 1
      %v6300 = vrot.slane %v3805, 2
      %v6301 = vor.u32 %v6299, %v6300
      %v6302 = vsel %vm6270, %v6293, %v6301
      %v6303 = vrot.slane %v3825, 1
      %v6304 = vrot.slane %v3813, 2
      %v6305 = vor.u32 %v6303, %v6304
      %v6306 = vsel %vm6270, %v6297, %v6305
      %v6307 = vrot.slane %v3833, 1
      %v6308 = vrot.slane %v3821, 2
      %v6309 = vor.u32 %v6307, %v6308
      %v6310 = vsel %vm6270, %v6301, %v6309
      %v6311 = vrot.slane %v3841, 1
      %v6312 = vrot.slane %v3829, 2
      %v6313 = vor.u32 %v6311, %v6312
      %v6314 = vsel %vm6270, %v6305, %v6313
      %v6315 = vrot.slane %v3849, 1
      %v6316 = vrot.slane %v3837, 2
      %v6317 = vor.u32 %v6315, %v6316
      %v6318 = vsel %vm6270, %v6309, %v6317
      %v6319 = vrot.slane %v3857, 1
      %v6320 = vrot.slane %v3845, 2
      %v6321 = vor.u32 %v6319, %v6320
      %v6322 = vsel %vm6270, %v6313, %v6321
      %v6323 = vrot.slane %v3865, 1
      %v6324 = vrot.slane %v3853, 2
      %v6325 = vor.u32 %v6323, %v6324
      %v6326 = vsel %vm6270, %v6317, %v6325
      %v6327 = vrot.slane %v3873, 1
      %v6328 = vrot.slane %v3861, 2
      %v6329 = vor.u32 %v6327, %v6328
      %v6330 = vsel %vm6270, %v6321, %v6329
      %v6331 = vrot.slane %v3881, 1
      %v6332 = vrot.slane %v3869, 2
      %v6333 = vor.u32 %v6331, %v6332
      %v6334 = vsel %vm6270, %v6325, %v6333
      %v6335 = vrot.slane %v3889, 1
      %v6336 = vrot.slane %v3877, 2
      %v6337 = vor.u32 %v6335, %v6336
      %v6338 = vsel %vm6270, %v6329, %v6337
      %v6339 = vrot.slane %v3897, 1
      %v6340 = vrot.slane %v3885, 2
      %v6341 = vor.u32 %v6339, %v6340
      %v6342 = vsel %vm6270, %v6333, %v6341
      %v6343 = vrot.slane %v3905, 1
      %v6344 = vrot.slane %v3893, 2
      %v6345 = vor.u32 %v6343, %v6344
      %v6346 = vsel %vm6270, %v6337, %v6345
      %v6347 = vrot.slane %v3913, 1
      %v6348 = vrot.slane %v3901, 2
      %v6349 = vor.u32 %v6347, %v6348
      %v6350 = vsel %vm6270, %v6341, %v6349
      %v6351 = vrot.slane %v3921, 1
      %v6352 = vrot.slane %v3909, 2
      %v6353 = vor.u32 %v6351, %v6352
      %v6354 = vsel %vm6270, %v6345, %v6353
      %v6355 = vrot.slane %v3929, 1
      %v6356 = vrot.slane %v3917, 2
      %v6357 = vor.u32 %v6355, %v6356
      %v6358 = vsel %vm6270, %v6349, %v6357
      %v6359 = vrot.slane %v3937, 1
      %v6360 = vrot.slane %v3925, 2
      %v6361 = vor.u32 %v6359, %v6360
      %v6362 = vsel %vm6270, %v6353, %v6361
      %v6363 = vrot.slane %v3945, 1
      %v6364 = vrot.slane %v3933, 2
      %v6365 = vor.u32 %v6363, %v6364
      %v6366 = vsel %vm6270, %v6357, %v6365
      %v6367 = vrot.slane %v3953, 1
      %v6368 = vrot.slane %v3941, 2
      %v6369 = vor.u32 %v6367, %v6368
      %v6370 = vsel %vm6270, %v6361, %v6369
      %v6371 = vrot.slane %v3961, 1
      %v6372 = vrot.slane %v3949, 2
      %v6373 = vor.u32 %v6371, %v6372
      %v6374 = vsel %vm6270, %v6365, %v6373
      %v6375 = vrot.slane %v3969, 1
      %v6376 = vrot.slane %v3957, 2
      %v6377 = vor.u32 %v6375, %v6376
      %v6378 = vsel %vm6270, %v6369, %v6377
      %v6379 = vrot.slane %v3977, 1
      %v6380 = vrot.slane %v3965, 2
      %v6381 = vor.u32 %v6379, %v6380
      %v6382 = vsel %vm6270, %v6373, %v6381
      %v6383 = vrot.slane %v3985, 1
      %v6384 = vrot.slane %v3973, 2
      %v6385 = vor.u32 %v6383, %v6384
      %v6386 = vsel %vm6270, %v6377, %v6385
      %v6387 = vrot.slane %v3993, 1
      %v6388 = vrot.slane %v3981, 2
      %v6389 = vor.u32 %v6387, %v6388
      %v6390 = vsel %vm6270, %v6381, %v6389
      %v6391 = vrot.slane %v4001, 1
      %v6392 = vrot.slane %v3989, 2
      %v6393 = vor.u32 %v6391, %v6392
      %v6394 = vsel %vm6270, %v6385, %v6393
      %v6395 = vrot.slane %v4009, 1
      %v6396 = vrot.slane %v3997, 2
      %v6397 = vor.u32 %v6395, %v6396
      %v6398 = vsel %vm6270, %v6389, %v6397
      %v6399 = vrot.slane %v4017, 1
      %v6400 = vrot.slane %v4005, 2
      %v6401 = vor.u32 %v6399, %v6400
      %v6402 = vsel %vm6270, %v6393, %v6401
      %v6403 = vrot.slane %v4025, 1
      %v6404 = vrot.slane %v4013, 2
      %v6405 = vor.u32 %v6403, %v6404
      %v6406 = vsel %vm6270, %v6397, %v6405
      %v6407 = vrot.slane %v4033, 1
      %v6408 = vrot.slane %v4021, 2
      %v6409 = vor.u32 %v6407, %v6408
      %v6410 = vsel %vm6270, %v6401, %v6409
      %v6411 = vrot.slane %v4041, 1
      %v6412 = vrot.slane %v4029, 2
      %v6413 = vor.u32 %v6411, %v6412
      %v6414 = vsel %vm6270, %v6405, %v6413
      %v6416 = vshrl.u32 %v6235, 16
      %v6418 = vrot.slane %v6416, 1
      %v6419 = vshll.u32 %v6235, 16
      %v6421 = vrot.slane %v6419, 2
      %v6422 = vor.u32 %v6418, %v6421
      %v6423 = vsel %vm6270, %v6409, %v6422
      %v6425 = vshrl.u32 %v6236, 16
      %v6427 = vrot.slane %v6425, 1
      %v6428 = vshll.u32 %v6236, 16
      %v6430 = vrot.slane %v6428, 2
      %v6431 = vor.u32 %v6427, %v6430
      %v6432 = vsel %vm6270, %v6413, %v6431
      %v6501 = vunpack.c.l.b16 %v6238
      %v6502 = vunpack.c.l.b16 %v6239
      %v6503 = vunpack.c.l.b16 %v6240
      %v6504 = vunpack.c.l.b16 %v6241
      %v6505 = vunpack.c.l.b16 %v6242
      %v6506 = vunpack.c.l.b16 %v6243
      %v6507 = vunpack.c.l.b16 %v6244
      %v6508 = vunpack.c.l.b16 %v6245
      %v6509 = vunpack.c.l.b16 %v6246
      %v6510 = vunpack.c.l.b16 %v6247
      %v6511 = vunpack.c.l.b16 %v6248
      %v6512 = vunpack.c.l.b16 %v6249
      %v6513 = vunpack.c.l.b16 %v6250
      %v6514 = vunpack.c.l.b16 %v6251
      %v6515 = vunpack.c.l.b16 %v6252
      %v6516 = vunpack.c.l.b16 %v6253
      %v6517 = vunpack.c.l.b16 %v6254
      %v6518 = vunpack.c.l.b16 %v6255
      %v6519 = vunpack.c.l.b16 %v6256
      %v6520 = vunpack.c.l.b16 %v6257
      %v6521 = vunpack.c.l.b16 %v6258
      %v6522 = vunpack.c.l.b16 %v6259
      %v6523 = vunpack.c.l.b16 %v6260
      %v6524 = vunpack.c.l.b16 %v6261
      %v6525 = vunpack.c.l.b16 %v6262
      %v6526 = vunpack.c.l.b16 %v6263
      %v6527 = vunpack.c.l.b16 %v6264
      %v6528 = vunpack.c.l.b16 %v6265
      %v6529 = vunpack.c.l.b16 %v6266
      %v6530 = vunpack.c.l.b16 %v6267
      %v6531 = vunpack.c.l.b16 %v6268
      %v6532 = vunpack.c.l.b16 %v6269
      %v6533 = vpack.c.b16 %v6502, %v6501
      %v6534 = vpack.c.b16 %v6504, %v6503
      %v6535 = vpack.c.b16 %v6506, %v6505
      %v6536 = vpack.c.b16 %v6508, %v6507
      %v6537 = vpack.c.b16 %v6510, %v6509
      %v6538 = vpack.c.b16 %v6512, %v6511
      %v6539 = vpack.c.b16 %v6514, %v6513
      %v6540 = vpack.c.b16 %v6516, %v6515
      %v6541 = vpack.c.b16 %v6518, %v6517
      %v6542 = vpack.c.b16 %v6520, %v6519
      %v6543 = vpack.c.b16 %v6522, %v6521
      %v6544 = vpack.c.b16 %v6524, %v6523
      %v6545 = vpack.c.b16 %v6526, %v6525
      %v6546 = vpack.c.b16 %v6528, %v6527
      %v6547 = vpack.c.b16 %v6530, %v6529
      %v6548 = vpack.c.b16 %v6532, %v6531
      %6565 = vmatpush.bf16.msra.mxu0 %v6540
      %6566 = vmatpush.bf16.msra.mxu0 %v6539
      %6567 = vmatpush.bf16.msra.mxu0 %v6538
      %6568 = vmatpush.bf16.msra.mxu0 %v6537
      %6569 = vmatpush.bf16.msra.mxu0 %v6536
      %6570 = vmatpush.bf16.msra.mxu0 %v6535
      %6571 = vmatpush.bf16.msra.mxu0 %v6534
      %6572 = vmatpush.bf16.msra.mxu0 %v6533
      %6573 = vmatmul.bf16.gmra.mxu0 %v6282
      %v6574 = vpop.f32.mrf.mxu0
      %v6575 = vadd.f32 0.0, %v6574
      %v6576 = vpop.f32.mrf.mxu0
      %v6577 = vadd.f32 0.0, %v6576
      %6578 = vmatmul.bf16.gmra.mxu0 %v6298
      %v6579 = vpop.f32.mrf.mxu0
      %v6580 = vadd.f32 0.0, %v6579
      %v6581 = vpop.f32.mrf.mxu0
      %v6582 = vadd.f32 0.0, %v6581
      %6583 = vmatmul.bf16.gmra.mxu0 %v6306
      %v6584 = vpop.f32.mrf.mxu0
      %v6585 = vadd.f32 0.0, %v6584
      %v6586 = vpop.f32.mrf.mxu0
      %v6587 = vadd.f32 0.0, %v6586
      %6588 = vmatmul.bf16.gmra.mxu0 %v6314
      %v6589 = vpop.f32.mrf.mxu0
      %v6590 = vadd.f32 0.0, %v6589
      %v6591 = vpop.f32.mrf.mxu0
      %v6592 = vadd.f32 0.0, %v6591
      %6593 = vmatmul.bf16.gmra.mxu0 %v6322
      %v6594 = vpop.f32.mrf.mxu0
      %v6595 = vadd.f32 0.0, %v6594
      %v6596 = vpop.f32.mrf.mxu0
      %v6597 = vadd.f32 0.0, %v6596
      %6598 = vmatmul.bf16.gmra.mxu0 %v6330
      %v6599 = vpop.f32.mrf.mxu0
      %v6600 = vadd.f32 0.0, %v6599
      %v6601 = vpop.f32.mrf.mxu0
      %v6602 = vadd.f32 0.0, %v6601
      %6603 = vmatmul.bf16.gmra.mxu0 %v6338
      %v6604 = vpop.f32.mrf.mxu0
      %v6605 = vadd.f32 0.0, %v6604
      %v6606 = vpop.f32.mrf.mxu0
      %v6607 = vadd.f32 0.0, %v6606
      %6608 = vmatmul.bf16.gmra.mxu0 %v6346
      %v6609 = vpop.f32.mrf.mxu0
      %v6610 = vadd.f32 0.0, %v6609
      %v6611 = vpop.f32.mrf.mxu0
      %v6612 = vadd.f32 0.0, %v6611
      %6613 = vmatmul.bf16.gmra.mxu0 %v6354
      %v6614 = vpop.f32.mrf.mxu0
      %v6615 = vadd.f32 0.0, %v6614
      %v6616 = vpop.f32.mrf.mxu0
      %v6617 = vadd.f32 0.0, %v6616
      %6618 = vmatmul.bf16.gmra.mxu0 %v6362
      %v6619 = vpop.f32.mrf.mxu0
      %v6620 = vadd.f32 0.0, %v6619
      %v6621 = vpop.f32.mrf.mxu0
      %v6622 = vadd.f32 0.0, %v6621
      %6623 = vmatmul.bf16.gmra.mxu0 %v6370
      %v6624 = vpop.f32.mrf.mxu0
      %v6625 = vadd.f32 0.0, %v6624
      %v6626 = vpop.f32.mrf.mxu0
      %v6627 = vadd.f32 0.0, %v6626
      %6628 = vmatmul.bf16.gmra.mxu0 %v6378
      %v6629 = vpop.f32.mrf.mxu0
      %v6630 = vadd.f32 0.0, %v6629
      %v6631 = vpop.f32.mrf.mxu0
      %v6632 = vadd.f32 0.0, %v6631
      %6633 = vmatmul.bf16.gmra.mxu0 %v6386
      %v6634 = vpop.f32.mrf.mxu0
      %v6635 = vadd.f32 0.0, %v6634
      %v6636 = vpop.f32.mrf.mxu0
      %v6637 = vadd.f32 0.0, %v6636
      %6638 = vmatmul.bf16.gmra.mxu0 %v6394
      %v6639 = vpop.f32.mrf.mxu0
      %v6640 = vadd.f32 0.0, %v6639
      %v6641 = vpop.f32.mrf.mxu0
      %v6642 = vadd.f32 0.0, %v6641
      %6643 = vmatmul.bf16.gmra.mxu0 %v6402
      %v6644 = vpop.f32.mrf.mxu0
      %v6645 = vadd.f32 0.0, %v6644
      %v6646 = vpop.f32.mrf.mxu0
      %v6647 = vadd.f32 0.0, %v6646
      %6648 = vmatmul.bf16.gmra.mxu0 %v6410
      %v6649 = vpop.f32.mrf.mxu0
      %v6650 = vadd.f32 0.0, %v6649
      %v6651 = vpop.f32.mrf.mxu0
      %v6652 = vadd.f32 0.0, %v6651
      %6653 = vmatmul.bf16.gmra.mxu0 %v6423
      %v6654 = vpop.f32.mrf.mxu0
      %v6655 = vadd.f32 0.0, %v6654
      %v6656 = vpop.f32.mrf.mxu0
      %v6657 = vadd.f32 0.0, %v6656
      %6658 = vmatmul.bf16.gmra.mxu0 %v6422
      %v6659 = vpop.f32.mrf.mxu0
      %v6660 = vadd.f32 0.0, %v6659
      %v6661 = vpop.f32.mrf.mxu0
      %6662 = vdwg.mxu0
      %6663 = vmatpush.bf16.msra.mxu0 %v6548
      %6664 = vmatpush.bf16.msra.mxu0 %v6547
      %6665 = vmatpush.bf16.msra.mxu0 %v6546
      %6666 = vmatpush.bf16.msra.mxu0 %v6545
      %6667 = vmatpush.bf16.msra.mxu0 %v6544
      %6668 = vmatpush.bf16.msra.mxu0 %v6543
      %6669 = vmatpush.bf16.msra.mxu0 %v6542
      %6670 = vmatpush.bf16.msra.mxu0 %v6541
      %6671 = vmatmul.bf16.gmra.mxu0 %v6294
      %v6672 = vpop.f32.mrf.mxu0
      %v6673 = vadd.f32 %v6575, %v6672
      %v6674 = vpop.f32.mrf.mxu0
      %v6675 = vadd.f32 %v6577, %v6674
      %6676 = vmatmul.bf16.gmra.mxu0 %v6302
      %v6677 = vpop.f32.mrf.mxu0
      %v6678 = vadd.f32 %v6580, %v6677
      %v6679 = vpop.f32.mrf.mxu0
      %v6680 = vadd.f32 %v6582, %v6679
      %6681 = vmatmul.bf16.gmra.mxu0 %v6310
      %v6682 = vpop.f32.mrf.mxu0
      %v6683 = vadd.f32 %v6585, %v6682
      %v6684 = vpop.f32.mrf.mxu0
      %v6685 = vadd.f32 %v6587, %v6684
      %6686 = vmatmul.bf16.gmra.mxu0 %v6318
      %v6687 = vpop.f32.mrf.mxu0
      %v6688 = vadd.f32 %v6590, %v6687
      %v6689 = vpop.f32.mrf.mxu0
      %v6690 = vadd.f32 %v6592, %v6689
      %6691 = vmatmul.bf16.gmra.mxu0 %v6326
      %v6692 = vpop.f32.mrf.mxu0
      %v6693 = vadd.f32 %v6595, %v6692
      %v6694 = vpop.f32.mrf.mxu0
      %v6695 = vadd.f32 %v6597, %v6694
      %6696 = vmatmul.bf16.gmra.mxu0 %v6334
      %v6697 = vpop.f32.mrf.mxu0
      %v6698 = vadd.f32 %v6600, %v6697
      %v6699 = vpop.f32.mrf.mxu0
      %v6700 = vadd.f32 %v6602, %v6699
      %6701 = vmatmul.bf16.gmra.mxu0 %v6342
      %v6702 = vpop.f32.mrf.mxu0
      %v6703 = vadd.f32 %v6605, %v6702
      %v6704 = vpop.f32.mrf.mxu0
      %v6705 = vadd.f32 %v6607, %v6704
      %6706 = vmatmul.bf16.gmra.mxu0 %v6350
      %v6707 = vpop.f32.mrf.mxu0
      %v6708 = vadd.f32 %v6610, %v6707
      %v6709 = vpop.f32.mrf.mxu0
      %v6710 = vadd.f32 %v6612, %v6709
      %6711 = vmatmul.bf16.gmra.mxu0 %v6358
      %v6712 = vpop.f32.mrf.mxu0
      %v6713 = vadd.f32 %v6615, %v6712
      %v6714 = vpop.f32.mrf.mxu0
      %v6715 = vadd.f32 %v6617, %v6714
      %6716 = vmatmul.bf16.gmra.mxu0 %v6366
      %v6717 = vpop.f32.mrf.mxu0
      %v6718 = vadd.f32 %v6620, %v6717
      %v6719 = vpop.f32.mrf.mxu0
      %v6720 = vadd.f32 %v6622, %v6719
      %6721 = vmatmul.bf16.gmra.mxu0 %v6374
      %v6722 = vpop.f32.mrf.mxu0
      %v6723 = vadd.f32 %v6625, %v6722
      %v6724 = vpop.f32.mrf.mxu0
      %v6725 = vadd.f32 %v6627, %v6724
      %6726 = vmatmul.bf16.gmra.mxu0 %v6382
      %v6727 = vpop.f32.mrf.mxu0
      %v6728 = vadd.f32 %v6630, %v6727
      %v6729 = vpop.f32.mrf.mxu0
      %v6730 = vadd.f32 %v6632, %v6729
      %6731 = vmatmul.bf16.gmra.mxu0 %v6390
      %v6732 = vpop.f32.mrf.mxu0
      %v6733 = vadd.f32 %v6635, %v6732
      %v6734 = vpop.f32.mrf.mxu0
      %v6735 = vadd.f32 %v6637, %v6734
      %6736 = vmatmul.bf16.gmra.mxu0 %v6398
      %v6737 = vpop.f32.mrf.mxu0
      %v6738 = vadd.f32 %v6640, %v6737
      %v6739 = vpop.f32.mrf.mxu0
      %v6740 = vadd.f32 %v6642, %v6739
      %6741 = vmatmul.bf16.gmra.mxu0 %v6406
      %v6742 = vpop.f32.mrf.mxu0
      %v6743 = vadd.f32 %v6645, %v6742
      %v6744 = vpop.f32.mrf.mxu0
      %v6745 = vadd.f32 %v6647, %v6744
      %6746 = vmatmul.bf16.gmra.mxu0 %v6414
      %v6747 = vpop.f32.mrf.mxu0
      %v6748 = vadd.f32 %v6650, %v6747
      %v6749 = vpop.f32.mrf.mxu0
      %v6750 = vadd.f32 %v6652, %v6749
      %6751 = vmatmul.bf16.gmra.mxu0 %v6432
      %v6752 = vpop.f32.mrf.mxu0
      %v6753 = vadd.f32 %v6655, %v6752
      %v6754 = vpop.f32.mrf.mxu0
      %v6755 = vadd.f32 %v6657, %v6754
      %6756 = vmatmul.bf16.gmra.mxu0 %v6431
      %v6757 = vpop.f32.mrf.mxu0
      %v6758 = vadd.f32 %v6660, %v6757
      %v6759 = vpop.f32.mrf.mxu0
      %6760 = vdwg.mxu0
      %v6761 = vadd.f32 %v6194, %v6673
      %v6762 = vadd.f32 %v6195, %v6675
      %v6763 = vadd.f32 %v6196, %v6678
      %v6764 = vadd.f32 %v6197, %v6680
      %v6765 = vadd.f32 %v6198, %v6683
      %v6766 = vadd.f32 %v6199, %v6685
      %v6767 = vadd.f32 %v6200, %v6688
      %v6768 = vadd.f32 %v6201, %v6690
      %v6769 = vadd.f32 %v6202, %v6693
      %v6770 = vadd.f32 %v6203, %v6695
      %v6771 = vadd.f32 %v6204, %v6698
      %v6772 = vadd.f32 %v6205, %v6700
      %v6773 = vadd.f32 %v6206, %v6703
      %v6774 = vadd.f32 %v6207, %v6705
      %v6775 = vadd.f32 %v6208, %v6708
      %v6776 = vadd.f32 %v6209, %v6710
      %v6777 = vadd.f32 %v6210, %v6713
      %v6778 = vadd.f32 %v6211, %v6715
      %v6779 = vadd.f32 %v6212, %v6718
      %v6780 = vadd.f32 %v6213, %v6720
      %v6781 = vadd.f32 %v6214, %v6723
      %v6782 = vadd.f32 %v6215, %v6725
      %v6783 = vadd.f32 %v6216, %v6728
      %v6784 = vadd.f32 %v6217, %v6730
      %v6785 = vadd.f32 %v6218, %v6733
      %v6786 = vadd.f32 %v6219, %v6735
      %v6787 = vadd.f32 %v6220, %v6738
      %v6788 = vadd.f32 %v6221, %v6740
      %v6789 = vadd.f32 %v6222, %v6743
      %v6790 = vadd.f32 %v6223, %v6745
      %v6791 = vadd.f32 %v6224, %v6748
      %v6792 = vadd.f32 %v6225, %v6750
      %v6793 = vadd.f32 %v6226, %v6753
      %v6794 = vadd.f32 %v6227, %v6755
      %v6795 = vadd.f32 %v6228, %v6758
      %v6796 = vld [vmem:[%s8] sm:$0x1]
      %v6798 = vperm.slane %v6796, 0
      %v6800 = vadd.f32 %v6761, %v6798
      %v6801 = vadd.f32 %v6762, %v6798
      %v6802 = vadd.f32 %v6763, %v6798
      %v6803 = vadd.f32 %v6764, %v6798
      %v6804 = vadd.f32 %v6765, %v6798
      %v6805 = vadd.f32 %v6766, %v6798
      %v6806 = vadd.f32 %v6767, %v6798
      %v6807 = vadd.f32 %v6768, %v6798
      %v6808 = vadd.f32 %v6769, %v6798
      %v6809 = vadd.f32 %v6770, %v6798
      %v6810 = vadd.f32 %v6771, %v6798
      %v6811 = vadd.f32 %v6772, %v6798
      %v6812 = vadd.f32 %v6773, %v6798
      %v6813 = vadd.f32 %v6774, %v6798
      %v6814 = vadd.f32 %v6775, %v6798
      %v6815 = vadd.f32 %v6776, %v6798
      %v6816 = vadd.f32 %v6777, %v6798
      %v6817 = vadd.f32 %v6778, %v6798
      %v6818 = vadd.f32 %v6779, %v6798
      %v6819 = vadd.f32 %v6780, %v6798
      %v6820 = vadd.f32 %v6781, %v6798
      %v6821 = vadd.f32 %v6782, %v6798
      %v6822 = vadd.f32 %v6783, %v6798
      %v6823 = vadd.f32 %v6784, %v6798
      %v6824 = vadd.f32 %v6785, %v6798
      %v6825 = vadd.f32 %v6786, %v6798
      %v6826 = vadd.f32 %v6787, %v6798
      %v6827 = vadd.f32 %v6788, %v6798
      %v6828 = vadd.f32 %v6789, %v6798
      %v6829 = vadd.f32 %v6790, %v6798
      %v6830 = vadd.f32 %v6791, %v6798
      %v6831 = vadd.f32 %v6792, %v6798
      %v6832 = vadd.f32 %v6793, %v6798
      %v6833 = vadd.f32 %v6794, %v6798
      %v6834 = vadd.f32 %v6795, %v6798
      %v6835 = vmax.f32 %v6800, 0.0
      %v6836 = vmax.f32 %v6801, 0.0
      %v6837 = vmax.f32 %v6802, 0.0
      %v6838 = vmax.f32 %v6803, 0.0
      %v6839 = vmax.f32 %v6804, 0.0
      %v6840 = vmax.f32 %v6805, 0.0
      %v6841 = vmax.f32 %v6806, 0.0
      %v6842 = vmax.f32 %v6807, 0.0
      %v6843 = vmax.f32 %v6808, 0.0
      %v6844 = vmax.f32 %v6809, 0.0
      %v6845 = vmax.f32 %v6810, 0.0
      %v6846 = vmax.f32 %v6811, 0.0
      %v6847 = vmax.f32 %v6812, 0.0
      %v6848 = vmax.f32 %v6813, 0.0
      %v6849 = vmax.f32 %v6814, 0.0
      %v6850 = vmax.f32 %v6815, 0.0
      %v6851 = vmax.f32 %v6816, 0.0
      %v6852 = vmax.f32 %v6817, 0.0
      %v6853 = vmax.f32 %v6818, 0.0
      %v6854 = vmax.f32 %v6819, 0.0
      %v6855 = vmax.f32 %v6820, 0.0
      %v6856 = vmax.f32 %v6821, 0.0
      %v6857 = vmax.f32 %v6822, 0.0
      %v6858 = vmax.f32 %v6823, 0.0
      %v6859 = vmax.f32 %v6824, 0.0
      %v6860 = vmax.f32 %v6825, 0.0
      %v6861 = vmax.f32 %v6826, 0.0
      %v6862 = vmax.f32 %v6827, 0.0
      %v6863 = vmax.f32 %v6828, 0.0
      %v6864 = vmax.f32 %v6829, 0.0
      %v6865 = vmax.f32 %v6830, 0.0
      %v6866 = vmax.f32 %v6831, 0.0
      %v6867 = vmax.f32 %v6832, 0.0
      %v6868 = vmax.f32 %v6833, 0.0
      %v6869 = vmax.f32 %v6834, 0.0
      %v6870 = vld [vmem:[%s9] sm:$0x1]
      %v6872 = vperm.slane %v6870, 0
      %v6874 = vmul.f32 %v6835, %v6872
      %v6875 = vmul.f32 %v6836, %v6872
      %v6876 = vmul.f32 %v6837, %v6872
      %v6877 = vmul.f32 %v6838, %v6872
      %v6878 = vmul.f32 %v6839, %v6872
      %v6879 = vmul.f32 %v6840, %v6872
      %v6880 = vmul.f32 %v6841, %v6872
      %v6881 = vmul.f32 %v6842, %v6872
      %v6882 = vmul.f32 %v6843, %v6872
      %v6883 = vmul.f32 %v6844, %v6872
      %v6884 = vmul.f32 %v6845, %v6872
      %v6885 = vmul.f32 %v6846, %v6872
      %v6886 = vmul.f32 %v6847, %v6872
      %v6887 = vmul.f32 %v6848, %v6872
      %v6888 = vmul.f32 %v6849, %v6872
      %v6889 = vmul.f32 %v6850, %v6872
      %v6890 = vmul.f32 %v6851, %v6872
      %v6891 = vmul.f32 %v6852, %v6872
      %v6892 = vmul.f32 %v6853, %v6872
      %v6893 = vmul.f32 %v6854, %v6872
      %v6894 = vmul.f32 %v6855, %v6872
      %v6895 = vmul.f32 %v6856, %v6872
      %v6896 = vmul.f32 %v6857, %v6872
      %v6897 = vmul.f32 %v6858, %v6872
      %v6898 = vmul.f32 %v6859, %v6872
      %v6899 = vmul.f32 %v6860, %v6872
      %v6900 = vmul.f32 %v6861, %v6872
      %v6901 = vmul.f32 %v6862, %v6872
      %v6902 = vmul.f32 %v6863, %v6872
      %v6903 = vmul.f32 %v6864, %v6872
      %v6904 = vmul.f32 %v6865, %v6872
      %v6905 = vmul.f32 %v6866, %v6872
      %v6906 = vmul.f32 %v6867, %v6872
      %v6907 = vmul.f32 %v6868, %v6872
      %v6908 = vmul.f32 %v6869, %v6872
      %v6909 = vld [vmem:[%s10] sm:$0x1]
      %v6911 = vperm.slane %v6909, 0
      %v6913 = vadd.f32 %v6874, %v6911
      %v6914 = vadd.f32 %v6875, %v6911
      %v6915 = vadd.f32 %v6876, %v6911
      %v6916 = vadd.f32 %v6877, %v6911
      %v6917 = vadd.f32 %v6878, %v6911
      %v6918 = vadd.f32 %v6879, %v6911
      %v6919 = vadd.f32 %v6880, %v6911
      %v6920 = vadd.f32 %v6881, %v6911
      %v6921 = vadd.f32 %v6882, %v6911
      %v6922 = vadd.f32 %v6883, %v6911
      %v6923 = vadd.f32 %v6884, %v6911
      %v6924 = vadd.f32 %v6885, %v6911
      %v6925 = vadd.f32 %v6886, %v6911
      %v6926 = vadd.f32 %v6887, %v6911
      %v6927 = vadd.f32 %v6888, %v6911
      %v6928 = vadd.f32 %v6889, %v6911
      %v6929 = vadd.f32 %v6890, %v6911
      %v6930 = vadd.f32 %v6891, %v6911
      %v6931 = vadd.f32 %v6892, %v6911
      %v6932 = vadd.f32 %v6893, %v6911
      %v6933 = vadd.f32 %v6894, %v6911
      %v6934 = vadd.f32 %v6895, %v6911
      %v6935 = vadd.f32 %v6896, %v6911
      %v6936 = vadd.f32 %v6897, %v6911
      %v6937 = vadd.f32 %v6898, %v6911
      %v6938 = vadd.f32 %v6899, %v6911
      %v6939 = vadd.f32 %v6900, %v6911
      %v6940 = vadd.f32 %v6901, %v6911
      %v6941 = vadd.f32 %v6902, %v6911
      %v6942 = vadd.f32 %v6903, %v6911
      %v6943 = vadd.f32 %v6904, %v6911
      %v6944 = vadd.f32 %v6905, %v6911
      %v6945 = vadd.f32 %v6906, %v6911
      %v6946 = vadd.f32 %v6907, %v6911
      %v6947 = vadd.f32 %v6908, %v6911
      %6948 = vst [vmem:[#allocation3 + $0x28] sm:$0xff] %v6913
      %6949 = vst [vmem:[#allocation3 + $0x50] sm:$0xff] %v6914
      %6950 = vst [vmem:[#allocation3 + $0x78] sm:$0xff] %v6915
      %6951 = vst [vmem:[#allocation3 + $0xa0] sm:$0xff] %v6916
      %6952 = vst [vmem:[#allocation3 + $0xc8] sm:$0xff] %v6917
      %6953 = vst [vmem:[#allocation3 + $0xf0] sm:$0xff] %v6918
      %6954 = vst [vmem:[#allocation3 + $0x118] sm:$0xff] %v6919
      %6955 = vst [vmem:[#allocation3 + $0x140] sm:$0xff] %v6920
      %6956 = vst [vmem:[#allocation3 + $0x168] sm:$0xff] %v6921
      %6957 = vst [vmem:[#allocation3 + $0x190] sm:$0xff] %v6922
      %6958 = vst [vmem:[#allocation3 + $0x1b8] sm:$0xff] %v6923
      %6959 = vst [vmem:[#allocation3 + $0x1e0] sm:$0xff] %v6924
      %6960 = vst [vmem:[#allocation3 + $0x208] sm:$0xff] %v6925
      %6961 = vst [vmem:[#allocation3 + $0x230] sm:$0xff] %v6926
      %6962 = vst [vmem:[#allocation3 + $0x258] sm:$0xff] %v6927
      %6963 = vst [vmem:[#allocation3 + $0x280] sm:$0xff] %v6928
      %6964 = vst [vmem:[#allocation3 + $0x2a8] sm:$0xff] %v6929
      %6965 = vst [vmem:[#allocation3 + $0x2d0] sm:$0xff] %v6930
      %6966 = vst [vmem:[#allocation3 + $0x2f8] sm:$0xff] %v6931
      %6967 = vst [vmem:[#allocation3 + $0x320] sm:$0xff] %v6932
      %6968 = vst [vmem:[#allocation3 + $0x348] sm:$0xff] %v6933
      %6969 = vst [vmem:[#allocation3 + $0x370] sm:$0xff] %v6934
      %6970 = vst [vmem:[#allocation3 + $0x398] sm:$0xff] %v6935
      %6971 = vst [vmem:[#allocation3 + $0x3c0] sm:$0xff] %v6936
      %6972 = vst [vmem:[#allocation3 + $0x3e8] sm:$0xff] %v6937
      %6973 = vst [vmem:[#allocation3 + $0x410] sm:$0xff] %v6938
      %6974 = vst [vmem:[#allocation3 + $0x438] sm:$0xff] %v6939
      %6975 = vst [vmem:[#allocation3 + $0x460] sm:$0xff] %v6940
      %6976 = vst [vmem:[#allocation3 + $0x488] sm:$0xff] %v6941
      %6977 = vst [vmem:[#allocation3 + $0x4b0] sm:$0xff] %v6942
      %6978 = vst [vmem:[#allocation3 + $0x4d8] sm:$0xff] %v6943
      %6979 = vst [vmem:[#allocation3 + $0x500] sm:$0xff] %v6944
      %6980 = vst [vmem:[#allocation3 + $0x528] sm:$0xff] %v6945
      %6981 = vst [vmem:[#allocation3 + $0x550] sm:$0xff] %v6946
      %6982 = vst [vmem:[#allocation3 + $0x578] sm:$0xff] %v6947
      %vm7018 = vcmask 1046528
      %v7019 = vrot.slane %v6913, 1
      %v7020 = vrot.slane %v6914, 1
      %v7021 = vsel %vm7018, %v7019, %v7020
      %v7022 = vrot.slane %v6915, 1
      %v7023 = vsel %vm7018, %v7020, %v7022
      %v7024 = vrot.slane %v6916, 1
      %v7025 = vsel %vm7018, %v7022, %v7024
      %v7026 = vrot.slane %v6917, 1
      %v7027 = vsel %vm7018, %v7024, %v7026
      %v7028 = vrot.slane %v6918, 1
      %v7029 = vsel %vm7018, %v7026, %v7028
      %v7030 = vrot.slane %v6919, 1
      %v7031 = vsel %vm7018, %v7028, %v7030
      %v7032 = vrot.slane %v6920, 1
      %v7033 = vsel %vm7018, %v7030, %v7032
      %v7034 = vrot.slane %v6921, 1
      %v7035 = vsel %vm7018, %v7032, %v7034
      %v7036 = vrot.slane %v6922, 1
      %v7037 = vsel %vm7018, %v7034, %v7036
      %v7038 = vrot.slane %v6923, 1
      %v7039 = vsel %vm7018, %v7036, %v7038
      %v7040 = vrot.slane %v6924, 1
      %v7041 = vsel %vm7018, %v7038, %v7040
      %v7042 = vrot.slane %v6925, 1
      %v7043 = vsel %vm7018, %v7040, %v7042
      %v7044 = vrot.slane %v6926, 1
      %v7045 = vsel %vm7018, %v7042, %v7044
      %v7046 = vrot.slane %v6927, 1
      %v7047 = vsel %vm7018, %v7044, %v7046
      %v7048 = vrot.slane %v6928, 1
      %v7049 = vsel %vm7018, %v7046, %v7048
      %v7050 = vrot.slane %v6929, 1
      %v7051 = vsel %vm7018, %v7048, %v7050
      %v7052 = vrot.slane %v6930, 1
      %v7053 = vsel %vm7018, %v7050, %v7052
      %v7054 = vrot.slane %v6931, 1
      %v7055 = vsel %vm7018, %v7052, %v7054
      %v7056 = vrot.slane %v6932, 1
      %v7057 = vsel %vm7018, %v7054, %v7056
      %v7058 = vrot.slane %v6933, 1
      %v7059 = vsel %vm7018, %v7056, %v7058
      %v7060 = vrot.slane %v6934, 1
      %v7061 = vsel %vm7018, %v7058, %v7060
      %v7062 = vrot.slane %v6935, 1
      %v7063 = vsel %vm7018, %v7060, %v7062
      %v7064 = vrot.slane %v6936, 1
      %v7065 = vsel %vm7018, %v7062, %v7064
      %v7066 = vrot.slane %v6937, 1
      %v7067 = vsel %vm7018, %v7064, %v7066
      %v7068 = vrot.slane %v6938, 1
      %v7069 = vsel %vm7018, %v7066, %v7068
      %v7070 = vrot.slane %v6939, 1
      %v7071 = vsel %vm7018, %v7068, %v7070
      %v7072 = vrot.slane %v6940, 1
      %v7073 = vsel %vm7018, %v7070, %v7072
      %v7074 = vrot.slane %v6941, 1
      %v7075 = vsel %vm7018, %v7072, %v7074
      %v7076 = vrot.slane %v6942, 1
      %v7077 = vsel %vm7018, %v7074, %v7076
      %v7078 = vrot.slane %v6943, 1
      %v7079 = vsel %vm7018, %v7076, %v7078
      %v7080 = vrot.slane %v6944, 1
      %v7081 = vsel %vm7018, %v7078, %v7080
      %v7082 = vrot.slane %v6945, 1
      %v7083 = vsel %vm7018, %v7080, %v7082
      %v7084 = vrot.slane %v6946, 1
      %v7085 = vsel %vm7018, %v7082, %v7084
      %v7086 = vrot.slane %v6947, 1
      %v7087 = vsel %vm7018, %v7084, %v7086
      %7124 = vst [vmem:[#allocation3 + $0x8] sm:$0x80] %v7019
      %7125 = vst [vmem:[#allocation3 + $0x30] sm:$0xff] %v7021
      %7126 = vst [vmem:[#allocation3 + $0x58] sm:$0xff] %v7023
      %7127 = vst [vmem:[#allocation3 + $0x80] sm:$0xff] %v7025
      %7128 = vst [vmem:[#allocation3 + $0xa8] sm:$0xff] %v7027
      %7129 = vst [vmem:[#allocation3 + $0xd0] sm:$0xff] %v7029
      %7130 = vst [vmem:[#allocation3 + $0xf8] sm:$0xff] %v7031
      %7131 = vst [vmem:[#allocation3 + $0x120] sm:$0xff] %v7033
      %7132 = vst [vmem:[#allocation3 + $0x148] sm:$0xff] %v7035
      %7133 = vst [vmem:[#allocation3 + $0x170] sm:$0xff] %v7037
      %7134 = vst [vmem:[#allocation3 + $0x198] sm:$0xff] %v7039
      %7135 = vst [vmem:[#allocation3 + $0x1c0] sm:$0xff] %v7041
      %7136 = vst [vmem:[#allocation3 + $0x1e8] sm:$0xff] %v7043
      %7137 = vst [vmem:[#allocation3 + $0x210] sm:$0xff] %v7045
      %7138 = vst [vmem:[#allocation3 + $0x238] sm:$0xff] %v7047
      %7139 = vst [vmem:[#allocation3 + $0x260] sm:$0xff] %v7049
      %7140 = vst [vmem:[#allocation3 + $0x288] sm:$0xff] %v7051
      %7141 = vst [vmem:[#allocation3 + $0x2b0] sm:$0xff] %v7053
      %7142 = vst [vmem:[#allocation3 + $0x2d8] sm:$0xff] %v7055
      %7143 = vst [vmem:[#allocation3 + $0x300] sm:$0xff] %v7057
      %7144 = vst [vmem:[#allocation3 + $0x328] sm:$0xff] %v7059
      %7145 = vst [vmem:[#allocation3 + $0x350] sm:$0xff] %v7061
      %7146 = vst [vmem:[#allocation3 + $0x378] sm:$0xff] %v7063
      %7147 = vst [vmem:[#allocation3 + $0x3a0] sm:$0xff] %v7065
      %7148 = vst [vmem:[#allocation3 + $0x3c8] sm:$0xff] %v7067
      %7149 = vst [vmem:[#allocation3 + $0x3f0] sm:$0xff] %v7069
      %7150 = vst [vmem:[#allocation3 + $0x418] sm:$0xff] %v7071
      %7151 = vst [vmem:[#allocation3 + $0x440] sm:$0xff] %v7073
      %7152 = vst [vmem:[#allocation3 + $0x468] sm:$0xff] %v7075
      %7153 = vst [vmem:[#allocation3 + $0x490] sm:$0xff] %v7077
      %7154 = vst [vmem:[#allocation3 + $0x4b8] sm:$0xff] %v7079
      %7155 = vst [vmem:[#allocation3 + $0x4e0] sm:$0xff] %v7081
      %7156 = vst [vmem:[#allocation3 + $0x508] sm:$0xff] %v7083
      %7157 = vst [vmem:[#allocation3 + $0x530] sm:$0xff] %v7085
      %7158 = vst [vmem:[#allocation3 + $0x558] sm:$0xff] %v7087
      %7159 = vst [vmem:[#allocation3 + $0x580] sm:$0x7f] %v7086
      %vm7160 = vcmask 1045504
      %v7161 = vrot.slane %v6913, 2
      %v7162 = vrot.slane %v6914, 2
      %v7163 = vsel %vm7160, %v7161, %v7162
      %v7164 = vrot.slane %v6915, 2
      %v7165 = vsel %vm7160, %v7162, %v7164
      %v7166 = vrot.slane %v6916, 2
      %v7167 = vsel %vm7160, %v7164, %v7166
      %v7168 = vrot.slane %v6917, 2
      %v7169 = vsel %vm7160, %v7166, %v7168
      %v7170 = vrot.slane %v6918, 2
      %v7171 = vsel %vm7160, %v7168, %v7170
      %v7172 = vrot.slane %v6919, 2
      %v7173 = vsel %vm7160, %v7170, %v7172
      %v7174 = vrot.slane %v6920, 2
      %v7175 = vsel %vm7160, %v7172, %v7174
      %v7176 = vrot.slane %v6921, 2
      %v7177 = vsel %vm7160, %v7174, %v7176
      %v7178 = vrot.slane %v6922, 2
      %v7179 = vsel %vm7160, %v7176, %v7178
      %v7180 = vrot.slane %v6923, 2
      %v7181 = vsel %vm7160, %v7178, %v7180
      %v7182 = vrot.slane %v6924, 2
      %v7183 = vsel %vm7160, %v7180, %v7182
      %v7184 = vrot.slane %v6925, 2
      %v7185 = vsel %vm7160, %v7182, %v7184
      %v7186 = vrot.slane %v6926, 2
      %v7187 = vsel %vm7160, %v7184, %v7186
      %v7188 = vrot.slane %v6927, 2
      %v7189 = vsel %vm7160, %v7186, %v7188
      %v7190 = vrot.slane %v6928, 2
      %v7191 = vsel %vm7160, %v7188, %v7190
      %v7192 = vrot.slane %v6929, 2
      %v7193 = vsel %vm7160, %v7190, %v7192
      %v7194 = vrot.slane %v6930, 2
      %v7195 = vsel %vm7160, %v7192, %v7194
      %v7196 = vrot.slane %v6931, 2
      %v7197 = vsel %vm7160, %v7194, %v7196
      %v7198 = vrot.slane %v6932, 2
      %v7199 = vsel %vm7160, %v7196, %v7198
      %v7200 = vrot.slane %v6933, 2
      %v7201 = vsel %vm7160, %v7198, %v7200
      %v7202 = vrot.slane %v6934, 2
      %v7203 = vsel %vm7160, %v7200, %v7202
      %v7204 = vrot.slane %v6935, 2
      %v7205 = vsel %vm7160, %v7202, %v7204
      %v7206 = vrot.slane %v6936, 2
      %v7207 = vsel %vm7160, %v7204, %v7206
      %v7208 = vrot.slane %v6937, 2
      %v7209 = vsel %vm7160, %v7206, %v7208
      %v7210 = vrot.slane %v6938, 2
      %v7211 = vsel %vm7160, %v7208, %v7210
      %v7212 = vrot.slane %v6939, 2
      %v7213 = vsel %vm7160, %v7210, %v7212
      %v7214 = vrot.slane %v6940, 2
      %v7215 = vsel %vm7160, %v7212, %v7214
      %v7216 = vrot.slane %v6941, 2
      %v7217 = vsel %vm7160, %v7214, %v7216
      %v7218 = vrot.slane %v6942, 2
      %v7219 = vsel %vm7160, %v7216, %v7218
      %v7220 = vrot.slane %v6943, 2
      %v7221 = vsel %vm7160, %v7218, %v7220
      %v7222 = vrot.slane %v6944, 2
      %v7223 = vsel %vm7160, %v7220, %v7222
      %v7224 = vrot.slane %v6945, 2
      %v7225 = vsel %vm7160, %v7222, %v7224
      %v7226 = vrot.slane %v6946, 2
      %v7227 = vsel %vm7160, %v7224, %v7226
      %v7228 = vrot.slane %v6947, 2
      %v7229 = vsel %vm7160, %v7226, %v7228
      %7266 = vst [vmem:[#allocation3 + $0x10] sm:$0xc0] %v7161
      %7267 = vst [vmem:[#allocation3 + $0x38] sm:$0xff] %v7163
      %7268 = vst [vmem:[#allocation3 + $0x60] sm:$0xff] %v7165
      %7269 = vst [vmem:[#allocation3 + $0x88] sm:$0xff] %v7167
      %7270 = vst [vmem:[#allocation3 + $0xb0] sm:$0xff] %v7169
      %7271 = vst [vmem:[#allocation3 + $0xd8] sm:$0xff] %v7171
      %7272 = vst [vmem:[#allocation3 + $0x100] sm:$0xff] %v7173
      %7273 = vst [vmem:[#allocation3 + $0x128] sm:$0xff] %v7175
      %7274 = vst [vmem:[#allocation3 + $0x150] sm:$0xff] %v7177
      %7275 = vst [vmem:[#allocation3 + $0x178] sm:$0xff] %v7179
      %7276 = vst [vmem:[#allocation3 + $0x1a0] sm:$0xff] %v7181
      %7277 = vst [vmem:[#allocation3 + $0x1c8] sm:$0xff] %v7183
      %7278 = vst [vmem:[#allocation3 + $0x1f0] sm:$0xff] %v7185
      %7279 = vst [vmem:[#allocation3 + $0x218] sm:$0xff] %v7187
      %7280 = vst [vmem:[#allocation3 + $0x240] sm:$0xff] %v7189
      %7281 = vst [vmem:[#allocation3 + $0x268] sm:$0xff] %v7191
      %7282 = vst [vmem:[#allocation3 + $0x290] sm:$0xff] %v7193
      %7283 = vst [vmem:[#allocation3 + $0x2b8] sm:$0xff] %v7195
      %7284 = vst [vmem:[#allocation3 + $0x2e0] sm:$0xff] %v7197
      %7285 = vst [vmem:[#allocation3 + $0x308] sm:$0xff] %v7199
      %7286 = vst [vmem:[#allocation3 + $0x330] sm:$0xff] %v7201
      %7287 = vst [vmem:[#allocation3 + $0x358] sm:$0xff] %v7203
      %7288 = vst [vmem:[#allocation3 + $0x380] sm:$0xff] %v7205
      %7289 = vst [vmem:[#allocation3 + $0x3a8] sm:$0xff] %v7207
      %7290 = vst [vmem:[#allocation3 + $0x3d0] sm:$0xff] %v7209
      %7291 = vst [vmem:[#allocation3 + $0x3f8] sm:$0xff] %v7211
      %7292 = vst [vmem:[#allocation3 + $0x420] sm:$0xff] %v7213
      %7293 = vst [vmem:[#allocation3 + $0x448] sm:$0xff] %v7215
      %7294 = vst [vmem:[#allocation3 + $0x470] sm:$0xff] %v7217
      %7295 = vst [vmem:[#allocation3 + $0x498] sm:$0xff] %v7219
      %7296 = vst [vmem:[#allocation3 + $0x4c0] sm:$0xff] %v7221
      %7297 = vst [vmem:[#allocation3 + $0x4e8] sm:$0xff] %v7223
      %7298 = vst [vmem:[#allocation3 + $0x510] sm:$0xff] %v7225
      %7299 = vst [vmem:[#allocation3 + $0x538] sm:$0xff] %v7227
      %7300 = vst [vmem:[#allocation3 + $0x560] sm:$0xff] %v7229
      %7301 = vst [vmem:[#allocation3 + $0x588] sm:$0x3f] %v7228
      %vm7302 = vcmask 1044480
      %v7303 = vrot.slane %v6913, 3
      %v7304 = vrot.slane %v6914, 3
      %v7305 = vsel %vm7302, %v7303, %v7304
      %v7306 = vrot.slane %v6915, 3
      %v7307 = vsel %vm7302, %v7304, %v7306
      %v7308 = vrot.slane %v6916, 3
      %v7309 = vsel %vm7302, %v7306, %v7308
      %v7310 = vrot.slane %v6917, 3
      %v7311 = vsel %vm7302, %v7308, %v7310
      %v7312 = vrot.slane %v6918, 3
      %v7313 = vsel %vm7302, %v7310, %v7312
      %v7314 = vrot.slane %v6919, 3
      %v7315 = vsel %vm7302, %v7312, %v7314
      %v7316 = vrot.slane %v6920, 3
      %v7317 = vsel %vm7302, %v7314, %v7316
      %v7318 = vrot.slane %v6921, 3
      %v7319 = vsel %vm7302, %v7316, %v7318
      %v7320 = vrot.slane %v6922, 3
      %v7321 = vsel %vm7302, %v7318, %v7320
      %v7322 = vrot.slane %v6923, 3
      %v7323 = vsel %vm7302, %v7320, %v7322
      %v7324 = vrot.slane %v6924, 3
      %v7325 = vsel %vm7302, %v7322, %v7324
      %v7326 = vrot.slane %v6925, 3
      %v7327 = vsel %vm7302, %v7324, %v7326
      %v7328 = vrot.slane %v6926, 3
      %v7329 = vsel %vm7302, %v7326, %v7328
      %v7330 = vrot.slane %v6927, 3
      %v7331 = vsel %vm7302, %v7328, %v7330
      %v7332 = vrot.slane %v6928, 3
      %v7333 = vsel %vm7302, %v7330, %v7332
      %v7334 = vrot.slane %v6929, 3
      %v7335 = vsel %vm7302, %v7332, %v7334
      %v7336 = vrot.slane %v6930, 3
      %v7337 = vsel %vm7302, %v7334, %v7336
      %v7338 = vrot.slane %v6931, 3
      %v7339 = vsel %vm7302, %v7336, %v7338
      %v7340 = vrot.slane %v6932, 3
      %v7341 = vsel %vm7302, %v7338, %v7340
      %v7342 = vrot.slane %v6933, 3
      %v7343 = vsel %vm7302, %v7340, %v7342
      %v7344 = vrot.slane %v6934, 3
      %v7345 = vsel %vm7302, %v7342, %v7344
      %v7346 = vrot.slane %v6935, 3
      %v7347 = vsel %vm7302, %v7344, %v7346
      %v7348 = vrot.slane %v6936, 3
      %v7349 = vsel %vm7302, %v7346, %v7348
      %v7350 = vrot.slane %v6937, 3
      %v7351 = vsel %vm7302, %v7348, %v7350
      %v7352 = vrot.slane %v6938, 3
      %v7353 = vsel %vm7302, %v7350, %v7352
      %v7354 = vrot.slane %v6939, 3
      %v7355 = vsel %vm7302, %v7352, %v7354
      %v7356 = vrot.slane %v6940, 3
      %v7357 = vsel %vm7302, %v7354, %v7356
      %v7358 = vrot.slane %v6941, 3
      %v7359 = vsel %vm7302, %v7356, %v7358
      %v7360 = vrot.slane %v6942, 3
      %v7361 = vsel %vm7302, %v7358, %v7360
      %v7362 = vrot.slane %v6943, 3
      %v7363 = vsel %vm7302, %v7360, %v7362
      %v7364 = vrot.slane %v6944, 3
      %v7365 = vsel %vm7302, %v7362, %v7364
      %v7366 = vrot.slane %v6945, 3
      %v7367 = vsel %vm7302, %v7364, %v7366
      %v7368 = vrot.slane %v6946, 3
      %v7369 = vsel %vm7302, %v7366, %v7368
      %v7370 = vrot.slane %v6947, 3
      %v7371 = vsel %vm7302, %v7368, %v7370
      %7408 = vst [vmem:[#allocation3 + $0x18] sm:$0xe0] %v7303
      %7409 = vst [vmem:[#allocation3 + $0x40] sm:$0xff] %v7305
      %7410 = vst [vmem:[#allocation3 + $0x68] sm:$0xff] %v7307
      %7411 = vst [vmem:[#allocation3 + $0x90] sm:$0xff] %v7309
      %7412 = vst [vmem:[#allocation3 + $0xb8] sm:$0xff] %v7311
      %7413 = vst [vmem:[#allocation3 + $0xe0] sm:$0xff] %v7313
      %7414 = vst [vmem:[#allocation3 + $0x108] sm:$0xff] %v7315
      %7415 = vst [vmem:[#allocation3 + $0x130] sm:$0xff] %v7317
      %7416 = vst [vmem:[#allocation3 + $0x158] sm:$0xff] %v7319
      %7417 = vst [vmem:[#allocation3 + $0x180] sm:$0xff] %v7321
      %7418 = vst [vmem:[#allocation3 + $0x1a8] sm:$0xff] %v7323
      %7419 = vst [vmem:[#allocation3 + $0x1d0] sm:$0xff] %v7325
      %7420 = vst [vmem:[#allocation3 + $0x1f8] sm:$0xff] %v7327
      %7421 = vst [vmem:[#allocation3 + $0x220] sm:$0xff] %v7329
      %7422 = vst [vmem:[#allocation3 + $0x248] sm:$0xff] %v7331
      %7423 = vst [vmem:[#allocation3 + $0x270] sm:$0xff] %v7333
      %7424 = vst [vmem:[#allocation3 + $0x298] sm:$0xff] %v7335
      %7425 = vst [vmem:[#allocation3 + $0x2c0] sm:$0xff] %v7337
      %7426 = vst [vmem:[#allocation3 + $0x2e8] sm:$0xff] %v7339
      %7427 = vst [vmem:[#allocation3 + $0x310] sm:$0xff] %v7341
      %7428 = vst [vmem:[#allocation3 + $0x338] sm:$0xff] %v7343
      %7429 = vst [vmem:[#allocation3 + $0x360] sm:$0xff] %v7345
      %7430 = vst [vmem:[#allocation3 + $0x388] sm:$0xff] %v7347
      %7431 = vst [vmem:[#allocation3 + $0x3b0] sm:$0xff] %v7349
      %7432 = vst [vmem:[#allocation3 + $0x3d8] sm:$0xff] %v7351
      %7433 = vst [vmem:[#allocation3 + $0x400] sm:$0xff] %v7353
      %7434 = vst [vmem:[#allocation3 + $0x428] sm:$0xff] %v7355
      %7435 = vst [vmem:[#allocation3 + $0x450] sm:$0xff] %v7357
      %7436 = vst [vmem:[#allocation3 + $0x478] sm:$0xff] %v7359
      %7437 = vst [vmem:[#allocation3 + $0x4a0] sm:$0xff] %v7361
      %7438 = vst [vmem:[#allocation3 + $0x4c8] sm:$0xff] %v7363
      %7439 = vst [vmem:[#allocation3 + $0x4f0] sm:$0xff] %v7365
      %7440 = vst [vmem:[#allocation3 + $0x518] sm:$0xff] %v7367
      %7441 = vst [vmem:[#allocation3 + $0x540] sm:$0xff] %v7369
      %7442 = vst [vmem:[#allocation3 + $0x568] sm:$0xff] %v7371
      %7443 = vst [vmem:[#allocation3 + $0x590] sm:$0x1f] %v7370
      %vm7444 = vcmask 1043456
      %v7445 = vrot.slane %v6913, 4
      %v7446 = vrot.slane %v6914, 4
      %v7447 = vsel %vm7444, %v7445, %v7446
      %v7448 = vrot.slane %v6915, 4
      %v7449 = vsel %vm7444, %v7446, %v7448
      %v7450 = vrot.slane %v6916, 4
      %v7451 = vsel %vm7444, %v7448, %v7450
      %v7452 = vrot.slane %v6917, 4
      %v7453 = vsel %vm7444, %v7450, %v7452
      %v7454 = vrot.slane %v6918, 4
      %v7455 = vsel %vm7444, %v7452, %v7454
      %v7456 = vrot.slane %v6919, 4
      %v7457 = vsel %vm7444, %v7454, %v7456
      %v7458 = vrot.slane %v6920, 4
      %v7459 = vsel %vm7444, %v7456, %v7458
      %v7460 = vrot.slane %v6921, 4
      %v7461 = vsel %vm7444, %v7458, %v7460
      %v7462 = vrot.slane %v6922, 4
      %v7463 = vsel %vm7444, %v7460, %v7462
      %v7464 = vrot.slane %v6923, 4
      %v7465 = vsel %vm7444, %v7462, %v7464
      %v7466 = vrot.slane %v6924, 4
      %v7467 = vsel %vm7444, %v7464, %v7466
      %v7468 = vrot.slane %v6925, 4
      %v7469 = vsel %vm7444, %v7466, %v7468
      %v7470 = vrot.slane %v6926, 4
      %v7471 = vsel %vm7444, %v7468, %v7470
      %v7472 = vrot.slane %v6927, 4
      %v7473 = vsel %vm7444, %v7470, %v7472
      %v7474 = vrot.slane %v6928, 4
      %v7475 = vsel %vm7444, %v7472, %v7474
      %v7476 = vrot.slane %v6929, 4
      %v7477 = vsel %vm7444, %v7474, %v7476
      %v7478 = vrot.slane %v6930, 4
      %v7479 = vsel %vm7444, %v7476, %v7478
      %v7480 = vrot.slane %v6931, 4
      %v7481 = vsel %vm7444, %v7478, %v7480
      %v7482 = vrot.slane %v6932, 4
      %v7483 = vsel %vm7444, %v7480, %v7482
      %v7484 = vrot.slane %v6933, 4
      %v7485 = vsel %vm7444, %v7482, %v7484
      %v7486 = vrot.slane %v6934, 4
      %v7487 = vsel %vm7444, %v7484, %v7486
      %v7488 = vrot.slane %v6935, 4
      %v7489 = vsel %vm7444, %v7486, %v7488
      %v7490 = vrot.slane %v6936, 4
      %v7491 = vsel %vm7444, %v7488, %v7490
      %v7492 = vrot.slane %v6937, 4
      %v7493 = vsel %vm7444, %v7490, %v7492
      %v7494 = vrot.slane %v6938, 4
      %v7495 = vsel %vm7444, %v7492, %v7494
      %v7496 = vrot.slane %v6939, 4
      %v7497 = vsel %vm7444, %v7494, %v7496
      %v7498 = vrot.slane %v6940, 4
      %v7499 = vsel %vm7444, %v7496, %v7498
      %v7500 = vrot.slane %v6941, 4
      %v7501 = vsel %vm7444, %v7498, %v7500
      %v7502 = vrot.slane %v6942, 4
      %v7503 = vsel %vm7444, %v7500, %v7502
      %v7504 = vrot.slane %v6943, 4
      %v7505 = vsel %vm7444, %v7502, %v7504
      %v7506 = vrot.slane %v6944, 4
      %v7507 = vsel %vm7444, %v7504, %v7506
      %v7508 = vrot.slane %v6945, 4
      %v7509 = vsel %vm7444, %v7506, %v7508
      %v7510 = vrot.slane %v6946, 4
      %v7511 = vsel %vm7444, %v7508, %v7510
      %v7512 = vrot.slane %v6947, 4
      %v7513 = vsel %vm7444, %v7510, %v7512
      %7550 = vst [vmem:[#allocation3 + $0x20] sm:$0xf0] %v7445
      %7551 = vst [vmem:[#allocation3 + $0x48] sm:$0xff] %v7447
      %7552 = vst [vmem:[#allocation3 + $0x70] sm:$0xff] %v7449
      %7553 = vst [vmem:[#allocation3 + $0x98] sm:$0xff] %v7451
      %7554 = vst [vmem:[#allocation3 + $0xc0] sm:$0xff] %v7453
      %7555 = vst [vmem:[#allocation3 + $0xe8] sm:$0xff] %v7455
      %7556 = vst [vmem:[#allocation3 + $0x110] sm:$0xff] %v7457
      %7557 = vst [vmem:[#allocation3 + $0x138] sm:$0xff] %v7459
      %7558 = vst [vmem:[#allocation3 + $0x160] sm:$0xff] %v7461
      %7559 = vst [vmem:[#allocation3 + $0x188] sm:$0xff] %v7463
      %7560 = vst [vmem:[#allocation3 + $0x1b0] sm:$0xff] %v7465
      %7561 = vst [vmem:[#allocation3 + $0x1d8] sm:$0xff] %v7467
      %7562 = vst [vmem:[#allocation3 + $0x200] sm:$0xff] %v7469
      %7563 = vst [vmem:[#allocation3 + $0x228] sm:$0xff] %v7471
      %7564 = vst [vmem:[#allocation3 + $0x250] sm:$0xff] %v7473
      %7565 = vst [vmem:[#allocation3 + $0x278] sm:$0xff] %v7475
      %7566 = vst [vmem:[#allocation3 + $0x2a0] sm:$0xff] %v7477
      %7567 = vst [vmem:[#allocation3 + $0x2c8] sm:$0xff] %v7479
      %7568 = vst [vmem:[#allocation3 + $0x2f0] sm:$0xff] %v7481
      %7569 = vst [vmem:[#allocation3 + $0x318] sm:$0xff] %v7483
      %7570 = vst [vmem:[#allocation3 + $0x340] sm:$0xff] %v7485
      %7571 = vst [vmem:[#allocation3 + $0x368] sm:$0xff] %v7487
      %7572 = vst [vmem:[#allocation3 + $0x390] sm:$0xff] %v7489
      %7573 = vst [vmem:[#allocation3 + $0x3b8] sm:$0xff] %v7491
      %7574 = vst [vmem:[#allocation3 + $0x3e0] sm:$0xff] %v7493
      %7575 = vst [vmem:[#allocation3 + $0x408] sm:$0xff] %v7495
      %7576 = vst [vmem:[#allocation3 + $0x430] sm:$0xff] %v7497
      %7577 = vst [vmem:[#allocation3 + $0x458] sm:$0xff] %v7499
      %7578 = vst [vmem:[#allocation3 + $0x480] sm:$0xff] %v7501
      %7579 = vst [vmem:[#allocation3 + $0x4a8] sm:$0xff] %v7503
      %7580 = vst [vmem:[#allocation3 + $0x4d0] sm:$0xff] %v7505
      %7581 = vst [vmem:[#allocation3 + $0x4f8] sm:$0xff] %v7507
      %7582 = vst [vmem:[#allocation3 + $0x520] sm:$0xff] %v7509
      %7583 = vst [vmem:[#allocation3 + $0x548] sm:$0xff] %v7511
      %7584 = vst [vmem:[#allocation3 + $0x570] sm:$0xff] %v7513
      %7585 = vst [vmem:[#allocation3 + $0x598] sm:$0xf] %v7512
      %v7586 = vld [vmem:[#allocation3 + $0x28] sm:$0xff]
      %v7587 = vld [vmem:[#allocation3 + $0x30] sm:$0xff]
      %v7588 = vld [vmem:[#allocation3 + $0x38] sm:$0xff]
      %v7589 = vld [vmem:[#allocation3 + $0x40] sm:$0xff]
      %v7590 = vld [vmem:[#allocation3 + $0x48] sm:$0xff]
      %v7591 = vld [vmem:[#allocation3 + $0x50] sm:$0xff]
      %v7592 = vld [vmem:[#allocation3 + $0x58] sm:$0xff]
      %v7593 = vld [vmem:[#allocation3 + $0x60] sm:$0xff]
      %v7594 = vld [vmem:[#allocation3 + $0x68] sm:$0xff]
      %v7595 = vld [vmem:[#allocation3 + $0x70] sm:$0xff]
      %v7596 = vld [vmem:[#allocation3 + $0x78] sm:$0xff]
      %v7597 = vld [vmem:[#allocation3 + $0x80] sm:$0xff]
      %v7598 = vld [vmem:[#allocation3 + $0x88] sm:$0xff]
      %v7599 = vld [vmem:[#allocation3 + $0x90] sm:$0xff]
      %v7600 = vld [vmem:[#allocation3 + $0x98] sm:$0xff]
      %v7601 = vld [vmem:[#allocation3 + $0xa0] sm:$0xff]
      %v7602 = vld [vmem:[#allocation3 + $0xa8] sm:$0xff]
      %v7603 = vld [vmem:[#allocation3 + $0xb0] sm:$0xff]
      %v7604 = vld [vmem:[#allocation3 + $0xb8] sm:$0xff]
      %v7605 = vld [vmem:[#allocation3 + $0xc0] sm:$0xff]
      %v7606 = vld [vmem:[#allocation3 + $0xc8] sm:$0xff]
      %v7607 = vld [vmem:[#allocation3 + $0xd0] sm:$0xff]
      %v7608 = vld [vmem:[#allocation3 + $0xd8] sm:$0xff]
      %v7609 = vld [vmem:[#allocation3 + $0xe0] sm:$0xff]
      %v7610 = vld [vmem:[#allocation3 + $0xe8] sm:$0xff]
      %v7611 = vld [vmem:[#allocation3 + $0xf0] sm:$0xff]
      %v7612 = vld [vmem:[#allocation3 + $0xf8] sm:$0xff]
      %v7613 = vld [vmem:[#allocation3 + $0x100] sm:$0xff]
      %v7614 = vld [vmem:[#allocation3 + $0x108] sm:$0xff]
      %v7615 = vld [vmem:[#allocation3 + $0x110] sm:$0xff]
      %v7616 = vld [vmem:[#allocation3 + $0x118] sm:$0xff]
      %v7617 = vld [vmem:[#allocation3 + $0x120] sm:$0xff]
      %v7618 = vld [vmem:[#allocation3 + $0x128] sm:$0xff]
      %v7619 = vld [vmem:[#allocation3 + $0x130] sm:$0xff]
      %v7620 = vld [vmem:[#allocation3 + $0x138] sm:$0xff]
      %v7621 = vld [vmem:[#allocation3 + $0x140] sm:$0xff]
      %v7622 = vld [vmem:[#allocation3 + $0x148] sm:$0xff]
      %v7623 = vld [vmem:[#allocation3 + $0x150] sm:$0xff]
      %v7624 = vld [vmem:[#allocation3 + $0x158] sm:$0xff]
      %v7625 = vld [vmem:[#allocation3 + $0x160] sm:$0xff]
      %v7626 = vld [vmem:[#allocation3 + $0x168] sm:$0xff]
      %v7627 = vld [vmem:[#allocation3 + $0x170] sm:$0xff]
      %v7628 = vld [vmem:[#allocation3 + $0x178] sm:$0xff]
      %v7629 = vld [vmem:[#allocation3 + $0x180] sm:$0xff]
      %v7630 = vld [vmem:[#allocation3 + $0x188] sm:$0xff]
      %v7631 = vld [vmem:[#allocation3 + $0x190] sm:$0xff]
      %v7632 = vld [vmem:[#allocation3 + $0x198] sm:$0xff]
      %v7633 = vld [vmem:[#allocation3 + $0x1a0] sm:$0xff]
      %v7634 = vld [vmem:[#allocation3 + $0x1a8] sm:$0xff]
      %v7635 = vld [vmem:[#allocation3 + $0x1b0] sm:$0xff]
      %v7636 = vld [vmem:[#allocation3 + $0x1b8] sm:$0xff]
      %v7637 = vld [vmem:[#allocation3 + $0x1c0] sm:$0xff]
      %v7638 = vld [vmem:[#allocation3 + $0x1c8] sm:$0xff]
      %v7639 = vld [vmem:[#allocation3 + $0x1d0] sm:$0xff]
      %v7640 = vld [vmem:[#allocation3 + $0x1d8] sm:$0xff]
      %v7641 = vld [vmem:[#allocation3 + $0x1e0] sm:$0xff]
      %v7642 = vld [vmem:[#allocation3 + $0x1e8] sm:$0xff]
      %v7643 = vld [vmem:[#allocation3 + $0x1f0] sm:$0xff]
      %v7644 = vld [vmem:[#allocation3 + $0x1f8] sm:$0xff]
      %v7645 = vld [vmem:[#allocation3 + $0x200] sm:$0xff]
      %v7646 = vld [vmem:[#allocation3 + $0x208] sm:$0xff]
      %v7647 = vld [vmem:[#allocation3 + $0x210] sm:$0xff]
      %v7648 = vld [vmem:[#allocation3 + $0x218] sm:$0xff]
      %v7649 = vld [vmem:[#allocation3 + $0x220] sm:$0xff]
      %v7650 = vld [vmem:[#allocation3 + $0x228] sm:$0xff]
      %v7651 = vld [vmem:[#allocation3 + $0x230] sm:$0xff]
      %v7652 = vld [vmem:[#allocation3 + $0x238] sm:$0xff]
      %v7653 = vld [vmem:[#allocation3 + $0x240] sm:$0xff]
      %v7654 = vld [vmem:[#allocation3 + $0x248] sm:$0xff]
      %v7655 = vld [vmem:[#allocation3 + $0x250] sm:$0xff]
      %v7656 = vld [vmem:[#allocation3 + $0x258] sm:$0xff]
      %v7657 = vld [vmem:[#allocation3 + $0x260] sm:$0xff]
      %v7658 = vld [vmem:[#allocation3 + $0x268] sm:$0xff]
      %v7659 = vld [vmem:[#allocation3 + $0x270] sm:$0xff]
      %v7660 = vld [vmem:[#allocation3 + $0x278] sm:$0xff]
      %v7661 = vld [vmem:[#allocation3 + $0x280] sm:$0xff]
      %v7662 = vld [vmem:[#allocation3 + $0x288] sm:$0xff]
      %v7663 = vld [vmem:[#allocation3 + $0x290] sm:$0xff]
      %v7664 = vld [vmem:[#allocation3 + $0x298] sm:$0xff]
      %v7665 = vld [vmem:[#allocation3 + $0x2a0] sm:$0xff]
      %v7666 = vld [vmem:[#allocation3 + $0x2a8] sm:$0xff]
      %v7667 = vld [vmem:[#allocation3 + $0x2b0] sm:$0xff]
      %v7668 = vld [vmem:[#allocation3 + $0x2b8] sm:$0xff]
      %v7669 = vld [vmem:[#allocation3 + $0x2c0] sm:$0xff]
      %v7670 = vld [vmem:[#allocation3 + $0x2c8] sm:$0xff]
      %v7671 = vld [vmem:[#allocation3 + $0x2d0] sm:$0xff]
      %v7672 = vld [vmem:[#allocation3 + $0x2d8] sm:$0xff]
      %v7673 = vld [vmem:[#allocation3 + $0x2e0] sm:$0xff]
      %v7674 = vld [vmem:[#allocation3 + $0x2e8] sm:$0xff]
      %v7675 = vld [vmem:[#allocation3 + $0x2f0] sm:$0xff]
      %v7676 = vld [vmem:[#allocation3 + $0x2f8] sm:$0xff]
      %v7677 = vld [vmem:[#allocation3 + $0x300] sm:$0xff]
      %v7678 = vld [vmem:[#allocation3 + $0x308] sm:$0xff]
      %v7679 = vld [vmem:[#allocation3 + $0x310] sm:$0xff]
      %v7680 = vld [vmem:[#allocation3 + $0x318] sm:$0xff]
      %v7681 = vld [vmem:[#allocation3 + $0x320] sm:$0xff]
      %v7682 = vld [vmem:[#allocation3 + $0x328] sm:$0xff]
      %v7683 = vld [vmem:[#allocation3 + $0x330] sm:$0xff]
      %v7684 = vld [vmem:[#allocation3 + $0x338] sm:$0xff]
      %v7685 = vld [vmem:[#allocation3 + $0x340] sm:$0xff]
      %v7686 = vld [vmem:[#allocation3 + $0x348] sm:$0xff]
      %v7687 = vld [vmem:[#allocation3 + $0x350] sm:$0xff]
      %v7688 = vld [vmem:[#allocation3 + $0x358] sm:$0xff]
      %v7689 = vld [vmem:[#allocation3 + $0x360] sm:$0xff]
      %v7690 = vld [vmem:[#allocation3 + $0x368] sm:$0xff]
      %v7691 = vld [vmem:[#allocation3 + $0x370] sm:$0xff]
      %v7692 = vld [vmem:[#allocation3 + $0x378] sm:$0xff]
      %v7693 = vld [vmem:[#allocation3 + $0x380] sm:$0xff]
      %v7694 = vld [vmem:[#allocation3 + $0x388] sm:$0xff]
      %v7695 = vld [vmem:[#allocation3 + $0x390] sm:$0xff]
      %v7696 = vld [vmem:[#allocation3 + $0x398] sm:$0xff]
      %v7697 = vld [vmem:[#allocation3 + $0x3a0] sm:$0xff]
      %v7698 = vld [vmem:[#allocation3 + $0x3a8] sm:$0xff]
      %v7699 = vld [vmem:[#allocation3 + $0x3b0] sm:$0xff]
      %v7700 = vld [vmem:[#allocation3 + $0x3b8] sm:$0xff]
      %v7701 = vld [vmem:[#allocation3 + $0x3c0] sm:$0xff]
      %v7702 = vld [vmem:[#allocation3 + $0x3c8] sm:$0xff]
      %v7703 = vld [vmem:[#allocation3 + $0x3d0] sm:$0xff]
      %v7704 = vld [vmem:[#allocation3 + $0x3d8] sm:$0xff]
      %v7705 = vld [vmem:[#allocation3 + $0x3e0] sm:$0xff]
      %v7706 = vld [vmem:[#allocation3 + $0x3e8] sm:$0xff]
      %v7707 = vld [vmem:[#allocation3 + $0x3f0] sm:$0xff]
      %v7708 = vld [vmem:[#allocation3 + $0x3f8] sm:$0xff]
      %v7709 = vld [vmem:[#allocation3 + $0x400] sm:$0xff]
      %v7710 = vld [vmem:[#allocation3 + $0x408] sm:$0xff]
      %v7711 = vld [vmem:[#allocation3 + $0x410] sm:$0xff]
      %v7712 = vld [vmem:[#allocation3 + $0x418] sm:$0xff]
      %v7713 = vld [vmem:[#allocation3 + $0x420] sm:$0xff]
      %v7714 = vld [vmem:[#allocation3 + $0x428] sm:$0xff]
      %v7715 = vld [vmem:[#allocation3 + $0x430] sm:$0xff]
      %v7716 = vld [vmem:[#allocation3 + $0x438] sm:$0xff]
      %v7717 = vld [vmem:[#allocation3 + $0x440] sm:$0xff]
      %v7718 = vld [vmem:[#allocation3 + $0x448] sm:$0xff]
      %v7719 = vld [vmem:[#allocation3 + $0x450] sm:$0xff]
      %v7720 = vld [vmem:[#allocation3 + $0x458] sm:$0xff]
      %v7721 = vld [vmem:[#allocation3 + $0x460] sm:$0xff]
      %v7722 = vld [vmem:[#allocation3 + $0x468] sm:$0xff]
      %v7723 = vld [vmem:[#allocation3 + $0x470] sm:$0xff]
      %v7724 = vld [vmem:[#allocation3 + $0x478] sm:$0xff]
      %v7725 = vld [vmem:[#allocation3 + $0x480] sm:$0xff]
      %v7726 = vld [vmem:[#allocation3 + $0x488] sm:$0xff]
      %v7727 = vld [vmem:[#allocation3 + $0x490] sm:$0xff]
      %v7728 = vld [vmem:[#allocation3 + $0x498] sm:$0xff]
      %v7729 = vld [vmem:[#allocation3 + $0x4a0] sm:$0xff]
      %v7730 = vld [vmem:[#allocation3 + $0x4a8] sm:$0xff]
      %v7731 = vld [vmem:[#allocation3 + $0x4b0] sm:$0xff]
      %v7732 = vld [vmem:[#allocation3 + $0x4b8] sm:$0xff]
      %v7733 = vld [vmem:[#allocation3 + $0x4c0] sm:$0xff]
      %v7734 = vld [vmem:[#allocation3 + $0x4c8] sm:$0xff]
      %v7735 = vld [vmem:[#allocation3 + $0x4d0] sm:$0xff]
      %v7736 = vld [vmem:[#allocation3 + $0x4d8] sm:$0xff]
      %v7737 = vld [vmem:[#allocation3 + $0x4e0] sm:$0xff]
      %v7738 = vld [vmem:[#allocation3 + $0x4e8] sm:$0xff]
      %v7739 = vld [vmem:[#allocation3 + $0x4f0] sm:$0xff]
      %v7740 = vld [vmem:[#allocation3 + $0x4f8] sm:$0xff]
      %v7741 = vld [vmem:[#allocation3 + $0x500] sm:$0xff]
      %v7742 = vld [vmem:[#allocation3 + $0x508] sm:$0xff]
      %v7743 = vld [vmem:[#allocation3 + $0x510] sm:$0xff]
      %v7744 = vld [vmem:[#allocation3 + $0x518] sm:$0xff]
      %v7745 = vld [vmem:[#allocation3 + $0x520] sm:$0xff]
      %v7746 = vld [vmem:[#allocation3 + $0x528] sm:$0xff]
      %v7747 = vld [vmem:[#allocation3 + $0x530] sm:$0xff]
      %v7748 = vld [vmem:[#allocation3 + $0x538] sm:$0xff]
      %v7749 = vld [vmem:[#allocation3 + $0x540] sm:$0xff]
      %v7750 = vld [vmem:[#allocation3 + $0x548] sm:$0xff]
      %v7751 = vld [vmem:[#allocation3 + $0x550] sm:$0xff]
      %v7752 = vld [vmem:[#allocation3 + $0x558] sm:$0xff]
      %v7753 = vld [vmem:[#allocation3 + $0x560] sm:$0xff]
      %v7754 = vld [vmem:[#allocation3 + $0x568] sm:$0xff]
      %v7755 = vld [vmem:[#allocation3 + $0x570] sm:$0xff]
      %v7756 = vld [vmem:[#allocation3 + $0x578] sm:$0xf]
      %v7757 = vld [vmem:[#allocation3 + $0x580] sm:$0xf]
      %v7758 = vld [vmem:[#allocation3 + $0x588] sm:$0xf]
      %v7759 = vld [vmem:[#allocation3 + $0x590] sm:$0xf]
      %v7760 = vld [vmem:[#allocation3 + $0x598] sm:$0xf]
      %v7761 = vpack.c.bf16 %v7591, %v7586
      %v7762 = vpack.c.bf16 %v7592, %v7587
      %v7763 = vpack.c.bf16 %v7593, %v7588
      %v7764 = vpack.c.bf16 %v7594, %v7589
      %v7765 = vpack.c.bf16 %v7595, %v7590
      %v7766 = vpack.c.bf16 %v7601, %v7596
      %v7767 = vpack.c.bf16 %v7602, %v7597
      %v7768 = vpack.c.bf16 %v7603, %v7598
      %v7769 = vpack.c.bf16 %v7604, %v7599
      %v7770 = vpack.c.bf16 %v7605, %v7600
      %v7771 = vpack.c.bf16 %v7611, %v7606
      %v7772 = vpack.c.bf16 %v7612, %v7607
      %v7773 = vpack.c.bf16 %v7613, %v7608
      %v7774 = vpack.c.bf16 %v7614, %v7609
      %v7775 = vpack.c.bf16 %v7615, %v7610
      %v7776 = vpack.c.bf16 %v7621, %v7616
      %v7777 = vpack.c.bf16 %v7622, %v7617
      %v7778 = vpack.c.bf16 %v7623, %v7618
      %v7779 = vpack.c.bf16 %v7624, %v7619
      %v7780 = vpack.c.bf16 %v7625, %v7620
      %v7781 = vpack.c.bf16 %v7631, %v7626
      %v7782 = vpack.c.bf16 %v7632, %v7627
      %v7783 = vpack.c.bf16 %v7633, %v7628
      %v7784 = vpack.c.bf16 %v7634, %v7629
      %v7785 = vpack.c.bf16 %v7635, %v7630
      %v7786 = vpack.c.bf16 %v7641, %v7636
      %v7787 = vpack.c.bf16 %v7642, %v7637
      %v7788 = vpack.c.bf16 %v7643, %v7638
      %v7789 = vpack.c.bf16 %v7644, %v7639
      %v7790 = vpack.c.bf16 %v7645, %v7640
      %v7791 = vpack.c.bf16 %v7651, %v7646
      %v7792 = vpack.c.bf16 %v7652, %v7647
      %v7793 = vpack.c.bf16 %v7653, %v7648
      %v7794 = vpack.c.bf16 %v7654, %v7649
      %v7795 = vpack.c.bf16 %v7655, %v7650
      %v7796 = vpack.c.bf16 %v7661, %v7656
      %v7797 = vpack.c.bf16 %v7662, %v7657
      %v7798 = vpack.c.bf16 %v7663, %v7658
      %v7799 = vpack.c.bf16 %v7664, %v7659
      %v7800 = vpack.c.bf16 %v7665, %v7660
      %v7801 = vpack.c.bf16 %v7671, %v7666
      %v7802 = vpack.c.bf16 %v7672, %v7667
      %v7803 = vpack.c.bf16 %v7673, %v7668
      %v7804 = vpack.c.bf16 %v7674, %v7669
      %v7805 = vpack.c.bf16 %v7675, %v7670
      %v7806 = vpack.c.bf16 %v7681, %v7676
      %v7807 = vpack.c.bf16 %v7682, %v7677
      %v7808 = vpack.c.bf16 %v7683, %v7678
      %v7809 = vpack.c.bf16 %v7684, %v7679
      %v7810 = vpack.c.bf16 %v7685, %v7680
      %v7811 = vpack.c.bf16 %v7691, %v7686
      %v7812 = vpack.c.bf16 %v7692, %v7687
      %v7813 = vpack.c.bf16 %v7693, %v7688
      %v7814 = vpack.c.bf16 %v7694, %v7689
      %v7815 = vpack.c.bf16 %v7695, %v7690
      %v7816 = vpack.c.bf16 %v7701, %v7696
      %v7817 = vpack.c.bf16 %v7702, %v7697
      %v7818 = vpack.c.bf16 %v7703, %v7698
      %v7819 = vpack.c.bf16 %v7704, %v7699
      %v7820 = vpack.c.bf16 %v7705, %v7700
      %v7821 = vpack.c.bf16 %v7711, %v7706
      %v7822 = vpack.c.bf16 %v7712, %v7707
      %v7823 = vpack.c.bf16 %v7713, %v7708
      %v7824 = vpack.c.bf16 %v7714, %v7709
      %v7825 = vpack.c.bf16 %v7715, %v7710
      %v7826 = vpack.c.bf16 %v7721, %v7716
      %v7827 = vpack.c.bf16 %v7722, %v7717
      %v7828 = vpack.c.bf16 %v7723, %v7718
      %v7829 = vpack.c.bf16 %v7724, %v7719
      %v7830 = vpack.c.bf16 %v7725, %v7720
      %v7831 = vpack.c.bf16 %v7731, %v7726
      %v7832 = vpack.c.bf16 %v7732, %v7727
      %v7833 = vpack.c.bf16 %v7733, %v7728
      %v7834 = vpack.c.bf16 %v7734, %v7729
      %v7835 = vpack.c.bf16 %v7735, %v7730
      %v7836 = vpack.c.bf16 %v7741, %v7736
      %v7837 = vpack.c.bf16 %v7742, %v7737
      %v7838 = vpack.c.bf16 %v7743, %v7738
      %v7839 = vpack.c.bf16 %v7744, %v7739
      %v7840 = vpack.c.bf16 %v7745, %v7740
      %v7841 = vpack.c.bf16 %v7751, %v7746
      %v7842 = vpack.c.bf16 %v7752, %v7747
      %v7843 = vpack.c.bf16 %v7753, %v7748
      %v7844 = vpack.c.bf16 %v7754, %v7749
      %v7845 = vpack.c.bf16 %v7755, %v7750
      %v7846 = vpack.c.bf16 %v7756, %v7756
      %v7847 = vpack.c.bf16 %v7757, %v7757
      %v7848 = vpack.c.bf16 %v7758, %v7758
      %v7849 = vpack.c.bf16 %v7759, %v7759
      %v7850 = vpack.c.bf16 %v7760, %v7760
      %v7851 = vld [vmem:[%s3] sm:$0xf]
      %v7852 = vld [vmem:[%s3 + $0x4] sm:$0xf]
      %v7853 = vld [vmem:[%s3 + $0x8] sm:$0xf]
      %v7854 = vld [vmem:[%s3 + $0xc] sm:$0xf]
      %v7855 = vld [vmem:[%s3 + $0x10] sm:$0xf]
      %v7856 = vld [vmem:[%s3 + $0x14] sm:$0xf]
      %v7857 = vld [vmem:[%s3 + $0x18] sm:$0xf]
      %v7858 = vld [vmem:[%s3 + $0x1c] sm:$0xf]
      %v7859 = vld [vmem:[%s3 + $0x20] sm:$0xf]
      %v7860 = vld [vmem:[%s3 + $0x24] sm:$0xf]
      %v7861 = vld [vmem:[%s3 + $0x28] sm:$0xf]
      %v7862 = vld [vmem:[%s3 + $0x2c] sm:$0xf]
      %v7863 = vld [vmem:[%s3 + $0x30] sm:$0xf]
      %v7864 = vld [vmem:[%s3 + $0x34] sm:$0xf]
      %v7865 = vld [vmem:[%s3 + $0x38] sm:$0xf]
      %v7866 = vld [vmem:[%s3 + $0x3c] sm:$0xf]
      %v7867 = vld [vmem:[%s3 + $0x40] sm:$0xf]
      %v7868 = vld [vmem:[%s3 + $0x44] sm:$0xf]
      %v7869 = vld [vmem:[%s3 + $0x48] sm:$0xf]
      %v7870 = vld [vmem:[%s3 + $0x4c] sm:$0xf]
      %v7871 = vld [vmem:[%s3 + $0x50] sm:$0xf]
      %v7872 = vld [vmem:[%s3 + $0x54] sm:$0xf]
      %v7873 = vld [vmem:[%s3 + $0x58] sm:$0xf]
      %v7874 = vld [vmem:[%s3 + $0x5c] sm:$0xf]
      %v7875 = vld [vmem:[%s3 + $0x60] sm:$0xf]
      %v7876 = vld [vmem:[%s3 + $0x64] sm:$0xf]
      %v7877 = vld [vmem:[%s3 + $0x68] sm:$0xf]
      %v7878 = vld [vmem:[%s3 + $0x6c] sm:$0xf]
      %v7879 = vld [vmem:[%s3 + $0x70] sm:$0xf]
      %v7880 = vld [vmem:[%s3 + $0x74] sm:$0xf]
      %v7881 = vld [vmem:[%s3 + $0x78] sm:$0xf]
      %v7882 = vld [vmem:[%s3 + $0x7c] sm:$0xf]
      %v7883 = vld [vmem:[%s3 + $0x80] sm:$0xf]
      %v7884 = vld [vmem:[%s3 + $0x84] sm:$0xf]
      %v7885 = vld [vmem:[%s3 + $0x88] sm:$0xf]
      %v7886 = vld [vmem:[%s3 + $0x8c] sm:$0xf]
      %v7887 = vld [vmem:[%s3 + $0x90] sm:$0xf]
      %v7888 = vld [vmem:[%s3 + $0x94] sm:$0xf]
      %v7889 = vld [vmem:[%s3 + $0x98] sm:$0xf]
      %v7890 = vld [vmem:[%s3 + $0x9c] sm:$0xf]
      %v7891 = vld [vmem:[%s3 + $0xa0] sm:$0xf]
      %v7892 = vld [vmem:[%s3 + $0xa4] sm:$0xf]
      %v7893 = vld [vmem:[%s3 + $0xa8] sm:$0xf]
      %v7894 = vld [vmem:[%s3 + $0xac] sm:$0xf]
      %v7895 = vld [vmem:[%s3 + $0xb0] sm:$0xf]
      %v7896 = vld [vmem:[%s3 + $0xb4] sm:$0xf]
      %v7897 = vld [vmem:[%s3 + $0xb8] sm:$0xf]
      %v7898 = vld [vmem:[%s3 + $0xbc] sm:$0xf]
      %v7899 = vld [vmem:[%s3 + $0xc0] sm:$0xf]
      %v7900 = vld [vmem:[%s3 + $0xc4] sm:$0xf]
      %v7901 = vld [vmem:[%s3 + $0xc8] sm:$0xf]
      %v7902 = vld [vmem:[%s3 + $0xcc] sm:$0xf]
      %v7903 = vld [vmem:[%s3 + $0xd0] sm:$0xf]
      %v7904 = vld [vmem:[%s3 + $0xd4] sm:$0xf]
      %v7905 = vld [vmem:[%s3 + $0xd8] sm:$0xf]
      %v7906 = vld [vmem:[%s3 + $0xdc] sm:$0xf]
      %v7907 = vld [vmem:[%s3 + $0xe0] sm:$0xf]
      %v7908 = vld [vmem:[%s3 + $0xe4] sm:$0xf]
      %v7909 = vld [vmem:[%s3 + $0xe8] sm:$0xf]
      %v7910 = vld [vmem:[%s3 + $0xec] sm:$0xf]
      %v7911 = vld [vmem:[%s3 + $0xf0] sm:$0xf]
      %v7912 = vld [vmem:[%s3 + $0xf4] sm:$0xf]
      %v7913 = vld [vmem:[%s3 + $0xf8] sm:$0xf]
      %v7914 = vld [vmem:[%s3 + $0xfc] sm:$0xf]
      %v7915 = vld [vmem:[%s3 + $0x100] sm:$0xf]
      %v7916 = vld [vmem:[%s3 + $0x104] sm:$0xf]
      %v7917 = vld [vmem:[%s3 + $0x108] sm:$0xf]
      %v7918 = vld [vmem:[%s3 + $0x10c] sm:$0xf]
      %v7919 = vld [vmem:[%s3 + $0x110] sm:$0xf]
      %v7920 = vld [vmem:[%s3 + $0x114] sm:$0xf]
      %v7921 = vld [vmem:[%s3 + $0x118] sm:$0xf]
      %v7922 = vld [vmem:[%s3 + $0x11c] sm:$0xf]
      %v7923 = vld [vmem:[%s3 + $0x120] sm:$0xf]
      %v7924 = vld [vmem:[%s3 + $0x124] sm:$0xf]
      %v7925 = vld [vmem:[%s3 + $0x128] sm:$0xf]
      %v7926 = vld [vmem:[%s3 + $0x12c] sm:$0xf]
      %v7927 = vld [vmem:[%s3 + $0x130] sm:$0xf]
      %v7928 = vld [vmem:[%s3 + $0x134] sm:$0xf]
      %v7929 = vld [vmem:[%s3 + $0x138] sm:$0xf]
      %v7930 = vld [vmem:[%s3 + $0x13c] sm:$0xf]
      %v7931 = vld [vmem:[%s11] sm:$0x1]
      %v7933 = vperm.slane %v7931, 0
      %v8015 = vunpack.c.l.b16 %v7851
      %v8016 = vunpack.c.l.b16 %v7852
      %v8017 = vunpack.c.l.b16 %v7853
      %v8018 = vunpack.c.l.b16 %v7854
      %v8019 = vunpack.c.l.b16 %v7855
      %v8020 = vunpack.c.l.b16 %v7856
      %v8021 = vunpack.c.l.b16 %v7857
      %v8022 = vunpack.c.l.b16 %v7858
      %v8023 = vunpack.c.l.b16 %v7859
      %v8024 = vunpack.c.l.b16 %v7860
      %v8025 = vunpack.c.l.b16 %v7861
      %v8026 = vunpack.c.l.b16 %v7862
      %v8027 = vunpack.c.l.b16 %v7863
      %v8028 = vunpack.c.l.b16 %v7864
      %v8029 = vunpack.c.l.b16 %v7865
      %v8030 = vunpack.c.l.b16 %v7866
      %v8031 = vunpack.c.l.b16 %v7867
      %v8032 = vunpack.c.l.b16 %v7868
      %v8033 = vunpack.c.l.b16 %v7869
      %v8034 = vunpack.c.l.b16 %v7870
      %v8035 = vunpack.c.l.b16 %v7871
      %v8036 = vunpack.c.l.b16 %v7872
      %v8037 = vunpack.c.l.b16 %v7873
      %v8038 = vunpack.c.l.b16 %v7874
      %v8039 = vunpack.c.l.b16 %v7875
      %v8040 = vunpack.c.l.b16 %v7876
      %v8041 = vunpack.c.l.b16 %v7877
      %v8042 = vunpack.c.l.b16 %v7878
      %v8043 = vunpack.c.l.b16 %v7879
      %v8044 = vunpack.c.l.b16 %v7880
      %v8045 = vunpack.c.l.b16 %v7881
      %v8046 = vunpack.c.l.b16 %v7882
      %v8047 = vunpack.c.l.b16 %v7883
      %v8048 = vunpack.c.l.b16 %v7884
      %v8049 = vunpack.c.l.b16 %v7885
      %v8050 = vunpack.c.l.b16 %v7886
      %v8051 = vunpack.c.l.b16 %v7887
      %v8052 = vunpack.c.l.b16 %v7888
      %v8053 = vunpack.c.l.b16 %v7889
      %v8054 = vunpack.c.l.b16 %v7890
      %v8055 = vunpack.c.l.b16 %v7891
      %v8056 = vunpack.c.l.b16 %v7892
      %v8057 = vunpack.c.l.b16 %v7893
      %v8058 = vunpack.c.l.b16 %v7894
      %v8059 = vunpack.c.l.b16 %v7895
      %v8060 = vunpack.c.l.b16 %v7896
      %v8061 = vunpack.c.l.b16 %v7897
      %v8062 = vunpack.c.l.b16 %v7898
      %v8063 = vunpack.c.l.b16 %v7899
      %v8064 = vunpack.c.l.b16 %v7900
      %v8065 = vunpack.c.l.b16 %v7901
      %v8066 = vunpack.c.l.b16 %v7902
      %v8067 = vunpack.c.l.b16 %v7903
      %v8068 = vunpack.c.l.b16 %v7904
      %v8069 = vunpack.c.l.b16 %v7905
      %v8070 = vunpack.c.l.b16 %v7906
      %v8071 = vunpack.c.l.b16 %v7907
      %v8072 = vunpack.c.l.b16 %v7908
      %v8073 = vunpack.c.l.b16 %v7909
      %v8074 = vunpack.c.l.b16 %v7910
      %v8075 = vunpack.c.l.b16 %v7911
      %v8076 = vunpack.c.l.b16 %v7912
      %v8077 = vunpack.c.l.b16 %v7913
      %v8078 = vunpack.c.l.b16 %v7914
      %v8079 = vunpack.c.l.b16 %v7915
      %v8080 = vunpack.c.l.b16 %v7916
      %v8081 = vunpack.c.l.b16 %v7917
      %v8082 = vunpack.c.l.b16 %v7918
      %v8083 = vunpack.c.l.b16 %v7919
      %v8084 = vunpack.c.l.b16 %v7920
      %v8085 = vunpack.c.l.b16 %v7921
      %v8086 = vunpack.c.l.b16 %v7922
      %v8087 = vunpack.c.l.b16 %v7923
      %v8088 = vunpack.c.l.b16 %v7924
      %v8089 = vunpack.c.l.b16 %v7925
      %v8090 = vunpack.c.l.b16 %v7926
      %v8091 = vunpack.c.l.b16 %v7927
      %v8092 = vunpack.c.l.b16 %v7928
      %v8093 = vunpack.c.l.b16 %v7929
      %v8094 = vunpack.c.l.b16 %v7930
      %v8095 = vpack.c.b16 %v8016, %v8015
      %v8096 = vpack.c.b16 %v8018, %v8017
      %v8097 = vpack.c.b16 %v8020, %v8019
      %v8098 = vpack.c.b16 %v8022, %v8021
      %v8099 = vpack.c.b16 %v8024, %v8023
      %v8100 = vpack.c.b16 %v8026, %v8025
      %v8101 = vpack.c.b16 %v8028, %v8027
      %v8102 = vpack.c.b16 %v8030, %v8029
      %v8103 = vpack.c.b16 %v8032, %v8031
      %v8104 = vpack.c.b16 %v8034, %v8033
      %v8105 = vpack.c.b16 %v8036, %v8035
      %v8106 = vpack.c.b16 %v8038, %v8037
      %v8107 = vpack.c.b16 %v8040, %v8039
      %v8108 = vpack.c.b16 %v8042, %v8041
      %v8109 = vpack.c.b16 %v8044, %v8043
      %v8110 = vpack.c.b16 %v8046, %v8045
      %v8111 = vpack.c.b16 %v8048, %v8047
      %v8112 = vpack.c.b16 %v8050, %v8049
      %v8113 = vpack.c.b16 %v8052, %v8051
      %v8114 = vpack.c.b16 %v8054, %v8053
      %v8115 = vpack.c.b16 %v8056, %v8055
      %v8116 = vpack.c.b16 %v8058, %v8057
      %v8117 = vpack.c.b16 %v8060, %v8059
      %v8118 = vpack.c.b16 %v8062, %v8061
      %v8119 = vpack.c.b16 %v8064, %v8063
      %v8120 = vpack.c.b16 %v8066, %v8065
      %v8121 = vpack.c.b16 %v8068, %v8067
      %v8122 = vpack.c.b16 %v8070, %v8069
      %v8123 = vpack.c.b16 %v8072, %v8071
      %v8124 = vpack.c.b16 %v8074, %v8073
      %v8125 = vpack.c.b16 %v8076, %v8075
      %v8126 = vpack.c.b16 %v8078, %v8077
      %v8127 = vpack.c.b16 %v8080, %v8079
      %v8128 = vpack.c.b16 %v8082, %v8081
      %v8129 = vpack.c.b16 %v8084, %v8083
      %v8130 = vpack.c.b16 %v8086, %v8085
      %v8131 = vpack.c.b16 %v8088, %v8087
      %v8132 = vpack.c.b16 %v8090, %v8089
      %v8133 = vpack.c.b16 %v8092, %v8091
      %v8134 = vpack.c.b16 %v8094, %v8093
      %8175 = vmatpush.bf16.msra.mxu0 %v8102
      %8176 = vmatpush.bf16.msra.mxu0 %v8101
      %8177 = vmatpush.bf16.msra.mxu0 %v8100
      %8178 = vmatpush.bf16.msra.mxu0 %v8099
      %8179 = vmatpush.bf16.msra.mxu0 %v8098
      %8180 = vmatpush.bf16.msra.mxu0 %v8097
      %8181 = vmatpush.bf16.msra.mxu0 %v8096
      %8182 = vmatpush.bf16.msra.mxu0 %v8095
      %8183 = vmatmul.bf16.gmra.mxu0 %v7761
      %v8184 = vpop.f32.mrf.mxu0
      %v8185 = vadd.f32 %v7933, %v8184
      %v8186 = vpop.f32.mrf.mxu0
      %v8187 = vadd.f32 %v7933, %v8186
      %8188 = vmatmul.bf16.gmra.mxu0 %v7766
      %v8189 = vpop.f32.mrf.mxu0
      %v8190 = vadd.f32 %v7933, %v8189
      %v8191 = vpop.f32.mrf.mxu0
      %v8192 = vadd.f32 %v7933, %v8191
      %8193 = vmatmul.bf16.gmra.mxu0 %v7771
      %v8194 = vpop.f32.mrf.mxu0
      %v8195 = vadd.f32 %v7933, %v8194
      %v8196 = vpop.f32.mrf.mxu0
      %v8197 = vadd.f32 %v7933, %v8196
      %8198 = vmatmul.bf16.gmra.mxu0 %v7776
      %v8199 = vpop.f32.mrf.mxu0
      %v8200 = vadd.f32 %v7933, %v8199
      %v8201 = vpop.f32.mrf.mxu0
      %v8202 = vadd.f32 %v7933, %v8201
      %8203 = vmatmul.bf16.gmra.mxu0 %v7781
      %v8204 = vpop.f32.mrf.mxu0
      %v8205 = vadd.f32 %v7933, %v8204
      %v8206 = vpop.f32.mrf.mxu0
      %v8207 = vadd.f32 %v7933, %v8206
      %8208 = vmatmul.bf16.gmra.mxu0 %v7786
      %v8209 = vpop.f32.mrf.mxu0
      %v8210 = vadd.f32 %v7933, %v8209
      %v8211 = vpop.f32.mrf.mxu0
      %v8212 = vadd.f32 %v7933, %v8211
      %8213 = vmatmul.bf16.gmra.mxu0 %v7791
      %v8214 = vpop.f32.mrf.mxu0
      %v8215 = vadd.f32 %v7933, %v8214
      %v8216 = vpop.f32.mrf.mxu0
      %v8217 = vadd.f32 %v7933, %v8216
      %8218 = vmatmul.bf16.gmra.mxu0 %v7796
      %v8219 = vpop.f32.mrf.mxu0
      %v8220 = vadd.f32 %v7933, %v8219
      %v8221 = vpop.f32.mrf.mxu0
      %v8222 = vadd.f32 %v7933, %v8221
      %8223 = vmatmul.bf16.gmra.mxu0 %v7801
      %v8224 = vpop.f32.mrf.mxu0
      %v8225 = vadd.f32 %v7933, %v8224
      %v8226 = vpop.f32.mrf.mxu0
      %v8227 = vadd.f32 %v7933, %v8226
      %8228 = vmatmul.bf16.gmra.mxu0 %v7806
      %v8229 = vpop.f32.mrf.mxu0
      %v8230 = vadd.f32 %v7933, %v8229
      %v8231 = vpop.f32.mrf.mxu0
      %v8232 = vadd.f32 %v7933, %v8231
      %8233 = vmatmul.bf16.gmra.mxu0 %v7811
      %v8234 = vpop.f32.mrf.mxu0
      %v8235 = vadd.f32 %v7933, %v8234
      %v8236 = vpop.f32.mrf.mxu0
      %v8237 = vadd.f32 %v7933, %v8236
      %8238 = vmatmul.bf16.gmra.mxu0 %v7816
      %v8239 = vpop.f32.mrf.mxu0
      %v8240 = vadd.f32 %v7933, %v8239
      %v8241 = vpop.f32.mrf.mxu0
      %v8242 = vadd.f32 %v7933, %v8241
      %8243 = vmatmul.bf16.gmra.mxu0 %v7821
      %v8244 = vpop.f32.mrf.mxu0
      %v8245 = vadd.f32 %v7933, %v8244
      %v8246 = vpop.f32.mrf.mxu0
      %v8247 = vadd.f32 %v7933, %v8246
      %8248 = vmatmul.bf16.gmra.mxu0 %v7826
      %v8249 = vpop.f32.mrf.mxu0
      %v8250 = vadd.f32 %v7933, %v8249
      %v8251 = vpop.f32.mrf.mxu0
      %v8252 = vadd.f32 %v7933, %v8251
      %8253 = vmatmul.bf16.gmra.mxu0 %v7831
      %v8254 = vpop.f32.mrf.mxu0
      %v8255 = vadd.f32 %v7933, %v8254
      %v8256 = vpop.f32.mrf.mxu0
      %v8257 = vadd.f32 %v7933, %v8256
      %8258 = vmatmul.bf16.gmra.mxu0 %v7836
      %v8259 = vpop.f32.mrf.mxu0
      %v8260 = vadd.f32 %v7933, %v8259
      %v8261 = vpop.f32.mrf.mxu0
      %v8262 = vadd.f32 %v7933, %v8261
      %8263 = vmatmul.bf16.gmra.mxu0 %v7841
      %v8264 = vpop.f32.mrf.mxu0
      %v8265 = vadd.f32 %v7933, %v8264
      %v8266 = vpop.f32.mrf.mxu0
      %v8267 = vadd.f32 %v7933, %v8266
      %8268 = vmatmul.bf16.gmra.mxu0 %v7846
      %v8269 = vpop.f32.mrf.mxu0
      %v8270 = vadd.f32 %v7933, %v8269
      %v8271 = vpop.f32.mrf.mxu0
      %8272 = vdwg.mxu0
      %8273 = vmatpush.bf16.msra.mxu0 %v8110
      %8274 = vmatpush.bf16.msra.mxu0 %v8109
      %8275 = vmatpush.bf16.msra.mxu0 %v8108
      %8276 = vmatpush.bf16.msra.mxu0 %v8107
      %8277 = vmatpush.bf16.msra.mxu0 %v8106
      %8278 = vmatpush.bf16.msra.mxu0 %v8105
      %8279 = vmatpush.bf16.msra.mxu0 %v8104
      %8280 = vmatpush.bf16.msra.mxu0 %v8103
      %8281 = vmatmul.bf16.gmra.mxu0 %v7762
      %v8282 = vpop.f32.mrf.mxu0
      %v8283 = vadd.f32 %v8185, %v8282
      %v8284 = vpop.f32.mrf.mxu0
      %v8285 = vadd.f32 %v8187, %v8284
      %8286 = vmatmul.bf16.gmra.mxu0 %v7767
      %v8287 = vpop.f32.mrf.mxu0
      %v8288 = vadd.f32 %v8190, %v8287
      %v8289 = vpop.f32.mrf.mxu0
      %v8290 = vadd.f32 %v8192, %v8289
      %8291 = vmatmul.bf16.gmra.mxu0 %v7772
      %v8292 = vpop.f32.mrf.mxu0
      %v8293 = vadd.f32 %v8195, %v8292
      %v8294 = vpop.f32.mrf.mxu0
      %v8295 = vadd.f32 %v8197, %v8294
      %8296 = vmatmul.bf16.gmra.mxu0 %v7777
      %v8297 = vpop.f32.mrf.mxu0
      %v8298 = vadd.f32 %v8200, %v8297
      %v8299 = vpop.f32.mrf.mxu0
      %v8300 = vadd.f32 %v8202, %v8299
      %8301 = vmatmul.bf16.gmra.mxu0 %v7782
      %v8302 = vpop.f32.mrf.mxu0
      %v8303 = vadd.f32 %v8205, %v8302
      %v8304 = vpop.f32.mrf.mxu0
      %v8305 = vadd.f32 %v8207, %v8304
      %8306 = vmatmul.bf16.gmra.mxu0 %v7787
      %v8307 = vpop.f32.mrf.mxu0
      %v8308 = vadd.f32 %v8210, %v8307
      %v8309 = vpop.f32.mrf.mxu0
      %v8310 = vadd.f32 %v8212, %v8309
      %8311 = vmatmul.bf16.gmra.mxu0 %v7792
      %v8312 = vpop.f32.mrf.mxu0
      %v8313 = vadd.f32 %v8215, %v8312
      %v8314 = vpop.f32.mrf.mxu0
      %v8315 = vadd.f32 %v8217, %v8314
      %8316 = vmatmul.bf16.gmra.mxu0 %v7797
      %v8317 = vpop.f32.mrf.mxu0
      %v8318 = vadd.f32 %v8220, %v8317
      %v8319 = vpop.f32.mrf.mxu0
      %v8320 = vadd.f32 %v8222, %v8319
      %8321 = vmatmul.bf16.gmra.mxu0 %v7802
      %v8322 = vpop.f32.mrf.mxu0
      %v8323 = vadd.f32 %v8225, %v8322
      %v8324 = vpop.f32.mrf.mxu0
      %v8325 = vadd.f32 %v8227, %v8324
      %8326 = vmatmul.bf16.gmra.mxu0 %v7807
      %v8327 = vpop.f32.mrf.mxu0
      %v8328 = vadd.f32 %v8230, %v8327
      %v8329 = vpop.f32.mrf.mxu0
      %v8330 = vadd.f32 %v8232, %v8329
      %8331 = vmatmul.bf16.gmra.mxu0 %v7812
      %v8332 = vpop.f32.mrf.mxu0
      %v8333 = vadd.f32 %v8235, %v8332
      %v8334 = vpop.f32.mrf.mxu0
      %v8335 = vadd.f32 %v8237, %v8334
      %8336 = vmatmul.bf16.gmra.mxu0 %v7817
      %v8337 = vpop.f32.mrf.mxu0
      %v8338 = vadd.f32 %v8240, %v8337
      %v8339 = vpop.f32.mrf.mxu0
      %v8340 = vadd.f32 %v8242, %v8339
      %8341 = vmatmul.bf16.gmra.mxu0 %v7822
      %v8342 = vpop.f32.mrf.mxu0
      %v8343 = vadd.f32 %v8245, %v8342
      %v8344 = vpop.f32.mrf.mxu0
      %v8345 = vadd.f32 %v8247, %v8344
      %8346 = vmatmul.bf16.gmra.mxu0 %v7827
      %v8347 = vpop.f32.mrf.mxu0
      %v8348 = vadd.f32 %v8250, %v8347
      %v8349 = vpop.f32.mrf.mxu0
      %v8350 = vadd.f32 %v8252, %v8349
      %8351 = vmatmul.bf16.gmra.mxu0 %v7832
      %v8352 = vpop.f32.mrf.mxu0
      %v8353 = vadd.f32 %v8255, %v8352
      %v8354 = vpop.f32.mrf.mxu0
      %v8355 = vadd.f32 %v8257, %v8354
      %8356 = vmatmul.bf16.gmra.mxu0 %v7837
      %v8357 = vpop.f32.mrf.mxu0
      %v8358 = vadd.f32 %v8260, %v8357
      %v8359 = vpop.f32.mrf.mxu0
      %v8360 = vadd.f32 %v8262, %v8359
      %8361 = vmatmul.bf16.gmra.mxu0 %v7842
      %v8362 = vpop.f32.mrf.mxu0
      %v8363 = vadd.f32 %v8265, %v8362
      %v8364 = vpop.f32.mrf.mxu0
      %v8365 = vadd.f32 %v8267, %v8364
      %8366 = vmatmul.bf16.gmra.mxu0 %v7847
      %v8367 = vpop.f32.mrf.mxu0
      %v8368 = vadd.f32 %v8270, %v8367
      %v8369 = vpop.f32.mrf.mxu0
      %8370 = vdwg.mxu0
      %8371 = vmatpush.bf16.msra.mxu0 %v8118
      %8372 = vmatpush.bf16.msra.mxu0 %v8117
      %8373 = vmatpush.bf16.msra.mxu0 %v8116
      %8374 = vmatpush.bf16.msra.mxu0 %v8115
      %8375 = vmatpush.bf16.msra.mxu0 %v8114
      %8376 = vmatpush.bf16.msra.mxu0 %v8113
      %8377 = vmatpush.bf16.msra.mxu0 %v8112
      %8378 = vmatpush.bf16.msra.mxu0 %v8111
      %8379 = vmatmul.bf16.gmra.mxu0 %v7763
      %v8380 = vpop.f32.mrf.mxu0
      %v8381 = vadd.f32 %v8283, %v8380
      %v8382 = vpop.f32.mrf.mxu0
      %v8383 = vadd.f32 %v8285, %v8382
      %8384 = vmatmul.bf16.gmra.mxu0 %v7768
      %v8385 = vpop.f32.mrf.mxu0
      %v8386 = vadd.f32 %v8288, %v8385
      %v8387 = vpop.f32.mrf.mxu0
      %v8388 = vadd.f32 %v8290, %v8387
      %8389 = vmatmul.bf16.gmra.mxu0 %v7773
      %v8390 = vpop.f32.mrf.mxu0
      %v8391 = vadd.f32 %v8293, %v8390
      %v8392 = vpop.f32.mrf.mxu0
      %v8393 = vadd.f32 %v8295, %v8392
      %8394 = vmatmul.bf16.gmra.mxu0 %v7778
      %v8395 = vpop.f32.mrf.mxu0
      %v8396 = vadd.f32 %v8298, %v8395
      %v8397 = vpop.f32.mrf.mxu0
      %v8398 = vadd.f32 %v8300, %v8397
      %8399 = vmatmul.bf16.gmra.mxu0 %v7783
      %v8400 = vpop.f32.mrf.mxu0
      %v8401 = vadd.f32 %v8303, %v8400
      %v8402 = vpop.f32.mrf.mxu0
      %v8403 = vadd.f32 %v8305, %v8402
      %8404 = vmatmul.bf16.gmra.mxu0 %v7788
      %v8405 = vpop.f32.mrf.mxu0
      %v8406 = vadd.f32 %v8308, %v8405
      %v8407 = vpop.f32.mrf.mxu0
      %v8408 = vadd.f32 %v8310, %v8407
      %8409 = vmatmul.bf16.gmra.mxu0 %v7793
      %v8410 = vpop.f32.mrf.mxu0
      %v8411 = vadd.f32 %v8313, %v8410
      %v8412 = vpop.f32.mrf.mxu0
      %v8413 = vadd.f32 %v8315, %v8412
      %8414 = vmatmul.bf16.gmra.mxu0 %v7798
      %v8415 = vpop.f32.mrf.mxu0
      %v8416 = vadd.f32 %v8318, %v8415
      %v8417 = vpop.f32.mrf.mxu0
      %v8418 = vadd.f32 %v8320, %v8417
      %8419 = vmatmul.bf16.gmra.mxu0 %v7803
      %v8420 = vpop.f32.mrf.mxu0
      %v8421 = vadd.f32 %v8323, %v8420
      %v8422 = vpop.f32.mrf.mxu0
      %v8423 = vadd.f32 %v8325, %v8422
      %8424 = vmatmul.bf16.gmra.mxu0 %v7808
      %v8425 = vpop.f32.mrf.mxu0
      %v8426 = vadd.f32 %v8328, %v8425
      %v8427 = vpop.f32.mrf.mxu0
      %v8428 = vadd.f32 %v8330, %v8427
      %8429 = vmatmul.bf16.gmra.mxu0 %v7813
      %v8430 = vpop.f32.mrf.mxu0
      %v8431 = vadd.f32 %v8333, %v8430
      %v8432 = vpop.f32.mrf.mxu0
      %v8433 = vadd.f32 %v8335, %v8432
      %8434 = vmatmul.bf16.gmra.mxu0 %v7818
      %v8435 = vpop.f32.mrf.mxu0
      %v8436 = vadd.f32 %v8338, %v8435
      %v8437 = vpop.f32.mrf.mxu0
      %v8438 = vadd.f32 %v8340, %v8437
      %8439 = vmatmul.bf16.gmra.mxu0 %v7823
      %v8440 = vpop.f32.mrf.mxu0
      %v8441 = vadd.f32 %v8343, %v8440
      %v8442 = vpop.f32.mrf.mxu0
      %v8443 = vadd.f32 %v8345, %v8442
      %8444 = vmatmul.bf16.gmra.mxu0 %v7828
      %v8445 = vpop.f32.mrf.mxu0
      %v8446 = vadd.f32 %v8348, %v8445
      %v8447 = vpop.f32.mrf.mxu0
      %v8448 = vadd.f32 %v8350, %v8447
      %8449 = vmatmul.bf16.gmra.mxu0 %v7833
      %v8450 = vpop.f32.mrf.mxu0
      %v8451 = vadd.f32 %v8353, %v8450
      %v8452 = vpop.f32.mrf.mxu0
      %v8453 = vadd.f32 %v8355, %v8452
      %8454 = vmatmul.bf16.gmra.mxu0 %v7838
      %v8455 = vpop.f32.mrf.mxu0
      %v8456 = vadd.f32 %v8358, %v8455
      %v8457 = vpop.f32.mrf.mxu0
      %v8458 = vadd.f32 %v8360, %v8457
      %8459 = vmatmul.bf16.gmra.mxu0 %v7843
      %v8460 = vpop.f32.mrf.mxu0
      %v8461 = vadd.f32 %v8363, %v8460
      %v8462 = vpop.f32.mrf.mxu0
      %v8463 = vadd.f32 %v8365, %v8462
      %8464 = vmatmul.bf16.gmra.mxu0 %v7848
      %v8465 = vpop.f32.mrf.mxu0
      %v8466 = vadd.f32 %v8368, %v8465
      %v8467 = vpop.f32.mrf.mxu0
      %8468 = vdwg.mxu0
      %8469 = vmatpush.bf16.msra.mxu0 %v8126
      %8470 = vmatpush.bf16.msra.mxu0 %v8125
      %8471 = vmatpush.bf16.msra.mxu0 %v8124
      %8472 = vmatpush.bf16.msra.mxu0 %v8123
      %8473 = vmatpush.bf16.msra.mxu0 %v8122
      %8474 = vmatpush.bf16.msra.mxu0 %v8121
      %8475 = vmatpush.bf16.msra.mxu0 %v8120
      %8476 = vmatpush.bf16.msra.mxu0 %v8119
      %8477 = vmatmul.bf16.gmra.mxu0 %v7764
      %v8478 = vpop.f32.mrf.mxu0
      %v8479 = vadd.f32 %v8381, %v8478
      %v8480 = vpop.f32.mrf.mxu0
      %v8481 = vadd.f32 %v8383, %v8480
      %8482 = vmatmul.bf16.gmra.mxu0 %v7769
      %v8483 = vpop.f32.mrf.mxu0
      %v8484 = vadd.f32 %v8386, %v8483
      %v8485 = vpop.f32.mrf.mxu0
      %v8486 = vadd.f32 %v8388, %v8485
      %8487 = vmatmul.bf16.gmra.mxu0 %v7774
      %v8488 = vpop.f32.mrf.mxu0
      %v8489 = vadd.f32 %v8391, %v8488
      %v8490 = vpop.f32.mrf.mxu0
      %v8491 = vadd.f32 %v8393, %v8490
      %8492 = vmatmul.bf16.gmra.mxu0 %v7779
      %v8493 = vpop.f32.mrf.mxu0
      %v8494 = vadd.f32 %v8396, %v8493
      %v8495 = vpop.f32.mrf.mxu0
      %v8496 = vadd.f32 %v8398, %v8495
      %8497 = vmatmul.bf16.gmra.mxu0 %v7784
      %v8498 = vpop.f32.mrf.mxu0
      %v8499 = vadd.f32 %v8401, %v8498
      %v8500 = vpop.f32.mrf.mxu0
      %v8501 = vadd.f32 %v8403, %v8500
      %8502 = vmatmul.bf16.gmra.mxu0 %v7789
      %v8503 = vpop.f32.mrf.mxu0
      %v8504 = vadd.f32 %v8406, %v8503
      %v8505 = vpop.f32.mrf.mxu0
      %v8506 = vadd.f32 %v8408, %v8505
      %8507 = vmatmul.bf16.gmra.mxu0 %v7794
      %v8508 = vpop.f32.mrf.mxu0
      %v8509 = vadd.f32 %v8411, %v8508
      %v8510 = vpop.f32.mrf.mxu0
      %v8511 = vadd.f32 %v8413, %v8510
      %8512 = vmatmul.bf16.gmra.mxu0 %v7799
      %v8513 = vpop.f32.mrf.mxu0
      %v8514 = vadd.f32 %v8416, %v8513
      %v8515 = vpop.f32.mrf.mxu0
      %v8516 = vadd.f32 %v8418, %v8515
      %8517 = vmatmul.bf16.gmra.mxu0 %v7804
      %v8518 = vpop.f32.mrf.mxu0
      %v8519 = vadd.f32 %v8421, %v8518
      %v8520 = vpop.f32.mrf.mxu0
      %v8521 = vadd.f32 %v8423, %v8520
      %8522 = vmatmul.bf16.gmra.mxu0 %v7809
      %v8523 = vpop.f32.mrf.mxu0
      %v8524 = vadd.f32 %v8426, %v8523
      %v8525 = vpop.f32.mrf.mxu0
      %v8526 = vadd.f32 %v8428, %v8525
      %8527 = vmatmul.bf16.gmra.mxu0 %v7814
      %v8528 = vpop.f32.mrf.mxu0
      %v8529 = vadd.f32 %v8431, %v8528
      %v8530 = vpop.f32.mrf.mxu0
      %v8531 = vadd.f32 %v8433, %v8530
      %8532 = vmatmul.bf16.gmra.mxu0 %v7819
      %v8533 = vpop.f32.mrf.mxu0
      %v8534 = vadd.f32 %v8436, %v8533
      %v8535 = vpop.f32.mrf.mxu0
      %v8536 = vadd.f32 %v8438, %v8535
      %8537 = vmatmul.bf16.gmra.mxu0 %v7824
      %v8538 = vpop.f32.mrf.mxu0
      %v8539 = vadd.f32 %v8441, %v8538
      %v8540 = vpop.f32.mrf.mxu0
      %v8541 = vadd.f32 %v8443, %v8540
      %8542 = vmatmul.bf16.gmra.mxu0 %v7829
      %v8543 = vpop.f32.mrf.mxu0
      %v8544 = vadd.f32 %v8446, %v8543
      %v8545 = vpop.f32.mrf.mxu0
      %v8546 = vadd.f32 %v8448, %v8545
      %8547 = vmatmul.bf16.gmra.mxu0 %v7834
      %v8548 = vpop.f32.mrf.mxu0
      %v8549 = vadd.f32 %v8451, %v8548
      %v8550 = vpop.f32.mrf.mxu0
      %v8551 = vadd.f32 %v8453, %v8550
      %8552 = vmatmul.bf16.gmra.mxu0 %v7839
      %v8553 = vpop.f32.mrf.mxu0
      %v8554 = vadd.f32 %v8456, %v8553
      %v8555 = vpop.f32.mrf.mxu0
      %v8556 = vadd.f32 %v8458, %v8555
      %8557 = vmatmul.bf16.gmra.mxu0 %v7844
      %v8558 = vpop.f32.mrf.mxu0
      %v8559 = vadd.f32 %v8461, %v8558
      %v8560 = vpop.f32.mrf.mxu0
      %v8561 = vadd.f32 %v8463, %v8560
      %8562 = vmatmul.bf16.gmra.mxu0 %v7849
      %v8563 = vpop.f32.mrf.mxu0
      %v8564 = vadd.f32 %v8466, %v8563
      %v8565 = vpop.f32.mrf.mxu0
      %8566 = vdwg.mxu0
      %8567 = vmatpush.bf16.msra.mxu0 %v8134
      %8568 = vmatpush.bf16.msra.mxu0 %v8133
      %8569 = vmatpush.bf16.msra.mxu0 %v8132
      %8570 = vmatpush.bf16.msra.mxu0 %v8131
      %8571 = vmatpush.bf16.msra.mxu0 %v8130
      %8572 = vmatpush.bf16.msra.mxu0 %v8129
      %8573 = vmatpush.bf16.msra.mxu0 %v8128
      %8574 = vmatpush.bf16.msra.mxu0 %v8127
      %8575 = vmatmul.bf16.gmra.mxu0 %v7765
      %v8576 = vpop.f32.mrf.mxu0
      %v8577 = vadd.f32 %v8479, %v8576
      %v8578 = vpop.f32.mrf.mxu0
      %v8579 = vadd.f32 %v8481, %v8578
      %8580 = vmatmul.bf16.gmra.mxu0 %v7770
      %v8581 = vpop.f32.mrf.mxu0
      %v8582 = vadd.f32 %v8484, %v8581
      %v8583 = vpop.f32.mrf.mxu0
      %v8584 = vadd.f32 %v8486, %v8583
      %8585 = vmatmul.bf16.gmra.mxu0 %v7775
      %v8586 = vpop.f32.mrf.mxu0
      %v8587 = vadd.f32 %v8489, %v8586
      %v8588 = vpop.f32.mrf.mxu0
      %v8589 = vadd.f32 %v8491, %v8588
      %8590 = vmatmul.bf16.gmra.mxu0 %v7780
      %v8591 = vpop.f32.mrf.mxu0
      %v8592 = vadd.f32 %v8494, %v8591
      %v8593 = vpop.f32.mrf.mxu0
      %v8594 = vadd.f32 %v8496, %v8593
      %8595 = vmatmul.bf16.gmra.mxu0 %v7785
      %v8596 = vpop.f32.mrf.mxu0
      %v8597 = vadd.f32 %v8499, %v8596
      %v8598 = vpop.f32.mrf.mxu0
      %v8599 = vadd.f32 %v8501, %v8598
      %8600 = vmatmul.bf16.gmra.mxu0 %v7790
      %v8601 = vpop.f32.mrf.mxu0
      %v8602 = vadd.f32 %v8504, %v8601
      %v8603 = vpop.f32.mrf.mxu0
      %v8604 = vadd.f32 %v8506, %v8603
      %8605 = vmatmul.bf16.gmra.mxu0 %v7795
      %v8606 = vpop.f32.mrf.mxu0
      %v8607 = vadd.f32 %v8509, %v8606
      %v8608 = vpop.f32.mrf.mxu0
      %v8609 = vadd.f32 %v8511, %v8608
      %8610 = vmatmul.bf16.gmra.mxu0 %v7800
      %v8611 = vpop.f32.mrf.mxu0
      %v8612 = vadd.f32 %v8514, %v8611
      %v8613 = vpop.f32.mrf.mxu0
      %v8614 = vadd.f32 %v8516, %v8613
      %8615 = vmatmul.bf16.gmra.mxu0 %v7805
      %v8616 = vpop.f32.mrf.mxu0
      %v8617 = vadd.f32 %v8519, %v8616
      %v8618 = vpop.f32.mrf.mxu0
      %v8619 = vadd.f32 %v8521, %v8618
      %8620 = vmatmul.bf16.gmra.mxu0 %v7810
      %v8621 = vpop.f32.mrf.mxu0
      %v8622 = vadd.f32 %v8524, %v8621
      %v8623 = vpop.f32.mrf.mxu0
      %v8624 = vadd.f32 %v8526, %v8623
      %8625 = vmatmul.bf16.gmra.mxu0 %v7815
      %v8626 = vpop.f32.mrf.mxu0
      %v8627 = vadd.f32 %v8529, %v8626
      %v8628 = vpop.f32.mrf.mxu0
      %v8629 = vadd.f32 %v8531, %v8628
      %8630 = vmatmul.bf16.gmra.mxu0 %v7820
      %v8631 = vpop.f32.mrf.mxu0
      %v8632 = vadd.f32 %v8534, %v8631
      %v8633 = vpop.f32.mrf.mxu0
      %v8634 = vadd.f32 %v8536, %v8633
      %8635 = vmatmul.bf16.gmra.mxu0 %v7825
      %v8636 = vpop.f32.mrf.mxu0
      %v8637 = vadd.f32 %v8539, %v8636
      %v8638 = vpop.f32.mrf.mxu0
      %v8639 = vadd.f32 %v8541, %v8638
      %8640 = vmatmul.bf16.gmra.mxu0 %v7830
      %v8641 = vpop.f32.mrf.mxu0
      %v8642 = vadd.f32 %v8544, %v8641
      %v8643 = vpop.f32.mrf.mxu0
      %v8644 = vadd.f32 %v8546, %v8643
      %8645 = vmatmul.bf16.gmra.mxu0 %v7835
      %v8646 = vpop.f32.mrf.mxu0
      %v8647 = vadd.f32 %v8549, %v8646
      %v8648 = vpop.f32.mrf.mxu0
      %v8649 = vadd.f32 %v8551, %v8648
      %8650 = vmatmul.bf16.gmra.mxu0 %v7840
      %v8651 = vpop.f32.mrf.mxu0
      %v8652 = vadd.f32 %v8554, %v8651
      %v8653 = vpop.f32.mrf.mxu0
      %v8654 = vadd.f32 %v8556, %v8653
      %8655 = vmatmul.bf16.gmra.mxu0 %v7845
      %v8656 = vpop.f32.mrf.mxu0
      %v8657 = vadd.f32 %v8559, %v8656
      %v8658 = vpop.f32.mrf.mxu0
      %v8659 = vadd.f32 %v8561, %v8658
      %8660 = vmatmul.bf16.gmra.mxu0 %v7850
      %v8661 = vpop.f32.mrf.mxu0
      %v8662 = vadd.f32 %v8564, %v8661
      %v8663 = vpop.f32.mrf.mxu0
      %8664 = vdwg.mxu0
      %v8665 = vmax.f32 %v8577, 0.0
      %v8666 = vmax.f32 %v8579, 0.0
      %v8667 = vmax.f32 %v8582, 0.0
      %v8668 = vmax.f32 %v8584, 0.0
      %v8669 = vmax.f32 %v8587, 0.0
      %v8670 = vmax.f32 %v8589, 0.0
      %v8671 = vmax.f32 %v8592, 0.0
      %v8672 = vmax.f32 %v8594, 0.0
      %v8673 = vmax.f32 %v8597, 0.0
      %v8674 = vmax.f32 %v8599, 0.0
      %v8675 = vmax.f32 %v8602, 0.0
      %v8676 = vmax.f32 %v8604, 0.0
      %v8677 = vmax.f32 %v8607, 0.0
      %v8678 = vmax.f32 %v8609, 0.0
      %v8679 = vmax.f32 %v8612, 0.0
      %v8680 = vmax.f32 %v8614, 0.0
      %v8681 = vmax.f32 %v8617, 0.0
      %v8682 = vmax.f32 %v8619, 0.0
      %v8683 = vmax.f32 %v8622, 0.0
      %v8684 = vmax.f32 %v8624, 0.0
      %v8685 = vmax.f32 %v8627, 0.0
      %v8686 = vmax.f32 %v8629, 0.0
      %v8687 = vmax.f32 %v8632, 0.0
      %v8688 = vmax.f32 %v8634, 0.0
      %v8689 = vmax.f32 %v8637, 0.0
      %v8690 = vmax.f32 %v8639, 0.0
      %v8691 = vmax.f32 %v8642, 0.0
      %v8692 = vmax.f32 %v8644, 0.0
      %v8693 = vmax.f32 %v8647, 0.0
      %v8694 = vmax.f32 %v8649, 0.0
      %v8695 = vmax.f32 %v8652, 0.0
      %v8696 = vmax.f32 %v8654, 0.0
      %v8697 = vmax.f32 %v8657, 0.0
      %v8698 = vmax.f32 %v8659, 0.0
      %v8699 = vmax.f32 %v8662, 0.0
      %v8700 = vld [vmem:[%s12] sm:$0x1]
      %v8702 = vperm.slane %v8700, 0
      %v8704 = vmul.f32 %v8665, %v8702
      %v8705 = vmul.f32 %v8666, %v8702
      %v8706 = vmul.f32 %v8667, %v8702
      %v8707 = vmul.f32 %v8668, %v8702
      %v8708 = vmul.f32 %v8669, %v8702
      %v8709 = vmul.f32 %v8670, %v8702
      %v8710 = vmul.f32 %v8671, %v8702
      %v8711 = vmul.f32 %v8672, %v8702
      %v8712 = vmul.f32 %v8673, %v8702
      %v8713 = vmul.f32 %v8674, %v8702
      %v8714 = vmul.f32 %v8675, %v8702
      %v8715 = vmul.f32 %v8676, %v8702
      %v8716 = vmul.f32 %v8677, %v8702
      %v8717 = vmul.f32 %v8678, %v8702
      %v8718 = vmul.f32 %v8679, %v8702
      %v8719 = vmul.f32 %v8680, %v8702
      %v8720 = vmul.f32 %v8681, %v8702
      %v8721 = vmul.f32 %v8682, %v8702
      %v8722 = vmul.f32 %v8683, %v8702
      %v8723 = vmul.f32 %v8684, %v8702
      %v8724 = vmul.f32 %v8685, %v8702
      %v8725 = vmul.f32 %v8686, %v8702
      %v8726 = vmul.f32 %v8687, %v8702
      %v8727 = vmul.f32 %v8688, %v8702
      %v8728 = vmul.f32 %v8689, %v8702
      %v8729 = vmul.f32 %v8690, %v8702
      %v8730 = vmul.f32 %v8691, %v8702
      %v8731 = vmul.f32 %v8692, %v8702
      %v8732 = vmul.f32 %v8693, %v8702
      %v8733 = vmul.f32 %v8694, %v8702
      %v8734 = vmul.f32 %v8695, %v8702
      %v8735 = vmul.f32 %v8696, %v8702
      %v8736 = vmul.f32 %v8697, %v8702
      %v8737 = vmul.f32 %v8698, %v8702
      %v8738 = vmul.f32 %v8699, %v8702
      %v8739 = vld [vmem:[%s13] sm:$0x1]
      %v8741 = vperm.slane %v8739, 0
      %v8743 = vadd.f32 %v8704, %v8741
      %v8744 = vadd.f32 %v8705, %v8741
      %v8745 = vadd.f32 %v8706, %v8741
      %v8746 = vadd.f32 %v8707, %v8741
      %v8747 = vadd.f32 %v8708, %v8741
      %v8748 = vadd.f32 %v8709, %v8741
      %v8749 = vadd.f32 %v8710, %v8741
      %v8750 = vadd.f32 %v8711, %v8741
      %v8751 = vadd.f32 %v8712, %v8741
      %v8752 = vadd.f32 %v8713, %v8741
      %v8753 = vadd.f32 %v8714, %v8741
      %v8754 = vadd.f32 %v8715, %v8741
      %v8755 = vadd.f32 %v8716, %v8741
      %v8756 = vadd.f32 %v8717, %v8741
      %v8757 = vadd.f32 %v8718, %v8741
      %v8758 = vadd.f32 %v8719, %v8741
      %v8759 = vadd.f32 %v8720, %v8741
      %v8760 = vadd.f32 %v8721, %v8741
      %v8761 = vadd.f32 %v8722, %v8741
      %v8762 = vadd.f32 %v8723, %v8741
      %v8763 = vadd.f32 %v8724, %v8741
      %v8764 = vadd.f32 %v8725, %v8741
      %v8765 = vadd.f32 %v8726, %v8741
      %v8766 = vadd.f32 %v8727, %v8741
      %v8767 = vadd.f32 %v8728, %v8741
      %v8768 = vadd.f32 %v8729, %v8741
      %v8769 = vadd.f32 %v8730, %v8741
      %v8770 = vadd.f32 %v8731, %v8741
      %v8771 = vadd.f32 %v8732, %v8741
      %v8772 = vadd.f32 %v8733, %v8741
      %v8773 = vadd.f32 %v8734, %v8741
      %v8774 = vadd.f32 %v8735, %v8741
      %v8775 = vadd.f32 %v8736, %v8741
      %v8776 = vadd.f32 %v8737, %v8741
      %v8777 = vadd.f32 %v8738, %v8741
      %vm8778 = vcmask 523264
      %8779 = vst.msk [vmem:[#allocation4 + $0x18] sm:$0xff] %vm8778, %v8743
      %8780 = vst.msk [vmem:[#allocation4 + $0x30] sm:$0xff] %vm8778, %v8744
      %8781 = vst.msk [vmem:[#allocation4 + $0x48] sm:$0xff] %vm8778, %v8745
      %8782 = vst.msk [vmem:[#allocation4 + $0x60] sm:$0xff] %vm8778, %v8746
      %8783 = vst.msk [vmem:[#allocation4 + $0x78] sm:$0xff] %vm8778, %v8747
      %8784 = vst.msk [vmem:[#allocation4 + $0x90] sm:$0xff] %vm8778, %v8748
      %8785 = vst.msk [vmem:[#allocation4 + $0xa8] sm:$0xff] %vm8778, %v8749
      %8786 = vst.msk [vmem:[#allocation4 + $0xc0] sm:$0xff] %vm8778, %v8750
      %8787 = vst.msk [vmem:[#allocation4 + $0xd8] sm:$0xff] %vm8778, %v8751
      %8788 = vst.msk [vmem:[#allocation4 + $0xf0] sm:$0xff] %vm8778, %v8752
      %8789 = vst.msk [vmem:[#allocation4 + $0x108] sm:$0xff] %vm8778, %v8753
      %8790 = vst.msk [vmem:[#allocation4 + $0x120] sm:$0xff] %vm8778, %v8754
      %8791 = vst.msk [vmem:[#allocation4 + $0x138] sm:$0xff] %vm8778, %v8755
      %8792 = vst.msk [vmem:[#allocation4 + $0x150] sm:$0xff] %vm8778, %v8756
      %8793 = vst.msk [vmem:[#allocation4 + $0x168] sm:$0xff] %vm8778, %v8757
      %8794 = vst.msk [vmem:[#allocation4 + $0x180] sm:$0xff] %vm8778, %v8758
      %8795 = vst.msk [vmem:[#allocation4 + $0x198] sm:$0xff] %vm8778, %v8759
      %8796 = vst.msk [vmem:[#allocation4 + $0x1b0] sm:$0xff] %vm8778, %v8760
      %8797 = vst.msk [vmem:[#allocation4 + $0x1c8] sm:$0xff] %vm8778, %v8761
      %8798 = vst.msk [vmem:[#allocation4 + $0x1e0] sm:$0xff] %vm8778, %v8762
      %8799 = vst.msk [vmem:[#allocation4 + $0x1f8] sm:$0xff] %vm8778, %v8763
      %8800 = vst.msk [vmem:[#allocation4 + $0x210] sm:$0xff] %vm8778, %v8764
      %8801 = vst.msk [vmem:[#allocation4 + $0x228] sm:$0xff] %vm8778, %v8765
      %8802 = vst.msk [vmem:[#allocation4 + $0x240] sm:$0xff] %vm8778, %v8766
      %8803 = vst.msk [vmem:[#allocation4 + $0x258] sm:$0xff] %vm8778, %v8767
      %8804 = vst.msk [vmem:[#allocation4 + $0x270] sm:$0xff] %vm8778, %v8768
      %8805 = vst.msk [vmem:[#allocation4 + $0x288] sm:$0xff] %vm8778, %v8769
      %8806 = vst.msk [vmem:[#allocation4 + $0x2a0] sm:$0xff] %vm8778, %v8770
      %8807 = vst.msk [vmem:[#allocation4 + $0x2b8] sm:$0xff] %vm8778, %v8771
      %8808 = vst.msk [vmem:[#allocation4 + $0x2d0] sm:$0xff] %vm8778, %v8772
      %8809 = vst.msk [vmem:[#allocation4 + $0x2e8] sm:$0xff] %vm8778, %v8773
      %8810 = vst.msk [vmem:[#allocation4 + $0x300] sm:$0xff] %vm8778, %v8774
      %8811 = vst.msk [vmem:[#allocation4 + $0x318] sm:$0xff] %vm8778, %v8775
      %8812 = vst.msk [vmem:[#allocation4 + $0x330] sm:$0xff] %vm8778, %v8776
      %vm8813 = vcmask 519168
      %8814 = vst.msk [vmem:[#allocation4 + $0x348] sm:$0xf] %vm8813, %v8777
      %v8850 = vrot.slane %v8743, 1
      %v8851 = vrot.slane %v8744, 1
      %v8852 = vsel %vm7018, %v8850, %v8851
      %v8853 = vrot.slane %v8745, 1
      %v8854 = vsel %vm7018, %v8851, %v8853
      %v8855 = vrot.slane %v8746, 1
      %v8856 = vsel %vm7018, %v8853, %v8855
      %v8857 = vrot.slane %v8747, 1
      %v8858 = vsel %vm7018, %v8855, %v8857
      %v8859 = vrot.slane %v8748, 1
      %v8860 = vsel %vm7018, %v8857, %v8859
      %v8861 = vrot.slane %v8749, 1
      %v8862 = vsel %vm7018, %v8859, %v8861
      %v8863 = vrot.slane %v8750, 1
      %v8864 = vsel %vm7018, %v8861, %v8863
      %v8865 = vrot.slane %v8751, 1
      %v8866 = vsel %vm7018, %v8863, %v8865
      %v8867 = vrot.slane %v8752, 1
      %v8868 = vsel %vm7018, %v8865, %v8867
      %v8869 = vrot.slane %v8753, 1
      %v8870 = vsel %vm7018, %v8867, %v8869
      %v8871 = vrot.slane %v8754, 1
      %v8872 = vsel %vm7018, %v8869, %v8871
      %v8873 = vrot.slane %v8755, 1
      %v8874 = vsel %vm7018, %v8871, %v8873
      %v8875 = vrot.slane %v8756, 1
      %v8876 = vsel %vm7018, %v8873, %v8875
      %v8877 = vrot.slane %v8757, 1
      %v8878 = vsel %vm7018, %v8875, %v8877
      %v8879 = vrot.slane %v8758, 1
      %v8880 = vsel %vm7018, %v8877, %v8879
      %v8881 = vrot.slane %v8759, 1
      %v8882 = vsel %vm7018, %v8879, %v8881
      %v8883 = vrot.slane %v8760, 1
      %v8884 = vsel %vm7018, %v8881, %v8883
      %v8885 = vrot.slane %v8761, 1
      %v8886 = vsel %vm7018, %v8883, %v8885
      %v8887 = vrot.slane %v8762, 1
      %v8888 = vsel %vm7018, %v8885, %v8887
      %v8889 = vrot.slane %v8763, 1
      %v8890 = vsel %vm7018, %v8887, %v8889
      %v8891 = vrot.slane %v8764, 1
      %v8892 = vsel %vm7018, %v8889, %v8891
      %v8893 = vrot.slane %v8765, 1
      %v8894 = vsel %vm7018, %v8891, %v8893
      %v8895 = vrot.slane %v8766, 1
      %v8896 = vsel %vm7018, %v8893, %v8895
      %v8897 = vrot.slane %v8767, 1
      %v8898 = vsel %vm7018, %v8895, %v8897
      %v8899 = vrot.slane %v8768, 1
      %v8900 = vsel %vm7018, %v8897, %v8899
      %v8901 = vrot.slane %v8769, 1
      %v8902 = vsel %vm7018, %v8899, %v8901
      %v8903 = vrot.slane %v8770, 1
      %v8904 = vsel %vm7018, %v8901, %v8903
      %v8905 = vrot.slane %v8771, 1
      %v8906 = vsel %vm7018, %v8903, %v8905
      %v8907 = vrot.slane %v8772, 1
      %v8908 = vsel %vm7018, %v8905, %v8907
      %v8909 = vrot.slane %v8773, 1
      %v8910 = vsel %vm7018, %v8907, %v8909
      %v8911 = vrot.slane %v8774, 1
      %v8912 = vsel %vm7018, %v8909, %v8911
      %v8913 = vrot.slane %v8775, 1
      %v8914 = vsel %vm7018, %v8911, %v8913
      %v8915 = vrot.slane %v8776, 1
      %v8916 = vsel %vm7018, %v8913, %v8915
      %v8917 = vrot.slane %v8777, 1
      %v8918 = vsel %vm7018, %v8915, %v8917
      %8919 = vrot.lane.b32.xlu0 %v8850, 64
      %v8920 = vpop.permute.xlu0 %8919
      %8921 = vrot.lane.b32.xlu0 %v8852, 64
      %v8922 = vpop.permute.xlu0 %8921
      %8923 = vrot.lane.b32.xlu0 %v8854, 64
      %v8924 = vpop.permute.xlu0 %8923
      %8925 = vrot.lane.b32.xlu0 %v8856, 64
      %v8926 = vpop.permute.xlu0 %8925
      %8927 = vrot.lane.b32.xlu0 %v8858, 64
      %v8928 = vpop.permute.xlu0 %8927
      %8929 = vrot.lane.b32.xlu0 %v8860, 64
      %v8930 = vpop.permute.xlu0 %8929
      %8931 = vrot.lane.b32.xlu0 %v8862, 64
      %v8932 = vpop.permute.xlu0 %8931
      %8933 = vrot.lane.b32.xlu0 %v8864, 64
      %v8934 = vpop.permute.xlu0 %8933
      %8935 = vrot.lane.b32.xlu0 %v8866, 64
      %v8936 = vpop.permute.xlu0 %8935
      %8937 = vrot.lane.b32.xlu0 %v8868, 64
      %v8938 = vpop.permute.xlu0 %8937
      %8939 = vrot.lane.b32.xlu0 %v8870, 64
      %v8940 = vpop.permute.xlu0 %8939
      %8941 = vrot.lane.b32.xlu0 %v8872, 64
      %v8942 = vpop.permute.xlu0 %8941
      %8943 = vrot.lane.b32.xlu0 %v8874, 64
      %v8944 = vpop.permute.xlu0 %8943
      %8945 = vrot.lane.b32.xlu0 %v8876, 64
      %v8946 = vpop.permute.xlu0 %8945
      %8947 = vrot.lane.b32.xlu0 %v8878, 64
      %v8948 = vpop.permute.xlu0 %8947
      %8949 = vrot.lane.b32.xlu0 %v8880, 64
      %v8950 = vpop.permute.xlu0 %8949
      %8951 = vrot.lane.b32.xlu0 %v8882, 64
      %v8952 = vpop.permute.xlu0 %8951
      %8953 = vrot.lane.b32.xlu0 %v8884, 64
      %v8954 = vpop.permute.xlu0 %8953
      %8955 = vrot.lane.b32.xlu0 %v8886, 64
      %v8956 = vpop.permute.xlu0 %8955
      %8957 = vrot.lane.b32.xlu0 %v8888, 64
      %v8958 = vpop.permute.xlu0 %8957
      %8959 = vrot.lane.b32.xlu0 %v8890, 64
      %v8960 = vpop.permute.xlu0 %8959
      %8961 = vrot.lane.b32.xlu0 %v8892, 64
      %v8962 = vpop.permute.xlu0 %8961
      %8963 = vrot.lane.b32.xlu0 %v8894, 64
      %v8964 = vpop.permute.xlu0 %8963
      %8965 = vrot.lane.b32.xlu0 %v8896, 64
      %v8966 = vpop.permute.xlu0 %8965
      %8967 = vrot.lane.b32.xlu0 %v8898, 64
      %v8968 = vpop.permute.xlu0 %8967
      %8969 = vrot.lane.b32.xlu0 %v8900, 64
      %v8970 = vpop.permute.xlu0 %8969
      %8971 = vrot.lane.b32.xlu0 %v8902, 64
      %v8972 = vpop.permute.xlu0 %8971
      %8973 = vrot.lane.b32.xlu0 %v8904, 64
      %v8974 = vpop.permute.xlu0 %8973
      %8975 = vrot.lane.b32.xlu0 %v8906, 64
      %v8976 = vpop.permute.xlu0 %8975
      %8977 = vrot.lane.b32.xlu0 %v8908, 64
      %v8978 = vpop.permute.xlu0 %8977
      %8979 = vrot.lane.b32.xlu0 %v8910, 64
      %v8980 = vpop.permute.xlu0 %8979
      %8981 = vrot.lane.b32.xlu0 %v8912, 64
      %v8982 = vpop.permute.xlu0 %8981
      %8983 = vrot.lane.b32.xlu0 %v8914, 64
      %v8984 = vpop.permute.xlu0 %8983
      %8985 = vrot.lane.b32.xlu0 %v8916, 64
      %v8986 = vpop.permute.xlu0 %8985
      %8987 = vrot.lane.b32.xlu0 %v8918, 64
      %v8988 = vpop.permute.xlu0 %8987
      %8989 = vrot.lane.b32.xlu0 %v8917, 64
      %v8990 = vpop.permute.xlu0 %8989
      %vm9027 = vcmask 1048071
      %9028 = vst.msk [vmem:[#allocation4] sm:$0x80] %vm9027, %v8920
      %vm9029 = vcmask 1048064
      %9030 = vst.msk [vmem:[#allocation4 + $0x18] sm:$0xff] %vm9029, %v8922
      %9031 = vst.msk [vmem:[#allocation4 + $0x30] sm:$0xff] %vm9029, %v8924
      %9032 = vst.msk [vmem:[#allocation4 + $0x48] sm:$0xff] %vm9029, %v8926
      %9033 = vst.msk [vmem:[#allocation4 + $0x60] sm:$0xff] %vm9029, %v8928
      %9034 = vst.msk [vmem:[#allocation4 + $0x78] sm:$0xff] %vm9029, %v8930
      %9035 = vst.msk [vmem:[#allocation4 + $0x90] sm:$0xff] %vm9029, %v8932
      %9036 = vst.msk [vmem:[#allocation4 + $0xa8] sm:$0xff] %vm9029, %v8934
      %9037 = vst.msk [vmem:[#allocation4 + $0xc0] sm:$0xff] %vm9029, %v8936
      %9038 = vst.msk [vmem:[#allocation4 + $0xd8] sm:$0xff] %vm9029, %v8938
      %9039 = vst.msk [vmem:[#allocation4 + $0xf0] sm:$0xff] %vm9029, %v8940
      %9040 = vst.msk [vmem:[#allocation4 + $0x108] sm:$0xff] %vm9029, %v8942
      %9041 = vst.msk [vmem:[#allocation4 + $0x120] sm:$0xff] %vm9029, %v8944
      %9042 = vst.msk [vmem:[#allocation4 + $0x138] sm:$0xff] %vm9029, %v8946
      %9043 = vst.msk [vmem:[#allocation4 + $0x150] sm:$0xff] %vm9029, %v8948
      %9044 = vst.msk [vmem:[#allocation4 + $0x168] sm:$0xff] %vm9029, %v8950
      %9045 = vst.msk [vmem:[#allocation4 + $0x180] sm:$0xff] %vm9029, %v8952
      %9046 = vst.msk [vmem:[#allocation4 + $0x198] sm:$0xff] %vm9029, %v8954
      %9047 = vst.msk [vmem:[#allocation4 + $0x1b0] sm:$0xff] %vm9029, %v8956
      %9048 = vst.msk [vmem:[#allocation4 + $0x1c8] sm:$0xff] %vm9029, %v8958
      %9049 = vst.msk [vmem:[#allocation4 + $0x1e0] sm:$0xff] %vm9029, %v8960
      %9050 = vst.msk [vmem:[#allocation4 + $0x1f8] sm:$0xff] %vm9029, %v8962
      %9051 = vst.msk [vmem:[#allocation4 + $0x210] sm:$0xff] %vm9029, %v8964
      %9052 = vst.msk [vmem:[#allocation4 + $0x228] sm:$0xff] %vm9029, %v8966
      %9053 = vst.msk [vmem:[#allocation4 + $0x240] sm:$0xff] %vm9029, %v8968
      %9054 = vst.msk [vmem:[#allocation4 + $0x258] sm:$0xff] %vm9029, %v8970
      %9055 = vst.msk [vmem:[#allocation4 + $0x270] sm:$0xff] %vm9029, %v8972
      %9056 = vst.msk [vmem:[#allocation4 + $0x288] sm:$0xff] %vm9029, %v8974
      %9057 = vst.msk [vmem:[#allocation4 + $0x2a0] sm:$0xff] %vm9029, %v8976
      %9058 = vst.msk [vmem:[#allocation4 + $0x2b8] sm:$0xff] %vm9029, %v8978
      %9059 = vst.msk [vmem:[#allocation4 + $0x2d0] sm:$0xff] %vm9029, %v8980
      %9060 = vst.msk [vmem:[#allocation4 + $0x2e8] sm:$0xff] %vm9029, %v8982
      %9061 = vst.msk [vmem:[#allocation4 + $0x300] sm:$0xff] %vm9029, %v8984
      %9062 = vst.msk [vmem:[#allocation4 + $0x318] sm:$0xff] %vm9029, %v8986
      %9063 = vst.msk [vmem:[#allocation4 + $0x330] sm:$0xff] %vm9029, %v8988
      %vm9064 = vcmask 1042944
      %9065 = vst.msk [vmem:[#allocation4 + $0x348] sm:$0x7] %vm9064, %v8990
      %v9066 = vrot.slane %v8743, 2
      %v9067 = vrot.slane %v8744, 2
      %v9068 = vsel %vm7160, %v9066, %v9067
      %v9069 = vrot.slane %v8745, 2
      %v9070 = vsel %vm7160, %v9067, %v9069
      %v9071 = vrot.slane %v8746, 2
      %v9072 = vsel %vm7160, %v9069, %v9071
      %v9073 = vrot.slane %v8747, 2
      %v9074 = vsel %vm7160, %v9071, %v9073
      %v9075 = vrot.slane %v8748, 2
      %v9076 = vsel %vm7160, %v9073, %v9075
      %v9077 = vrot.slane %v8749, 2
      %v9078 = vsel %vm7160, %v9075, %v9077
      %v9079 = vrot.slane %v8750, 2
      %v9080 = vsel %vm7160, %v9077, %v9079
      %v9081 = vrot.slane %v8751, 2
      %v9082 = vsel %vm7160, %v9079, %v9081
      %v9083 = vrot.slane %v8752, 2
      %v9084 = vsel %vm7160, %v9081, %v9083
      %v9085 = vrot.slane %v8753, 2
      %v9086 = vsel %vm7160, %v9083, %v9085
      %v9087 = vrot.slane %v8754, 2
      %v9088 = vsel %vm7160, %v9085, %v9087
      %v9089 = vrot.slane %v8755, 2
      %v9090 = vsel %vm7160, %v9087, %v9089
      %v9091 = vrot.slane %v8756, 2
      %v9092 = vsel %vm7160, %v9089, %v9091
      %v9093 = vrot.slane %v8757, 2
      %v9094 = vsel %vm7160, %v9091, %v9093
      %v9095 = vrot.slane %v8758, 2
      %v9096 = vsel %vm7160, %v9093, %v9095
      %v9097 = vrot.slane %v8759, 2
      %v9098 = vsel %vm7160, %v9095, %v9097
      %v9099 = vrot.slane %v8760, 2
      %v9100 = vsel %vm7160, %v9097, %v9099
      %v9101 = vrot.slane %v8761, 2
      %v9102 = vsel %vm7160, %v9099, %v9101
      %v9103 = vrot.slane %v8762, 2
      %v9104 = vsel %vm7160, %v9101, %v9103
      %v9105 = vrot.slane %v8763, 2
      %v9106 = vsel %vm7160, %v9103, %v9105
      %v9107 = vrot.slane %v8764, 2
      %v9108 = vsel %vm7160, %v9105, %v9107
      %v9109 = vrot.slane %v8765, 2
      %v9110 = vsel %vm7160, %v9107, %v9109
      %v9111 = vrot.slane %v8766, 2
      %v9112 = vsel %vm7160, %v9109, %v9111
      %v9113 = vrot.slane %v8767, 2
      %v9114 = vsel %vm7160, %v9111, %v9113
      %v9115 = vrot.slane %v8768, 2
      %v9116 = vsel %vm7160, %v9113, %v9115
      %v9117 = vrot.slane %v8769, 2
      %v9118 = vsel %vm7160, %v9115, %v9117
      %v9119 = vrot.slane %v8770, 2
      %v9120 = vsel %vm7160, %v9117, %v9119
      %v9121 = vrot.slane %v8771, 2
      %v9122 = vsel %vm7160, %v9119, %v9121
      %v9123 = vrot.slane %v8772, 2
      %v9124 = vsel %vm7160, %v9121, %v9123
      %v9125 = vrot.slane %v8773, 2
      %v9126 = vsel %vm7160, %v9123, %v9125
      %v9127 = vrot.slane %v8774, 2
      %v9128 = vsel %vm7160, %v9125, %v9127
      %v9129 = vrot.slane %v8775, 2
      %v9130 = vsel %vm7160, %v9127, %v9129
      %v9131 = vrot.slane %v8776, 2
      %v9132 = vsel %vm7160, %v9129, %v9131
      %v9133 = vrot.slane %v8777, 2
      %v9134 = vsel %vm7160, %v9131, %v9133
      %vm9171 = vcmask 523270
      %9172 = vst.msk [vmem:[#allocation4 + $0x8] sm:$0xc0] %vm9171, %v9066
      %9173 = vst.msk [vmem:[#allocation4 + $0x20] sm:$0xff] %vm8778, %v9068
      %9174 = vst.msk [vmem:[#allocation4 + $0x38] sm:$0xff] %vm8778, %v9070
      %9175 = vst.msk [vmem:[#allocation4 + $0x50] sm:$0xff] %vm8778, %v9072
      %9176 = vst.msk [vmem:[#allocation4 + $0x68] sm:$0xff] %vm8778, %v9074
      %9177 = vst.msk [vmem:[#allocation4 + $0x80] sm:$0xff] %vm8778, %v9076
      %9178 = vst.msk [vmem:[#allocation4 + $0x98] sm:$0xff] %vm8778, %v9078
      %9179 = vst.msk [vmem:[#allocation4 + $0xb0] sm:$0xff] %vm8778, %v9080
      %9180 = vst.msk [vmem:[#allocation4 + $0xc8] sm:$0xff] %vm8778, %v9082
      %9181 = vst.msk [vmem:[#allocation4 + $0xe0] sm:$0xff] %vm8778, %v9084
      %9182 = vst.msk [vmem:[#allocation4 + $0xf8] sm:$0xff] %vm8778, %v9086
      %9183 = vst.msk [vmem:[#allocation4 + $0x110] sm:$0xff] %vm8778, %v9088
      %9184 = vst.msk [vmem:[#allocation4 + $0x128] sm:$0xff] %vm8778, %v9090
      %9185 = vst.msk [vmem:[#allocation4 + $0x140] sm:$0xff] %vm8778, %v9092
      %9186 = vst.msk [vmem:[#allocation4 + $0x158] sm:$0xff] %vm8778, %v9094
      %9187 = vst.msk [vmem:[#allocation4 + $0x170] sm:$0xff] %vm8778, %v9096
      %9188 = vst.msk [vmem:[#allocation4 + $0x188] sm:$0xff] %vm8778, %v9098
      %9189 = vst.msk [vmem:[#allocation4 + $0x1a0] sm:$0xff] %vm8778, %v9100
      %9190 = vst.msk [vmem:[#allocation4 + $0x1b8] sm:$0xff] %vm8778, %v9102
      %9191 = vst.msk [vmem:[#allocation4 + $0x1d0] sm:$0xff] %vm8778, %v9104
      %9192 = vst.msk [vmem:[#allocation4 + $0x1e8] sm:$0xff] %vm8778, %v9106
      %9193 = vst.msk [vmem:[#allocation4 + $0x200] sm:$0xff] %vm8778, %v9108
      %9194 = vst.msk [vmem:[#allocation4 + $0x218] sm:$0xff] %vm8778, %v9110
      %9195 = vst.msk [vmem:[#allocation4 + $0x230] sm:$0xff] %vm8778, %v9112
      %9196 = vst.msk [vmem:[#allocation4 + $0x248] sm:$0xff] %vm8778, %v9114
      %9197 = vst.msk [vmem:[#allocation4 + $0x260] sm:$0xff] %vm8778, %v9116
      %9198 = vst.msk [vmem:[#allocation4 + $0x278] sm:$0xff] %vm8778, %v9118
      %9199 = vst.msk [vmem:[#allocation4 + $0x290] sm:$0xff] %vm8778, %v9120
      %9200 = vst.msk [vmem:[#allocation4 + $0x2a8] sm:$0xff] %vm8778, %v9122
      %9201 = vst.msk [vmem:[#allocation4 + $0x2c0] sm:$0xff] %vm8778, %v9124
      %9202 = vst.msk [vmem:[#allocation4 + $0x2d8] sm:$0xff] %vm8778, %v9126
      %9203 = vst.msk [vmem:[#allocation4 + $0x2f0] sm:$0xff] %vm8778, %v9128
      %9204 = vst.msk [vmem:[#allocation4 + $0x308] sm:$0xff] %vm8778, %v9130
      %9205 = vst.msk [vmem:[#allocation4 + $0x320] sm:$0xff] %vm8778, %v9132
      %9206 = vst.msk [vmem:[#allocation4 + $0x338] sm:$0xff] %vm8778, %v9134
      %vm9207 = vcmask 517120
      %9208 = vst.msk [vmem:[#allocation4 + $0x350] sm:$0x3] %vm9207, %v9133
      %v9209 = vrot.slane %v8743, 3
      %v9210 = vrot.slane %v8744, 3
      %v9211 = vsel %vm7302, %v9209, %v9210
      %v9212 = vrot.slane %v8745, 3
      %v9213 = vsel %vm7302, %v9210, %v9212
      %v9214 = vrot.slane %v8746, 3
      %v9215 = vsel %vm7302, %v9212, %v9214
      %v9216 = vrot.slane %v8747, 3
      %v9217 = vsel %vm7302, %v9214, %v9216
      %v9218 = vrot.slane %v8748, 3
      %v9219 = vsel %vm7302, %v9216, %v9218
      %v9220 = vrot.slane %v8749, 3
      %v9221 = vsel %vm7302, %v9218, %v9220
      %v9222 = vrot.slane %v8750, 3
      %v9223 = vsel %vm7302, %v9220, %v9222
      %v9224 = vrot.slane %v8751, 3
      %v9225 = vsel %vm7302, %v9222, %v9224
      %v9226 = vrot.slane %v8752, 3
      %v9227 = vsel %vm7302, %v9224, %v9226
      %v9228 = vrot.slane %v8753, 3
      %v9229 = vsel %vm7302, %v9226, %v9228
      %v9230 = vrot.slane %v8754, 3
      %v9231 = vsel %vm7302, %v9228, %v9230
      %v9232 = vrot.slane %v8755, 3
      %v9233 = vsel %vm7302, %v9230, %v9232
      %v9234 = vrot.slane %v8756, 3
      %v9235 = vsel %vm7302, %v9232, %v9234
      %v9236 = vrot.slane %v8757, 3
      %v9237 = vsel %vm7302, %v9234, %v9236
      %v9238 = vrot.slane %v8758, 3
      %v9239 = vsel %vm7302, %v9236, %v9238
      %v9240 = vrot.slane %v8759, 3
      %v9241 = vsel %vm7302, %v9238, %v9240
      %v9242 = vrot.slane %v8760, 3
      %v9243 = vsel %vm7302, %v9240, %v9242
      %v9244 = vrot.slane %v8761, 3
      %v9245 = vsel %vm7302, %v9242, %v9244
      %v9246 = vrot.slane %v8762, 3
      %v9247 = vsel %vm7302, %v9244, %v9246
      %v9248 = vrot.slane %v8763, 3
      %v9249 = vsel %vm7302, %v9246, %v9248
      %v9250 = vrot.slane %v8764, 3
      %v9251 = vsel %vm7302, %v9248, %v9250
      %v9252 = vrot.slane %v8765, 3
      %v9253 = vsel %vm7302, %v9250, %v9252
      %v9254 = vrot.slane %v8766, 3
      %v9255 = vsel %vm7302, %v9252, %v9254
      %v9256 = vrot.slane %v8767, 3
      %v9257 = vsel %vm7302, %v9254, %v9256
      %v9258 = vrot.slane %v8768, 3
      %v9259 = vsel %vm7302, %v9256, %v9258
      %v9260 = vrot.slane %v8769, 3
      %v9261 = vsel %vm7302, %v9258, %v9260
      %v9262 = vrot.slane %v8770, 3
      %v9263 = vsel %vm7302, %v9260, %v9262
      %v9264 = vrot.slane %v8771, 3
      %v9265 = vsel %vm7302, %v9262, %v9264
      %v9266 = vrot.slane %v8772, 3
      %v9267 = vsel %vm7302, %v9264, %v9266
      %v9268 = vrot.slane %v8773, 3
      %v9269 = vsel %vm7302, %v9266, %v9268
      %v9270 = vrot.slane %v8774, 3
      %v9271 = vsel %vm7302, %v9268, %v9270
      %v9272 = vrot.slane %v8775, 3
      %v9273 = vsel %vm7302, %v9270, %v9272
      %v9274 = vrot.slane %v8776, 3
      %v9275 = vsel %vm7302, %v9272, %v9274
      %v9276 = vrot.slane %v8777, 3
      %v9277 = vsel %vm7302, %v9274, %v9276
      %9278 = vrot.lane.b32.xlu0 %v9209, 64
      %v9279 = vpop.permute.xlu0 %9278
      %9280 = vrot.lane.b32.xlu0 %v9211, 64
      %v9281 = vpop.permute.xlu0 %9280
      %9282 = vrot.lane.b32.xlu0 %v9213, 64
      %v9283 = vpop.permute.xlu0 %9282
      %9284 = vrot.lane.b32.xlu0 %v9215, 64
      %v9285 = vpop.permute.xlu0 %9284
      %9286 = vrot.lane.b32.xlu0 %v9217, 64
      %v9287 = vpop.permute.xlu0 %9286
      %9288 = vrot.lane.b32.xlu0 %v9219, 64
      %v9289 = vpop.permute.xlu0 %9288
      %9290 = vrot.lane.b32.xlu0 %v9221, 64
      %v9291 = vpop.permute.xlu0 %9290
      %9292 = vrot.lane.b32.xlu0 %v9223, 64
      %v9293 = vpop.permute.xlu0 %9292
      %9294 = vrot.lane.b32.xlu0 %v9225, 64
      %v9295 = vpop.permute.xlu0 %9294
      %9296 = vrot.lane.b32.xlu0 %v9227, 64
      %v9297 = vpop.permute.xlu0 %9296
      %9298 = vrot.lane.b32.xlu0 %v9229, 64
      %v9299 = vpop.permute.xlu0 %9298
      %9300 = vrot.lane.b32.xlu0 %v9231, 64
      %v9301 = vpop.permute.xlu0 %9300
      %9302 = vrot.lane.b32.xlu0 %v9233, 64
      %v9303 = vpop.permute.xlu0 %9302
      %9304 = vrot.lane.b32.xlu0 %v9235, 64
      %v9305 = vpop.permute.xlu0 %9304
      %9306 = vrot.lane.b32.xlu0 %v9237, 64
      %v9307 = vpop.permute.xlu0 %9306
      %9308 = vrot.lane.b32.xlu0 %v9239, 64
      %v9309 = vpop.permute.xlu0 %9308
      %9310 = vrot.lane.b32.xlu0 %v9241, 64
      %v9311 = vpop.permute.xlu0 %9310
      %9312 = vrot.lane.b32.xlu0 %v9243, 64
      %v9313 = vpop.permute.xlu0 %9312
      %9314 = vrot.lane.b32.xlu0 %v9245, 64
      %v9315 = vpop.permute.xlu0 %9314
      %9316 = vrot.lane.b32.xlu0 %v9247, 64
      %v9317 = vpop.permute.xlu0 %9316
      %9318 = vrot.lane.b32.xlu0 %v9249, 64
      %v9319 = vpop.permute.xlu0 %9318
      %9320 = vrot.lane.b32.xlu0 %v9251, 64
      %v9321 = vpop.permute.xlu0 %9320
      %9322 = vrot.lane.b32.xlu0 %v9253, 64
      %v9323 = vpop.permute.xlu0 %9322
      %9324 = vrot.lane.b32.xlu0 %v9255, 64
      %v9325 = vpop.permute.xlu0 %9324
      %9326 = vrot.lane.b32.xlu0 %v9257, 64
      %v9327 = vpop.permute.xlu0 %9326
      %9328 = vrot.lane.b32.xlu0 %v9259, 64
      %v9329 = vpop.permute.xlu0 %9328
      %9330 = vrot.lane.b32.xlu0 %v9261, 64
      %v9331 = vpop.permute.xlu0 %9330
      %9332 = vrot.lane.b32.xlu0 %v9263, 64
      %v9333 = vpop.permute.xlu0 %9332
      %9334 = vrot.lane.b32.xlu0 %v9265, 64
      %v9335 = vpop.permute.xlu0 %9334
      %9336 = vrot.lane.b32.xlu0 %v9267, 64
      %v9337 = vpop.permute.xlu0 %9336
      %9338 = vrot.lane.b32.xlu0 %v9269, 64
      %v9339 = vpop.permute.xlu0 %9338
      %9340 = vrot.lane.b32.xlu0 %v9271, 64
      %v9341 = vpop.permute.xlu0 %9340
      %9342 = vrot.lane.b32.xlu0 %v9273, 64
      %v9343 = vpop.permute.xlu0 %9342
      %9344 = vrot.lane.b32.xlu0 %v9275, 64
      %v9345 = vpop.permute.xlu0 %9344
      %9346 = vrot.lane.b32.xlu0 %v9277, 64
      %v9347 = vpop.permute.xlu0 %9346
      %9348 = vrot.lane.b32.xlu0 %v9276, 64
      %v9349 = vpop.permute.xlu0 %9348
      %vm9386 = vcmask 1048069
      %9387 = vst.msk [vmem:[#allocation4 + $0x8] sm:$0xe0] %vm9386, %v9279
      %9388 = vst.msk [vmem:[#allocation4 + $0x20] sm:$0xff] %vm9029, %v9281
      %9389 = vst.msk [vmem:[#allocation4 + $0x38] sm:$0xff] %vm9029, %v9283
      %9390 = vst.msk [vmem:[#allocation4 + $0x50] sm:$0xff] %vm9029, %v9285
      %9391 = vst.msk [vmem:[#allocation4 + $0x68] sm:$0xff] %vm9029, %v9287
      %9392 = vst.msk [vmem:[#allocation4 + $0x80] sm:$0xff] %vm9029, %v9289
      %9393 = vst.msk [vmem:[#allocation4 + $0x98] sm:$0xff] %vm9029, %v9291
      %9394 = vst.msk [vmem:[#allocation4 + $0xb0] sm:$0xff] %vm9029, %v9293
      %9395 = vst.msk [vmem:[#allocation4 + $0xc8] sm:$0xff] %vm9029, %v9295
      %9396 = vst.msk [vmem:[#allocation4 + $0xe0] sm:$0xff] %vm9029, %v9297
      %9397 = vst.msk [vmem:[#allocation4 + $0xf8] sm:$0xff] %vm9029, %v9299
      %9398 = vst.msk [vmem:[#allocation4 + $0x110] sm:$0xff] %vm9029, %v9301
      %9399 = vst.msk [vmem:[#allocation4 + $0x128] sm:$0xff] %vm9029, %v9303
      %9400 = vst.msk [vmem:[#allocation4 + $0x140] sm:$0xff] %vm9029, %v9305
      %9401 = vst.msk [vmem:[#allocation4 + $0x158] sm:$0xff] %vm9029, %v9307
      %9402 = vst.msk [vmem:[#allocation4 + $0x170] sm:$0xff] %vm9029, %v9309
      %9403 = vst.msk [vmem:[#allocation4 + $0x188] sm:$0xff] %vm9029, %v9311
      %9404 = vst.msk [vmem:[#allocation4 + $0x1a0] sm:$0xff] %vm9029, %v9313
      %9405 = vst.msk [vmem:[#allocation4 + $0x1b8] sm:$0xff] %vm9029, %v9315
      %9406 = vst.msk [vmem:[#allocation4 + $0x1d0] sm:$0xff] %vm9029, %v9317
      %9407 = vst.msk [vmem:[#allocation4 + $0x1e8] sm:$0xff] %vm9029, %v9319
      %9408 = vst.msk [vmem:[#allocation4 + $0x200] sm:$0xff] %vm9029, %v9321
      %9409 = vst.msk [vmem:[#allocation4 + $0x218] sm:$0xff] %vm9029, %v9323
      %9410 = vst.msk [vmem:[#allocation4 + $0x230] sm:$0xff] %vm9029, %v9325
      %9411 = vst.msk [vmem:[#allocation4 + $0x248] sm:$0xff] %vm9029, %v9327
      %9412 = vst.msk [vmem:[#allocation4 + $0x260] sm:$0xff] %vm9029, %v9329
      %9413 = vst.msk [vmem:[#allocation4 + $0x278] sm:$0xff] %vm9029, %v9331
      %9414 = vst.msk [vmem:[#allocation4 + $0x290] sm:$0xff] %vm9029, %v9333
      %9415 = vst.msk [vmem:[#allocation4 + $0x2a8] sm:$0xff] %vm9029, %v9335
      %9416 = vst.msk [vmem:[#allocation4 + $0x2c0] sm:$0xff] %vm9029, %v9337
      %9417 = vst.msk [vmem:[#allocation4 + $0x2d8] sm:$0xff] %vm9029, %v9339
      %9418 = vst.msk [vmem:[#allocation4 + $0x2f0] sm:$0xff] %vm9029, %v9341
      %9419 = vst.msk [vmem:[#allocation4 + $0x308] sm:$0xff] %vm9029, %v9343
      %9420 = vst.msk [vmem:[#allocation4 + $0x320] sm:$0xff] %vm9029, %v9345
      %9421 = vst.msk [vmem:[#allocation4 + $0x338] sm:$0xff] %vm9029, %v9347
      %vm9422 = vcmask 1040896
      %9423 = vst.msk [vmem:[#allocation4 + $0x350] sm:$0x1] %vm9422, %v9349
      %v9424 = vrot.slane %v8743, 4
      %v9425 = vrot.slane %v8744, 4
      %v9426 = vsel %vm7444, %v9424, %v9425
      %v9427 = vrot.slane %v8745, 4
      %v9428 = vsel %vm7444, %v9425, %v9427
      %v9429 = vrot.slane %v8746, 4
      %v9430 = vsel %vm7444, %v9427, %v9429
      %v9431 = vrot.slane %v8747, 4
      %v9432 = vsel %vm7444, %v9429, %v9431
      %v9433 = vrot.slane %v8748, 4
      %v9434 = vsel %vm7444, %v9431, %v9433
      %v9435 = vrot.slane %v8749, 4
      %v9436 = vsel %vm7444, %v9433, %v9435
      %v9437 = vrot.slane %v8750, 4
      %v9438 = vsel %vm7444, %v9435, %v9437
      %v9439 = vrot.slane %v8751, 4
      %v9440 = vsel %vm7444, %v9437, %v9439
      %v9441 = vrot.slane %v8752, 4
      %v9442 = vsel %vm7444, %v9439, %v9441
      %v9443 = vrot.slane %v8753, 4
      %v9444 = vsel %vm7444, %v9441, %v9443
      %v9445 = vrot.slane %v8754, 4
      %v9446 = vsel %vm7444, %v9443, %v9445
      %v9447 = vrot.slane %v8755, 4
      %v9448 = vsel %vm7444, %v9445, %v9447
      %v9449 = vrot.slane %v8756, 4
      %v9450 = vsel %vm7444, %v9447, %v9449
      %v9451 = vrot.slane %v8757, 4
      %v9452 = vsel %vm7444, %v9449, %v9451
      %v9453 = vrot.slane %v8758, 4
      %v9454 = vsel %vm7444, %v9451, %v9453
      %v9455 = vrot.slane %v8759, 4
      %v9456 = vsel %vm7444, %v9453, %v9455
      %v9457 = vrot.slane %v8760, 4
      %v9458 = vsel %vm7444, %v9455, %v9457
      %v9459 = vrot.slane %v8761, 4
      %v9460 = vsel %vm7444, %v9457, %v9459
      %v9461 = vrot.slane %v8762, 4
      %v9462 = vsel %vm7444, %v9459, %v9461
      %v9463 = vrot.slane %v8763, 4
      %v9464 = vsel %vm7444, %v9461, %v9463
      %v9465 = vrot.slane %v8764, 4
      %v9466 = vsel %vm7444, %v9463, %v9465
      %v9467 = vrot.slane %v8765, 4
      %v9468 = vsel %vm7444, %v9465, %v9467
      %v9469 = vrot.slane %v8766, 4
      %v9470 = vsel %vm7444, %v9467, %v9469
      %v9471 = vrot.slane %v8767, 4
      %v9472 = vsel %vm7444, %v9469, %v9471
      %v9473 = vrot.slane %v8768, 4
      %v9474 = vsel %vm7444, %v9471, %v9473
      %v9475 = vrot.slane %v8769, 4
      %v9476 = vsel %vm7444, %v9473, %v9475
      %v9477 = vrot.slane %v8770, 4
      %v9478 = vsel %vm7444, %v9475, %v9477
      %v9479 = vrot.slane %v8771, 4
      %v9480 = vsel %vm7444, %v9477, %v9479
      %v9481 = vrot.slane %v8772, 4
      %v9482 = vsel %vm7444, %v9479, %v9481
      %v9483 = vrot.slane %v8773, 4
      %v9484 = vsel %vm7444, %v9481, %v9483
      %v9485 = vrot.slane %v8774, 4
      %v9486 = vsel %vm7444, %v9483, %v9485
      %v9487 = vrot.slane %v8775, 4
      %v9488 = vsel %vm7444, %v9485, %v9487
      %v9489 = vrot.slane %v8776, 4
      %v9490 = vsel %vm7444, %v9487, %v9489
      %v9491 = vrot.slane %v8777, 4
      %v9492 = vsel %vm7444, %v9489, %v9491
      %vm9528 = vcmask 523268
      %9529 = vst.msk [vmem:[#allocation4 + $0x10] sm:$0xf0] %vm9528, %v9424
      %9530 = vst.msk [vmem:[#allocation4 + $0x28] sm:$0xff] %vm8778, %v9426
      %9531 = vst.msk [vmem:[#allocation4 + $0x40] sm:$0xff] %vm8778, %v9428
      %9532 = vst.msk [vmem:[#allocation4 + $0x58] sm:$0xff] %vm8778, %v9430
      %9533 = vst.msk [vmem:[#allocation4 + $0x70] sm:$0xff] %vm8778, %v9432
      %9534 = vst.msk [vmem:[#allocation4 + $0x88] sm:$0xff] %vm8778, %v9434
      %9535 = vst.msk [vmem:[#allocation4 + $0xa0] sm:$0xff] %vm8778, %v9436
      %9536 = vst.msk [vmem:[#allocation4 + $0xb8] sm:$0xff] %vm8778, %v9438
      %9537 = vst.msk [vmem:[#allocation4 + $0xd0] sm:$0xff] %vm8778, %v9440
      %9538 = vst.msk [vmem:[#allocation4 + $0xe8] sm:$0xff] %vm8778, %v9442
      %9539 = vst.msk [vmem:[#allocation4 + $0x100] sm:$0xff] %vm8778, %v9444
      %9540 = vst.msk [vmem:[#allocation4 + $0x118] sm:$0xff] %vm8778, %v9446
      %9541 = vst.msk [vmem:[#allocation4 + $0x130] sm:$0xff] %vm8778, %v9448
      %9542 = vst.msk [vmem:[#allocation4 + $0x148] sm:$0xff] %vm8778, %v9450
      %9543 = vst.msk [vmem:[#allocation4 + $0x160] sm:$0xff] %vm8778, %v9452
      %9544 = vst.msk [vmem:[#allocation4 + $0x178] sm:$0xff] %vm8778, %v9454
      %9545 = vst.msk [vmem:[#allocation4 + $0x190] sm:$0xff] %vm8778, %v9456
      %9546 = vst.msk [vmem:[#allocation4 + $0x1a8] sm:$0xff] %vm8778, %v9458
      %9547 = vst.msk [vmem:[#allocation4 + $0x1c0] sm:$0xff] %vm8778, %v9460
      %9548 = vst.msk [vmem:[#allocation4 + $0x1d8] sm:$0xff] %vm8778, %v9462
      %9549 = vst.msk [vmem:[#allocation4 + $0x1f0] sm:$0xff] %vm8778, %v9464
      %9550 = vst.msk [vmem:[#allocation4 + $0x208] sm:$0xff] %vm8778, %v9466
      %9551 = vst.msk [vmem:[#allocation4 + $0x220] sm:$0xff] %vm8778, %v9468
      %9552 = vst.msk [vmem:[#allocation4 + $0x238] sm:$0xff] %vm8778, %v9470
      %9553 = vst.msk [vmem:[#allocation4 + $0x250] sm:$0xff] %vm8778, %v9472
      %9554 = vst.msk [vmem:[#allocation4 + $0x268] sm:$0xff] %vm8778, %v9474
      %9555 = vst.msk [vmem:[#allocation4 + $0x280] sm:$0xff] %vm8778, %v9476
      %9556 = vst.msk [vmem:[#allocation4 + $0x298] sm:$0xff] %vm8778, %v9478
      %9557 = vst.msk [vmem:[#allocation4 + $0x2b0] sm:$0xff] %vm8778, %v9480
      %9558 = vst.msk [vmem:[#allocation4 + $0x2c8] sm:$0xff] %vm8778, %v9482
      %9559 = vst.msk [vmem:[#allocation4 + $0x2e0] sm:$0xff] %vm8778, %v9484
      %9560 = vst.msk [vmem:[#allocation4 + $0x2f8] sm:$0xff] %vm8778, %v9486
      %9561 = vst.msk [vmem:[#allocation4 + $0x310] sm:$0xff] %vm8778, %v9488
      %9562 = vst.msk [vmem:[#allocation4 + $0x328] sm:$0xff] %vm8778, %v9490
      %9563 = vst.msk [vmem:[#allocation4 + $0x340] sm:$0xff] %vm8778, %v9492
      %v9564 = vld [vmem:[#allocation4 + $0x18] sm:$0xff]
      %v9565 = vld [vmem:[#allocation4 + $0x20] sm:$0xff]
      %v9566 = vld [vmem:[#allocation4 + $0x28] sm:$0xff]
      %v9567 = vld [vmem:[#allocation4 + $0x30] sm:$0xff]
      %v9568 = vld [vmem:[#allocation4 + $0x38] sm:$0xff]
      %v9569 = vld [vmem:[#allocation4 + $0x40] sm:$0xff]
      %v9570 = vld [vmem:[#allocation4 + $0x48] sm:$0xff]
      %v9571 = vld [vmem:[#allocation4 + $0x50] sm:$0xff]
      %v9572 = vld [vmem:[#allocation4 + $0x58] sm:$0xff]
      %v9573 = vld [vmem:[#allocation4 + $0x60] sm:$0xff]
      %v9574 = vld [vmem:[#allocation4 + $0x68] sm:$0xff]
      %v9575 = vld [vmem:[#allocation4 + $0x70] sm:$0xff]
      %v9576 = vld [vmem:[#allocation4 + $0x78] sm:$0xff]
      %v9577 = vld [vmem:[#allocation4 + $0x80] sm:$0xff]
      %v9578 = vld [vmem:[#allocation4 + $0x88] sm:$0xff]
      %v9579 = vld [vmem:[#allocation4 + $0x90] sm:$0xff]
      %v9580 = vld [vmem:[#allocation4 + $0x98] sm:$0xff]
      %v9581 = vld [vmem:[#allocation4 + $0xa0] sm:$0xff]
      %v9582 = vld [vmem:[#allocation4 + $0xa8] sm:$0xff]
      %v9583 = vld [vmem:[#allocation4 + $0xb0] sm:$0xff]
      %v9584 = vld [vmem:[#allocation4 + $0xb8] sm:$0xff]
      %v9585 = vld [vmem:[#allocation4 + $0xc0] sm:$0xff]
      %v9586 = vld [vmem:[#allocation4 + $0xc8] sm:$0xff]
      %v9587 = vld [vmem:[#allocation4 + $0xd0] sm:$0xff]
      %v9588 = vld [vmem:[#allocation4 + $0xd8] sm:$0xff]
      %v9589 = vld [vmem:[#allocation4 + $0xe0] sm:$0xff]
      %v9590 = vld [vmem:[#allocation4 + $0xe8] sm:$0xff]
      %v9591 = vld [vmem:[#allocation4 + $0xf0] sm:$0xff]
      %v9592 = vld [vmem:[#allocation4 + $0xf8] sm:$0xff]
      %v9593 = vld [vmem:[#allocation4 + $0x100] sm:$0xff]
      %v9594 = vld [vmem:[#allocation4 + $0x108] sm:$0xff]
      %v9595 = vld [vmem:[#allocation4 + $0x110] sm:$0xff]
      %v9596 = vld [vmem:[#allocation4 + $0x118] sm:$0xff]
      %v9597 = vld [vmem:[#allocation4 + $0x120] sm:$0xff]
      %v9598 = vld [vmem:[#allocation4 + $0x128] sm:$0xff]
      %v9599 = vld [vmem:[#allocation4 + $0x130] sm:$0xff]
      %v9600 = vld [vmem:[#allocation4 + $0x138] sm:$0xff]
      %v9601 = vld [vmem:[#allocation4 + $0x140] sm:$0xff]
      %v9602 = vld [vmem:[#allocation4 + $0x148] sm:$0xff]
      %v9603 = vld [vmem:[#allocation4 + $0x150] sm:$0xff]
      %v9604 = vld [vmem:[#allocation4 + $0x158] sm:$0xff]
      %v9605 = vld [vmem:[#allocation4 + $0x160] sm:$0xff]
      %v9606 = vld [vmem:[#allocation4 + $0x168] sm:$0xff]
      %v9607 = vld [vmem:[#allocation4 + $0x170] sm:$0xff]
      %v9608 = vld [vmem:[#allocation4 + $0x178] sm:$0xff]
      %v9609 = vld [vmem:[#allocation4 + $0x180] sm:$0xff]
      %v9610 = vld [vmem:[#allocation4 + $0x188] sm:$0xff]
      %v9611 = vld [vmem:[#allocation4 + $0x190] sm:$0xff]
      %v9612 = vld [vmem:[#allocation4 + $0x198] sm:$0xff]
      %v9613 = vld [vmem:[#allocation4 + $0x1a0] sm:$0xff]
      %v9614 = vld [vmem:[#allocation4 + $0x1a8] sm:$0xff]
      %v9615 = vld [vmem:[#allocation4 + $0x1b0] sm:$0xff]
      %v9616 = vld [vmem:[#allocation4 + $0x1b8] sm:$0xff]
      %v9617 = vld [vmem:[#allocation4 + $0x1c0] sm:$0xff]
      %v9618 = vld [vmem:[#allocation4 + $0x1c8] sm:$0xff]
      %v9619 = vld [vmem:[#allocation4 + $0x1d0] sm:$0xff]
      %v9620 = vld [vmem:[#allocation4 + $0x1d8] sm:$0xff]
      %v9621 = vld [vmem:[#allocation4 + $0x1e0] sm:$0xff]
      %v9622 = vld [vmem:[#allocation4 + $0x1e8] sm:$0xff]
      %v9623 = vld [vmem:[#allocation4 + $0x1f0] sm:$0xff]
      %v9624 = vld [vmem:[#allocation4 + $0x1f8] sm:$0xff]
      %v9625 = vld [vmem:[#allocation4 + $0x200] sm:$0xff]
      %v9626 = vld [vmem:[#allocation4 + $0x208] sm:$0xff]
      %v9627 = vld [vmem:[#allocation4 + $0x210] sm:$0xff]
      %v9628 = vld [vmem:[#allocation4 + $0x218] sm:$0xff]
      %v9629 = vld [vmem:[#allocation4 + $0x220] sm:$0xff]
      %v9630 = vld [vmem:[#allocation4 + $0x228] sm:$0xff]
      %v9631 = vld [vmem:[#allocation4 + $0x230] sm:$0xff]
      %v9632 = vld [vmem:[#allocation4 + $0x238] sm:$0xff]
      %v9633 = vld [vmem:[#allocation4 + $0x240] sm:$0xff]
      %v9634 = vld [vmem:[#allocation4 + $0x248] sm:$0xff]
      %v9635 = vld [vmem:[#allocation4 + $0x250] sm:$0xff]
      %v9636 = vld [vmem:[#allocation4 + $0x258] sm:$0xff]
      %v9637 = vld [vmem:[#allocation4 + $0x260] sm:$0xff]
      %v9638 = vld [vmem:[#allocation4 + $0x268] sm:$0xff]
      %v9639 = vld [vmem:[#allocation4 + $0x270] sm:$0xff]
      %v9640 = vld [vmem:[#allocation4 + $0x278] sm:$0xff]
      %v9641 = vld [vmem:[#allocation4 + $0x280] sm:$0xff]
      %v9642 = vld [vmem:[#allocation4 + $0x288] sm:$0xff]
      %v9643 = vld [vmem:[#allocation4 + $0x290] sm:$0xff]
      %v9644 = vld [vmem:[#allocation4 + $0x298] sm:$0xff]
      %v9645 = vld [vmem:[#allocation4 + $0x2a0] sm:$0xff]
      %v9646 = vld [vmem:[#allocation4 + $0x2a8] sm:$0xff]
      %v9647 = vld [vmem:[#allocation4 + $0x2b0] sm:$0xff]
      %v9648 = vld [vmem:[#allocation4 + $0x2b8] sm:$0xff]
      %v9649 = vld [vmem:[#allocation4 + $0x2c0] sm:$0xff]
      %v9650 = vld [vmem:[#allocation4 + $0x2c8] sm:$0xff]
      %v9651 = vld [vmem:[#allocation4 + $0x2d0] sm:$0xff]
      %v9652 = vld [vmem:[#allocation4 + $0x2d8] sm:$0xff]
      %v9653 = vld [vmem:[#allocation4 + $0x2e0] sm:$0xff]
      %v9654 = vld [vmem:[#allocation4 + $0x2e8] sm:$0xff]
      %v9655 = vld [vmem:[#allocation4 + $0x2f0] sm:$0xff]
      %v9656 = vld [vmem:[#allocation4 + $0x2f8] sm:$0xff]
      %v9657 = vld [vmem:[#allocation4 + $0x300] sm:$0xff]
      %v9658 = vld [vmem:[#allocation4 + $0x308] sm:$0xff]
      %v9659 = vld [vmem:[#allocation4 + $0x310] sm:$0xff]
      %v9660 = vld [vmem:[#allocation4 + $0x318] sm:$0xff]
      %v9661 = vld [vmem:[#allocation4 + $0x320] sm:$0xff]
      %v9662 = vld [vmem:[#allocation4 + $0x328] sm:$0xff]
      %v9663 = vld [vmem:[#allocation4 + $0x330] sm:$0xff]
      %v9664 = vld [vmem:[#allocation4 + $0x338] sm:$0xff]
      %v9665 = vld [vmem:[#allocation4 + $0x340] sm:$0xff]
      %v9666 = vpack.c.bf16 %v9567, %v9564
      %v9667 = vpack.c.bf16 %v9568, %v9565
      %v9668 = vpack.c.bf16 %v9569, %v9566
      %v9669 = vpack.c.bf16 %v9573, %v9570
      %v9670 = vpack.c.bf16 %v9574, %v9571
      %v9671 = vpack.c.bf16 %v9575, %v9572
      %v9672 = vpack.c.bf16 %v9579, %v9576
      %v9673 = vpack.c.bf16 %v9580, %v9577
      %v9674 = vpack.c.bf16 %v9581, %v9578
      %v9675 = vpack.c.bf16 %v9585, %v9582
      %v9676 = vpack.c.bf16 %v9586, %v9583
      %v9677 = vpack.c.bf16 %v9587, %v9584
      %v9678 = vpack.c.bf16 %v9591, %v9588
      %v9679 = vpack.c.bf16 %v9592, %v9589
      %v9680 = vpack.c.bf16 %v9593, %v9590
      %v9681 = vpack.c.bf16 %v9597, %v9594
      %v9682 = vpack.c.bf16 %v9598, %v9595
      %v9683 = vpack.c.bf16 %v9599, %v9596
      %v9684 = vpack.c.bf16 %v9603, %v9600
      %v9685 = vpack.c.bf16 %v9604, %v9601
      %v9686 = vpack.c.bf16 %v9605, %v9602
      %v9687 = vpack.c.bf16 %v9609, %v9606
      %v9688 = vpack.c.bf16 %v9610, %v9607
      %v9689 = vpack.c.bf16 %v9611, %v9608
      %v9690 = vpack.c.bf16 %v9615, %v9612
      %v9691 = vpack.c.bf16 %v9616, %v9613
      %v9692 = vpack.c.bf16 %v9617, %v9614
      %v9693 = vpack.c.bf16 %v9621, %v9618
      %v9694 = vpack.c.bf16 %v9622, %v9619
      %v9695 = vpack.c.bf16 %v9623, %v9620
      %v9696 = vpack.c.bf16 %v9627, %v9624
      %v9697 = vpack.c.bf16 %v9628, %v9625
      %v9698 = vpack.c.bf16 %v9629, %v9626
      %v9699 = vpack.c.bf16 %v9633, %v9630
      %v9700 = vpack.c.bf16 %v9634, %v9631
      %v9701 = vpack.c.bf16 %v9635, %v9632
      %v9702 = vpack.c.bf16 %v9639, %v9636
      %v9703 = vpack.c.bf16 %v9640, %v9637
      %v9704 = vpack.c.bf16 %v9641, %v9638
      %v9705 = vpack.c.bf16 %v9645, %v9642
      %v9706 = vpack.c.bf16 %v9646, %v9643
      %v9707 = vpack.c.bf16 %v9647, %v9644
      %v9708 = vpack.c.bf16 %v9651, %v9648
      %v9709 = vpack.c.bf16 %v9652, %v9649
      %v9710 = vpack.c.bf16 %v9653, %v9650
      %v9711 = vpack.c.bf16 %v9657, %v9654
      %v9712 = vpack.c.bf16 %v9658, %v9655
      %v9713 = vpack.c.bf16 %v9659, %v9656
      %v9714 = vpack.c.bf16 %v9663, %v9660
      %v9715 = vpack.c.bf16 %v9664, %v9661
      %v9716 = vpack.c.bf16 %v9665, %v9662
      %v9717 = vld [vmem:[%s4] sm:$0xf]
      %v9718 = vld [vmem:[%s4 + $0x4] sm:$0xf]
      %v9719 = vld [vmem:[%s4 + $0x8] sm:$0xf]
      %v9720 = vld [vmem:[%s4 + $0xc] sm:$0xf]
      %v9721 = vld [vmem:[%s4 + $0x10] sm:$0xf]
      %v9722 = vld [vmem:[%s4 + $0x14] sm:$0xf]
      %v9723 = vld [vmem:[%s4 + $0x18] sm:$0xf]
      %v9724 = vld [vmem:[%s4 + $0x1c] sm:$0xf]
      %v9725 = vld [vmem:[%s4 + $0x20] sm:$0xf]
      %v9726 = vld [vmem:[%s4 + $0x24] sm:$0xf]
      %v9727 = vld [vmem:[%s4 + $0x28] sm:$0xf]
      %v9728 = vld [vmem:[%s4 + $0x2c] sm:$0xf]
      %v9729 = vld [vmem:[%s4 + $0x30] sm:$0xf]
      %v9730 = vld [vmem:[%s4 + $0x34] sm:$0xf]
      %v9731 = vld [vmem:[%s4 + $0x38] sm:$0xf]
      %v9732 = vld [vmem:[%s4 + $0x3c] sm:$0xf]
      %v9733 = vld [vmem:[%s4 + $0x40] sm:$0xf]
      %v9734 = vld [vmem:[%s4 + $0x44] sm:$0xf]
      %v9735 = vld [vmem:[%s4 + $0x48] sm:$0xf]
      %v9736 = vld [vmem:[%s4 + $0x4c] sm:$0xf]
      %v9737 = vld [vmem:[%s4 + $0x50] sm:$0xf]
      %v9738 = vld [vmem:[%s4 + $0x54] sm:$0xf]
      %v9739 = vld [vmem:[%s4 + $0x58] sm:$0xf]
      %v9740 = vld [vmem:[%s4 + $0x5c] sm:$0xf]
      %v9741 = vld [vmem:[%s4 + $0x60] sm:$0xf]
      %v9742 = vld [vmem:[%s4 + $0x64] sm:$0xf]
      %v9743 = vld [vmem:[%s4 + $0x68] sm:$0xf]
      %v9744 = vld [vmem:[%s4 + $0x6c] sm:$0xf]
      %v9745 = vld [vmem:[%s4 + $0x70] sm:$0xf]
      %v9746 = vld [vmem:[%s4 + $0x74] sm:$0xf]
      %v9747 = vld [vmem:[%s4 + $0x78] sm:$0xf]
      %v9748 = vld [vmem:[%s4 + $0x7c] sm:$0xf]
      %v9749 = vld [vmem:[%s4 + $0x80] sm:$0xf]
      %v9750 = vld [vmem:[%s4 + $0x84] sm:$0xf]
      %v9751 = vld [vmem:[%s4 + $0x88] sm:$0xf]
      %v9752 = vld [vmem:[%s4 + $0x8c] sm:$0xf]
      %v9753 = vld [vmem:[%s4 + $0x90] sm:$0xf]
      %v9754 = vld [vmem:[%s4 + $0x94] sm:$0xf]
      %v9755 = vld [vmem:[%s4 + $0x98] sm:$0xf]
      %v9756 = vld [vmem:[%s4 + $0x9c] sm:$0xf]
      %v9757 = vld [vmem:[%s14] sm:$0x1]
      %v9759 = vperm.slane %v9757, 0
      %v9801 = vunpack.c.l.b16 %v9717
      %v9802 = vunpack.c.l.b16 %v9718
      %v9803 = vunpack.c.l.b16 %v9719
      %v9804 = vunpack.c.l.b16 %v9720
      %v9805 = vunpack.c.l.b16 %v9721
      %v9806 = vunpack.c.l.b16 %v9722
      %v9807 = vunpack.c.l.b16 %v9723
      %v9808 = vunpack.c.l.b16 %v9724
      %v9809 = vunpack.c.l.b16 %v9725
      %v9810 = vunpack.c.l.b16 %v9726
      %v9811 = vunpack.c.l.b16 %v9727
      %v9812 = vunpack.c.l.b16 %v9728
      %v9813 = vunpack.c.l.b16 %v9729
      %v9814 = vunpack.c.l.b16 %v9730
      %v9815 = vunpack.c.l.b16 %v9731
      %v9816 = vunpack.c.l.b16 %v9732
      %v9817 = vunpack.c.l.b16 %v9733
      %v9818 = vunpack.c.l.b16 %v9734
      %v9819 = vunpack.c.l.b16 %v9735
      %v9820 = vunpack.c.l.b16 %v9736
      %v9821 = vunpack.c.l.b16 %v9737
      %v9822 = vunpack.c.l.b16 %v9738
      %v9823 = vunpack.c.l.b16 %v9739
      %v9824 = vunpack.c.l.b16 %v9740
      %v9825 = vunpack.c.l.b16 %v9741
      %v9826 = vunpack.c.l.b16 %v9742
      %v9827 = vunpack.c.l.b16 %v9743
      %v9828 = vunpack.c.l.b16 %v9744
      %v9829 = vunpack.c.l.b16 %v9745
      %v9830 = vunpack.c.l.b16 %v9746
      %v9831 = vunpack.c.l.b16 %v9747
      %v9832 = vunpack.c.l.b16 %v9748
      %v9833 = vunpack.c.l.b16 %v9749
      %v9834 = vunpack.c.l.b16 %v9750
      %v9835 = vunpack.c.l.b16 %v9751
      %v9836 = vunpack.c.l.b16 %v9752
      %v9837 = vunpack.c.l.b16 %v9753
      %v9838 = vunpack.c.l.b16 %v9754
      %v9839 = vunpack.c.l.b16 %v9755
      %v9840 = vunpack.c.l.b16 %v9756
      %v9841 = vpack.c.b16 %v9802, %v9801
      %v9842 = vpack.c.b16 %v9804, %v9803
      %v9843 = vpack.c.b16 %v9806, %v9805
      %v9844 = vpack.c.b16 %v9808, %v9807
      %v9845 = vpack.c.b16 %v9810, %v9809
      %v9846 = vpack.c.b16 %v9812, %v9811
      %v9847 = vpack.c.b16 %v9814, %v9813
      %v9848 = vpack.c.b16 %v9816, %v9815
      %v9849 = vpack.c.b16 %v9818, %v9817
      %v9850 = vpack.c.b16 %v9820, %v9819
      %v9851 = vpack.c.b16 %v9822, %v9821
      %v9852 = vpack.c.b16 %v9824, %v9823
      %v9853 = vpack.c.b16 %v9826, %v9825
      %v9854 = vpack.c.b16 %v9828, %v9827
      %v9855 = vpack.c.b16 %v9830, %v9829
      %v9856 = vpack.c.b16 %v9832, %v9831
      %v9857 = vpack.c.b16 %v9834, %v9833
      %v9858 = vpack.c.b16 %v9836, %v9835
      %v9859 = vpack.c.b16 %v9838, %v9837
      %v9860 = vpack.c.b16 %v9840, %v9839
      %v9882 = vsel %vm8778, %v9668, 0
      %v9885 = vsel %vm8778, %v9671, 0
      %v9888 = vsel %vm8778, %v9674, 0
      %v9891 = vsel %vm8778, %v9677, 0
      %v9894 = vsel %vm8778, %v9680, 0
      %v9897 = vsel %vm8778, %v9683, 0
      %v9900 = vsel %vm8778, %v9686, 0
      %v9903 = vsel %vm8778, %v9689, 0
      %v9906 = vsel %vm8778, %v9692, 0
      %v9909 = vsel %vm8778, %v9695, 0
      %v9912 = vsel %vm8778, %v9698, 0
      %v9915 = vsel %vm8778, %v9701, 0
      %v9918 = vsel %vm8778, %v9704, 0
      %v9921 = vsel %vm8778, %v9707, 0
      %v9924 = vsel %vm8778, %v9710, 0
      %v9927 = vsel %vm8778, %v9713, 0
      %v9930 = vsel %vm8778, %v9716, 0
      %9932 = vmatpush.bf16.msra.mxu0 %v9848
      %9933 = vmatpush.bf16.msra.mxu0 %v9847
      %9934 = vmatpush.bf16.msra.mxu0 %v9846
      %9935 = vmatpush.bf16.msra.mxu0 %v9845
      %9936 = vmatpush.bf16.msra.mxu0 %v9844
      %9937 = vmatpush.bf16.msra.mxu0 %v9843
      %9938 = vmatpush.bf16.msra.mxu0 %v9842
      %9939 = vmatpush.bf16.msra.mxu0 %v9841
      %9940 = vmatmul.bf16.gmra.mxu0 %v9666
      %v9941 = vpop.f32.mrf.mxu0
      %v9942 = vadd.f32 %v9759, %v9941
      %v9943 = vpop.f32.mrf.mxu0
      %v9944 = vadd.f32 %v9759, %v9943
      %9945 = vmatmul.bf16.gmra.mxu0 %v9669
      %v9946 = vpop.f32.mrf.mxu0
      %v9947 = vadd.f32 %v9759, %v9946
      %v9948 = vpop.f32.mrf.mxu0
      %v9949 = vadd.f32 %v9759, %v9948
      %9950 = vmatmul.bf16.gmra.mxu0 %v9672
      %v9951 = vpop.f32.mrf.mxu0
      %v9952 = vadd.f32 %v9759, %v9951
      %v9953 = vpop.f32.mrf.mxu0
      %v9954 = vadd.f32 %v9759, %v9953
      %9955 = vmatmul.bf16.gmra.mxu0 %v9675
      %v9956 = vpop.f32.mrf.mxu0
      %v9957 = vadd.f32 %v9759, %v9956
      %v9958 = vpop.f32.mrf.mxu0
      %v9959 = vadd.f32 %v9759, %v9958
      %9960 = vmatmul.bf16.gmra.mxu0 %v9678
      %v9961 = vpop.f32.mrf.mxu0
      %v9962 = vadd.f32 %v9759, %v9961
      %v9963 = vpop.f32.mrf.mxu0
      %v9964 = vadd.f32 %v9759, %v9963
      %9965 = vmatmul.bf16.gmra.mxu0 %v9681
      %v9966 = vpop.f32.mrf.mxu0
      %v9967 = vadd.f32 %v9759, %v9966
      %v9968 = vpop.f32.mrf.mxu0
      %v9969 = vadd.f32 %v9759, %v9968
      %9970 = vmatmul.bf16.gmra.mxu0 %v9684
      %v9971 = vpop.f32.mrf.mxu0
      %v9972 = vadd.f32 %v9759, %v9971
      %v9973 = vpop.f32.mrf.mxu0
      %v9974 = vadd.f32 %v9759, %v9973
      %9975 = vmatmul.bf16.gmra.mxu0 %v9687
      %v9976 = vpop.f32.mrf.mxu0
      %v9977 = vadd.f32 %v9759, %v9976
      %v9978 = vpop.f32.mrf.mxu0
      %v9979 = vadd.f32 %v9759, %v9978
      %9980 = vmatmul.bf16.gmra.mxu0 %v9690
      %v9981 = vpop.f32.mrf.mxu0
      %v9982 = vadd.f32 %v9759, %v9981
      %v9983 = vpop.f32.mrf.mxu0
      %v9984 = vadd.f32 %v9759, %v9983
      %9985 = vmatmul.bf16.gmra.mxu0 %v9693
      %v9986 = vpop.f32.mrf.mxu0
      %v9987 = vadd.f32 %v9759, %v9986
      %v9988 = vpop.f32.mrf.mxu0
      %v9989 = vadd.f32 %v9759, %v9988
      %9990 = vmatmul.bf16.gmra.mxu0 %v9696
      %v9991 = vpop.f32.mrf.mxu0
      %v9992 = vadd.f32 %v9759, %v9991
      %v9993 = vpop.f32.mrf.mxu0
      %v9994 = vadd.f32 %v9759, %v9993
      %9995 = vmatmul.bf16.gmra.mxu0 %v9699
      %v9996 = vpop.f32.mrf.mxu0
      %v9997 = vadd.f32 %v9759, %v9996
      %v9998 = vpop.f32.mrf.mxu0
      %v9999 = vadd.f32 %v9759, %v9998
      %10000 = vmatmul.bf16.gmra.mxu0 %v9702
      %v10001 = vpop.f32.mrf.mxu0
      %v10002 = vadd.f32 %v9759, %v10001
      %v10003 = vpop.f32.mrf.mxu0
      %v10004 = vadd.f32 %v9759, %v10003
      %10005 = vmatmul.bf16.gmra.mxu0 %v9705
      %v10006 = vpop.f32.mrf.mxu0
      %v10007 = vadd.f32 %v9759, %v10006
      %v10008 = vpop.f32.mrf.mxu0
      %v10009 = vadd.f32 %v9759, %v10008
      %10010 = vmatmul.bf16.gmra.mxu0 %v9708
      %v10011 = vpop.f32.mrf.mxu0
      %v10012 = vadd.f32 %v9759, %v10011
      %v10013 = vpop.f32.mrf.mxu0
      %v10014 = vadd.f32 %v9759, %v10013
      %10015 = vmatmul.bf16.gmra.mxu0 %v9711
      %v10016 = vpop.f32.mrf.mxu0
      %v10017 = vadd.f32 %v9759, %v10016
      %v10018 = vpop.f32.mrf.mxu0
      %v10019 = vadd.f32 %v9759, %v10018
      %10020 = vmatmul.bf16.gmra.mxu0 %v9714
      %v10021 = vpop.f32.mrf.mxu0
      %v10022 = vadd.f32 %v9759, %v10021
      %v10023 = vpop.f32.mrf.mxu0
      %v10024 = vadd.f32 %v9759, %v10023
      %10025 = vdwg.mxu0
      %10026 = vmatpush.bf16.msra.mxu0 %v9856
      %10027 = vmatpush.bf16.msra.mxu0 %v9855
      %10028 = vmatpush.bf16.msra.mxu0 %v9854
      %10029 = vmatpush.bf16.msra.mxu0 %v9853
      %10030 = vmatpush.bf16.msra.mxu0 %v9852
      %10031 = vmatpush.bf16.msra.mxu0 %v9851
      %10032 = vmatpush.bf16.msra.mxu0 %v9850
      %10033 = vmatpush.bf16.msra.mxu0 %v9849
      %10034 = vmatmul.bf16.gmra.mxu0 %v9667
      %v10035 = vpop.f32.mrf.mxu0
      %v10036 = vadd.f32 %v9942, %v10035
      %v10037 = vpop.f32.mrf.mxu0
      %v10038 = vadd.f32 %v9944, %v10037
      %10039 = vmatmul.bf16.gmra.mxu0 %v9670
      %v10040 = vpop.f32.mrf.mxu0
      %v10041 = vadd.f32 %v9947, %v10040
      %v10042 = vpop.f32.mrf.mxu0
      %v10043 = vadd.f32 %v9949, %v10042
      %10044 = vmatmul.bf16.gmra.mxu0 %v9673
      %v10045 = vpop.f32.mrf.mxu0
      %v10046 = vadd.f32 %v9952, %v10045
      %v10047 = vpop.f32.mrf.mxu0
      %v10048 = vadd.f32 %v9954, %v10047
      %10049 = vmatmul.bf16.gmra.mxu0 %v9676
      %v10050 = vpop.f32.mrf.mxu0
      %v10051 = vadd.f32 %v9957, %v10050
      %v10052 = vpop.f32.mrf.mxu0
      %v10053 = vadd.f32 %v9959, %v10052
      %10054 = vmatmul.bf16.gmra.mxu0 %v9679
      %v10055 = vpop.f32.mrf.mxu0
      %v10056 = vadd.f32 %v9962, %v10055
      %v10057 = vpop.f32.mrf.mxu0
      %v10058 = vadd.f32 %v9964, %v10057
      %10059 = vmatmul.bf16.gmra.mxu0 %v9682
      %v10060 = vpop.f32.mrf.mxu0
      %v10061 = vadd.f32 %v9967, %v10060
      %v10062 = vpop.f32.mrf.mxu0
      %v10063 = vadd.f32 %v9969, %v10062
      %10064 = vmatmul.bf16.gmra.mxu0 %v9685
      %v10065 = vpop.f32.mrf.mxu0
      %v10066 = vadd.f32 %v9972, %v10065
      %v10067 = vpop.f32.mrf.mxu0
      %v10068 = vadd.f32 %v9974, %v10067
      %10069 = vmatmul.bf16.gmra.mxu0 %v9688
      %v10070 = vpop.f32.mrf.mxu0
      %v10071 = vadd.f32 %v9977, %v10070
      %v10072 = vpop.f32.mrf.mxu0
      %v10073 = vadd.f32 %v9979, %v10072
      %10074 = vmatmul.bf16.gmra.mxu0 %v9691
      %v10075 = vpop.f32.mrf.mxu0
      %v10076 = vadd.f32 %v9982, %v10075
      %v10077 = vpop.f32.mrf.mxu0
      %v10078 = vadd.f32 %v9984, %v10077
      %10079 = vmatmul.bf16.gmra.mxu0 %v9694
      %v10080 = vpop.f32.mrf.mxu0
      %v10081 = vadd.f32 %v9987, %v10080
      %v10082 = vpop.f32.mrf.mxu0
      %v10083 = vadd.f32 %v9989, %v10082
      %10084 = vmatmul.bf16.gmra.mxu0 %v9697
      %v10085 = vpop.f32.mrf.mxu0
      %v10086 = vadd.f32 %v9992, %v10085
      %v10087 = vpop.f32.mrf.mxu0
      %v10088 = vadd.f32 %v9994, %v10087
      %10089 = vmatmul.bf16.gmra.mxu0 %v9700
      %v10090 = vpop.f32.mrf.mxu0
      %v10091 = vadd.f32 %v9997, %v10090
      %v10092 = vpop.f32.mrf.mxu0
      %v10093 = vadd.f32 %v9999, %v10092
      %10094 = vmatmul.bf16.gmra.mxu0 %v9703
      %v10095 = vpop.f32.mrf.mxu0
      %v10096 = vadd.f32 %v10002, %v10095
      %v10097 = vpop.f32.mrf.mxu0
      %v10098 = vadd.f32 %v10004, %v10097
      %10099 = vmatmul.bf16.gmra.mxu0 %v9706
      %v10100 = vpop.f32.mrf.mxu0
      %v10101 = vadd.f32 %v10007, %v10100
      %v10102 = vpop.f32.mrf.mxu0
      %v10103 = vadd.f32 %v10009, %v10102
      %10104 = vmatmul.bf16.gmra.mxu0 %v9709
      %v10105 = vpop.f32.mrf.mxu0
      %v10106 = vadd.f32 %v10012, %v10105
      %v10107 = vpop.f32.mrf.mxu0
      %v10108 = vadd.f32 %v10014, %v10107
      %10109 = vmatmul.bf16.gmra.mxu0 %v9712
      %v10110 = vpop.f32.mrf.mxu0
      %v10111 = vadd.f32 %v10017, %v10110
      %v10112 = vpop.f32.mrf.mxu0
      %v10113 = vadd.f32 %v10019, %v10112
      %10114 = vmatmul.bf16.gmra.mxu0 %v9715
      %v10115 = vpop.f32.mrf.mxu0
      %v10116 = vadd.f32 %v10022, %v10115
      %v10117 = vpop.f32.mrf.mxu0
      %v10118 = vadd.f32 %v10024, %v10117
      %10119 = vdwg.mxu0
      %10120 = vmatpush.bf16.msra.mxu0 0
      %10121 = vmatpush.bf16.msra.mxu0 0
      %10122 = vmatpush.bf16.msra.mxu0 0
      %10123 = vmatpush.bf16.msra.mxu0 0
      %10124 = vmatpush.bf16.msra.mxu0 %v9860
      %10125 = vmatpush.bf16.msra.mxu0 %v9859
      %10126 = vmatpush.bf16.msra.mxu0 %v9858
      %10127 = vmatpush.bf16.msra.mxu0 %v9857
      %10128 = vmatmul.bf16.gmra.mxu0 %v9882
      %v10129 = vpop.f32.mrf.mxu0
      %v10130 = vadd.f32 %v10036, %v10129
      %v10131 = vpop.f32.mrf.mxu0
      %v10132 = vadd.f32 %v10038, %v10131
      %10133 = vmatmul.bf16.gmra.mxu0 %v9885
      %v10134 = vpop.f32.mrf.mxu0
      %v10135 = vadd.f32 %v10041, %v10134
      %v10136 = vpop.f32.mrf.mxu0
      %v10137 = vadd.f32 %v10043, %v10136
      %10138 = vmatmul.bf16.gmra.mxu0 %v9888
      %v10139 = vpop.f32.mrf.mxu0
      %v10140 = vadd.f32 %v10046, %v10139
      %v10141 = vpop.f32.mrf.mxu0
      %v10142 = vadd.f32 %v10048, %v10141
      %10143 = vmatmul.bf16.gmra.mxu0 %v9891
      %v10144 = vpop.f32.mrf.mxu0
      %v10145 = vadd.f32 %v10051, %v10144
      %v10146 = vpop.f32.mrf.mxu0
      %v10147 = vadd.f32 %v10053, %v10146
      %10148 = vmatmul.bf16.gmra.mxu0 %v9894
      %v10149 = vpop.f32.mrf.mxu0
      %v10150 = vadd.f32 %v10056, %v10149
      %v10151 = vpop.f32.mrf.mxu0
      %v10152 = vadd.f32 %v10058, %v10151
      %10153 = vmatmul.bf16.gmra.mxu0 %v9897
      %v10154 = vpop.f32.mrf.mxu0
      %v10155 = vadd.f32 %v10061, %v10154
      %v10156 = vpop.f32.mrf.mxu0
      %v10157 = vadd.f32 %v10063, %v10156
      %10158 = vmatmul.bf16.gmra.mxu0 %v9900
      %v10159 = vpop.f32.mrf.mxu0
      %v10160 = vadd.f32 %v10066, %v10159
      %v10161 = vpop.f32.mrf.mxu0
      %v10162 = vadd.f32 %v10068, %v10161
      %10163 = vmatmul.bf16.gmra.mxu0 %v9903
      %v10164 = vpop.f32.mrf.mxu0
      %v10165 = vadd.f32 %v10071, %v10164
      %v10166 = vpop.f32.mrf.mxu0
      %v10167 = vadd.f32 %v10073, %v10166
      %10168 = vmatmul.bf16.gmra.mxu0 %v9906
      %v10169 = vpop.f32.mrf.mxu0
      %v10170 = vadd.f32 %v10076, %v10169
      %v10171 = vpop.f32.mrf.mxu0
      %v10172 = vadd.f32 %v10078, %v10171
      %10173 = vmatmul.bf16.gmra.mxu0 %v9909
      %v10174 = vpop.f32.mrf.mxu0
      %v10175 = vadd.f32 %v10081, %v10174
      %v10176 = vpop.f32.mrf.mxu0
      %v10177 = vadd.f32 %v10083, %v10176
      %10178 = vmatmul.bf16.gmra.mxu0 %v9912
      %v10179 = vpop.f32.mrf.mxu0
      %v10180 = vadd.f32 %v10086, %v10179
      %v10181 = vpop.f32.mrf.mxu0
      %v10182 = vadd.f32 %v10088, %v10181
      %10183 = vmatmul.bf16.gmra.mxu0 %v9915
      %v10184 = vpop.f32.mrf.mxu0
      %v10185 = vadd.f32 %v10091, %v10184
      %v10186 = vpop.f32.mrf.mxu0
      %v10187 = vadd.f32 %v10093, %v10186
      %10188 = vmatmul.bf16.gmra.mxu0 %v9918
      %v10189 = vpop.f32.mrf.mxu0
      %v10190 = vadd.f32 %v10096, %v10189
      %v10191 = vpop.f32.mrf.mxu0
      %v10192 = vadd.f32 %v10098, %v10191
      %10193 = vmatmul.bf16.gmra.mxu0 %v9921
      %v10194 = vpop.f32.mrf.mxu0
      %v10195 = vadd.f32 %v10101, %v10194
      %v10196 = vpop.f32.mrf.mxu0
      %v10197 = vadd.f32 %v10103, %v10196
      %10198 = vmatmul.bf16.gmra.mxu0 %v9924
      %v10199 = vpop.f32.mrf.mxu0
      %v10200 = vadd.f32 %v10106, %v10199
      %v10201 = vpop.f32.mrf.mxu0
      %v10202 = vadd.f32 %v10108, %v10201
      %10203 = vmatmul.bf16.gmra.mxu0 %v9927
      %v10204 = vpop.f32.mrf.mxu0
      %v10205 = vadd.f32 %v10111, %v10204
      %v10206 = vpop.f32.mrf.mxu0
      %v10207 = vadd.f32 %v10113, %v10206
      %10208 = vmatmul.bf16.gmra.mxu0 %v9930
      %v10209 = vpop.f32.mrf.mxu0
      %v10210 = vadd.f32 %v10116, %v10209
      %v10211 = vpop.f32.mrf.mxu0
      %v10212 = vadd.f32 %v10118, %v10211
      %10213 = vdwg.mxu0
      %v10214 = vmax.f32 %v10130, 0.0
      %v10215 = vmax.f32 %v10132, 0.0
      %v10216 = vmax.f32 %v10135, 0.0
      %v10217 = vmax.f32 %v10137, 0.0
      %v10218 = vmax.f32 %v10140, 0.0
      %v10219 = vmax.f32 %v10142, 0.0
      %v10220 = vmax.f32 %v10145, 0.0
      %v10221 = vmax.f32 %v10147, 0.0
      %v10222 = vmax.f32 %v10150, 0.0
      %v10223 = vmax.f32 %v10152, 0.0
      %v10224 = vmax.f32 %v10155, 0.0
      %v10225 = vmax.f32 %v10157, 0.0
      %v10226 = vmax.f32 %v10160, 0.0
      %v10227 = vmax.f32 %v10162, 0.0
      %v10228 = vmax.f32 %v10165, 0.0
      %v10229 = vmax.f32 %v10167, 0.0
      %v10230 = vmax.f32 %v10170, 0.0
      %v10231 = vmax.f32 %v10172, 0.0
      %v10232 = vmax.f32 %v10175, 0.0
      %v10233 = vmax.f32 %v10177, 0.0
      %v10234 = vmax.f32 %v10180, 0.0
      %v10235 = vmax.f32 %v10182, 0.0
      %v10236 = vmax.f32 %v10185, 0.0
      %v10237 = vmax.f32 %v10187, 0.0
      %v10238 = vmax.f32 %v10190, 0.0
      %v10239 = vmax.f32 %v10192, 0.0
      %v10240 = vmax.f32 %v10195, 0.0
      %v10241 = vmax.f32 %v10197, 0.0
      %v10242 = vmax.f32 %v10200, 0.0
      %v10243 = vmax.f32 %v10202, 0.0
      %v10244 = vmax.f32 %v10205, 0.0
      %v10245 = vmax.f32 %v10207, 0.0
      %v10246 = vmax.f32 %v10210, 0.0
      %v10247 = vmax.f32 %v10212, 0.0
      %vm10248 = vcmask 261120
      %v10249 = vsel %vm10248, %v10214, -inf
      %10250 = vmax.xlane.f32.xlu0 %v10249
      %v10251 = vpop.xlane.xlu0 %10250
      %v10252 = vsel %vm10248, %v10215, -inf
      %10253 = vmax.xlane.f32.xlu0 %v10252
      %v10254 = vpop.xlane.xlu0 %10253
      %v10255 = vsel %vm10248, %v10216, -inf
      %10256 = vmax.xlane.f32.xlu0 %v10255
      %v10257 = vpop.xlane.xlu0 %10256
      %v10258 = vsel %vm10248, %v10217, -inf
      %10259 = vmax.xlane.f32.xlu0 %v10258
      %v10260 = vpop.xlane.xlu0 %10259
      %v10261 = vsel %vm10248, %v10218, -inf
      %10262 = vmax.xlane.f32.xlu0 %v10261
      %v10263 = vpop.xlane.xlu0 %10262
      %v10264 = vsel %vm10248, %v10219, -inf
      %10265 = vmax.xlane.f32.xlu0 %v10264
      %v10266 = vpop.xlane.xlu0 %10265
      %v10267 = vsel %vm10248, %v10220, -inf
      %10268 = vmax.xlane.f32.xlu0 %v10267
      %v10269 = vpop.xlane.xlu0 %10268
      %v10270 = vsel %vm10248, %v10221, -inf
      %10271 = vmax.xlane.f32.xlu0 %v10270
      %v10272 = vpop.xlane.xlu0 %10271
      %v10273 = vsel %vm10248, %v10222, -inf
      %10274 = vmax.xlane.f32.xlu0 %v10273
      %v10275 = vpop.xlane.xlu0 %10274
      %v10276 = vsel %vm10248, %v10223, -inf
      %10277 = vmax.xlane.f32.xlu0 %v10276
      %v10278 = vpop.xlane.xlu0 %10277
      %v10279 = vsel %vm10248, %v10224, -inf
      %10280 = vmax.xlane.f32.xlu0 %v10279
      %v10281 = vpop.xlane.xlu0 %10280
      %v10282 = vsel %vm10248, %v10225, -inf
      %10283 = vmax.xlane.f32.xlu0 %v10282
      %v10284 = vpop.xlane.xlu0 %10283
      %v10285 = vsel %vm10248, %v10226, -inf
      %10286 = vmax.xlane.f32.xlu0 %v10285
      %v10287 = vpop.xlane.xlu0 %10286
      %v10288 = vsel %vm10248, %v10227, -inf
      %10289 = vmax.xlane.f32.xlu0 %v10288
      %v10290 = vpop.xlane.xlu0 %10289
      %v10291 = vsel %vm10248, %v10228, -inf
      %10292 = vmax.xlane.f32.xlu0 %v10291
      %v10293 = vpop.xlane.xlu0 %10292
      %v10294 = vsel %vm10248, %v10229, -inf
      %10295 = vmax.xlane.f32.xlu0 %v10294
      %v10296 = vpop.xlane.xlu0 %10295
      %v10297 = vsel %vm10248, %v10230, -inf
      %10298 = vmax.xlane.f32.xlu0 %v10297
      %v10299 = vpop.xlane.xlu0 %10298
      %v10300 = vsel %vm10248, %v10231, -inf
      %10301 = vmax.xlane.f32.xlu0 %v10300
      %v10302 = vpop.xlane.xlu0 %10301
      %v10303 = vsel %vm10248, %v10232, -inf
      %10304 = vmax.xlane.f32.xlu0 %v10303
      %v10305 = vpop.xlane.xlu0 %10304
      %v10306 = vsel %vm10248, %v10233, -inf
      %10307 = vmax.xlane.f32.xlu0 %v10306
      %v10308 = vpop.xlane.xlu0 %10307
      %v10309 = vsel %vm10248, %v10234, -inf
      %10310 = vmax.xlane.f32.xlu0 %v10309
      %v10311 = vpop.xlane.xlu0 %10310
      %v10312 = vsel %vm10248, %v10235, -inf
      %10313 = vmax.xlane.f32.xlu0 %v10312
      %v10314 = vpop.xlane.xlu0 %10313
      %v10315 = vsel %vm10248, %v10236, -inf
      %10316 = vmax.xlane.f32.xlu0 %v10315
      %v10317 = vpop.xlane.xlu0 %10316
      %v10318 = vsel %vm10248, %v10237, -inf
      %10319 = vmax.xlane.f32.xlu0 %v10318
      %v10320 = vpop.xlane.xlu0 %10319
      %v10321 = vsel %vm10248, %v10238, -inf
      %10322 = vmax.xlane.f32.xlu0 %v10321
      %v10323 = vpop.xlane.xlu0 %10322
      %v10324 = vsel %vm10248, %v10239, -inf
      %10325 = vmax.xlane.f32.xlu0 %v10324
      %v10326 = vpop.xlane.xlu0 %10325
      %v10327 = vsel %vm10248, %v10240, -inf
      %10328 = vmax.xlane.f32.xlu0 %v10327
      %v10329 = vpop.xlane.xlu0 %10328
      %v10330 = vsel %vm10248, %v10241, -inf
      %10331 = vmax.xlane.f32.xlu0 %v10330
      %v10332 = vpop.xlane.xlu0 %10331
      %v10333 = vsel %vm10248, %v10242, -inf
      %10334 = vmax.xlane.f32.xlu0 %v10333
      %v10335 = vpop.xlane.xlu0 %10334
      %v10336 = vsel %vm10248, %v10243, -inf
      %10337 = vmax.xlane.f32.xlu0 %v10336
      %v10338 = vpop.xlane.xlu0 %10337
      %v10339 = vsel %vm10248, %v10244, -inf
      %10340 = vmax.xlane.f32.xlu0 %v10339
      %v10341 = vpop.xlane.xlu0 %10340
      %v10342 = vsel %vm10248, %v10245, -inf
      %10343 = vmax.xlane.f32.xlu0 %v10342
      %v10344 = vpop.xlane.xlu0 %10343
      %v10345 = vsel %vm10248, %v10246, -inf
      %10346 = vmax.xlane.f32.xlu0 %v10345
      %v10347 = vpop.xlane.xlu0 %10346
      %v10348 = vsel %vm10248, %v10247, -inf
      %10349 = vmax.xlane.f32.xlu0 %v10348
      %v10350 = vpop.xlane.xlu0 %10349
      %v10351 = vld [vmem:[%s15] sm:$0xff]
      %v10352 = vld [vmem:[%s15 + $0x8] sm:$0xff]
      %v10353 = vld [vmem:[%s15 + $0x10] sm:$0xff]
      %v10354 = vld [vmem:[%s15 + $0x18] sm:$0xff]
      %v10355 = vld [vmem:[%s15 + $0x20] sm:$0xff]
      %v10356 = vld [vmem:[%s15 + $0x28] sm:$0xff]
      %v10357 = vld [vmem:[%s15 + $0x30] sm:$0xff]
      %v10358 = vld [vmem:[%s15 + $0x38] sm:$0xff]
      %v10359 = vld [vmem:[%s15 + $0x40] sm:$0xff]
      %v10360 = vld [vmem:[%s15 + $0x48] sm:$0xff]
      %v10361 = vld [vmem:[%s15 + $0x50] sm:$0xff]
      %v10362 = vld [vmem:[%s15 + $0x58] sm:$0xff]
      %v10363 = vld [vmem:[%s15 + $0x60] sm:$0xff]
      %v10364 = vld [vmem:[%s15 + $0x68] sm:$0xff]
      %v10365 = vld [vmem:[%s15 + $0x70] sm:$0xff]
      %v10366 = vld [vmem:[%s15 + $0x78] sm:$0xff]
      %v10367 = vld [vmem:[%s15 + $0x80] sm:$0xff]
      %v10368 = vld [vmem:[%s15 + $0x88] sm:$0xff]
      %v10369 = vld [vmem:[%s15 + $0x90] sm:$0xff]
      %v10370 = vld [vmem:[%s15 + $0x98] sm:$0xff]
      %v10371 = vld [vmem:[%s15 + $0xa0] sm:$0xff]
      %v10372 = vld [vmem:[%s15 + $0xa8] sm:$0xff]
      %v10373 = vld [vmem:[%s15 + $0xb0] sm:$0xff]
      %v10374 = vld [vmem:[%s15 + $0xb8] sm:$0xff]
      %v10375 = vld [vmem:[%s15 + $0xc0] sm:$0xff]
      %v10376 = vld [vmem:[%s15 + $0xc8] sm:$0xff]
      %v10377 = vld [vmem:[%s15 + $0xd0] sm:$0xff]
      %v10378 = vld [vmem:[%s15 + $0xd8] sm:$0xff]
      %v10379 = vld [vmem:[%s15 + $0xe0] sm:$0xff]
      %v10380 = vld [vmem:[%s15 + $0xe8] sm:$0xff]
      %v10381 = vld [vmem:[%s15 + $0xf0] sm:$0xff]
      %v10382 = vld [vmem:[%s15 + $0xf8] sm:$0xff]
      %v10383 = vld [vmem:[%s15 + $0x100] sm:$0xff]
      %v10384 = vld [vmem:[%s15 + $0x108] sm:$0xff]
      %v10385 = vmul.f32 %v10251, %v10351
      %v10386 = vmul.f32 %v10254, %v10352
      %v10387 = vmul.f32 %v10257, %v10353
      %v10388 = vmul.f32 %v10260, %v10354
      %v10389 = vmul.f32 %v10263, %v10355
      %v10390 = vmul.f32 %v10266, %v10356
      %v10391 = vmul.f32 %v10269, %v10357
      %v10392 = vmul.f32 %v10272, %v10358
      %v10393 = vmul.f32 %v10275, %v10359
      %v10394 = vmul.f32 %v10278, %v10360
      %v10395 = vmul.f32 %v10281, %v10361
      %v10396 = vmul.f32 %v10284, %v10362
      %v10397 = vmul.f32 %v10287, %v10363
      %v10398 = vmul.f32 %v10290, %v10364
      %v10399 = vmul.f32 %v10293, %v10365
      %v10400 = vmul.f32 %v10296, %v10366
      %v10401 = vmul.f32 %v10299, %v10367
      %v10402 = vmul.f32 %v10302, %v10368
      %v10403 = vmul.f32 %v10305, %v10369
      %v10404 = vmul.f32 %v10308, %v10370
      %v10405 = vmul.f32 %v10311, %v10371
      %v10406 = vmul.f32 %v10314, %v10372
      %v10407 = vmul.f32 %v10317, %v10373
      %v10408 = vmul.f32 %v10320, %v10374
      %v10409 = vmul.f32 %v10323, %v10375
      %v10410 = vmul.f32 %v10326, %v10376
      %v10411 = vmul.f32 %v10329, %v10377
      %v10412 = vmul.f32 %v10332, %v10378
      %v10413 = vmul.f32 %v10335, %v10379
      %v10414 = vmul.f32 %v10338, %v10380
      %v10415 = vmul.f32 %v10341, %v10381
      %v10416 = vmul.f32 %v10344, %v10382
      %v10417 = vmul.f32 %v10347, %v10383
      %v10418 = vmul.f32 %v10350, %v10384
      %vm10419 = vcmask 31744
      %v10420 = vsel %vm10419, %v10385, 0.0
      %v10421 = vsel %vm10419, %v10386, 0.0
      %v10422 = vadd.f32 %v10420, %v10421
      %v10423 = vsel %vm10419, %v10387, 0.0
      %v10424 = vadd.f32 %v10422, %v10423
      %v10425 = vsel %vm10419, %v10388, 0.0
      %v10426 = vadd.f32 %v10424, %v10425
      %v10427 = vsel %vm10419, %v10389, 0.0
      %v10428 = vadd.f32 %v10426, %v10427
      %v10429 = vsel %vm10419, %v10390, 0.0
      %v10430 = vadd.f32 %v10428, %v10429
      %v10431 = vsel %vm10419, %v10391, 0.0
      %v10432 = vadd.f32 %v10430, %v10431
      %v10433 = vsel %vm10419, %v10392, 0.0
      %v10434 = vadd.f32 %v10432, %v10433
      %v10435 = vsel %vm10419, %v10393, 0.0
      %v10436 = vadd.f32 %v10434, %v10435
      %v10437 = vsel %vm10419, %v10394, 0.0
      %v10438 = vadd.f32 %v10436, %v10437
      %v10439 = vsel %vm10419, %v10395, 0.0
      %v10440 = vadd.f32 %v10438, %v10439
      %v10441 = vsel %vm10419, %v10396, 0.0
      %v10442 = vadd.f32 %v10440, %v10441
      %v10443 = vsel %vm10419, %v10397, 0.0
      %v10444 = vadd.f32 %v10442, %v10443
      %v10445 = vsel %vm10419, %v10398, 0.0
      %v10446 = vadd.f32 %v10444, %v10445
      %v10447 = vsel %vm10419, %v10399, 0.0
      %v10448 = vadd.f32 %v10446, %v10447
      %v10449 = vsel %vm10419, %v10400, 0.0
      %v10450 = vadd.f32 %v10448, %v10449
      %v10451 = vsel %vm10419, %v10401, 0.0
      %v10452 = vadd.f32 %v10450, %v10451
      %v10453 = vsel %vm10419, %v10402, 0.0
      %v10454 = vadd.f32 %v10452, %v10453
      %v10455 = vsel %vm10419, %v10403, 0.0
      %v10456 = vadd.f32 %v10454, %v10455
      %v10457 = vsel %vm10419, %v10404, 0.0
      %v10458 = vadd.f32 %v10456, %v10457
      %v10459 = vsel %vm10419, %v10405, 0.0
      %v10460 = vadd.f32 %v10458, %v10459
      %v10461 = vsel %vm10419, %v10406, 0.0
      %v10462 = vadd.f32 %v10460, %v10461
      %v10463 = vsel %vm10419, %v10407, 0.0
      %v10464 = vadd.f32 %v10462, %v10463
      %v10465 = vsel %vm10419, %v10408, 0.0
      %v10466 = vadd.f32 %v10464, %v10465
      %v10467 = vsel %vm10419, %v10409, 0.0
      %v10468 = vadd.f32 %v10466, %v10467
      %v10469 = vsel %vm10419, %v10410, 0.0
      %v10470 = vadd.f32 %v10468, %v10469
      %v10471 = vsel %vm10419, %v10411, 0.0
      %v10472 = vadd.f32 %v10470, %v10471
      %v10473 = vsel %vm10419, %v10412, 0.0
      %v10474 = vadd.f32 %v10472, %v10473
      %v10475 = vsel %vm10419, %v10413, 0.0
      %v10476 = vadd.f32 %v10474, %v10475
      %v10477 = vsel %vm10419, %v10414, 0.0
      %v10478 = vadd.f32 %v10476, %v10477
      %v10479 = vsel %vm10419, %v10415, 0.0
      %v10480 = vadd.f32 %v10478, %v10479
      %v10481 = vsel %vm10419, %v10416, 0.0
      %v10482 = vadd.f32 %v10480, %v10481
      %v10483 = vsel %vm10419, %v10417, 0.0
      %v10484 = vadd.f32 %v10482, %v10483
      %v10485 = vsel %vm10419, %v10418, 0.0
      %v10486 = vadd.f32 %v10484, %v10485
      %v10487 = vrot.slane %v10486, 4
      %v10488 = vadd.f32 %v10486, %v10487
      %v10489 = vrot.slane %v10488, 2
      %v10490 = vadd.f32 %v10488, %v10489
      %v10491 = vrot.slane %v10490, 1
      %v10492 = vadd.f32 %v10490, %v10491
      %vm10493 = vcmask 24576
      %10494 = vst.msk [vmem:[%s517] sm:$0x1] %vm10493, %v10492
      %p10495 = scmp.lt.s32.totalorder %s27, 1
      %s10496 = scalar_select %p10495, %s27, 1
      %s10497 = scalar_lea.vmem %s16, %s10496
      // Predicated region
      $region85: #{_lambda_.1} parent=83 // pred_check
        %p10498 = pneg %p386
      $region86: #{_lambda_.1} parent=83 // pred_check_branch
        %10500 = sbr.rel (%p10498) target = $region88
      $region87: #{_lambda_.1} parent=83 // pred_region
        _
      $region88: #{_lambda_.1} parent=83 // pred_fallthru
        _
    $region84: #{_lambda_.1} parent=5 // pred_fallthru
      _
    %p10501 = scmp.le.s32.totalorder 2, %s22
    // Predicated region
    $region89: #{_lambda_.1} parent=5 // pred_check
      %p10502 = pneg %p10501
    $region90: #{_lambda_.1} parent=5 // pred_check_branch
      %10504 = sbr.rel (%p10502) target = $region92
    $region91: #{_lambda_.1} parent=5 // pred_region
      %s10505 = ssub.s32 %s22, 2
      // Predicated region
      $region93: #{_lambda_.1} parent=91 // pred_check
        %p10506 = pneg %p392
      $region94: #{_lambda_.1} parent=91 // pred_check_branch
        %10508 = sbr.rel (%p10506) target = $region96
      $region95: #{_lambda_.1} parent=91 // pred_region
        %p10509 = scmp.lt.s32.totalorder %s28, 1
        %s10510 = scalar_select %p10509, %s28, 1
        %s10511 = scalar_lea.vmem %s16, %s10510
      $region96: #{_lambda_.1} parent=91 // pred_fallthru
        _
    $region92: #{_lambda_.1} parent=5 // pred_fallthru
      _
  $region6: #{_lambda_.1} parent=0 // loop_footer
    %s26 = sadd.s32 1, %s22
  $region7: #{_lambda_.1} parent=0 // loop_footer_branch
    %21 = sbr.rel target = $region3
  $region8: #{_lambda_.1} parent=0 // loop_exit
    _

</llo_original>
